<compile_context>
chip_gen: v6e
topology: v6e:2x2x1
jax: 0.10.0
libtpu: 0.0.40
codegen_flags: <defaults>
</compile_context>

<pallas_src>
import functools
import math

import jax
import jax.numpy as jnp
from jax.experimental import pallas as pl
from jax.experimental.pallas import tpu as pltpu

NEG_INF = -1e9
LN_EPS = 1e-12                  # BERT-style layer_norm_eps

ACT_DTYPE = jnp.bfloat16        # MXU operand / inter-kernel activation dtype

# Default tile sizes (clamped to the actual extents for small shapes).
TILE_M = 256                    # rows of the flattened (B*S) activations
TILE_N = 512                    # output-feature tile (lane-dense, >=256 MXU width)
TILE_K = 512                    # contraction tile
TILE_Q = 256                    # query-sequence tile in flash attention
TILE_KV = 512                   # key/value-sequence tile in flash attention


def _pick_tile(dim, desired, align):
    """Largest multiple of `align` dividing `dim` that is <= desired; else full dim."""
    if dim <= desired:
        return dim
    t = (desired // align) * align
    while t >= align:
        if dim % t == 0:
            return t
        t -= align
    return dim


# ---------------------------------------------------------------------------
# Exact GELU.  erf via Abramowitz & Stegun 7.1.26 (|err| <= 1.5e-7), using only
# exp / abs / where / polynomial ops that are guaranteed to lower in Mosaic.
# ---------------------------------------------------------------------------
def _erf(x):
    a1, a2, a3, a4, a5 = (0.254829592, -0.284496736, 1.421413741,
                          -1.453152027, 1.061405429)
    p = 0.3275911
    ax = jnp.abs(x)
    t = 1.0 / (1.0 + p * ax)
    poly = ((((a5 * t + a4) * t + a3) * t + a2) * t + a1) * t
    e = 1.0 - poly * jnp.exp(-ax * ax)
    return jnp.where(x >= 0, e, -e)


def _gelu_exact(x):
    return 0.5 * x * (1.0 + _erf(x * 0.7071067811865476))


# ---------------------------------------------------------------------------
# Kernel 1: tiled matmul + bias (+ optional exact GELU).  bf16 in, f32 acc.
# Used for QKV / Q / KV projections and the first FFN layer.
# ---------------------------------------------------------------------------
def _mm_bias_act_kernel(x_ref, w_ref, b_ref, o_ref, acc_ref, *, activation):
    k = pl.program_id(2)

    @pl.when(k == 0)
    def _init():
        acc_ref[...] = jnp.zeros(acc_ref.shape, jnp.float32)

    acc_ref[...] += jnp.dot(x_ref[...], w_ref[...],
                            preferred_element_type=jnp.float32)

    @pl.when(k == pl.num_programs(2) - 1)
    def _finalize():
        y = acc_ref[...] + b_ref[...].astype(jnp.float32)
        if activation == "gelu":
            y = _gelu_exact(y)
        o_ref[...] = y.astype(o_ref.dtype)


def matmul_bias_act(x, w, b, activation=None, out_dtype=ACT_DTYPE):
    M, K = x.shape
    N = w.shape[1]
    tm = _pick_tile(M, TILE_M, 16)     # 16-row alignment: bf16 sublane packing
    tn = _pick_tile(N, TILE_N, 128)
    tk = _pick_tile(K, TILE_K, 128)
    grid = (M // tm, N // tn, K // tk)
    return pl.pallas_call(
        functools.partial(_mm_bias_act_kernel, activation=activation),
        out_shape=jax.ShapeDtypeStruct((M, N), out_dtype),
        grid=grid,
        in_specs=[
            pl.BlockSpec((tm, tk), lambda i, j, k: (i, k)),
            pl.BlockSpec((tk, tn), lambda i, j, k: (k, j)),
            pl.BlockSpec((1, tn), lambda i, j, k: (0, j)),
        ],
        out_specs=pl.BlockSpec((tm, tn), lambda i, j, k: (i, j)),
        scratch_shapes=[pltpu.VMEM((tm, tn), jnp.float32)],
        compiler_params=pltpu.CompilerParams(
            dimension_semantics=("parallel", "parallel", "arbitrary")),
    )(x, w, b)


# ---------------------------------------------------------------------------
# Kernel 2: tiled matmul + bias + residual + LayerNorm.  N (=hidden) untiled so
# the full row is resident for the LayerNorm epilogue.  Used for both attention
# out-projections and the second FFN layer.
# ---------------------------------------------------------------------------
def _mm_res_ln_kernel(x_ref, w_ref, b_ref, r_ref, g_ref, bt_ref,
                      o_ref, acc_ref, *, eps):
    k = pl.program_id(1)

    @pl.when(k == 0)
    def _init():
        acc_ref[...] = jnp.zeros(acc_ref.shape, jnp.float32)

    acc_ref[...] += jnp.dot(x_ref[...], w_ref[...],
                            preferred_element_type=jnp.float32)

    @pl.when(k == pl.num_programs(1) - 1)
    def _finalize():
        y = (acc_ref[...] + b_ref[...].astype(jnp.float32)
             + r_ref[...].astype(jnp.float32))
        mu = jnp.mean(y, axis=-1, keepdims=True)
        var = jnp.mean(jnp.square(y - mu), axis=-1, keepdims=True)
        yn = (y - mu) * jax.lax.rsqrt(var + eps)
        o_ref[...] = (yn * g_ref[...].astype(jnp.float32)
                      + bt_ref[...].astype(jnp.float32)).astype(o_ref.dtype)


def matmul_residual_layernorm(x, w, b, residual, gamma, beta,
                              out_dtype=jnp.float32):
    M, K = x.shape
    N = w.shape[1]
    tm = _pick_tile(M, TILE_M, 16)
    tk = _pick_tile(K, TILE_K, 128)
    grid = (M // tm, K // tk)
    return pl.pallas_call(
        functools.partial(_mm_res_ln_kernel, eps=LN_EPS),
        out_shape=jax.ShapeDtypeStruct((M, N), out_dtype),
        grid=grid,
        in_specs=[
            pl.BlockSpec((tm, tk), lambda i, k: (i, k)),
            pl.BlockSpec((tk, N), lambda i, k: (k, 0)),
            pl.BlockSpec((1, N), lambda i, k: (0, 0)),
            pl.BlockSpec((tm, N), lambda i, k: (i, 0)),
            pl.BlockSpec((1, N), lambda i, k: (0, 0)),
            pl.BlockSpec((1, N), lambda i, k: (0, 0)),
        ],
        out_specs=pl.BlockSpec((tm, N), lambda i, k: (i, 0)),
        scratch_shapes=[pltpu.VMEM((tm, N), jnp.float32)],
        compiler_params=pltpu.CompilerParams(
            dimension_semantics=("parallel", "arbitrary")),
    )(x, w, b, residual, gamma, beta)


# ---------------------------------------------------------------------------
# Kernel 3: flash-style multi-head attention core.
#   q_t : (B, Sq,  Dq)  packed along the last dim  (Dq  in {H, 3H})
#   kv_t: (B, Skv, Dkv) packed along the last dim  (Dkv in {2H, 3H})
#   mask: (B, 1, Sm, Skv) additive, Sm in {1, Sq}, reused across heads
#   out : (B, Sq, H) bf16 (merged-head layout, lane-dense)
# Grid: (B, nh//G, Sq//tq, Skv//tkv), Skv axis last (arbitrary, running stats).
# G heads grouped per step so every lane block is a multiple of 128 wide.
# ---------------------------------------------------------------------------
def _flash_attn_kernel(q_ref, k_ref, v_ref, m_ref, o_ref,
                       m_sc, l_sc, acc_sc, *, heads_per_block, head_dim):
    kv_i = pl.program_id(3)

    @pl.when(kv_i == 0)
    def _init():
        m_sc[...] = jnp.full(m_sc.shape, -jnp.inf, jnp.float32)
        l_sc[...] = jnp.zeros(l_sc.shape, jnp.float32)
        acc_sc[...] = jnp.zeros(acc_sc.shape, jnp.float32)

    mask = m_ref[0, 0].astype(jnp.float32)            # (tqm, tkv); broadcasts if tqm==1

    for g in range(heads_per_block):                   # static unroll, G in {1,2,4}
        sl = slice(g * head_dim, (g + 1) * head_dim)
        q = q_ref[0, :, sl]                            # (tq, hd) bf16 (scale pre-folded)
        k = k_ref[0, :, sl]                            # (tkv, hd)
        v = v_ref[0, :, sl]                            # (tkv, hd)
        s = jax.lax.dot_general(q, k, (((1,), (1,)), ((), ())),
                                preferred_element_type=jnp.float32)  # (tq, tkv)
        s = s + mask
        m_prev = m_sc[:, g:g + 1]
        m_new = jnp.maximum(m_prev, jnp.max(s, axis=-1, keepdims=True))
        alpha = jnp.exp(m_prev - m_new)                # f32 vector math (v5e-safe)
        p = jnp.exp(s - m_new)
        l_sc[:, g:g + 1] = alpha * l_sc[:, g:g + 1] + jnp.sum(p, -1, keepdims=True)
        acc_sc[:, sl] = alpha * acc_sc[:, sl] + jax.lax.dot_general(
            p.astype(v.dtype), v, (((1,), (0,)), ((), ())),
            preferred_element_type=jnp.float32)
        m_sc[:, g:g + 1] = m_new

    @pl.when(kv_i == pl.num_programs(3) - 1)
    def _finalize():
        for g in range(heads_per_block):
            sl = slice(g * head_dim, (g + 1) * head_dim)
            o_ref[0, :, sl] = (acc_sc[:, sl] /
                               l_sc[:, g:g + 1]).astype(o_ref.dtype)   # exact divide


def flash_attention(q_t, kv_t, mask4d, *, nh, hd, q_col0, k_col0, v_col0):
    B, Sq, _ = q_t.shape
    Skv = kv_t.shape[1]
    Sm = mask4d.shape[2]
    H = nh * hd

    if hd % 128 == 0:
        G = 1
    else:
        G = max(1, 128 // hd)
        while G > 1 and nh % G:
            G -= 1
    if (G * hd) % 128 != 0:
        # TODO(synk): support head_dim*group widths that are not 128-lane aligned.
        raise NotImplementedError("head_dim * head-group must be a multiple of 128")
    W = G * hd
    assert q_col0 % W == 0 and k_col0 % W == 0 and v_col0 % W == 0
    qb, kb, vb = q_col0 // W, k_col0 // W, v_col0 // W

    tq = _pick_tile(Sq, TILE_Q, 16)
    tkv = _pick_tile(Skv, TILE_KV, 16)
    tqm = tq if Sm == Sq else 1
    grid = (B, nh // G, Sq // tq, Skv // tkv)

    return pl.pallas_call(
        functools.partial(_flash_attn_kernel, heads_per_block=G, head_dim=hd),
        out_shape=jax.ShapeDtypeStruct((B, Sq, H), ACT_DTYPE),
        grid=grid,
        in_specs=[
            pl.BlockSpec((1, tq, W), lambda b, g, q, kv: (b, q, qb + g)),
            pl.BlockSpec((1, tkv, W), lambda b, g, q, kv: (b, kv, kb + g)),
            pl.BlockSpec((1, tkv, W), lambda b, g, q, kv: (b, kv, vb + g)),
            pl.BlockSpec((1, 1, tqm, tkv),
                         lambda b, g, q, kv: (b, 0, q if Sm == Sq else 0, kv)),
        ],
        out_specs=pl.BlockSpec((1, tq, W), lambda b, g, q, kv: (b, q, g)),
        scratch_shapes=[pltpu.VMEM((tq, G), jnp.float32),     # running max
                        pltpu.VMEM((tq, G), jnp.float32),     # running sum
                        pltpu.VMEM((tq, W), jnp.float32)],    # output accumulator
        compiler_params=pltpu.CompilerParams(
            dimension_semantics=("parallel", "parallel", "parallel", "arbitrary")),
    )(q_t, kv_t, kv_t, mask4d)


# ------------------------------- layer glue -------------------------------

def _self_attention_block(hidden_bf, hidden_res_f32, mask4d, p, nh):
    B, S, H = hidden_bf.shape
    hd = H // nh
    qkv = matmul_bias_act(hidden_bf.reshape(B * S, H),
                          p["w_qkv"], p["b_qkv"]).reshape(B, S, 3 * H)
    ctx = flash_attention(qkv, qkv, mask4d, nh=nh, hd=hd,
                          q_col0=0, k_col0=H, v_col0=2 * H)          # (B,S,H) bf16
    out = matmul_residual_layernorm(ctx.reshape(B * S, H), p["wo"], p["bo"],
                                    hidden_res_f32.reshape(B * S, H),
                                    p["ln_g"], p["ln_b"], out_dtype=ACT_DTYPE)
    return out.reshape(B, S, H)


def _cross_attention_block(dec_bf, enc_bf, mask4d, p, nh):
    B, Sq, H = dec_bf.shape
    Skv = enc_bf.shape[1]
    hd = H // nh
    q = matmul_bias_act(dec_bf.reshape(B * Sq, H),
                        p["w_q"], p["b_q"]).reshape(B, Sq, H)
    kv = matmul_bias_act(enc_bf.reshape(B * Skv, H),
                         p["w_kv"], p["b_kv"]).reshape(B, Skv, 2 * H)
    ctx = flash_attention(q, kv, mask4d, nh=nh, hd=hd,
                          q_col0=0, k_col0=0, v_col0=H)
    out = matmul_residual_layernorm(ctx.reshape(B * Sq, H), p["wo"], p["bo"],
                                    dec_bf.reshape(B * Sq, H),
                                    p["ln_g"], p["ln_b"], out_dtype=ACT_DTYPE)
    return out.reshape(B, Sq, H)


def seq2seq_decoder_layer(hidden_state, attention_mask, encoder_hidden_state,
                          encoder_attention_mask, params):
    B, S, H = hidden_state.shape
    nh = params["num_heads"]

    x_bf = hidden_state.astype(ACT_DTYPE)                # cast once at the producer
    enc_bf = encoder_hidden_state.astype(ACT_DTYPE)

    out = _self_attention_block(x_bf, hidden_state, attention_mask,
                                params["self_attn"], nh)
    out = _cross_attention_block(out, enc_bf, encoder_attention_mask,
                                 params["cross_attn"], nh)

    # Feed-forward; residual is the ORIGINAL layer input, per the PyTorch module
    # (`self.feed_forward(out, hidden_state)`).
    ffn = params["ffn"]
    inter = matmul_bias_act(out.reshape(B * S, H), ffn["wi"], ffn["bi"],
                            activation="gelu")                      # (B*S, I) bf16
    final = matmul_residual_layernorm(inter, ffn["wo"], ffn["bo"],
                                      hidden_state.reshape(B * S, H),
                                      ffn["ln_g"], ffn["ln_b"],
                                      out_dtype=jnp.float32)
    return final.reshape(B, S, H)


# ---------------------------- parameter prep -------------------------------

def init_params(key, hidden, num_heads, intermediate):
    hd = hidden // num_heads
    scale = 1.0 / math.sqrt(hd)          # folded into the Q projection weights

    def dense(k, fi, fo):
        return 0.02 * jax.random.normal(k, (fi, fo), jnp.float32)

    keys = iter(jax.random.split(key, 12))

    def self_attn_params():
        wq = dense(next(keys), hidden, hidden) * scale
        wk = dense(next(keys), hidden, hidden)
        wv = dense(next(keys), hidden, hidden)
        wo = dense(next(keys), hidden, hidden)
        return {
            "w_qkv": jnp.concatenate([wq, wk, wv], axis=1).astype(ACT_DTYPE),
            "b_qkv": jnp.zeros((1, 3 * hidden), jnp.float32),   # q-bias would be scaled too
            "wo": wo.astype(ACT_DTYPE),
            "bo": jnp.zeros((1, hidden), jnp.float32),
            "ln_g": jnp.ones((1, hidden), jnp.float32),
            "ln_b": jnp.zeros((1, hidden), jnp.float32),
        }

    def cross_attn_params():
        wq = dense(next(keys), hidden, hidden) * scale
        wk = dense(next(keys), hidden, hidden)
        wv = dense(next(keys), hidden, hidden)
        wo = dense(next(keys), hidden, hidden)
        return {
            "w_q": wq.astype(ACT_DTYPE),
            "b_q": jnp.zeros((1, hidden), jnp.float32),
            "w_kv": jnp.concatenate([wk, wv], axis=1).astype(ACT_DTYPE),
            "b_kv": jnp.zeros((1, 2 * hidden), jnp.float32),
            "wo": wo.astype(ACT_DTYPE),
            "bo": jnp.zeros((1, hidden), jnp.float32),
            "ln_g": jnp.ones((1, hidden), jnp.float32),
            "ln_b": jnp.zeros((1, hidden), jnp.float32),
        }

    return {
        "num_heads": num_heads,
        "self_attn": self_attn_params(),
        "cross_attn": cross_attn_params(),
        "ffn": {
            "wi": dense(next(keys), hidden, intermediate).astype(ACT_DTYPE),
            "bi": jnp.zeros((1, intermediate), jnp.float32),
            "wo": dense(next(keys), intermediate, hidden).astype(ACT_DTYPE),
            "bo": jnp.zeros((1, hidden), jnp.float32),
            "ln_g": jnp.ones((1, hidden), jnp.float32),
            "ln_b": jnp.zeros((1, hidden), jnp.float32),
        },
    }


# ---------------------- pure-JAX reference (f32 math) ----------------------

def _layernorm_ref(x, g, b):
    mu = jnp.mean(x, -1, keepdims=True)
    var = jnp.mean(jnp.square(x - mu), -1, keepdims=True)
    return (x - mu) * jax.lax.rsqrt(var + LN_EPS) * g + b


def _mha_ref(q_in, kv_in, mask, w_q, b_q, w_k, b_k, w_v, b_v,
             wo, bo, ln_g, ln_b, residual, nh):
    B, Sq, H = q_in.shape
    Skv = kv_in.shape[1]
    hd = H // nh
    q = (q_in @ w_q + b_q).reshape(B, Sq, nh, hd).transpose(0, 2, 1, 3)
    k = (kv_in @ w_k + b_k).reshape(B, Skv, nh, hd).transpose(0, 2, 1, 3)
    v = (kv_in @ w_v + b_v).reshape(B, Skv, nh, hd).transpose(0, 2, 1, 3)
    s = jnp.einsum("bhqd,bhkd->bhqk", q, k) + mask   # 1/sqrt(hd) already in w_q
    p = jax.nn.softmax(s, axis=-1)
    ctx = jnp.einsum("bhqk,bhkd->bhqd", p, v).transpose(0, 2, 1, 3).reshape(B, Sq, H)
    return _layernorm_ref(ctx @ wo + bo + residual, ln_g, ln_b)


def reference_forward(hidden, attn_mask, enc_hidden, enc_mask, params):
    nh = params["num_heads"]
    H = hidden.shape[-1]
    f32 = lambda a: a.astype(jnp.float32)

    sa = params["self_attn"]
    w_qkv, b_qkv = f32(sa["w_qkv"]), f32(sa["b_qkv"])
    out = _mha_ref(hidden, hidden, attn_mask,
                   w_qkv[:, :H], b_qkv[:, :H],
                   w_qkv[:, H:2 * H], b_qkv[:, H:2 * H],
                   w_qkv[:, 2 * H:], b_qkv[:, 2 * H:],
                   f32(sa["wo"]), f32(sa["bo"]), f32(sa["ln_g"]), f32(sa["ln_b"]),
                   hidden, nh)

    ca = params["cross_attn"]
    w_kv, b_kv = f32(ca["w_kv"]), f32(ca["b_kv"])
    out = _mha_ref(out, enc_hidden, enc_mask,
                   f32(ca["w_q"]), f32(ca["b_q"]),
                   w_kv[:, :H], b_kv[:, :H], w_kv[:, H:], b_kv[:, H:],
                   f32(ca["wo"]), f32(ca["bo"]), f32(ca["ln_g"]), f32(ca["ln_b"]),
                   out, nh)

    ffn = params["ffn"]
    inter = jax.nn.gelu(out @ f32(ffn["wi"]) + f32(ffn["bi"]), approximate=False)
    y = inter @ f32(ffn["wo"]) + f32(ffn["bo"]) + hidden
    return _layernorm_ref(y, f32(ffn["ln_g"]), f32(ffn["ln_b"]))


# --------------------------------- demo ------------------------------------

if __name__ == "__main__":
    B, S, S_ENC = 2, 8, 8
    NH, HD = 2, 128          # head_dim=128 -> fully lane-dense attention blocks
    H = NH * HD              # 256
    INTER = 4 * H            # 1024

    key = jax.random.PRNGKey(0)
    k_h, k_e, k_p = jax.random.split(key, 3)

    hidden_state = jax.random.normal(k_h, (B, S, H), jnp.float32)
    encoder_hidden_state = jax.random.normal(k_e, (B, S_ENC, H), jnp.float32)

    # additive causal mask for decoder self-attention: (B, 1, S, S)
    causal = jnp.tril(jnp.ones((S, S), jnp.float32))
    attention_mask = jnp.where(causal[None, None] > 0, 0.0, NEG_INF)
    attention_mask = jnp.broadcast_to(attention_mask, (B, 1, S, S))

    # additive padding mask for encoder states: (B, 1, 1, S_enc)
    enc_valid = jnp.ones((B, S_ENC), jnp.float32).at[1, -2:].set(0.0)
    encoder_attention_mask = jnp.where(enc_valid[:, None, None, :] > 0, 0.0, NEG_INF)

    params = init_params(k_p, H, NH, INTER)

    fwd = jax.jit(functools.partial(seq2seq_decoder_layer, params=params))
    out = fwd(hidden_state, attention_mask, encoder_hidden_state,
              encoder_attention_mask)
    jax.block_until_ready(out)

    assert out.shape == (B, S, H), out.shape
    assert bool(jnp.all(jnp.isfinite(out)))

    # Loose check vs. a pure-JAX f32 reference (bf16 activations => ~1e-2 noise).
    ref = reference_forward(hidden_state, attention_mask, encoder_hidden_state,
                            encoder_attention_mask, params)
    err = float(jnp.max(jnp.abs(out - ref)))
    assert err < 0.15, f"kernel/reference mismatch: max abs err {err}"

    print("KERNEL_OK")
</pallas_src>

<mosaic_0001>
module attributes {stable_mosaic.version = 11 : i64} {
  func.func @_mm_bias_act_kernel(%arg0: i32, %arg1: i32, %arg2: i32, %arg3: memref<16x256xbf16, #tpu.memory_space<vmem>>, %arg4: memref<256x384xbf16, #tpu.memory_space<vmem>>, %arg5: memref<1x384xf32, #tpu.memory_space<vmem>>, %arg6: memref<16x384xbf16, #tpu.memory_space<vmem>>, %arg7: memref<16x384xf32, #tpu.memory_space<vmem>>) attributes {dimension_semantics = [#tpu.dimension_semantics<parallel>, #tpu.dimension_semantics<parallel>, #tpu.dimension_semantics<arbitrary>], iteration_bounds = array<i64: 1, 2, 1>, scalar_prefetch = 0 : i64, scratch_operands = 1 : i64, tpu.core_type = #tpu.core_type<tc>, window_params = [{transform_indices = @transform_0, window_bounds = array<i64: 16, 256>}, {transform_indices = @transform_1, window_bounds = array<i64: 256, 384>}, {transform_indices = @transform_2, window_bounds = array<i64: 1, 384>}, {transform_indices = @transform_3, window_bounds = array<i64: 16, 384>}]} {
    %c0_i32 = arith.constant 0 : i32
    %0 = arith.cmpi eq, %arg2, %c0_i32 : i32
    %1 = arith.extui %0 : i1 to i32
    %c0_i32_0 = arith.constant 0 : i32
    %2 = arith.cmpi ne, %1, %c0_i32_0 : i32
    scf.if %2 {
      %cst_10 = arith.constant 0.000000e+00 : f32
      %12 = vector.broadcast %cst_10 : f32 to vector<16x384xf32>
      %c0_11 = arith.constant 0 : index
      %c0_12 = arith.constant 0 : index
      %13 = vector.load %arg7[%c0_11, %c0_12] : memref<16x384xf32, #tpu.memory_space<vmem>>, vector<16x384xf32>
      tpu.vector_store %arg7[%c0_11, %c0_12], %12 {strides = array<i32>} : memref<16x384xf32, #tpu.memory_space<vmem>>, vector<16x384xf32>,
    } else {
    }
    %c0 = arith.constant 0 : index
    %c0_1 = arith.constant 0 : index
    %3 = vector.load %arg7[%c0, %c0_1] : memref<16x384xf32, #tpu.memory_space<vmem>>, vector<16x384xf32>
    %c0_2 = arith.constant 0 : index
    %c0_3 = arith.constant 0 : index
    %4 = vector.load %arg3[%c0_2, %c0_3] : memref<16x256xbf16, #tpu.memory_space<vmem>>, vector<16x256xbf16>
    %c0_4 = arith.constant 0 : index
    %c0_5 = arith.constant 0 : index
    %5 = vector.load %arg4[%c0_4, %c0_5] : memref<256x384xbf16, #tpu.memory_space<vmem>>, vector<256x384xbf16>
    %cst = arith.constant dense<0.000000e+00> : vector<16x384xf32>
    %6 = tpu.matmul %4, %5, %cst {dimension_numbers = #tpu.dot_dimension_numbers<[1], [0], [0], [1], [0, 0, 1, 1], [], []>} : vector<16x256xbf16>, vector<256x384xbf16>, vector<16x384xf32> -> vector<16x384xf32>
    %7 = arith.addf %3, %6 : vector<16x384xf32>
    %c0_6 = arith.constant 0 : index
    %c0_7 = arith.constant 0 : index
    %8 = vector.load %arg7[%c0_6, %c0_7] : memref<16x384xf32, #tpu.memory_space<vmem>>, vector<16x384xf32>
    tpu.vector_store %arg7[%c0_6, %c0_7], %7 {strides = array<i32>} : memref<16x384xf32, #tpu.memory_space<vmem>>, vector<16x384xf32>,
    %c0_i32_8 = arith.constant 0 : i32
    %9 = arith.cmpi eq, %arg2, %c0_i32_8 : i32
    %10 = arith.extui %9 : i1 to i32
    %c0_i32_9 = arith.constant 0 : i32
    %11 = arith.cmpi ne, %10, %c0_i32_9 : i32
    scf.if %11 {
      %c0_10 = arith.constant 0 : index
      %c0_11 = arith.constant 0 : index
      %12 = vector.load %arg7[%c0_10, %c0_11] : memref<16x384xf32, #tpu.memory_space<vmem>>, vector<16x384xf32>
      %c0_12 = arith.constant 0 : index
      %c0_13 = arith.constant 0 : index
      %13 = vector.load %arg5[%c0_12, %c0_13] : memref<1x384xf32, #tpu.memory_space<vmem>>, vector<1x384xf32>
      %14 = vector.broadcast %13 : vector<1x384xf32> to vector<16x384xf32>
      %15 = arith.addf %12, %14 : vector<16x384xf32>
      %16 = arith.truncf %15 : vector<16x384xf32> to vector<16x384xbf16>
      %c0_14 = arith.constant 0 : index
      %c0_15 = arith.constant 0 : index
      %17 = vector.load %arg6[%c0_14, %c0_15] : memref<16x384xbf16, #tpu.memory_space<vmem>>, vector<16x384xbf16>
      tpu.vector_store %arg6[%c0_14, %c0_15], %16 {strides = array<i32>} : memref<16x384xbf16, #tpu.memory_space<vmem>>, vector<16x384xbf16>,
    } else {
    }
    return
  }
  func.func @transform_0(%arg0: i32, %arg1: i32, %arg2: i32) -> (i32, i32) {
    %c0_i32 = arith.constant 0 : i32
    return %arg0, %arg2 : i32, i32
  }
  func.func @transform_1(%arg0: i32, %arg1: i32, %arg2: i32) -> (i32, i32) {
    %c0_i32 = arith.constant 0 : i32
    return %arg2, %arg1 : i32, i32
  }
  func.func @transform_2(%arg0: i32, %arg1: i32, %arg2: i32) -> (i32, i32) {
    %c0_i32 = arith.constant 0 : i32
    %c0_i32_0 = arith.constant 0 : i32
    return %c0_i32, %arg1 : i32, i32
  }
  func.func @transform_3(%arg0: i32, %arg1: i32, %arg2: i32) -> (i32, i32) {
    %c0_i32 = arith.constant 0 : i32
    return %arg0, %arg1 : i32, i32
  }
}

module attributes {stable_mosaic.version = 11 : i64} {
  func.func @_flash_attn_kernel(%arg0: i32, %arg1: i32, %arg2: i32, %arg3: i32, %arg4: memref<1x8x128xbf16, #tpu.memory_space<vmem>>, %arg5: memref<1x8x128xbf16, #tpu.memory_space<vmem>>, %arg6: memref<1x8x128xbf16, #tpu.memory_space<vmem>>, %arg7: memref<1x1x8x8xf32, #tpu.memory_space<vmem>>, %arg8: memref<1x8x128xbf16, #tpu.memory_space<vmem>>, %arg9: memref<8x1xf32, #tpu.memory_space<vmem>>, %arg10: memref<8x1xf32, #tpu.memory_space<vmem>>, %arg11: memref<8x128xf32, #tpu.memory_space<vmem>>) attributes {dimension_semantics = [#tpu.dimension_semantics<parallel>, #tpu.dimension_semantics<parallel>, #tpu.dimension_semantics<parallel>, #tpu.dimension_semantics<arbitrary>], iteration_bounds = array<i64: 2, 2, 1, 1>, scalar_prefetch = 0 : i64, scratch_operands = 3 : i64, tpu.core_type = #tpu.core_type<tc>, window_params = [{transform_indices = @transform_0, window_bounds = array<i64: 1, 8, 128>}, {transform_indices = @transform_1, window_bounds = array<i64: 1, 8, 128>}, {transform_indices = @transform_2, window_bounds = array<i64: 1, 8, 128>}, {transform_indices = @transform_3, window_bounds = array<i64: 1, 1, 8, 8>}, {transform_indices = @transform_4, window_bounds = array<i64: 1, 8, 128>}]} {
    %c0_i32 = arith.constant 0 : i32
    %0 = arith.cmpi eq, %arg3, %c0_i32 : i32
    %1 = arith.extui %0 : i1 to i32
    %c0_i32_0 = arith.constant 0 : i32
    %2 = arith.cmpi ne, %1, %c0_i32_0 : i32
    scf.if %2 {
      %cst_30 = arith.constant 0xFF800000 : f32
      %39 = vector.broadcast %cst_30 : f32 to vector<8x1xf32>
      %c0_31 = arith.constant 0 : index
      %c0_32 = arith.constant 0 : index
      %40 = vector.load %arg9[%c0_31, %c0_32] : memref<8x1xf32, #tpu.memory_space<vmem>>, vector<8x1xf32>
      tpu.vector_store %arg9[%c0_31, %c0_32], %39 {strides = array<i32>} : memref<8x1xf32, #tpu.memory_space<vmem>>, vector<8x1xf32>,
      %cst_33 = arith.constant 0.000000e+00 : f32
      %41 = vector.broadcast %cst_33 : f32 to vector<8x1xf32>
      %c0_34 = arith.constant 0 : index
      %c0_35 = arith.constant 0 : index
      %42 = vector.load %arg10[%c0_34, %c0_35] : memref<8x1xf32, #tpu.memory_space<vmem>>, vector<8x1xf32>
      tpu.vector_store %arg10[%c0_34, %c0_35], %41 {strides = array<i32>} : memref<8x1xf32, #tpu.memory_space<vmem>>, vector<8x1xf32>,
      %cst_36 = arith.constant 0.000000e+00 : f32
      %43 = vector.broadcast %cst_36 : f32 to vector<8x128xf32>
      %c0_37 = arith.constant 0 : index
      %c0_38 = arith.constant 0 : index
      %44 = vector.load %arg11[%c0_37, %c0_38] : memref<8x128xf32, #tpu.memory_space<vmem>>, vector<8x128xf32>
      tpu.vector_store %arg11[%c0_37, %c0_38], %43 {strides = array<i32>} : memref<8x128xf32, #tpu.memory_space<vmem>>, vector<8x128xf32>,
    } else {
    }
    %c0 = arith.constant 0 : index
    %c0_1 = arith.constant 0 : index
    %c0_2 = arith.constant 0 : index
    %c0_3 = arith.constant 0 : index
    %3 = vector.load %arg7[%c0, %c0_1, %c0_2, %c0_3] : memref<1x1x8x8xf32, #tpu.memory_space<vmem>>, vector<1x1x8x8xf32>
    %4 = vector.shape_cast %3 : vector<1x1x8x8xf32> to vector<8x8xf32>
    %c0_4 = arith.constant 0 : index
    %c0_5 = arith.constant 0 : index
    %c0_6 = arith.constant 0 : index
    %5 = vector.load %arg4[%c0_4, %c0_5, %c0_6] : memref<1x8x128xbf16, #tpu.memory_space<vmem>>, vector<1x8x128xbf16>
    %6 = vector.shape_cast %5 : vector<1x8x128xbf16> to vector<8x128xbf16>
    %c0_7 = arith.constant 0 : index
    %c0_8 = arith.constant 0 : index
    %c0_9 = arith.constant 0 : index
    %7 = vector.load %arg5[%c0_7, %c0_8, %c0_9] : memref<1x8x128xbf16, #tpu.memory_space<vmem>>, vector<1x8x128xbf16>
    %8 = vector.shape_cast %7 : vector<1x8x128xbf16> to vector<8x128xbf16>
    %c0_10 = arith.constant 0 : index
    %c0_11 = arith.constant 0 : index
    %c0_12 = arith.constant 0 : index
    %9 = vector.load %arg6[%c0_10, %c0_11, %c0_12] : memref<1x8x128xbf16, #tpu.memory_space<vmem>>, vector<1x8x128xbf16>
    %10 = vector.shape_cast %9 : vector<1x8x128xbf16> to vector<8x128xbf16>
    %cst = arith.constant dense<0.000000e+00> : vector<8x8xf32>
    %11 = tpu.matmul %6, %8, %cst {dimension_numbers = #tpu.dot_dimension_numbers<[1], [1], [0], [0], [0, 0, 1, 0], [], []>} : vector<8x128xbf16>, vector<8x128xbf16>, vector<8x8xf32> -> vector<8x8xf32>
    %12 = arith.addf %11, %4 : vector<8x8xf32>
    %c0_13 = arith.constant 0 : index
    %c0_14 = arith.constant 0 : index
    %13 = vector.load %arg9[%c0_13, %c0_14] : memref<8x1xf32, #tpu.memory_space<vmem>>, vector<8x1xf32>
    %cst_15 = arith.constant dense<0xFF800000> : vector<8xf32>
    %14 = vector.multi_reduction <maximumf>, %12, %cst_15 [1] : vector<8x8xf32> to vector<8xf32>
    %15 = vector.shape_cast %14 : vector<8xf32> to vector<8x1xf32>
    %16 = arith.maximumf %13, %15 : vector<8x1xf32>
    %17 = arith.subf %13, %16 : vector<8x1xf32>
    %18 = math.exp %17 : vector<8x1xf32>
    %19 = vector.broadcast %16 : vector<8x1xf32> to vector<8x8xf32>
    %20 = arith.subf %12, %19 : vector<8x8xf32>
    %21 = math.exp %20 : vector<8x8xf32>
    %c0_16 = arith.constant 0 : index
    %c0_17 = arith.constant 0 : index
    %22 = vector.load %arg10[%c0_16, %c0_17] : memref<8x1xf32, #tpu.memory_space<vmem>>, vector<8x1xf32>
    %23 = arith.mulf %18, %22 : vector<8x1xf32>
    %cst_18 = arith.constant dense<0.000000e+00> : vector<8xf32>
    %24 = vector.multi_reduction <add>, %21, %cst_18 [1] : vector<8x8xf32> to vector<8xf32>
    %25 = vector.shape_cast %24 : vector<8xf32> to vector<8x1xf32>
    %26 = arith.addf %23, %25 : vector<8x1xf32>
    %c0_19 = arith.constant 0 : index
    %c0_20 = arith.constant 0 : index
    %27 = vector.load %arg10[%c0_19, %c0_20] : memref<8x1xf32, #tpu.memory_space<vmem>>, vector<8x1xf32>
    tpu.vector_store %arg10[%c0_19, %c0_20], %26 {strides = array<i32>} : memref<8x1xf32, #tpu.memory_space<vmem>>, vector<8x1xf32>,
    %c0_21 = arith.constant 0 : index
    %c0_22 = arith.constant 0 : index
    %28 = vector.load %arg11[%c0_21, %c0_22] : memref<8x128xf32, #tpu.memory_space<vmem>>, vector<8x128xf32>
    %29 = vector.broadcast %18 : vector<8x1xf32> to vector<8x128xf32>
    %30 = arith.mulf %29, %28 : vector<8x128xf32>
    %31 = arith.truncf %21 : vector<8x8xf32> to vector<8x8xbf16>
    %cst_23 = arith.constant dense<0.000000e+00> : vector<8x128xf32>
    %32 = tpu.matmul %31, %10, %cst_23 {dimension_numbers = #tpu.dot_dimension_numbers<[1], [0], [0], [1], [0, 0, 1, 1], [], []>} : vector<8x8xbf16>, vector<8x128xbf16>, vector<8x128xf32> -> vector<8x128xf32>
    %33 = arith.addf %30, %32 : vector<8x128xf32>
    %c0_24 = arith.constant 0 : index
    %c0_25 = arith.constant 0 : index
    %34 = vector.load %arg11[%c0_24, %c0_25] : memref<8x128xf32, #tpu.memory_space<vmem>>, vector<8x128xf32>
    tpu.vector_store %arg11[%c0_24, %c0_25], %33 {strides = array<i32>} : memref<8x128xf32, #tpu.memory_space<vmem>>, vector<8x128xf32>,
    %c0_26 = arith.constant 0 : index
    %c0_27 = arith.constant 0 : index
    %35 = vector.load %arg9[%c0_26, %c0_27] : memref<8x1xf32, #tpu.memory_space<vmem>>, vector<8x1xf32>
    tpu.vector_store %arg9[%c0_26, %c0_27], %16 {strides = array<i32>} : memref<8x1xf32, #tpu.memory_space<vmem>>, vector<8x1xf32>,
    %c0_i32_28 = arith.constant 0 : i32
    %36 = arith.cmpi eq, %arg3, %c0_i32_28 : i32
    %37 = arith.extui %36 : i1 to i32
    %c0_i32_29 = arith.constant 0 : i32
    %38 = arith.cmpi ne, %37, %c0_i32_29 : i32
    scf.if %38 {
      %c0_30 = arith.constant 0 : index
      %c0_31 = arith.constant 0 : index
      %39 = vector.load %arg11[%c0_30, %c0_31] : memref<8x128xf32, #tpu.memory_space<vmem>>, vector<8x128xf32>
      %c0_32 = arith.constant 0 : index
      %c0_33 = arith.constant 0 : index
      %40 = vector.load %arg10[%c0_32, %c0_33] : memref<8x1xf32, #tpu.memory_space<vmem>>, vector<8x1xf32>
      %41 = vector.broadcast %40 : vector<8x1xf32> to vector<8x128xf32>
      %42 = arith.divf %39, %41 : vector<8x128xf32>
      %43 = arith.truncf %42 : vector<8x128xf32> to vector<8x128xbf16>
      %c0_34 = arith.constant 0 : index
      %c0_35 = arith.constant 0 : index
      %c0_36 = arith.constant 0 : index
      %44 = vector.load %arg8[%c0_34, %c0_35, %c0_36] : memref<1x8x128xbf16, #tpu.memory_space<vmem>>, vector<1x8x128xbf16>
      %45 = vector.shape_cast %44 : vector<1x8x128xbf16> to vector<8x128xbf16>
      %46 = vector.shape_cast %43 : vector<8x128xbf16> to vector<1x8x128xbf16>
      tpu.vector_store %arg8[%c0_34, %c0_35, %c0_36], %46 {strides = array<i32>} : memref<1x8x128xbf16, #tpu.memory_space<vmem>>, vector<1x8x128xbf16>,
    } else {
    }
    return
  }
  func.func @transform_0(%arg0: i32, %arg1: i32, %arg2: i32, %arg3: i32) -> (i32, i32, i32) {
    %c0_i32 = arith.constant 0 : i32
    %0 = arith.addi %c0_i32, %arg1 : i32
    %c0_i32_0 = arith.constant 0 : i32
    return %arg0, %arg2, %0 : i32, i32, i32
  }
  func.func @transform_1(%arg0: i32, %arg1: i32, %arg2: i32, %arg3: i32) -> (i32, i32, i32) {
    %c2_i32 = arith.constant 2 : i32
    %0 = arith.addi %c2_i32, %arg1 : i32
    %c0_i32 = arith.constant 0 : i32
    return %arg0, %arg3, %0 : i32, i32, i32
  }
  func.func @transform_2(%arg0: i32, %arg1: i32, %arg2: i32, %arg3: i32) -> (i32, i32, i32) {
    %c4_i32 = arith.constant 4 : i32
    %0 = arith.addi %c4_i32, %arg1 : i32
    %c0_i32 = arith.constant 0 : i32
    return %arg0, %arg3, %0 : i32, i32, i32
  }
  func.func @transform_3(%arg0: i32, %arg1: i32, %arg2: i32, %arg3: i32) -> (i32, i32, i32, i32) {
    %c0_i32 = arith.constant 0 : i32
    %c0_i32_0 = arith.constant 0 : i32
    return %arg0, %c0_i32, %arg2, %arg3 : i32, i32, i32, i32
  }
  func.func @transform_4(%arg0: i32, %arg1: i32, %arg2: i32, %arg3: i32) -> (i32, i32, i32) {
    %c0_i32 = arith.constant 0 : i32
    return %arg0, %arg2, %arg1 : i32, i32, i32
  }
}

module attributes {stable_mosaic.version = 11 : i64} {
  func.func @_mm_bias_act_kernel(%arg0: i32, %arg1: i32, %arg2: i32, %arg3: memref<16x256xbf16, #tpu.memory_space<vmem>>, %arg4: memref<256x256xbf16, #tpu.memory_space<vmem>>, %arg5: memref<1x256xf32, #tpu.memory_space<vmem>>, %arg6: memref<16x256xbf16, #tpu.memory_space<vmem>>, %arg7: memref<16x256xf32, #tpu.memory_space<vmem>>) attributes {dimension_semantics = [#tpu.dimension_semantics<parallel>, #tpu.dimension_semantics<parallel>, #tpu.dimension_semantics<arbitrary>], iteration_bounds = array<i64: 1, 1, 1>, scalar_prefetch = 0 : i64, scratch_operands = 1 : i64, tpu.core_type = #tpu.core_type<tc>, window_params = [{transform_indices = @transform_0, window_bounds = array<i64: 16, 256>}, {transform_indices = @transform_1, window_bounds = array<i64: 256, 256>}, {transform_indices = @transform_2, window_bounds = array<i64: 1, 256>}, {transform_indices = @transform_3, window_bounds = array<i64: 16, 256>}]} {
    %c0_i32 = arith.constant 0 : i32
    %0 = arith.cmpi eq, %arg2, %c0_i32 : i32
    %1 = arith.extui %0 : i1 to i32
    %c0_i32_0 = arith.constant 0 : i32
    %2 = arith.cmpi ne, %1, %c0_i32_0 : i32
    scf.if %2 {
      %cst_10 = arith.constant 0.000000e+00 : f32
      %12 = vector.broadcast %cst_10 : f32 to vector<16x256xf32>
      %c0_11 = arith.constant 0 : index
      %c0_12 = arith.constant 0 : index
      %13 = vector.load %arg7[%c0_11, %c0_12] : memref<16x256xf32, #tpu.memory_space<vmem>>, vector<16x256xf32>
      tpu.vector_store %arg7[%c0_11, %c0_12], %12 {strides = array<i32>} : memref<16x256xf32, #tpu.memory_space<vmem>>, vector<16x256xf32>,
    } else {
    }
    %c0 = arith.constant 0 : index
    %c0_1 = arith.constant 0 : index
    %3 = vector.load %arg7[%c0, %c0_1] : memref<16x256xf32, #tpu.memory_space<vmem>>, vector<16x256xf32>
    %c0_2 = arith.constant 0 : index
    %c0_3 = arith.constant 0 : index
    %4 = vector.load %arg3[%c0_2, %c0_3] : memref<16x256xbf16, #tpu.memory_space<vmem>>, vector<16x256xbf16>
    %c0_4 = arith.constant 0 : index
    %c0_5 = arith.constant 0 : index
    %5 = vector.load %arg4[%c0_4, %c0_5] : memref<256x256xbf16, #tpu.memory_space<vmem>>, vector<256x256xbf16>
    %cst = arith.constant dense<0.000000e+00> : vector<16x256xf32>
    %6 = tpu.matmul %4, %5, %cst {dimension_numbers = #tpu.dot_dimension_numbers<[1], [0], [0], [1], [0, 0, 1, 1], [], []>} : vector<16x256xbf16>, vector<256x256xbf16>, vector<16x256xf32> -> vector<16x256xf32>
    %7 = arith.addf %3, %6 : vector<16x256xf32>
    %c0_6 = arith.constant 0 : index
    %c0_7 = arith.constant 0 : index
    %8 = vector.load %arg7[%c0_6, %c0_7] : memref<16x256xf32, #tpu.memory_space<vmem>>, vector<16x256xf32>
    tpu.vector_store %arg7[%c0_6, %c0_7], %7 {strides = array<i32>} : memref<16x256xf32, #tpu.memory_space<vmem>>, vector<16x256xf32>,
    %c0_i32_8 = arith.constant 0 : i32
    %9 = arith.cmpi eq, %arg2, %c0_i32_8 : i32
    %10 = arith.extui %9 : i1 to i32
    %c0_i32_9 = arith.constant 0 : i32
    %11 = arith.cmpi ne, %10, %c0_i32_9 : i32
    scf.if %11 {
      %c0_10 = arith.constant 0 : index
      %c0_11 = arith.constant 0 : index
      %12 = vector.load %arg7[%c0_10, %c0_11] : memref<16x256xf32, #tpu.memory_space<vmem>>, vector<16x256xf32>
      %c0_12 = arith.constant 0 : index
      %c0_13 = arith.constant 0 : index
      %13 = vector.load %arg5[%c0_12, %c0_13] : memref<1x256xf32, #tpu.memory_space<vmem>>, vector<1x256xf32>
      %14 = vector.broadcast %13 : vector<1x256xf32> to vector<16x256xf32>
      %15 = arith.addf %12, %14 : vector<16x256xf32>
      %16 = arith.truncf %15 : vector<16x256xf32> to vector<16x256xbf16>
      %c0_14 = arith.constant 0 : index
      %c0_15 = arith.constant 0 : index
      %17 = vector.load %arg6[%c0_14, %c0_15] : memref<16x256xbf16, #tpu.memory_space<vmem>>, vector<16x256xbf16>
      tpu.vector_store %arg6[%c0_14, %c0_15], %16 {strides = array<i32>} : memref<16x256xbf16, #tpu.memory_space<vmem>>, vector<16x256xbf16>,
    } else {
    }
    return
  }
  func.func @transform_0(%arg0: i32, %arg1: i32, %arg2: i32) -> (i32, i32) {
    %c0_i32 = arith.constant 0 : i32
    return %arg0, %arg2 : i32, i32
  }
  func.func @transform_1(%arg0: i32, %arg1: i32, %arg2: i32) -> (i32, i32) {
    %c0_i32 = arith.constant 0 : i32
    return %arg2, %arg1 : i32, i32
  }
  func.func @transform_2(%arg0: i32, %arg1: i32, %arg2: i32) -> (i32, i32) {
    %c0_i32 = arith.constant 0 : i32
    %c0_i32_0 = arith.constant 0 : i32
    return %c0_i32, %arg1 : i32, i32
  }
  func.func @transform_3(%arg0: i32, %arg1: i32, %arg2: i32) -> (i32, i32) {
    %c0_i32 = arith.constant 0 : i32
    return %arg0, %arg1 : i32, i32
  }
}

module attributes {stable_mosaic.version = 11 : i64} {
  func.func @_mm_res_ln_kernel(%arg0: i32, %arg1: i32, %arg2: memref<16x256xbf16, #tpu.memory_space<vmem>>, %arg3: memref<256x256xbf16, #tpu.memory_space<vmem>>, %arg4: memref<1x256xf32, #tpu.memory_space<vmem>>, %arg5: memref<16x256xf32, #tpu.memory_space<vmem>>, %arg6: memref<1x256xf32, #tpu.memory_space<vmem>>, %arg7: memref<1x256xf32, #tpu.memory_space<vmem>>, %arg8: memref<16x256xbf16, #tpu.memory_space<vmem>>, %arg9: memref<16x256xf32, #tpu.memory_space<vmem>>) attributes {dimension_semantics = [#tpu.dimension_semantics<parallel>, #tpu.dimension_semantics<arbitrary>], iteration_bounds = array<i64: 1, 1>, scalar_prefetch = 0 : i64, scratch_operands = 1 : i64, tpu.core_type = #tpu.core_type<tc>, window_params = [{transform_indices = @transform_0, window_bounds = array<i64: 16, 256>}, {transform_indices = @transform_1, window_bounds = array<i64: 256, 256>}, {pipeline_mode = #tpu.pipeline_mode<synchronous>, transform_indices = @transform_2, window_bounds = array<i64: 1, 256>}, {transform_indices = @transform_3, window_bounds = array<i64: 16, 256>}, {pipeline_mode = #tpu.pipeline_mode<synchronous>, transform_indices = @transform_4, window_bounds = array<i64: 1, 256>}, {pipeline_mode = #tpu.pipeline_mode<synchronous>, transform_indices = @transform_5, window_bounds = array<i64: 1, 256>}, {transform_indices = @transform_6, window_bounds = array<i64: 16, 256>}]} {
    %c0_i32 = arith.constant 0 : i32
    %0 = arith.cmpi eq, %arg1, %c0_i32 : i32
    %1 = arith.extui %0 : i1 to i32
    %c0_i32_0 = arith.constant 0 : i32
    %2 = arith.cmpi ne, %1, %c0_i32_0 : i32
    scf.if %2 {
      %cst_10 = arith.constant 0.000000e+00 : f32
      %12 = vector.broadcast %cst_10 : f32 to vector<16x256xf32>
      %c0_11 = arith.constant 0 : index
      %c0_12 = arith.constant 0 : index
      %13 = vector.load %arg9[%c0_11, %c0_12] : memref<16x256xf32, #tpu.memory_space<vmem>>, vector<16x256xf32>
      tpu.vector_store %arg9[%c0_11, %c0_12], %12 {strides = array<i32>} : memref<16x256xf32, #tpu.memory_space<vmem>>, vector<16x256xf32>,
    } else {
    }
    %c0 = arith.constant 0 : index
    %c0_1 = arith.constant 0 : index
    %3 = vector.load %arg9[%c0, %c0_1] : memref<16x256xf32, #tpu.memory_space<vmem>>, vector<16x256xf32>
    %c0_2 = arith.constant 0 : index
    %c0_3 = arith.constant 0 : index
    %4 = vector.load %arg2[%c0_2, %c0_3] : memref<16x256xbf16, #tpu.memory_space<vmem>>, vector<16x256xbf16>
    %c0_4 = arith.constant 0 : index
    %c0_5 = arith.constant 0 : index
    %5 = vector.load %arg3[%c0_4, %c0_5] : memref<256x256xbf16, #tpu.memory_space<vmem>>, vector<256x256xbf16>
    %cst = arith.constant dense<0.000000e+00> : vector<16x256xf32>
    %6 = tpu.matmul %4, %5, %cst {dimension_numbers = #tpu.dot_dimension_numbers<[1], [0], [0], [1], [0, 0, 1, 1], [], []>} : vector<16x256xbf16>, vector<256x256xbf16>, vector<16x256xf32> -> vector<16x256xf32>
    %7 = arith.addf %3, %6 : vector<16x256xf32>
    %c0_6 = arith.constant 0 : index
    %c0_7 = arith.constant 0 : index
    %8 = vector.load %arg9[%c0_6, %c0_7] : memref<16x256xf32, #tpu.memory_space<vmem>>, vector<16x256xf32>
    tpu.vector_store %arg9[%c0_6, %c0_7], %7 {strides = array<i32>} : memref<16x256xf32, #tpu.memory_space<vmem>>, vector<16x256xf32>,
    %c0_i32_8 = arith.constant 0 : i32
    %9 = arith.cmpi eq, %arg1, %c0_i32_8 : i32
    %10 = arith.extui %9 : i1 to i32
    %c0_i32_9 = arith.constant 0 : i32
    %11 = arith.cmpi ne, %10, %c0_i32_9 : i32
    scf.if %11 {
      %c0_10 = arith.constant 0 : index
      %c0_11 = arith.constant 0 : index
      %12 = vector.load %arg9[%c0_10, %c0_11] : memref<16x256xf32, #tpu.memory_space<vmem>>, vector<16x256xf32>
      %c0_12 = arith.constant 0 : index
      %c0_13 = arith.constant 0 : index
      %13 = vector.load %arg4[%c0_12, %c0_13] : memref<1x256xf32, #tpu.memory_space<vmem>>, vector<1x256xf32>
      %14 = vector.broadcast %13 : vector<1x256xf32> to vector<16x256xf32>
      %15 = arith.addf %12, %14 : vector<16x256xf32>
      %c0_14 = arith.constant 0 : index
      %c0_15 = arith.constant 0 : index
      %16 = vector.load %arg5[%c0_14, %c0_15] : memref<16x256xf32, #tpu.memory_space<vmem>>, vector<16x256xf32>
      %17 = arith.addf %15, %16 : vector<16x256xf32>
      %cst_16 = arith.constant dense<0.000000e+00> : vector<16xf32>
      %18 = vector.multi_reduction <add>, %17, %cst_16 [1] : vector<16x256xf32> to vector<16xf32>
      %19 = vector.shape_cast %18 : vector<16xf32> to vector<16x1xf32>
      %cst_17 = arith.constant 2.560000e+02 : f32
      %20 = vector.broadcast %cst_17 : f32 to vector<16x1xf32>
      %21 = arith.divf %19, %20 : vector<16x1xf32>
      %22 = vector.broadcast %21 : vector<16x1xf32> to vector<16x256xf32>
      %23 = arith.subf %17, %22 : vector<16x256xf32>
      %24 = arith.mulf %23, %23 : vector<16x256xf32>
      %cst_18 = arith.constant dense<0.000000e+00> : vector<16xf32>
      %25 = vector.multi_reduction <add>, %24, %cst_18 [1] : vector<16x256xf32> to vector<16xf32>
      %26 = vector.shape_cast %25 : vector<16xf32> to vector<16x1xf32>
      %cst_19 = arith.constant 2.560000e+02 : f32
      %27 = vector.broadcast %cst_19 : f32 to vector<16x1xf32>
      %28 = arith.divf %26, %27 : vector<16x1xf32>
      %29 = vector.broadcast %21 : vector<16x1xf32> to vector<16x256xf32>
      %30 = arith.subf %17, %29 : vector<16x256xf32>
      %cst_20 = arith.constant 9.99999996E-13 : f32
      %31 = vector.broadcast %cst_20 : f32 to vector<16x1xf32>
      %32 = arith.addf %28, %31 : vector<16x1xf32>
      %33 = math.rsqrt %32 : vector<16x1xf32>
      %34 = vector.broadcast %33 : vector<16x1xf32> to vector<16x256xf32>
      %35 = arith.mulf %30, %34 : vector<16x256xf32>
      %c0_21 = arith.constant 0 : index
      %c0_22 = arith.constant 0 : index
      %36 = vector.load %arg6[%c0_21, %c0_22] : memref<1x256xf32, #tpu.memory_space<vmem>>, vector<1x256xf32>
      %37 = vector.broadcast %36 : vector<1x256xf32> to vector<16x256xf32>
      %38 = arith.mulf %35, %37 : vector<16x256xf32>
      %c0_23 = arith.constant 0 : index
      %c0_24 = arith.constant 0 : index
      %39 = vector.load %arg7[%c0_23, %c0_24] : memref<1x256xf32, #tpu.memory_space<vmem>>, vector<1x256xf32>
      %40 = vector.broadcast %39 : vector<1x256xf32> to vector<16x256xf32>
      %41 = arith.addf %38, %40 : vector<16x256xf32>
      %42 = arith.truncf %41 : vector<16x256xf32> to vector<16x256xbf16>
      %c0_25 = arith.constant 0 : index
      %c0_26 = arith.constant 0 : index
      %43 = vector.load %arg8[%c0_25, %c0_26] : memref<16x256xbf16, #tpu.memory_space<vmem>>, vector<16x256xbf16>
      tpu.vector_store %arg8[%c0_25, %c0_26], %42 {strides = array<i32>} : memref<16x256xbf16, #tpu.memory_space<vmem>>, vector<16x256xbf16>,
    } else {
    }
    return
  }
  func.func @transform_0(%arg0: i32, %arg1: i32) -> (i32, i32) {
    %c0_i32 = arith.constant 0 : i32
    return %arg0, %arg1 : i32, i32
  }
  func.func @transform_1(%arg0: i32, %arg1: i32) -> (i32, i32) {
    %c0_i32 = arith.constant 0 : i32
    %c0_i32_0 = arith.constant 0 : i32
    return %arg1, %c0_i32 : i32, i32
  }
  func.func @transform_2(%arg0: i32, %arg1: i32) -> (i32, i32) {
    %c0_i32 = arith.constant 0 : i32
    %c0_i32_0 = arith.constant 0 : i32
    %c0_i32_1 = arith.constant 0 : i32
    return %c0_i32, %c0_i32_0 : i32, i32
  }
  func.func @transform_3(%arg0: i32, %arg1: i32) -> (i32, i32) {
    %c0_i32 = arith.constant 0 : i32
    %c0_i32_0 = arith.constant 0 : i32
    return %arg0, %c0_i32 : i32, i32
  }
  func.func @transform_4(%arg0: i32, %arg1: i32) -> (i32, i32) {
    %c0_i32 = arith.constant 0 : i32
    %c0_i32_0 = arith.constant 0 : i32
    %c0_i32_1 = arith.constant 0 : i32
    return %c0_i32, %c0_i32_0 : i32, i32
  }
  func.func @transform_5(%arg0: i32, %arg1: i32) -> (i32, i32) {
    %c0_i32 = arith.constant 0 : i32
    %c0_i32_0 = arith.constant 0 : i32
    %c0_i32_1 = arith.constant 0 : i32
    return %c0_i32, %c0_i32_0 : i32, i32
  }
  func.func @transform_6(%arg0: i32, %arg1: i32) -> (i32, i32) {
    %c0_i32 = arith.constant 0 : i32
    %c0_i32_0 = arith.constant 0 : i32
    return %arg0, %c0_i32 : i32, i32
  }
}

module attributes {stable_mosaic.version = 11 : i64} {
  func.func @_mm_bias_act_kernel(%arg0: i32, %arg1: i32, %arg2: i32, %arg3: memref<16x256xbf16, #tpu.memory_space<vmem>>, %arg4: memref<256x512xbf16, #tpu.memory_space<vmem>>, %arg5: memref<1x512xf32, #tpu.memory_space<vmem>>, %arg6: memref<16x512xbf16, #tpu.memory_space<vmem>>, %arg7: memref<16x512xf32, #tpu.memory_space<vmem>>) attributes {dimension_semantics = [#tpu.dimension_semantics<parallel>, #tpu.dimension_semantics<parallel>, #tpu.dimension_semantics<arbitrary>], iteration_bounds = array<i64: 1, 1, 1>, scalar_prefetch = 0 : i64, scratch_operands = 1 : i64, tpu.core_type = #tpu.core_type<tc>, window_params = [{transform_indices = @transform_0, window_bounds = array<i64: 16, 256>}, {transform_indices = @transform_1, window_bounds = array<i64: 256, 512>}, {transform_indices = @transform_2, window_bounds = array<i64: 1, 512>}, {transform_indices = @transform_3, window_bounds = array<i64: 16, 512>}]} {
    %c0_i32 = arith.constant 0 : i32
    %0 = arith.cmpi eq, %arg2, %c0_i32 : i32
    %1 = arith.extui %0 : i1 to i32
    %c0_i32_0 = arith.constant 0 : i32
    %2 = arith.cmpi ne, %1, %c0_i32_0 : i32
    scf.if %2 {
      %cst_10 = arith.constant 0.000000e+00 : f32
      %12 = vector.broadcast %cst_10 : f32 to vector<16x512xf32>
      %c0_11 = arith.constant 0 : index
      %c0_12 = arith.constant 0 : index
      %13 = vector.load %arg7[%c0_11, %c0_12] : memref<16x512xf32, #tpu.memory_space<vmem>>, vector<16x512xf32>
      tpu.vector_store %arg7[%c0_11, %c0_12], %12 {strides = array<i32>} : memref<16x512xf32, #tpu.memory_space<vmem>>, vector<16x512xf32>,
    } else {
    }
    %c0 = arith.constant 0 : index
    %c0_1 = arith.constant 0 : index
    %3 = vector.load %arg7[%c0, %c0_1] : memref<16x512xf32, #tpu.memory_space<vmem>>, vector<16x512xf32>
    %c0_2 = arith.constant 0 : index
    %c0_3 = arith.constant 0 : index
    %4 = vector.load %arg3[%c0_2, %c0_3] : memref<16x256xbf16, #tpu.memory_space<vmem>>, vector<16x256xbf16>
    %c0_4 = arith.constant 0 : index
    %c0_5 = arith.constant 0 : index
    %5 = vector.load %arg4[%c0_4, %c0_5] : memref<256x512xbf16, #tpu.memory_space<vmem>>, vector<256x512xbf16>
    %cst = arith.constant dense<0.000000e+00> : vector<16x512xf32>
    %6 = tpu.matmul %4, %5, %cst {dimension_numbers = #tpu.dot_dimension_numbers<[1], [0], [0], [1], [0, 0, 1, 1], [], []>} : vector<16x256xbf16>, vector<256x512xbf16>, vector<16x512xf32> -> vector<16x512xf32>
    %7 = arith.addf %3, %6 : vector<16x512xf32>
    %c0_6 = arith.constant 0 : index
    %c0_7 = arith.constant 0 : index
    %8 = vector.load %arg7[%c0_6, %c0_7] : memref<16x512xf32, #tpu.memory_space<vmem>>, vector<16x512xf32>
    tpu.vector_store %arg7[%c0_6, %c0_7], %7 {strides = array<i32>} : memref<16x512xf32, #tpu.memory_space<vmem>>, vector<16x512xf32>,
    %c0_i32_8 = arith.constant 0 : i32
    %9 = arith.cmpi eq, %arg2, %c0_i32_8 : i32
    %10 = arith.extui %9 : i1 to i32
    %c0_i32_9 = arith.constant 0 : i32
    %11 = arith.cmpi ne, %10, %c0_i32_9 : i32
    scf.if %11 {
      %c0_10 = arith.constant 0 : index
      %c0_11 = arith.constant 0 : index
      %12 = vector.load %arg7[%c0_10, %c0_11] : memref<16x512xf32, #tpu.memory_space<vmem>>, vector<16x512xf32>
      %c0_12 = arith.constant 0 : index
      %c0_13 = arith.constant 0 : index
      %13 = vector.load %arg5[%c0_12, %c0_13] : memref<1x512xf32, #tpu.memory_space<vmem>>, vector<1x512xf32>
      %14 = vector.broadcast %13 : vector<1x512xf32> to vector<16x512xf32>
      %15 = arith.addf %12, %14 : vector<16x512xf32>
      %16 = arith.truncf %15 : vector<16x512xf32> to vector<16x512xbf16>
      %c0_14 = arith.constant 0 : index
      %c0_15 = arith.constant 0 : index
      %17 = vector.load %arg6[%c0_14, %c0_15] : memref<16x512xbf16, #tpu.memory_space<vmem>>, vector<16x512xbf16>
      tpu.vector_store %arg6[%c0_14, %c0_15], %16 {strides = array<i32>} : memref<16x512xbf16, #tpu.memory_space<vmem>>, vector<16x512xbf16>,
    } else {
    }
    return
  }
  func.func @transform_0(%arg0: i32, %arg1: i32, %arg2: i32) -> (i32, i32) {
    %c0_i32 = arith.constant 0 : i32
    return %arg0, %arg2 : i32, i32
  }
  func.func @transform_1(%arg0: i32, %arg1: i32, %arg2: i32) -> (i32, i32) {
    %c0_i32 = arith.constant 0 : i32
    return %arg2, %arg1 : i32, i32
  }
  func.func @transform_2(%arg0: i32, %arg1: i32, %arg2: i32) -> (i32, i32) {
    %c0_i32 = arith.constant 0 : i32
    %c0_i32_0 = arith.constant 0 : i32
    return %c0_i32, %arg1 : i32, i32
  }
  func.func @transform_3(%arg0: i32, %arg1: i32, %arg2: i32) -> (i32, i32) {
    %c0_i32 = arith.constant 0 : i32
    return %arg0, %arg1 : i32, i32
  }
}

module attributes {stable_mosaic.version = 11 : i64} {
  func.func @_mm_res_ln_kernel(%arg0: i32, %arg1: i32, %arg2: memref<16x256xbf16, #tpu.memory_space<vmem>>, %arg3: memref<256x256xbf16, #tpu.memory_space<vmem>>, %arg4: memref<1x256xf32, #tpu.memory_space<vmem>>, %arg5: memref<16x256xbf16, #tpu.memory_space<vmem>>, %arg6: memref<1x256xf32, #tpu.memory_space<vmem>>, %arg7: memref<1x256xf32, #tpu.memory_space<vmem>>, %arg8: memref<16x256xbf16, #tpu.memory_space<vmem>>, %arg9: memref<16x256xf32, #tpu.memory_space<vmem>>) attributes {dimension_semantics = [#tpu.dimension_semantics<parallel>, #tpu.dimension_semantics<arbitrary>], iteration_bounds = array<i64: 1, 1>, scalar_prefetch = 0 : i64, scratch_operands = 1 : i64, tpu.core_type = #tpu.core_type<tc>, window_params = [{transform_indices = @transform_0, window_bounds = array<i64: 16, 256>}, {transform_indices = @transform_1, window_bounds = array<i64: 256, 256>}, {pipeline_mode = #tpu.pipeline_mode<synchronous>, transform_indices = @transform_2, window_bounds = array<i64: 1, 256>}, {transform_indices = @transform_3, window_bounds = array<i64: 16, 256>}, {pipeline_mode = #tpu.pipeline_mode<synchronous>, transform_indices = @transform_4, window_bounds = array<i64: 1, 256>}, {pipeline_mode = #tpu.pipeline_mode<synchronous>, transform_indices = @transform_5, window_bounds = array<i64: 1, 256>}, {transform_indices = @transform_6, window_bounds = array<i64: 16, 256>}]} {
    %c0_i32 = arith.constant 0 : i32
    %0 = arith.cmpi eq, %arg1, %c0_i32 : i32
    %1 = arith.extui %0 : i1 to i32
    %c0_i32_0 = arith.constant 0 : i32
    %2 = arith.cmpi ne, %1, %c0_i32_0 : i32
    scf.if %2 {
      %cst_10 = arith.constant 0.000000e+00 : f32
      %12 = vector.broadcast %cst_10 : f32 to vector<16x256xf32>
      %c0_11 = arith.constant 0 : index
      %c0_12 = arith.constant 0 : index
      %13 = vector.load %arg9[%c0_11, %c0_12] : memref<16x256xf32, #tpu.memory_space<vmem>>, vector<16x256xf32>
      tpu.vector_store %arg9[%c0_11, %c0_12], %12 {strides = array<i32>} : memref<16x256xf32, #tpu.memory_space<vmem>>, vector<16x256xf32>,
    } else {
    }
    %c0 = arith.constant 0 : index
    %c0_1 = arith.constant 0 : index
    %3 = vector.load %arg9[%c0, %c0_1] : memref<16x256xf32, #tpu.memory_space<vmem>>, vector<16x256xf32>
    %c0_2 = arith.constant 0 : index
    %c0_3 = arith.constant 0 : index
    %4 = vector.load %arg2[%c0_2, %c0_3] : memref<16x256xbf16, #tpu.memory_space<vmem>>, vector<16x256xbf16>
    %c0_4 = arith.constant 0 : index
    %c0_5 = arith.constant 0 : index
    %5 = vector.load %arg3[%c0_4, %c0_5] : memref<256x256xbf16, #tpu.memory_space<vmem>>, vector<256x256xbf16>
    %cst = arith.constant dense<0.000000e+00> : vector<16x256xf32>
    %6 = tpu.matmul %4, %5, %cst {dimension_numbers = #tpu.dot_dimension_numbers<[1], [0], [0], [1], [0, 0, 1, 1], [], []>} : vector<16x256xbf16>, vector<256x256xbf16>, vector<16x256xf32> -> vector<16x256xf32>
    %7 = arith.addf %3, %6 : vector<16x256xf32>
    %c0_6 = arith.constant 0 : index
    %c0_7 = arith.constant 0 : index
    %8 = vector.load %arg9[%c0_6, %c0_7] : memref<16x256xf32, #tpu.memory_space<vmem>>, vector<16x256xf32>
    tpu.vector_store %arg9[%c0_6, %c0_7], %7 {strides = array<i32>} : memref<16x256xf32, #tpu.memory_space<vmem>>, vector<16x256xf32>,
    %c0_i32_8 = arith.constant 0 : i32
    %9 = arith.cmpi eq, %arg1, %c0_i32_8 : i32
    %10 = arith.extui %9 : i1 to i32
    %c0_i32_9 = arith.constant 0 : i32
    %11 = arith.cmpi ne, %10, %c0_i32_9 : i32
    scf.if %11 {
      %c0_10 = arith.constant 0 : index
      %c0_11 = arith.constant 0 : index
      %12 = vector.load %arg9[%c0_10, %c0_11] : memref<16x256xf32, #tpu.memory_space<vmem>>, vector<16x256xf32>
      %c0_12 = arith.constant 0 : index
      %c0_13 = arith.constant 0 : index
      %13 = vector.load %arg4[%c0_12, %c0_13] : memref<1x256xf32, #tpu.memory_space<vmem>>, vector<1x256xf32>
      %14 = vector.broadcast %13 : vector<1x256xf32> to vector<16x256xf32>
      %15 = arith.addf %12, %14 : vector<16x256xf32>
      %c0_14 = arith.constant 0 : index
      %c0_15 = arith.constant 0 : index
      %16 = vector.load %arg5[%c0_14, %c0_15] : memref<16x256xbf16, #tpu.memory_space<vmem>>, vector<16x256xbf16>
      %17 = arith.extf %16 : vector<16x256xbf16> to vector<16x256xf32>
      %18 = arith.addf %15, %17 : vector<16x256xf32>
      %cst_16 = arith.constant dense<0.000000e+00> : vector<16xf32>
      %19 = vector.multi_reduction <add>, %18, %cst_16 [1] : vector<16x256xf32> to vector<16xf32>
      %20 = vector.shape_cast %19 : vector<16xf32> to vector<16x1xf32>
      %cst_17 = arith.constant 2.560000e+02 : f32
      %21 = vector.broadcast %cst_17 : f32 to vector<16x1xf32>
      %22 = arith.divf %20, %21 : vector<16x1xf32>
      %23 = vector.broadcast %22 : vector<16x1xf32> to vector<16x256xf32>
      %24 = arith.subf %18, %23 : vector<16x256xf32>
      %25 = arith.mulf %24, %24 : vector<16x256xf32>
      %cst_18 = arith.constant dense<0.000000e+00> : vector<16xf32>
      %26 = vector.multi_reduction <add>, %25, %cst_18 [1] : vector<16x256xf32> to vector<16xf32>
      %27 = vector.shape_cast %26 : vector<16xf32> to vector<16x1xf32>
      %cst_19 = arith.constant 2.560000e+02 : f32
      %28 = vector.broadcast %cst_19 : f32 to vector<16x1xf32>
      %29 = arith.divf %27, %28 : vector<16x1xf32>
      %30 = vector.broadcast %22 : vector<16x1xf32> to vector<16x256xf32>
      %31 = arith.subf %18, %30 : vector<16x256xf32>
      %cst_20 = arith.constant 9.99999996E-13 : f32
      %32 = vector.broadcast %cst_20 : f32 to vector<16x1xf32>
      %33 = arith.addf %29, %32 : vector<16x1xf32>
      %34 = math.rsqrt %33 : vector<16x1xf32>
      %35 = vector.broadcast %34 : vector<16x1xf32> to vector<16x256xf32>
      %36 = arith.mulf %31, %35 : vector<16x256xf32>
      %c0_21 = arith.constant 0 : index
      %c0_22 = arith.constant 0 : index
      %37 = vector.load %arg6[%c0_21, %c0_22] : memref<1x256xf32, #tpu.memory_space<vmem>>, vector<1x256xf32>
      %38 = vector.broadcast %37 : vector<1x256xf32> to vector<16x256xf32>
      %39 = arith.mulf %36, %38 : vector<16x256xf32>
      %c0_23 = arith.constant 0 : index
      %c0_24 = arith.constant 0 : index
      %40 = vector.load %arg7[%c0_23, %c0_24] : memref<1x256xf32, #tpu.memory_space<vmem>>, vector<1x256xf32>
      %41 = vector.broadcast %40 : vector<1x256xf32> to vector<16x256xf32>
      %42 = arith.addf %39, %41 : vector<16x256xf32>
      %43 = arith.truncf %42 : vector<16x256xf32> to vector<16x256xbf16>
      %c0_25 = arith.constant 0 : index
      %c0_26 = arith.constant 0 : index
      %44 = vector.load %arg8[%c0_25, %c0_26] : memref<16x256xbf16, #tpu.memory_space<vmem>>, vector<16x256xbf16>
      tpu.vector_store %arg8[%c0_25, %c0_26], %43 {strides = array<i32>} : memref<16x256xbf16, #tpu.memory_space<vmem>>, vector<16x256xbf16>,
    } else {
    }
    return
  }
  func.func @transform_0(%arg0: i32, %arg1: i32) -> (i32, i32) {
    %c0_i32 = arith.constant 0 : i32
    return %arg0, %arg1 : i32, i32
  }
  func.func @transform_1(%arg0: i32, %arg1: i32) -> (i32, i32) {
    %c0_i32 = arith.constant 0 : i32
    %c0_i32_0 = arith.constant 0 : i32
    return %arg1, %c0_i32 : i32, i32
  }
  func.func @transform_2(%arg0: i32, %arg1: i32) -> (i32, i32) {
    %c0_i32 = arith.constant 0 : i32
    %c0_i32_0 = arith.constant 0 : i32
    %c0_i32_1 = arith.constant 0 : i32
    return %c0_i32, %c0_i32_0 : i32, i32
  }
  func.func @transform_3(%arg0: i32, %arg1: i32) -> (i32, i32) {
    %c0_i32 = arith.constant 0 : i32
    %c0_i32_0 = arith.constant 0 : i32
    return %arg0, %c0_i32 : i32, i32
  }
  func.func @transform_4(%arg0: i32, %arg1: i32) -> (i32, i32) {
    %c0_i32 = arith.constant 0 : i32
    %c0_i32_0 = arith.constant 0 : i32
    %c0_i32_1 = arith.constant 0 : i32
    return %c0_i32, %c0_i32_0 : i32, i32
  }
  func.func @transform_5(%arg0: i32, %arg1: i32) -> (i32, i32) {
    %c0_i32 = arith.constant 0 : i32
    %c0_i32_0 = arith.constant 0 : i32
    %c0_i32_1 = arith.constant 0 : i32
    return %c0_i32, %c0_i32_0 : i32, i32
  }
  func.func @transform_6(%arg0: i32, %arg1: i32) -> (i32, i32) {
    %c0_i32 = arith.constant 0 : i32
    %c0_i32_0 = arith.constant 0 : i32
    return %arg0, %c0_i32 : i32, i32
  }
}

module attributes {stable_mosaic.version = 11 : i64} {
  func.func @_flash_attn_kernel(%arg0: i32, %arg1: i32, %arg2: i32, %arg3: i32, %arg4: memref<1x8x128xbf16, #tpu.memory_space<vmem>>, %arg5: memref<1x8x128xbf16, #tpu.memory_space<vmem>>, %arg6: memref<1x8x128xbf16, #tpu.memory_space<vmem>>, %arg7: memref<1x1x1x8xf32, #tpu.memory_space<vmem>>, %arg8: memref<1x8x128xbf16, #tpu.memory_space<vmem>>, %arg9: memref<8x1xf32, #tpu.memory_space<vmem>>, %arg10: memref<8x1xf32, #tpu.memory_space<vmem>>, %arg11: memref<8x128xf32, #tpu.memory_space<vmem>>) attributes {dimension_semantics = [#tpu.dimension_semantics<parallel>, #tpu.dimension_semantics<parallel>, #tpu.dimension_semantics<parallel>, #tpu.dimension_semantics<arbitrary>], iteration_bounds = array<i64: 2, 2, 1, 1>, scalar_prefetch = 0 : i64, scratch_operands = 3 : i64, tpu.core_type = #tpu.core_type<tc>, window_params = [{transform_indices = @transform_0, window_bounds = array<i64: 1, 8, 128>}, {transform_indices = @transform_1, window_bounds = array<i64: 1, 8, 128>}, {transform_indices = @transform_2, window_bounds = array<i64: 1, 8, 128>}, {transform_indices = @transform_3, window_bounds = array<i64: 1, 1, 1, 8>}, {transform_indices = @transform_4, window_bounds = array<i64: 1, 8, 128>}]} {
    %c0_i32 = arith.constant 0 : i32
    %0 = arith.cmpi eq, %arg3, %c0_i32 : i32
    %1 = arith.extui %0 : i1 to i32
    %c0_i32_0 = arith.constant 0 : i32
    %2 = arith.cmpi ne, %1, %c0_i32_0 : i32
    scf.if %2 {
      %cst_30 = arith.constant 0xFF800000 : f32
      %40 = vector.broadcast %cst_30 : f32 to vector<8x1xf32>
      %c0_31 = arith.constant 0 : index
      %c0_32 = arith.constant 0 : index
      %41 = vector.load %arg9[%c0_31, %c0_32] : memref<8x1xf32, #tpu.memory_space<vmem>>, vector<8x1xf32>
      tpu.vector_store %arg9[%c0_31, %c0_32], %40 {strides = array<i32>} : memref<8x1xf32, #tpu.memory_space<vmem>>, vector<8x1xf32>,
      %cst_33 = arith.constant 0.000000e+00 : f32
      %42 = vector.broadcast %cst_33 : f32 to vector<8x1xf32>
      %c0_34 = arith.constant 0 : index
      %c0_35 = arith.constant 0 : index
      %43 = vector.load %arg10[%c0_34, %c0_35] : memref<8x1xf32, #tpu.memory_space<vmem>>, vector<8x1xf32>
      tpu.vector_store %arg10[%c0_34, %c0_35], %42 {strides = array<i32>} : memref<8x1xf32, #tpu.memory_space<vmem>>, vector<8x1xf32>,
      %cst_36 = arith.constant 0.000000e+00 : f32
      %44 = vector.broadcast %cst_36 : f32 to vector<8x128xf32>
      %c0_37 = arith.constant 0 : index
      %c0_38 = arith.constant 0 : index
      %45 = vector.load %arg11[%c0_37, %c0_38] : memref<8x128xf32, #tpu.memory_space<vmem>>, vector<8x128xf32>
      tpu.vector_store %arg11[%c0_37, %c0_38], %44 {strides = array<i32>} : memref<8x128xf32, #tpu.memory_space<vmem>>, vector<8x128xf32>,
    } else {
    }
    %c0 = arith.constant 0 : index
    %c0_1 = arith.constant 0 : index
    %c0_2 = arith.constant 0 : index
    %c0_3 = arith.constant 0 : index
    %3 = vector.load %arg7[%c0, %c0_1, %c0_2, %c0_3] : memref<1x1x1x8xf32, #tpu.memory_space<vmem>>, vector<1x1x1x8xf32>
    %4 = vector.shape_cast %3 : vector<1x1x1x8xf32> to vector<1x8xf32>
    %c0_4 = arith.constant 0 : index
    %c0_5 = arith.constant 0 : index
    %c0_6 = arith.constant 0 : index
    %5 = vector.load %arg4[%c0_4, %c0_5, %c0_6] : memref<1x8x128xbf16, #tpu.memory_space<vmem>>, vector<1x8x128xbf16>
    %6 = vector.shape_cast %5 : vector<1x8x128xbf16> to vector<8x128xbf16>
    %c0_7 = arith.constant 0 : index
    %c0_8 = arith.constant 0 : index
    %c0_9 = arith.constant 0 : index
    %7 = vector.load %arg5[%c0_7, %c0_8, %c0_9] : memref<1x8x128xbf16, #tpu.memory_space<vmem>>, vector<1x8x128xbf16>
    %8 = vector.shape_cast %7 : vector<1x8x128xbf16> to vector<8x128xbf16>
    %c0_10 = arith.constant 0 : index
    %c0_11 = arith.constant 0 : index
    %c0_12 = arith.constant 0 : index
    %9 = vector.load %arg6[%c0_10, %c0_11, %c0_12] : memref<1x8x128xbf16, #tpu.memory_space<vmem>>, vector<1x8x128xbf16>
    %10 = vector.shape_cast %9 : vector<1x8x128xbf16> to vector<8x128xbf16>
    %cst = arith.constant dense<0.000000e+00> : vector<8x8xf32>
    %11 = tpu.matmul %6, %8, %cst {dimension_numbers = #tpu.dot_dimension_numbers<[1], [1], [0], [0], [0, 0, 1, 0], [], []>} : vector<8x128xbf16>, vector<8x128xbf16>, vector<8x8xf32> -> vector<8x8xf32>
    %12 = vector.broadcast %4 : vector<1x8xf32> to vector<8x8xf32>
    %13 = arith.addf %11, %12 : vector<8x8xf32>
    %c0_13 = arith.constant 0 : index
    %c0_14 = arith.constant 0 : index
    %14 = vector.load %arg9[%c0_13, %c0_14] : memref<8x1xf32, #tpu.memory_space<vmem>>, vector<8x1xf32>
    %cst_15 = arith.constant dense<0xFF800000> : vector<8xf32>
    %15 = vector.multi_reduction <maximumf>, %13, %cst_15 [1] : vector<8x8xf32> to vector<8xf32>
    %16 = vector.shape_cast %15 : vector<8xf32> to vector<8x1xf32>
    %17 = arith.maximumf %14, %16 : vector<8x1xf32>
    %18 = arith.subf %14, %17 : vector<8x1xf32>
    %19 = math.exp %18 : vector<8x1xf32>
    %20 = vector.broadcast %17 : vector<8x1xf32> to vector<8x8xf32>
    %21 = arith.subf %13, %20 : vector<8x8xf32>
    %22 = math.exp %21 : vector<8x8xf32>
    %c0_16 = arith.constant 0 : index
    %c0_17 = arith.constant 0 : index
    %23 = vector.load %arg10[%c0_16, %c0_17] : memref<8x1xf32, #tpu.memory_space<vmem>>, vector<8x1xf32>
    %24 = arith.mulf %19, %23 : vector<8x1xf32>
    %cst_18 = arith.constant dense<0.000000e+00> : vector<8xf32>
    %25 = vector.multi_reduction <add>, %22, %cst_18 [1] : vector<8x8xf32> to vector<8xf32>
    %26 = vector.shape_cast %25 : vector<8xf32> to vector<8x1xf32>
    %27 = arith.addf %24, %26 : vector<8x1xf32>
    %c0_19 = arith.constant 0 : index
    %c0_20 = arith.constant 0 : index
    %28 = vector.load %arg10[%c0_19, %c0_20] : memref<8x1xf32, #tpu.memory_space<vmem>>, vector<8x1xf32>
    tpu.vector_store %arg10[%c0_19, %c0_20], %27 {strides = array<i32>} : memref<8x1xf32, #tpu.memory_space<vmem>>, vector<8x1xf32>,
    %c0_21 = arith.constant 0 : index
    %c0_22 = arith.constant 0 : index
    %29 = vector.load %arg11[%c0_21, %c0_22] : memref<8x128xf32, #tpu.memory_space<vmem>>, vector<8x128xf32>
    %30 = vector.broadcast %19 : vector<8x1xf32> to vector<8x128xf32>
    %31 = arith.mulf %30, %29 : vector<8x128xf32>
    %32 = arith.truncf %22 : vector<8x8xf32> to vector<8x8xbf16>
    %cst_23 = arith.constant dense<0.000000e+00> : vector<8x128xf32>
    %33 = tpu.matmul %32, %10, %cst_23 {dimension_numbers = #tpu.dot_dimension_numbers<[1], [0], [0], [1], [0, 0, 1, 1], [], []>} : vector<8x8xbf16>, vector<8x128xbf16>, vector<8x128xf32> -> vector<8x128xf32>
    %34 = arith.addf %31, %33 : vector<8x128xf32>
    %c0_24 = arith.constant 0 : index
    %c0_25 = arith.constant 0 : index
    %35 = vector.load %arg11[%c0_24, %c0_25] : memref<8x128xf32, #tpu.memory_space<vmem>>, vector<8x128xf32>
    tpu.vector_store %arg11[%c0_24, %c0_25], %34 {strides = array<i32>} : memref<8x128xf32, #tpu.memory_space<vmem>>, vector<8x128xf32>,
    %c0_26 = arith.constant 0 : index
    %c0_27 = arith.constant 0 : index
    %36 = vector.load %arg9[%c0_26, %c0_27] : memref<8x1xf32, #tpu.memory_space<vmem>>, vector<8x1xf32>
    tpu.vector_store %arg9[%c0_26, %c0_27], %17 {strides = array<i32>} : memref<8x1xf32, #tpu.memory_space<vmem>>, vector<8x1xf32>,
    %c0_i32_28 = arith.constant 0 : i32
    %37 = arith.cmpi eq, %arg3, %c0_i32_28 : i32
    %38 = arith.extui %37 : i1 to i32
    %c0_i32_29 = arith.constant 0 : i32
    %39 = arith.cmpi ne, %38, %c0_i32_29 : i32
    scf.if %39 {
      %c0_30 = arith.constant 0 : index
      %c0_31 = arith.constant 0 : index
      %40 = vector.load %arg11[%c0_30, %c0_31] : memref<8x128xf32, #tpu.memory_space<vmem>>, vector<8x128xf32>
      %c0_32 = arith.constant 0 : index
      %c0_33 = arith.constant 0 : index
      %41 = vector.load %arg10[%c0_32, %c0_33] : memref<8x1xf32, #tpu.memory_space<vmem>>, vector<8x1xf32>
      %42 = vector.broadcast %41 : vector<8x1xf32> to vector<8x128xf32>
      %43 = arith.divf %40, %42 : vector<8x128xf32>
      %44 = arith.truncf %43 : vector<8x128xf32> to vector<8x128xbf16>
      %c0_34 = arith.constant 0 : index
      %c0_35 = arith.constant 0 : index
      %c0_36 = arith.constant 0 : index
      %45 = vector.load %arg8[%c0_34, %c0_35, %c0_36] : memref<1x8x128xbf16, #tpu.memory_space<vmem>>, vector<1x8x128xbf16>
      %46 = vector.shape_cast %45 : vector<1x8x128xbf16> to vector<8x128xbf16>
      %47 = vector.shape_cast %44 : vector<8x128xbf16> to vector<1x8x128xbf16>
      tpu.vector_store %arg8[%c0_34, %c0_35, %c0_36], %47 {strides = array<i32>} : memref<1x8x128xbf16, #tpu.memory_space<vmem>>, vector<1x8x128xbf16>,
    } else {
    }
    return
  }
  func.func @transform_0(%arg0: i32, %arg1: i32, %arg2: i32, %arg3: i32) -> (i32, i32, i32) {
    %c0_i32 = arith.constant 0 : i32
    %0 = arith.addi %c0_i32, %arg1 : i32
    %c0_i32_0 = arith.constant 0 : i32
    return %arg0, %arg2, %0 : i32, i32, i32
  }
  func.func @transform_1(%arg0: i32, %arg1: i32, %arg2: i32, %arg3: i32) -> (i32, i32, i32) {
    %c0_i32 = arith.constant 0 : i32
    %0 = arith.addi %c0_i32, %arg1 : i32
    %c0_i32_0 = arith.constant 0 : i32
    return %arg0, %arg3, %0 : i32, i32, i32
  }
  func.func @transform_2(%arg0: i32, %arg1: i32, %arg2: i32, %arg3: i32) -> (i32, i32, i32) {
    %c2_i32 = arith.constant 2 : i32
    %0 = arith.addi %c2_i32, %arg1 : i32
    %c0_i32 = arith.constant 0 : i32
    return %arg0, %arg3, %0 : i32, i32, i32
  }
  func.func @transform_3(%arg0: i32, %arg1: i32, %arg2: i32, %arg3: i32) -> (i32, i32, i32, i32) {
    %c0_i32 = arith.constant 0 : i32
    %c0_i32_0 = arith.constant 0 : i32
    %c0_i32_1 = arith.constant 0 : i32
    return %arg0, %c0_i32, %c0_i32_0, %arg3 : i32, i32, i32, i32
  }
  func.func @transform_4(%arg0: i32, %arg1: i32, %arg2: i32, %arg3: i32) -> (i32, i32, i32) {
    %c0_i32 = arith.constant 0 : i32
    return %arg0, %arg2, %arg1 : i32, i32, i32
  }
}

module attributes {stable_mosaic.version = 11 : i64} {
  func.func @_mm_bias_act_kernel(%arg0: i32, %arg1: i32, %arg2: i32, %arg3: memref<16x256xbf16, #tpu.memory_space<vmem>>, %arg4: memref<256x512xbf16, #tpu.memory_space<vmem>>, %arg5: memref<1x512xf32, #tpu.memory_space<vmem>>, %arg6: memref<16x512xbf16, #tpu.memory_space<vmem>>, %arg7: memref<16x512xf32, #tpu.memory_space<vmem>>) attributes {dimension_semantics = [#tpu.dimension_semantics<parallel>, #tpu.dimension_semantics<parallel>, #tpu.dimension_semantics<arbitrary>], iteration_bounds = array<i64: 1, 2, 1>, scalar_prefetch = 0 : i64, scratch_operands = 1 : i64, tpu.core_type = #tpu.core_type<tc>, window_params = [{transform_indices = @transform_0, window_bounds = array<i64: 16, 256>}, {transform_indices = @transform_1, window_bounds = array<i64: 256, 512>}, {transform_indices = @transform_2, window_bounds = array<i64: 1, 512>}, {transform_indices = @transform_3, window_bounds = array<i64: 16, 512>}]} {
    %c0_i32 = arith.constant 0 : i32
    %0 = arith.cmpi eq, %arg2, %c0_i32 : i32
    %1 = arith.extui %0 : i1 to i32
    %c0_i32_0 = arith.constant 0 : i32
    %2 = arith.cmpi ne, %1, %c0_i32_0 : i32
    scf.if %2 {
      %cst_10 = arith.constant 0.000000e+00 : f32
      %12 = vector.broadcast %cst_10 : f32 to vector<16x512xf32>
      %c0_11 = arith.constant 0 : index
      %c0_12 = arith.constant 0 : index
      %13 = vector.load %arg7[%c0_11, %c0_12] : memref<16x512xf32, #tpu.memory_space<vmem>>, vector<16x512xf32>
      tpu.vector_store %arg7[%c0_11, %c0_12], %12 {strides = array<i32>} : memref<16x512xf32, #tpu.memory_space<vmem>>, vector<16x512xf32>,
    } else {
    }
    %c0 = arith.constant 0 : index
    %c0_1 = arith.constant 0 : index
    %3 = vector.load %arg7[%c0, %c0_1] : memref<16x512xf32, #tpu.memory_space<vmem>>, vector<16x512xf32>
    %c0_2 = arith.constant 0 : index
    %c0_3 = arith.constant 0 : index
    %4 = vector.load %arg3[%c0_2, %c0_3] : memref<16x256xbf16, #tpu.memory_space<vmem>>, vector<16x256xbf16>
    %c0_4 = arith.constant 0 : index
    %c0_5 = arith.constant 0 : index
    %5 = vector.load %arg4[%c0_4, %c0_5] : memref<256x512xbf16, #tpu.memory_space<vmem>>, vector<256x512xbf16>
    %cst = arith.constant dense<0.000000e+00> : vector<16x512xf32>
    %6 = tpu.matmul %4, %5, %cst {dimension_numbers = #tpu.dot_dimension_numbers<[1], [0], [0], [1], [0, 0, 1, 1], [], []>} : vector<16x256xbf16>, vector<256x512xbf16>, vector<16x512xf32> -> vector<16x512xf32>
    %7 = arith.addf %3, %6 : vector<16x512xf32>
    %c0_6 = arith.constant 0 : index
    %c0_7 = arith.constant 0 : index
    %8 = vector.load %arg7[%c0_6, %c0_7] : memref<16x512xf32, #tpu.memory_space<vmem>>, vector<16x512xf32>
    tpu.vector_store %arg7[%c0_6, %c0_7], %7 {strides = array<i32>} : memref<16x512xf32, #tpu.memory_space<vmem>>, vector<16x512xf32>,
    %c0_i32_8 = arith.constant 0 : i32
    %9 = arith.cmpi eq, %arg2, %c0_i32_8 : i32
    %10 = arith.extui %9 : i1 to i32
    %c0_i32_9 = arith.constant 0 : i32
    %11 = arith.cmpi ne, %10, %c0_i32_9 : i32
    scf.if %11 {
      %c0_10 = arith.constant 0 : index
      %c0_11 = arith.constant 0 : index
      %12 = vector.load %arg7[%c0_10, %c0_11] : memref<16x512xf32, #tpu.memory_space<vmem>>, vector<16x512xf32>
      %c0_12 = arith.constant 0 : index
      %c0_13 = arith.constant 0 : index
      %13 = vector.load %arg5[%c0_12, %c0_13] : memref<1x512xf32, #tpu.memory_space<vmem>>, vector<1x512xf32>
      %14 = vector.broadcast %13 : vector<1x512xf32> to vector<16x512xf32>
      %15 = arith.addf %12, %14 : vector<16x512xf32>
      %cst_14 = arith.constant 5.000000e-01 : f32
      %16 = vector.broadcast %cst_14 : f32 to vector<16x512xf32>
      %17 = arith.mulf %16, %15 : vector<16x512xf32>
      %cst_15 = arith.constant 0.707106769 : f32
      %18 = vector.broadcast %cst_15 : f32 to vector<16x512xf32>
      %19 = arith.mulf %15, %18 : vector<16x512xf32>
      %20 = math.absf %19 : vector<16x512xf32>
      %cst_16 = arith.constant 0.327591091 : f32
      %21 = vector.broadcast %cst_16 : f32 to vector<16x512xf32>
      %22 = arith.mulf %21, %20 : vector<16x512xf32>
      %cst_17 = arith.constant 1.000000e+00 : f32
      %23 = vector.broadcast %cst_17 : f32 to vector<16x512xf32>
      %24 = arith.addf %23, %22 : vector<16x512xf32>
      %cst_18 = arith.constant 1.000000e+00 : f32
      %25 = vector.broadcast %cst_18 : f32 to vector<16x512xf32>
      %26 = arith.divf %25, %24 : vector<16x512xf32>
      %cst_19 = arith.constant 1.06140542 : f32
      %27 = vector.broadcast %cst_19 : f32 to vector<16x512xf32>
      %28 = arith.mulf %27, %26 : vector<16x512xf32>
      %cst_20 = arith.constant -1.45315206 : f32
      %29 = vector.broadcast %cst_20 : f32 to vector<16x512xf32>
      %30 = arith.addf %28, %29 : vector<16x512xf32>
      %31 = arith.mulf %30, %26 : vector<16x512xf32>
      %cst_21 = arith.constant 1.42141378 : f32
      %32 = vector.broadcast %cst_21 : f32 to vector<16x512xf32>
      %33 = arith.addf %31, %32 : vector<16x512xf32>
      %34 = arith.mulf %33, %26 : vector<16x512xf32>
      %cst_22 = arith.constant -0.284496725 : f32
      %35 = vector.broadcast %cst_22 : f32 to vector<16x512xf32>
      %36 = arith.addf %34, %35 : vector<16x512xf32>
      %37 = arith.mulf %36, %26 : vector<16x512xf32>
      %cst_23 = arith.constant 0.254829586 : f32
      %38 = vector.broadcast %cst_23 : f32 to vector<16x512xf32>
      %39 = arith.addf %37, %38 : vector<16x512xf32>
      %40 = arith.mulf %39, %26 : vector<16x512xf32>
      %cst_24 = arith.constant 0.000000e+00 : f32
      %41 = vector.broadcast %cst_24 : f32 to vector<16x512xf32>
      %42 = arith.subf %41, %20 : vector<16x512xf32>
      %43 = arith.mulf %42, %20 : vector<16x512xf32>
      %44 = math.exp %43 : vector<16x512xf32>
      %45 = arith.mulf %40, %44 : vector<16x512xf32>
      %cst_25 = arith.constant 1.000000e+00 : f32
      %46 = vector.broadcast %cst_25 : f32 to vector<16x512xf32>
      %47 = arith.subf %46, %45 : vector<16x512xf32>
      %cst_26 = arith.constant 0.000000e+00 : f32
      %48 = vector.broadcast %cst_26 : f32 to vector<16x512xf32>
      %49 = arith.cmpf oge, %19, %48 : vector<16x512xf32>
      %cst_27 = arith.constant 0.000000e+00 : f32
      %50 = vector.broadcast %cst_27 : f32 to vector<16x512xf32>
      %51 = arith.subf %50, %47 : vector<16x512xf32>
      %52 = arith.select %49, %47, %51 : vector<16x512xi1>, vector<16x512xf32>
      %cst_28 = arith.constant 1.000000e+00 : f32
      %53 = vector.broadcast %cst_28 : f32 to vector<16x512xf32>
      %54 = arith.addf %53, %52 : vector<16x512xf32>
      %55 = arith.mulf %17, %54 : vector<16x512xf32>
      %56 = arith.truncf %55 : vector<16x512xf32> to vector<16x512xbf16>
      %c0_29 = arith.constant 0 : index
      %c0_30 = arith.constant 0 : index
      %57 = vector.load %arg6[%c0_29, %c0_30] : memref<16x512xbf16, #tpu.memory_space<vmem>>, vector<16x512xbf16>
      tpu.vector_store %arg6[%c0_29, %c0_30], %56 {strides = array<i32>} : memref<16x512xbf16, #tpu.memory_space<vmem>>, vector<16x512xbf16>,
    } else {
    }
    return
  }
  func.func @transform_0(%arg0: i32, %arg1: i32, %arg2: i32) -> (i32, i32) {
    %c0_i32 = arith.constant 0 : i32
    return %arg0, %arg2 : i32, i32
  }
  func.func @transform_1(%arg0: i32, %arg1: i32, %arg2: i32) -> (i32, i32) {
    %c0_i32 = arith.constant 0 : i32
    return %arg2, %arg1 : i32, i32
  }
  func.func @transform_2(%arg0: i32, %arg1: i32, %arg2: i32) -> (i32, i32) {
    %c0_i32 = arith.constant 0 : i32
    %c0_i32_0 = arith.constant 0 : i32
    return %c0_i32, %arg1 : i32, i32
  }
  func.func @transform_3(%arg0: i32, %arg1: i32, %arg2: i32) -> (i32, i32) {
    %c0_i32 = arith.constant 0 : i32
    return %arg0, %arg1 : i32, i32
  }
}

module attributes {stable_mosaic.version = 11 : i64} {
  func.func @_mm_res_ln_kernel(%arg0: i32, %arg1: i32, %arg2: memref<16x512xbf16, #tpu.memory_space<vmem>>, %arg3: memref<512x256xbf16, #tpu.memory_space<vmem>>, %arg4: memref<1x256xf32, #tpu.memory_space<vmem>>, %arg5: memref<16x256xf32, #tpu.memory_space<vmem>>, %arg6: memref<1x256xf32, #tpu.memory_space<vmem>>, %arg7: memref<1x256xf32, #tpu.memory_space<vmem>>, %arg8: memref<16x256xf32, #tpu.memory_space<vmem>>, %arg9: memref<16x256xf32, #tpu.memory_space<vmem>>) attributes {dimension_semantics = [#tpu.dimension_semantics<parallel>, #tpu.dimension_semantics<arbitrary>], iteration_bounds = array<i64: 1, 2>, scalar_prefetch = 0 : i64, scratch_operands = 1 : i64, tpu.core_type = #tpu.core_type<tc>, window_params = [{transform_indices = @transform_0, window_bounds = array<i64: 16, 512>}, {transform_indices = @transform_1, window_bounds = array<i64: 512, 256>}, {pipeline_mode = #tpu.pipeline_mode<synchronous>, transform_indices = @transform_2, window_bounds = array<i64: 1, 256>}, {transform_indices = @transform_3, window_bounds = array<i64: 16, 256>}, {pipeline_mode = #tpu.pipeline_mode<synchronous>, transform_indices = @transform_4, window_bounds = array<i64: 1, 256>}, {pipeline_mode = #tpu.pipeline_mode<synchronous>, transform_indices = @transform_5, window_bounds = array<i64: 1, 256>}, {transform_indices = @transform_6, window_bounds = array<i64: 16, 256>}]} {
    %c0_i32 = arith.constant 0 : i32
    %0 = arith.cmpi eq, %arg1, %c0_i32 : i32
    %1 = arith.extui %0 : i1 to i32
    %c0_i32_0 = arith.constant 0 : i32
    %2 = arith.cmpi ne, %1, %c0_i32_0 : i32
    scf.if %2 {
      %cst_9 = arith.constant 0.000000e+00 : f32
      %12 = vector.broadcast %cst_9 : f32 to vector<16x256xf32>
      %c0_10 = arith.constant 0 : index
      %c0_11 = arith.constant 0 : index
      %13 = vector.load %arg9[%c0_10, %c0_11] : memref<16x256xf32, #tpu.memory_space<vmem>>, vector<16x256xf32>
      tpu.vector_store %arg9[%c0_10, %c0_11], %12 {strides = array<i32>} : memref<16x256xf32, #tpu.memory_space<vmem>>, vector<16x256xf32>,
    } else {
    }
    %c0 = arith.constant 0 : index
    %c0_1 = arith.constant 0 : index
    %3 = vector.load %arg9[%c0, %c0_1] : memref<16x256xf32, #tpu.memory_space<vmem>>, vector<16x256xf32>
    %c0_2 = arith.constant 0 : index
    %c0_3 = arith.constant 0 : index
    %4 = vector.load %arg2[%c0_2, %c0_3] : memref<16x512xbf16, #tpu.memory_space<vmem>>, vector<16x512xbf16>
    %c0_4 = arith.constant 0 : index
    %c0_5 = arith.constant 0 : index
    %5 = vector.load %arg3[%c0_4, %c0_5] : memref<512x256xbf16, #tpu.memory_space<vmem>>, vector<512x256xbf16>
    %cst = arith.constant dense<0.000000e+00> : vector<16x256xf32>
    %6 = tpu.matmul %4, %5, %cst {dimension_numbers = #tpu.dot_dimension_numbers<[1], [0], [0], [1], [0, 0, 1, 1], [], []>} : vector<16x512xbf16>, vector<512x256xbf16>, vector<16x256xf32> -> vector<16x256xf32>
    %7 = arith.addf %3, %6 : vector<16x256xf32>
    %c0_6 = arith.constant 0 : index
    %c0_7 = arith.constant 0 : index
    %8 = vector.load %arg9[%c0_6, %c0_7] : memref<16x256xf32, #tpu.memory_space<vmem>>, vector<16x256xf32>
    tpu.vector_store %arg9[%c0_6, %c0_7], %7 {strides = array<i32>} : memref<16x256xf32, #tpu.memory_space<vmem>>, vector<16x256xf32>,
    %c1_i32 = arith.constant 1 : i32
    %9 = arith.cmpi eq, %arg1, %c1_i32 : i32
    %10 = arith.extui %9 : i1 to i32
    %c0_i32_8 = arith.constant 0 : i32
    %11 = arith.cmpi ne, %10, %c0_i32_8 : i32
    scf.if %11 {
      %c0_9 = arith.constant 0 : index
      %c0_10 = arith.constant 0 : index
      %12 = vector.load %arg9[%c0_9, %c0_10] : memref<16x256xf32, #tpu.memory_space<vmem>>, vector<16x256xf32>
      %c0_11 = arith.constant 0 : index
      %c0_12 = arith.constant 0 : index
      %13 = vector.load %arg4[%c0_11, %c0_12] : memref<1x256xf32, #tpu.memory_space<vmem>>, vector<1x256xf32>
      %14 = vector.broadcast %13 : vector<1x256xf32> to vector<16x256xf32>
      %15 = arith.addf %12, %14 : vector<16x256xf32>
      %c0_13 = arith.constant 0 : index
      %c0_14 = arith.constant 0 : index
      %16 = vector.load %arg5[%c0_13, %c0_14] : memref<16x256xf32, #tpu.memory_space<vmem>>, vector<16x256xf32>
      %17 = arith.addf %15, %16 : vector<16x256xf32>
      %cst_15 = arith.constant dense<0.000000e+00> : vector<16xf32>
      %18 = vector.multi_reduction <add>, %17, %cst_15 [1] : vector<16x256xf32> to vector<16xf32>
      %19 = vector.shape_cast %18 : vector<16xf32> to vector<16x1xf32>
      %cst_16 = arith.constant 2.560000e+02 : f32
      %20 = vector.broadcast %cst_16 : f32 to vector<16x1xf32>
      %21 = arith.divf %19, %20 : vector<16x1xf32>
      %22 = vector.broadcast %21 : vector<16x1xf32> to vector<16x256xf32>
      %23 = arith.subf %17, %22 : vector<16x256xf32>
      %24 = arith.mulf %23, %23 : vector<16x256xf32>
      %cst_17 = arith.constant dense<0.000000e+00> : vector<16xf32>
      %25 = vector.multi_reduction <add>, %24, %cst_17 [1] : vector<16x256xf32> to vector<16xf32>
      %26 = vector.shape_cast %25 : vector<16xf32> to vector<16x1xf32>
      %cst_18 = arith.constant 2.560000e+02 : f32
      %27 = vector.broadcast %cst_18 : f32 to vector<16x1xf32>
      %28 = arith.divf %26, %27 : vector<16x1xf32>
      %29 = vector.broadcast %21 : vector<16x1xf32> to vector<16x256xf32>
      %30 = arith.subf %17, %29 : vector<16x256xf32>
      %cst_19 = arith.constant 9.99999996E-13 : f32
      %31 = vector.broadcast %cst_19 : f32 to vector<16x1xf32>
      %32 = arith.addf %28, %31 : vector<16x1xf32>
      %33 = math.rsqrt %32 : vector<16x1xf32>
      %34 = vector.broadcast %33 : vector<16x1xf32> to vector<16x256xf32>
      %35 = arith.mulf %30, %34 : vector<16x256xf32>
      %c0_20 = arith.constant 0 : index
      %c0_21 = arith.constant 0 : index
      %36 = vector.load %arg6[%c0_20, %c0_21] : memref<1x256xf32, #tpu.memory_space<vmem>>, vector<1x256xf32>
      %37 = vector.broadcast %36 : vector<1x256xf32> to vector<16x256xf32>
      %38 = arith.mulf %35, %37 : vector<16x256xf32>
      %c0_22 = arith.constant 0 : index
      %c0_23 = arith.constant 0 : index
      %39 = vector.load %arg7[%c0_22, %c0_23] : memref<1x256xf32, #tpu.memory_space<vmem>>, vector<1x256xf32>
      %40 = vector.broadcast %39 : vector<1x256xf32> to vector<16x256xf32>
      %41 = arith.addf %38, %40 : vector<16x256xf32>
      %c0_24 = arith.constant 0 : index
      %c0_25 = arith.constant 0 : index
      %42 = vector.load %arg8[%c0_24, %c0_25] : memref<16x256xf32, #tpu.memory_space<vmem>>, vector<16x256xf32>
      tpu.vector_store %arg8[%c0_24, %c0_25], %41 {strides = array<i32>} : memref<16x256xf32, #tpu.memory_space<vmem>>, vector<16x256xf32>,
    } else {
    }
    return
  }
  func.func @transform_0(%arg0: i32, %arg1: i32) -> (i32, i32) {
    %c0_i32 = arith.constant 0 : i32
    return %arg0, %arg1 : i32, i32
  }
  func.func @transform_1(%arg0: i32, %arg1: i32) -> (i32, i32) {
    %c0_i32 = arith.constant 0 : i32
    %c0_i32_0 = arith.constant 0 : i32
    return %arg1, %c0_i32 : i32, i32
  }
  func.func @transform_2(%arg0: i32, %arg1: i32) -> (i32, i32) {
    %c0_i32 = arith.constant 0 : i32
    %c0_i32_0 = arith.constant 0 : i32
    %c0_i32_1 = arith.constant 0 : i32
    return %c0_i32, %c0_i32_0 : i32, i32
  }
  func.func @transform_3(%arg0: i32, %arg1: i32) -> (i32, i32) {
    %c0_i32 = arith.constant 0 : i32
    %c0_i32_0 = arith.constant 0 : i32
    return %arg0, %c0_i32 : i32, i32
  }
  func.func @transform_4(%arg0: i32, %arg1: i32) -> (i32, i32) {
    %c0_i32 = arith.constant 0 : i32
    %c0_i32_0 = arith.constant 0 : i32
    %c0_i32_1 = arith.constant 0 : i32
    return %c0_i32, %c0_i32_0 : i32, i32
  }
  func.func @transform_5(%arg0: i32, %arg1: i32) -> (i32, i32) {
    %c0_i32 = arith.constant 0 : i32
    %c0_i32_0 = arith.constant 0 : i32
    %c0_i32_1 = arith.constant 0 : i32
    return %c0_i32, %c0_i32_0 : i32, i32
  }
  func.func @transform_6(%arg0: i32, %arg1: i32) -> (i32, i32) {
    %c0_i32 = arith.constant 0 : i32
    %c0_i32_0 = arith.constant 0 : i32
    return %arg0, %c0_i32 : i32, i32
  }
}

</mosaic_0001>

<llo_original>
// kernel: seq2seq_decoder_layer.10
$region0: #{seq2seq_decoder_layer.10}
  #allocation0 [shape = 'u32[]', space=smem, size = 0x4, offset = 0x4, fixed_abs, tag = 'smem constant byte address 0x4 - core index']
  #allocation1 [shape = 'u32[144,128]{1,0:T(1,128)}', space=vmem, size = 0x12000, scoped, tag = 'internal scratch']
  #allocation2 [shape = 'f32[8,1]{1,0:T(8,128)}', space=vmem, size = 0x1000, scoped, tag = 'scratch operand']
  #allocation3 [shape = 'f32[8,1]{1,0:T(8,128)}', space=vmem, size = 0x1000, scoped, tag = 'scratch operand']
  #allocation4 [shape = 'f32[8,128]{1,0:T(8,128)}', space=vmem, size = 0x1000, scoped, tag = 'scratch operand']
  %s0 = inlined_call_operand.vmem [shape: bf16[2,8,768], index: 0, kind: input, shape index: {}, may-alias: {0,1,2}]
  %s1 = inlined_call_operand.vmem [shape: bf16[2,8,768], index: 1, kind: input, shape index: {}, may-alias: {0,1,2}]
  %s2 = inlined_call_operand.vmem [shape: bf16[2,8,768], index: 2, kind: input, shape index: {}, may-alias: {0,1,2}]
  %s3 = inlined_call_operand.vmem [shape: f32[2,1,8,8], index: 3, kind: input, shape index: {}]
  %s4 = inlined_call_operand.vmem [shape: bf16[2,8,256], index: 4, kind: output, shape index: {}]
  %s5 = sld [smem:[#allocation0]]
  $region57: #{seq2seq_decoder_layer.10} parent=0
    _
  %s7 = ssub.s32 1, %s5
  %s8 = scalar_select 0, %s7, %s5
  loop: start=0, step=1, limit=6
  $region2: #{seq2seq_decoder_layer.10} parent=0 // loop_pre_header
    _
  $region3: #{seq2seq_decoder_layer.10} parent=0 // loop_header
    %s10 = sphi 0, %s14
    %p11 = scmp.ge.s32.totalorder %s10, 6
    %s17 = sphi 0, %s43
    %s18 = sphi 0, %s39
    %s19 = sphi 0, %s35
    %s20 = sphi 0, %s31
    %s21 = sphi 0, %s17
    %s22 = sphi 0, %s18
    %s23 = sphi 0, %s19
    %s24 = sphi 0, %s20
    %s25 = sphi 0, %s21
    %s26 = sphi 0, %s22
    %s27 = sphi 0, %s23
    %s28 = sphi 0, %s24
    %s50 = sphi 0, %s52
    %s53 = sphi 0, %s50
    %s54 = sphi 0, %s53
    %s70 = sphi 0, %s54
    %s82 = sphi 0, %s84
    %s85 = sphi 0, %s82
    %s86 = sphi 0, %s85
    %s102 = sphi 0, %s86
    %s114 = sphi 0, %s116
    %s117 = sphi 0, %s114
    %s118 = sphi 0, %s117
    %s134 = sphi 0, %s118
    %s144 = sphi 0, %s146
    %s147 = sphi 0, %s144
    %s148 = sphi 0, %s147
    %s164 = sphi 0, %s148
    %s174 = sphi 0, %s176
    %s177 = sphi 0, %s174
    %s178 = sphi 0, %s177
    %s194 = sphi 0, %s178
  $region4: #{seq2seq_decoder_layer.10} parent=0 // loop_header_branch
    %13 = sbr.rel (%p11) target = $region8
  $region5: #{seq2seq_decoder_layer.10} parent=0 // loop_body
    %s15 = ssub.s32 %s10, 1
    %s16 = ssub.s32 %s10, 2
    %s29 = sadd.s32 1, %s20
    %p30 = scmp.ge.s32.totalorder %s29, 1
    %s31 = scalar_select %p30, 0, %s29
    %s32 = sadd.s32 1, %s19
    %s33 = scalar_select %p30, %s32, %s19
    %p34 = scmp.ge.s32.totalorder %s33, 1
    %s35 = scalar_select %p34, 0, %s33
    %s36 = sadd.s32 1, %s18
    %s37 = scalar_select %p34, %s36, %s18
    %p38 = scmp.ge.s32.totalorder %s37, 2
    %s39 = scalar_select %p38, 0, %s37
    %s40 = sadd.s32 1, %s17
    %s41 = scalar_select %p38, %s40, %s17
    %p42 = scmp.ge.s32.totalorder %s41, 2
    %s43 = scalar_select %p42, 0, %s41
    %s44 = ssub.s32 %s17, %s43
    %s45 = ssub.s32 %s19, %s35
    %s46 = sor.u32 %s44, %s45
    %s47 = ssub.s32 %s18, %s39
    %s48 = sor.u32 %s46, %s47
    %p49 = scmp.eq.s32.totalorder %s48, 0
    %s51 = sadd.s32 %s50, 1
    %s52 = scalar_select %p49, %s50, %s51
    %p55 = pneg %p49
    %p56 = scmp.eq.s32.totalorder %s10, 3
    %p57 = por %p55, %p56
    %p58 = scmp.ne.s32.totalorder %s50, %s53
    %p59 = scmp.eq.s32.totalorder %s10, 0
    %p60 = por %p58, %p59
    %p61 = scmp.ne.s32.totalorder %s50, %s53
    %p62 = scmp.eq.s32.totalorder %s15, 3
    %p63 = por %p61, %p62
    %p64 = scmp.ne.s32.totalorder %s53, %s54
    %p65 = scmp.eq.s32.totalorder %s15, 0
    %p66 = por %p64, %p65
    %p67 = scmp.ne.s32.totalorder %s53, %s54
    %p68 = scmp.eq.s32.totalorder %s16, 3
    %p69 = por %p67, %p68
    %p71 = scmp.ne.s32.totalorder %s54, %s70
    %p72 = scmp.eq.s32.totalorder %s16, 0
    %p73 = por %p71, %p72
    %s74 = sadd.s32 %s18, 2
    %s75 = sadd.s32 %s39, 2
    %s76 = ssub.s32 %s17, %s43
    %s77 = ssub.s32 %s20, %s31
    %s78 = sor.u32 %s76, %s77
    %s79 = ssub.s32 %s74, %s75
    %s80 = sor.u32 %s78, %s79
    %p81 = scmp.eq.s32.totalorder %s80, 0
    %s83 = sadd.s32 %s82, 1
    %s84 = scalar_select %p81, %s82, %s83
    %p87 = pneg %p81
    %p88 = scmp.eq.s32.totalorder %s10, 3
    %p89 = por %p87, %p88
    %p90 = scmp.ne.s32.totalorder %s82, %s85
    %p91 = scmp.eq.s32.totalorder %s10, 0
    %p92 = por %p90, %p91
    %p93 = scmp.ne.s32.totalorder %s82, %s85
    %p94 = scmp.eq.s32.totalorder %s15, 3
    %p95 = por %p93, %p94
    %p96 = scmp.ne.s32.totalorder %s85, %s86
    %p97 = scmp.eq.s32.totalorder %s15, 0
    %p98 = por %p96, %p97
    %p99 = scmp.ne.s32.totalorder %s85, %s86
    %p100 = scmp.eq.s32.totalorder %s16, 3
    %p101 = por %p99, %p100
    %p103 = scmp.ne.s32.totalorder %s86, %s102
    %p104 = scmp.eq.s32.totalorder %s16, 0
    %p105 = por %p103, %p104
    %s106 = sadd.s32 %s18, 4
    %s107 = sadd.s32 %s39, 4
    %s108 = ssub.s32 %s17, %s43
    %s109 = ssub.s32 %s20, %s31
    %s110 = sor.u32 %s108, %s109
    %s111 = ssub.s32 %s106, %s107
    %s112 = sor.u32 %s110, %s111
    %p113 = scmp.eq.s32.totalorder %s112, 0
    %s115 = sadd.s32 %s114, 1
    %s116 = scalar_select %p113, %s114, %s115
    %p119 = pneg %p113
    %p120 = scmp.eq.s32.totalorder %s10, 3
    %p121 = por %p119, %p120
    %p122 = scmp.ne.s32.totalorder %s114, %s117
    %p123 = scmp.eq.s32.totalorder %s10, 0
    %p124 = por %p122, %p123
    %p125 = scmp.ne.s32.totalorder %s114, %s117
    %p126 = scmp.eq.s32.totalorder %s15, 3
    %p127 = por %p125, %p126
    %p128 = scmp.ne.s32.totalorder %s117, %s118
    %p129 = scmp.eq.s32.totalorder %s15, 0
    %p130 = por %p128, %p129
    %p131 = scmp.ne.s32.totalorder %s117, %s118
    %p132 = scmp.eq.s32.totalorder %s16, 3
    %p133 = por %p131, %p132
    %p135 = scmp.ne.s32.totalorder %s118, %s134
    %p136 = scmp.eq.s32.totalorder %s16, 0
    %p137 = por %p135, %p136
    %s138 = ssub.s32 %s17, %s43
    %s139 = ssub.s32 %s19, %s35
    %s140 = sor.u32 %s138, %s139
    %s141 = ssub.s32 %s20, %s31
    %s142 = sor.u32 %s140, %s141
    %p143 = scmp.eq.s32.totalorder %s142, 0
    %s145 = sadd.s32 %s144, 1
    %s146 = scalar_select %p143, %s144, %s145
    %p149 = pneg %p143
    %p150 = scmp.eq.s32.totalorder %s10, 3
    %p151 = por %p149, %p150
    %p152 = scmp.ne.s32.totalorder %s144, %s147
    %p153 = scmp.eq.s32.totalorder %s10, 0
    %p154 = por %p152, %p153
    %p155 = scmp.ne.s32.totalorder %s144, %s147
    %p156 = scmp.eq.s32.totalorder %s15, 3
    %p157 = por %p155, %p156
    %p158 = scmp.ne.s32.totalorder %s147, %s148
    %p159 = scmp.eq.s32.totalorder %s15, 0
    %p160 = por %p158, %p159
    %p161 = scmp.ne.s32.totalorder %s147, %s148
    %p162 = scmp.eq.s32.totalorder %s16, 3
    %p163 = por %p161, %p162
    %p165 = scmp.ne.s32.totalorder %s148, %s164
    %p166 = scmp.eq.s32.totalorder %s16, 0
    %p167 = por %p165, %p166
    %s168 = ssub.s32 %s17, %s43
    %s169 = ssub.s32 %s19, %s35
    %s170 = sor.u32 %s168, %s169
    %s171 = ssub.s32 %s18, %s39
    %s172 = sor.u32 %s170, %s171
    %p173 = scmp.eq.s32.totalorder %s172, 0
    %s175 = sadd.s32 %s174, 1
    %s176 = scalar_select %p173, %s174, %s175
    %p179 = pneg %p173
    %p180 = scmp.eq.s32.totalorder %s10, 3
    %p181 = por %p179, %p180
    %p182 = scmp.ne.s32.totalorder %s174, %s177
    %p183 = scmp.eq.s32.totalorder %s10, 0
    %p184 = por %p182, %p183
    %p185 = scmp.ne.s32.totalorder %s174, %s177
    %p186 = scmp.eq.s32.totalorder %s15, 3
    %p187 = por %p185, %p186
    %p188 = scmp.ne.s32.totalorder %s177, %s178
    %p189 = scmp.eq.s32.totalorder %s15, 0
    %p190 = por %p188, %p189
    %p191 = scmp.ne.s32.totalorder %s177, %s178
    %p192 = scmp.eq.s32.totalorder %s16, 3
    %p193 = por %p191, %p192
    %p195 = scmp.ne.s32.totalorder %s178, %s194
    %p196 = scmp.eq.s32.totalorder %s16, 0
    %p197 = por %p195, %p196
    %p198 = scmp.le.s32.totalorder 1, %s10
    %p199 = scmp.lt.s32.totalorder %s10, 5
    %p200 = pnand %p198, %p199
    %p201 = pneg %p200
    // Predicated region
    $region9: #{seq2seq_decoder_layer.10} parent=5 // pred_check
      _
    $region10: #{seq2seq_decoder_layer.10} parent=5 // pred_check_branch
      %203 = sbr.rel (%p200) target = $region12
    $region11: #{seq2seq_decoder_layer.10} parent=5 // pred_region
      %s204 = ssub.s32 %s10, 1
    $region12: #{seq2seq_decoder_layer.10} parent=5 // pred_fallthru
      _
    %p205 = scmp.lt.s32.totalorder %s10, 4
    // Predicated region
    $region13: #{seq2seq_decoder_layer.10} parent=5 // pred_check
      %p206 = pneg %p205
    $region14: #{seq2seq_decoder_layer.10} parent=5 // pred_check_branch
      %208 = sbr.rel (%p206) target = $region16
    $region15: #{seq2seq_decoder_layer.10} parent=5 // pred_region
      // Predicated region
      $region17: #{seq2seq_decoder_layer.10} parent=15 // pred_check
        %p209 = pneg %p60
      $region18: #{seq2seq_decoder_layer.10} parent=15 // pred_check_branch
        %211 = sbr.rel (%p209) target = $region20
      $region19: #{seq2seq_decoder_layer.10} parent=15 // pred_region
        %p212 = scmp.lt.s32.totalorder %s17, 1
        %s213 = scalar_select %p212, %s17, 1
        %p214 = scmp.lt.s32.totalorder %s19, 0
        %s215 = scalar_select %p214, %s19, 0
        %p216 = scmp.lt.s32.totalorder %s18, 5
        %s217 = scalar_select %p216, %s18, 5
        %s218 = smul.addr %s215, 6
        %s219 = sadd.s32 %s217, %s218
        %s220 = smul.addr %s213, 6
        %s221 = sadd.s32 %s219, %s220
        %s222 = smul.addr %s221, 4
        %s223 = scalar_lea.vmem %s0, %s222
      $region20: #{seq2seq_decoder_layer.10} parent=15 // pred_fallthru
        _
      // Predicated region
      $region21: #{seq2seq_decoder_layer.10} parent=15 // pred_check
        %p224 = pneg %p92
      $region22: #{seq2seq_decoder_layer.10} parent=15 // pred_check_branch
        %226 = sbr.rel (%p224) target = $region24
      $region23: #{seq2seq_decoder_layer.10} parent=15 // pred_region
        %s227 = sadd.s32 %s18, 2
        %p228 = scmp.lt.s32.totalorder %s17, 1
        %s229 = scalar_select %p228, %s17, 1
        %p230 = scmp.lt.s32.totalorder %s20, 0
        %s231 = scalar_select %p230, %s20, 0
        %p232 = scmp.lt.s32.totalorder %s227, 5
        %s233 = scalar_select %p232, %s227, 5
        %s234 = smul.addr %s231, 6
        %s235 = sadd.s32 %s233, %s234
        %s236 = smul.addr %s229, 6
        %s237 = sadd.s32 %s235, %s236
        %s238 = smul.addr %s237, 4
        %s239 = scalar_lea.vmem %s1, %s238
        %s240 = sadd.s32 %s18, 2
      $region24: #{seq2seq_decoder_layer.10} parent=15 // pred_fallthru
        _
      // Predicated region
      $region25: #{seq2seq_decoder_layer.10} parent=15 // pred_check
        %p241 = pneg %p124
      $region26: #{seq2seq_decoder_layer.10} parent=15 // pred_check_branch
        %243 = sbr.rel (%p241) target = $region28
      $region27: #{seq2seq_decoder_layer.10} parent=15 // pred_region
        %s244 = sadd.s32 %s18, 4
        %p245 = scmp.lt.s32.totalorder %s17, 1
        %s246 = scalar_select %p245, %s17, 1
        %p247 = scmp.lt.s32.totalorder %s20, 0
        %s248 = scalar_select %p247, %s20, 0
        %p249 = scmp.lt.s32.totalorder %s244, 5
        %s250 = scalar_select %p249, %s244, 5
        %s251 = smul.addr %s248, 6
        %s252 = sadd.s32 %s250, %s251
        %s253 = smul.addr %s246, 6
        %s254 = sadd.s32 %s252, %s253
        %s255 = smul.addr %s254, 4
        %s256 = scalar_lea.vmem %s2, %s255
        %s257 = sadd.s32 %s18, 4
      $region28: #{seq2seq_decoder_layer.10} parent=15 // pred_fallthru
        _
      // Predicated region
      $region29: #{seq2seq_decoder_layer.10} parent=15 // pred_check
        %p258 = pneg %p154
      $region30: #{seq2seq_decoder_layer.10} parent=15 // pred_check_branch
        %260 = sbr.rel (%p258) target = $region32
      $region31: #{seq2seq_decoder_layer.10} parent=15 // pred_region
        %p261 = scmp.lt.s32.totalorder %s17, 1
        %s262 = scalar_select %p261, %s17, 1
        %p263 = scmp.lt.s32.totalorder %s19, 0
        %s264 = scalar_select %p263, %s19, 0
        %p265 = scmp.lt.s32.totalorder %s20, 0
        %s266 = scalar_select %p265, %s20, 0
        %s267 = sadd.s32 %s266, %s264
        %s268 = sadd.s32 %s267, %s262
        %s269 = smul.addr %s268, 8
        %s270 = scalar_lea.vmem %s3, %s269
      $region32: #{seq2seq_decoder_layer.10} parent=15 // pred_fallthru
        _
    $region16: #{seq2seq_decoder_layer.10} parent=5 // pred_fallthru
      _
    %p271 = scmp.le.s32.totalorder 1, %s10
    %p272 = scmp.lt.s32.totalorder %s10, 5
    %p273 = pnand %p271, %p272
    %p274 = pneg %p273
    // Predicated region
    $region33: #{seq2seq_decoder_layer.10} parent=5 // pred_check
      _
    $region34: #{seq2seq_decoder_layer.10} parent=5 // pred_check_branch
      %276 = sbr.rel (%p273) target = $region36
    $region35: #{seq2seq_decoder_layer.10} parent=5 // pred_region
      %s277 = ssub.s32 %s10, 1
      %p278 = scmp.lt.s32.totalorder %s21, 1
      %s279 = scalar_select %p278, %s21, 1
      %p280 = scmp.lt.s32.totalorder %s23, 0
      %s281 = scalar_select %p280, %s23, 0
      %p282 = scmp.lt.s32.totalorder %s22, 5
      %s283 = scalar_select %p282, %s22, 5
      %s284 = smul.addr %s281, 6
      %s285 = sadd.s32 %s283, %s284
      %s286 = smul.addr %s279, 6
      %s287 = sadd.s32 %s285, %s286
      %s288 = smul.addr %s287, 4
      %s289 = scalar_lea.vmem %s0, %s288
      %p290 = pneg %p66
      %p291 = pneg %p63
      %s292 = sadd.s32 %s22, 2
      %p293 = scmp.lt.s32.totalorder %s21, 1
      %s294 = scalar_select %p293, %s21, 1
      %p295 = scmp.lt.s32.totalorder %s24, 0
      %s296 = scalar_select %p295, %s24, 0
      %p297 = scmp.lt.s32.totalorder %s292, 5
      %s298 = scalar_select %p297, %s292, 5
      %s299 = smul.addr %s296, 6
      %s300 = sadd.s32 %s298, %s299
      %s301 = smul.addr %s294, 6
      %s302 = sadd.s32 %s300, %s301
      %s303 = smul.addr %s302, 4
      %s304 = scalar_lea.vmem %s1, %s303
      %p305 = pneg %p98
      %p306 = pneg %p95
      %s307 = sadd.s32 %s22, 4
      %p308 = scmp.lt.s32.totalorder %s21, 1
      %s309 = scalar_select %p308, %s21, 1
      %p310 = scmp.lt.s32.totalorder %s24, 0
      %s311 = scalar_select %p310, %s24, 0
      %p312 = scmp.lt.s32.totalorder %s307, 5
      %s313 = scalar_select %p312, %s307, 5
      %s314 = smul.addr %s311, 6
      %s315 = sadd.s32 %s313, %s314
      %s316 = smul.addr %s309, 6
      %s317 = sadd.s32 %s315, %s316
      %s318 = smul.addr %s317, 4
      %s319 = scalar_lea.vmem %s2, %s318
      %p320 = pneg %p130
      %p321 = pneg %p127
      %p322 = scmp.lt.s32.totalorder %s21, 1
      %s323 = scalar_select %p322, %s21, 1
      %p324 = scmp.lt.s32.totalorder %s23, 0
      %s325 = scalar_select %p324, %s23, 0
      %p326 = scmp.lt.s32.totalorder %s24, 0
      %s327 = scalar_select %p326, %s24, 0
      %s328 = sadd.s32 %s327, %s325
      %s329 = sadd.s32 %s328, %s323
      %s330 = smul.addr %s329, 8
      %s331 = scalar_lea.vmem %s3, %s330
      %p332 = pneg %p160
      %p333 = pneg %p157
      %p334 = pneg %p190
      %p335 = pneg %p187
      %p336 = scmp.lt.s32.totalorder %s21, 1
      %s337 = scalar_select %p336, %s21, 1
      %p338 = scmp.lt.s32.totalorder %s23, 0
      %s339 = scalar_select %p338, %s23, 0
      %p340 = scmp.lt.s32.totalorder %s22, 1
      %s341 = scalar_select %p340, %s22, 1
      %s342 = smul.addr %s339, 2
      %s343 = sadd.s32 %s341, %s342
      %s344 = smul.addr %s337, 2
      %s345 = sadd.s32 %s343, %s344
      %s346 = smul.addr %s345, 4
      %s347 = scalar_lea.vmem %s4, %s346
      %p348 = scmp.lt.s32.totalorder %s21, 1
      %s349 = scalar_select %p348, %s21, 1
      %p350 = scmp.lt.s32.totalorder %s23, 0
      %s351 = scalar_select %p350, %s23, 0
      %p352 = scmp.lt.s32.totalorder %s22, 5
      %s353 = scalar_select %p352, %s22, 5
      %s354 = smul.addr %s351, 6
      %s355 = sadd.s32 %s353, %s354
      %s356 = smul.addr %s349, 6
      %s357 = sadd.s32 %s355, %s356
      %s358 = smul.addr %s357, 4
      %s359 = scalar_lea.vmem %s0, %s358
      %s360 = sadd.s32 %s22, 2
      %p361 = scmp.lt.s32.totalorder %s21, 1
      %s362 = scalar_select %p361, %s21, 1
      %p363 = scmp.lt.s32.totalorder %s24, 0
      %s364 = scalar_select %p363, %s24, 0
      %p365 = scmp.lt.s32.totalorder %s360, 5
      %s366 = scalar_select %p365, %s360, 5
      %s367 = smul.addr %s364, 6
      %s368 = sadd.s32 %s366, %s367
      %s369 = smul.addr %s362, 6
      %s370 = sadd.s32 %s368, %s369
      %s371 = smul.addr %s370, 4
      %s372 = scalar_lea.vmem %s1, %s371
      %s373 = sadd.s32 %s22, 2
      %s374 = sadd.s32 %s22, 4
      %p375 = scmp.lt.s32.totalorder %s21, 1
      %s376 = scalar_select %p375, %s21, 1
      %p377 = scmp.lt.s32.totalorder %s24, 0
      %s378 = scalar_select %p377, %s24, 0
      %p379 = scmp.lt.s32.totalorder %s374, 5
      %s380 = scalar_select %p379, %s374, 5
      %s381 = smul.addr %s378, 6
      %s382 = sadd.s32 %s380, %s381
      %s383 = smul.addr %s376, 6
      %s384 = sadd.s32 %s382, %s383
      %s385 = smul.addr %s384, 4
      %s386 = scalar_lea.vmem %s2, %s385
      %s387 = sadd.s32 %s22, 4
      %p388 = scmp.lt.s32.totalorder %s21, 1
      %s389 = scalar_select %p388, %s21, 1
      %p390 = scmp.lt.s32.totalorder %s23, 0
      %s391 = scalar_select %p390, %s23, 0
      %p392 = scmp.lt.s32.totalorder %s24, 0
      %s393 = scalar_select %p392, %s24, 0
      %s394 = sadd.s32 %s393, %s391
      %s395 = sadd.s32 %s394, %s389
      %s396 = smul.addr %s395, 8
      %s397 = scalar_lea.vmem %s3, %s396
      %p398 = scmp.lt.s32.totalorder %s21, 1
      %s399 = scalar_select %p398, %s21, 1
      %p400 = scmp.lt.s32.totalorder %s23, 0
      %s401 = scalar_select %p400, %s23, 0
      %p402 = scmp.lt.s32.totalorder %s22, 1
      %s403 = scalar_select %p402, %s22, 1
      %s404 = smul.addr %s401, 2
      %s405 = sadd.s32 %s403, %s404
      %s406 = smul.addr %s399, 2
      %s407 = sadd.s32 %s405, %s406
      %s408 = smul.addr %s407, 4
      %s409 = scalar_lea.vmem %s4, %s408
      %p411 = scmp.eq.s32.totalorder %s24, 0
      // Predicated region
      $region37: #{seq2seq_decoder_layer.10} parent=35 // pred_check
        %p412 = pneg %p411
      $region38: #{seq2seq_decoder_layer.10} parent=35 // pred_check_branch
        %414 = sbr.rel (%p412) target = $region40
      $region39: #{seq2seq_decoder_layer.10} parent=35 // pred_region
        %vm415 = vcmask 7168
        %416 = vst.msk [vmem:[#allocation2] sm:$0xff] %vm415, -inf
        %417 = vst.msk [vmem:[#allocation3] sm:$0xff] %vm415, 0.0
        %418 = vst [vmem:[#allocation4] sm:$0xff] 0.0
      $region40: #{seq2seq_decoder_layer.10} parent=35 // pred_fallthru
        _
      %v419 = vld [vmem:[%s397] sm:$0xff]
      %v420 = vld [vmem:[%s359] sm:$0xf]
      %v421 = vld [vmem:[%s372] sm:$0xf]
      %v422 = vld [vmem:[%s386] sm:$0xf]
      %423 = vmatprep.subr.bf16.mxu0 0
      %424 = vmatpush1.bf16.xpose.msra.mxu0 0
      %425 = vmatprep.subr.bf16.mxu0 0
      %426 = vmatpush1.bf16.xpose.msra.mxu0 0
      %427 = vmatprep.subr.bf16.mxu0 0
      %428 = vmatpush1.bf16.xpose.msra.mxu0 0
      %429 = vmatprep.subr.bf16.mxu0 0
      %430 = vmatpush1.bf16.xpose.msra.mxu0 0
      %431 = vmatprep.subr.bf16.mxu0 0
      %432 = vmatpush1.bf16.xpose.msra.mxu0 0
      %433 = vmatprep.subr.bf16.mxu0 0
      %434 = vmatpush1.bf16.xpose.msra.mxu0 0
      %435 = vmatprep.subr.bf16.mxu0 0
      %436 = vmatpush1.bf16.xpose.msra.mxu0 0
      %437 = vmatprep.subr.bf16.mxu0 0
      %438 = vmatpush1.bf16.xpose.msra.mxu0 %v421
      %439 = vmatprep.subr.bf16.mxu0 0
      %440 = vmatpush2.bf16.xpose.msra.mxu0 0
      %441 = vmatprep.subr.bf16.mxu0 0
      %442 = vmatpush2.bf16.xpose.msra.mxu0 0
      %443 = vmatprep.subr.bf16.mxu0 0
      %444 = vmatpush2.bf16.xpose.msra.mxu0 0
      %445 = vmatprep.subr.bf16.mxu0 0
      %446 = vmatpush2.bf16.xpose.msra.mxu0 0
      %447 = vmatprep.subr.bf16.mxu0 0
      %448 = vmatpush2.bf16.xpose.msra.mxu0 0
      %449 = vmatprep.subr.bf16.mxu0 0
      %450 = vmatpush2.bf16.xpose.msra.mxu0 0
      %451 = vmatprep.subr.bf16.mxu0 0
      %452 = vmatpush2.bf16.xpose.msra.mxu0 0
      %453 = vmatprep.subr.bf16.mxu0 0
      %454 = vmatpush2.bf16.xpose.msra.mxu0 0
      %455 = vmatprep.mubr.bf16.mxu0 0
      %456 = vmatmul.mubr.bf16.gmra.mxu0 %v420
      %v457 = vpop.f32.mrf.mxu0
      %v458 = vadd.f32 %v419, %v457
      %v459 = vpop.f32.mrf.mxu0
      %v460 = vpop.f32.mrf.mxu0
      %v461 = vpop.f32.mrf.mxu0
      %462 = vdwg.mxu0
      %v463 = vld [vmem:[#allocation2] sm:$0xff]
      %vm464 = vcmask 64512
      %v465 = vsel %vm464, %v458, -inf
      %466 = vmax.xlane.f32.xlu0 %v465
      %v467 = vpop.xlane.xlu0 %466
      %v468 = vmax.f32 %v463, %v467
      %v469 = vsub.f32 %v463, %v468
      %v470 = vmul.f32 %v469, 1.442695
      %v471 = vpow.pop %v470
      %473 = vset.pattern.permute.xlu0 0
      %474 = vperm.xlu0 %473, %v468
      %v475 = vpop.permute.xlu0 %474
      %v477 = vsub.f32 %v458, %v475
      %v478 = vmul.f32 %v477, 1.442695
      %v479 = vpow.pop %v478
      %v480 = vld [vmem:[#allocation3] sm:$0xff]
      %v481 = vmul.f32 %v471, %v480
      %v482 = vsel %vm464, %v479, 0.0
      %483 = vadd.xlane.f32.xlu0 %v482
      %v484 = vpop.xlane.xlu0 %483
      %v485 = vadd.f32 %v481, %v484
      %vm486 = vcmask 7168
      %487 = vst.msk [vmem:[#allocation3] sm:$0xff] %vm486, %v485
      %v488 = vld [vmem:[#allocation4] sm:$0xff]
      %490 = vset.pattern.permute.xlu0 0
      %491 = vperm.xlu0 %490, %v471
      %v492 = vpop.permute.xlu0 %491
      %v494 = vmul.f32 %v492, %v488
      %v495 = vpack.c.bf16 %v479, %v479
      %v497 = vsel %vm464, %v495, 0
      %vm499 = vcmask 1043456
      %v501 = vsel %vm499, %v422, 0
      %503 = vmatprep.subr.bf16.mxu0 0
      %504 = vmatpush1.bf16.msra.mxu0 0
      %505 = vmatprep.subr.bf16.mxu0 0
      %506 = vmatpush1.bf16.msra.mxu0 0
      %507 = vmatprep.subr.bf16.mxu0 0
      %508 = vmatpush1.bf16.msra.mxu0 0
      %509 = vmatprep.subr.bf16.mxu0 0
      %510 = vmatpush1.bf16.msra.mxu0 0
      %511 = vmatprep.subr.bf16.mxu0 0
      %512 = vmatpush1.bf16.msra.mxu0 0
      %513 = vmatprep.subr.bf16.mxu0 0
      %514 = vmatpush1.bf16.msra.mxu0 0
      %515 = vmatprep.subr.bf16.mxu0 0
      %516 = vmatpush1.bf16.msra.mxu0 0
      %517 = vmatprep.subr.bf16.mxu0 0
      %518 = vmatpush1.bf16.msra.mxu0 %v501
      %519 = vmatprep.subr.bf16.mxu0 0
      %520 = vmatpush2.bf16.msra.mxu0 0
      %521 = vmatprep.subr.bf16.mxu0 0
      %522 = vmatpush2.bf16.msra.mxu0 0
      %523 = vmatprep.subr.bf16.mxu0 0
      %524 = vmatpush2.bf16.msra.mxu0 0
      %525 = vmatprep.subr.bf16.mxu0 0
      %526 = vmatpush2.bf16.msra.mxu0 0
      %527 = vmatprep.subr.bf16.mxu0 0
      %528 = vmatpush2.bf16.msra.mxu0 0
      %529 = vmatprep.subr.bf16.mxu0 0
      %530 = vmatpush2.bf16.msra.mxu0 0
      %531 = vmatprep.subr.bf16.mxu0 0
      %532 = vmatpush2.bf16.msra.mxu0 0
      %533 = vmatprep.subr.bf16.mxu0 0
      %534 = vmatpush2.bf16.msra.mxu0 0
      %535 = vmatprep.mubr.bf16.mxu0 0
      %536 = vmatmul.mubr.bf16.gmra.mxu0 %v497
      %v537 = vpop.f32.mrf.mxu0
      %v538 = vadd.f32 0.0, %v537
      %v539 = vpop.f32.mrf.mxu0
      %v540 = vpop.f32.mrf.mxu0
      %v541 = vpop.f32.mrf.mxu0
      %542 = vdwg.mxu0
      %v543 = vadd.f32 %v494, %v538
      %544 = vst [vmem:[#allocation4] sm:$0xff] %v543
      %545 = vst.msk [vmem:[#allocation2] sm:$0xff] %vm486, %v468
      // Predicated region
      $region41: #{seq2seq_decoder_layer.10} parent=35 // pred_check
        %p546 = pneg %p411
      $region42: #{seq2seq_decoder_layer.10} parent=35 // pred_check_branch
        %548 = sbr.rel (%p546) target = $region44
      $region43: #{seq2seq_decoder_layer.10} parent=35 // pred_region
        %v549 = vld [vmem:[#allocation4] sm:$0xff]
        %v550 = vld [vmem:[#allocation3] sm:$0xff]
        %552 = vset.pattern.permute.xlu0 0
        %553 = vperm.xlu0 %552, %v550
        %v554 = vpop.permute.xlu0 %553
        %v556 = vrcp.pop %v554
        %v557 = vmul.f32 %v549, %v556
        %v558 = vpack.c.bf16 %v557, %v557
        %559 = vst [vmem:[%s409] sm:$0xf] %v558
      $region44: #{seq2seq_decoder_layer.10} parent=35 // pred_fallthru
        _
      %p560 = scmp.lt.s32.totalorder %s21, 1
      %s561 = scalar_select %p560, %s21, 1
      %p562 = scmp.lt.s32.totalorder %s23, 0
      %s563 = scalar_select %p562, %s23, 0
      %p564 = scmp.lt.s32.totalorder %s22, 1
      %s565 = scalar_select %p564, %s22, 1
      %s566 = smul.addr %s563, 2
      %s567 = sadd.s32 %s565, %s566
      %s568 = smul.addr %s561, 2
      %s569 = sadd.s32 %s567, %s568
      %s570 = smul.addr %s569, 4
      %s571 = scalar_lea.vmem %s4, %s570
      // Predicated region
      $region45: #{seq2seq_decoder_layer.10} parent=35 // pred_check
        %p572 = pneg %p187
      $region46: #{seq2seq_decoder_layer.10} parent=35 // pred_check_branch
        %574 = sbr.rel (%p572) target = $region48
      $region47: #{seq2seq_decoder_layer.10} parent=35 // pred_region
        _
      $region48: #{seq2seq_decoder_layer.10} parent=35 // pred_fallthru
        _
    $region36: #{seq2seq_decoder_layer.10} parent=5 // pred_fallthru
      _
    %p575 = scmp.le.s32.totalorder 2, %s10
    // Predicated region
    $region49: #{seq2seq_decoder_layer.10} parent=5 // pred_check
      %p576 = pneg %p575
    $region50: #{seq2seq_decoder_layer.10} parent=5 // pred_check_branch
      %578 = sbr.rel (%p576) target = $region52
    $region51: #{seq2seq_decoder_layer.10} parent=5 // pred_region
      %s579 = ssub.s32 %s10, 2
      // Predicated region
      $region53: #{seq2seq_decoder_layer.10} parent=51 // pred_check
        %p580 = pneg %p193
      $region54: #{seq2seq_decoder_layer.10} parent=51 // pred_check_branch
        %582 = sbr.rel (%p580) target = $region56
      $region55: #{seq2seq_decoder_layer.10} parent=51 // pred_region
        %p583 = scmp.lt.s32.totalorder %s25, 1
        %s584 = scalar_select %p583, %s25, 1
        %p585 = scmp.lt.s32.totalorder %s27, 0
        %s586 = scalar_select %p585, %s27, 0
        %p587 = scmp.lt.s32.totalorder %s26, 1
        %s588 = scalar_select %p587, %s26, 1
        %s589 = smul.addr %s586, 2
        %s590 = sadd.s32 %s588, %s589
        %s591 = smul.addr %s584, 2
        %s592 = sadd.s32 %s590, %s591
        %s593 = smul.addr %s592, 4
        %s594 = scalar_lea.vmem %s4, %s593
      $region56: #{seq2seq_decoder_layer.10} parent=51 // pred_fallthru
        _
    $region52: #{seq2seq_decoder_layer.10} parent=5 // pred_fallthru
      _
  $region6: #{seq2seq_decoder_layer.10} parent=0 // loop_footer
    %s14 = sadd.s32 1, %s10
  $region7: #{seq2seq_decoder_layer.10} parent=0 // loop_footer_branch
    %9 = sbr.rel target = $region3
  $region8: #{seq2seq_decoder_layer.10} parent=0 // loop_exit
    _

// kernel: seq2seq_decoder_layer.9
$region0: #{seq2seq_decoder_layer.9}
  #allocation0 [shape = 'u32[]', space=smem, size = 0x4, offset = 0x4, fixed_abs, tag = 'smem constant byte address 0x4 - core index']
  #allocation1 [shape = 'u32[144,128]{1,0:T(1,128)}', space=vmem, size = 0x12000, scoped, tag = 'internal scratch']
  #allocation2 [shape = 'f32[16,384]{1,0:T(8,128)}', space=vmem, size = 0x6000, scoped, tag = 'scratch operand']
  %s0 = inlined_call_operand.vmem [shape: bf16[16,256], index: 0, kind: input, shape index: {}]
  %s1 = inlined_call_operand.hbm [shape: bf16[256,768], index: 1, kind: input, shape index: {}]
  %s2 = inlined_call_operand.vmem [shape: f32[1,768], index: 2, kind: input, shape index: {}]
  %s3 = inlined_call_operand.vmem [shape: bf16[16,768], index: 3, kind: output, shape index: {}]
  %s4 = sld [smem:[#allocation0]]
  $region79: #{seq2seq_decoder_layer.9} parent=0
    _
  %s6 = ssub.s32 1, %s4
  %s7 = scalar_select 0, %s6, %s4
  $region1: #{seq2seq_decoder_layer.9} parent=0
    #allocation3 [shape = 'u8[393216]{0}', space=vmem, size = 0x60000, scoped, tag = 'input window, operand 1']
    #allocation4 [shape = 's32[2]{0}', space=sflag, size = 0x8, scoped, tag = 'scoped memory for seq2seq_decoder_layer.9']
    #allocation5 [shape = 'u8[24576]{0}', space=vmem, size = 0x6000, scoped, tag = 'output window, operand 0']
    %8 = vsyncpa [#allocation4], 0
    %s9 = scalar_lea.sflag [#allocation4], 1
    %10 = vsyncpa %s9, 0
    loop: start=0, step=1, limit=4
    $region2: #{seq2seq_decoder_layer.9} parent=1 // loop_pre_header
      _
    $region3: #{seq2seq_decoder_layer.9} parent=1 // loop_header
      %s12 = sphi 0, %s16
      %p13 = scmp.ge.s32.totalorder %s12, 4
      %s19 = sphi 0, %s38
      %s20 = sphi 0, %s34
      %s21 = sphi 0, %s30
      %s22 = sphi 0, %s19
      %s23 = sphi 0, %s20
      %s24 = sphi 0, %s21
      %s25 = sphi 0, %s22
      %s26 = sphi 0, %s23
      %s27 = sphi 0, %s24
      %s43 = sphi 0, %s45
      %s46 = sphi 0, %s43
      %s47 = sphi 0, %s46
      %s63 = sphi 0, %s47
      %s71 = sphi 0, %s73
      %s74 = sphi 0, %s71
      %s75 = sphi 0, %s74
      %s91 = sphi 0, %s75
      %s97 = sphi 0, %s99
      %s100 = sphi 0, %s97
      %s101 = sphi 0, %s100
      %s117 = sphi 0, %s101
      %s125 = sphi 0, %s127
      %s128 = sphi 0, %s125
      %s129 = sphi 0, %s128
      %s145 = sphi 0, %s129
    $region4: #{seq2seq_decoder_layer.9} parent=1 // loop_header_branch
      %15 = sbr.rel (%p13) target = $region8
    $region5: #{seq2seq_decoder_layer.9} parent=1 // loop_body
      %s17 = ssub.s32 %s12, 1
      %s18 = ssub.s32 %s12, 2
      %s28 = sadd.s32 1, %s21
      %p29 = scmp.ge.s32.totalorder %s28, 1
      %s30 = scalar_select %p29, 0, %s28
      %s31 = sadd.s32 1, %s20
      %s32 = scalar_select %p29, %s31, %s20
      %p33 = scmp.ge.s32.totalorder %s32, 2
      %s34 = scalar_select %p33, 0, %s32
      %s35 = sadd.s32 1, %s19
      %s36 = scalar_select %p33, %s35, %s19
      %p37 = scmp.ge.s32.totalorder %s36, 1
      %s38 = scalar_select %p37, 0, %s36
      %s39 = ssub.s32 %s19, %s38
      %s40 = ssub.s32 %s21, %s30
      %s41 = sor.u32 %s39, %s40
      %p42 = scmp.eq.s32.totalorder %s41, 0
      %s44 = sadd.s32 %s43, 1
      %s45 = scalar_select %p42, %s43, %s44
      %p48 = pneg %p42
      %p49 = scmp.eq.s32.totalorder %s12, 1
      %p50 = por %p48, %p49
      %p51 = scmp.ne.s32.totalorder %s43, %s46
      %p52 = scmp.eq.s32.totalorder %s12, 0
      %p53 = por %p51, %p52
      %p54 = scmp.ne.s32.totalorder %s43, %s46
      %p55 = scmp.eq.s32.totalorder %s17, 1
      %p56 = por %p54, %p55
      %p57 = scmp.ne.s32.totalorder %s46, %s47
      %p58 = scmp.eq.s32.totalorder %s17, 0
      %p59 = por %p57, %p58
      %p60 = scmp.ne.s32.totalorder %s46, %s47
      %p61 = scmp.eq.s32.totalorder %s18, 1
      %p62 = por %p60, %p61
      %p64 = scmp.ne.s32.totalorder %s47, %s63
      %p65 = scmp.eq.s32.totalorder %s18, 0
      %p66 = por %p64, %p65
      %s67 = ssub.s32 %s21, %s30
      %s68 = ssub.s32 %s20, %s34
      %s69 = sor.u32 %s67, %s68
      %p70 = scmp.eq.s32.totalorder %s69, 0
      %s72 = sadd.s32 %s71, 1
      %s73 = scalar_select %p70, %s71, %s72
      %p76 = pneg %p70
      %p77 = scmp.eq.s32.totalorder %s12, 1
      %p78 = por %p76, %p77
      %p79 = scmp.ne.s32.totalorder %s71, %s74
      %p80 = scmp.eq.s32.totalorder %s12, 0
      %p81 = por %p79, %p80
      %p82 = scmp.ne.s32.totalorder %s71, %s74
      %p83 = scmp.eq.s32.totalorder %s17, 1
      %p84 = por %p82, %p83
      %p85 = scmp.ne.s32.totalorder %s74, %s75
      %p86 = scmp.eq.s32.totalorder %s17, 0
      %p87 = por %p85, %p86
      %p88 = scmp.ne.s32.totalorder %s74, %s75
      %p89 = scmp.eq.s32.totalorder %s18, 1
      %p90 = por %p88, %p89
      %p92 = scmp.ne.s32.totalorder %s75, %s91
      %p93 = scmp.eq.s32.totalorder %s18, 0
      %p94 = por %p92, %p93
      %s95 = ssub.s32 %s20, %s34
      %p96 = scmp.eq.s32.totalorder %s95, 0
      %s98 = sadd.s32 %s97, 1
      %s99 = scalar_select %p96, %s97, %s98
      %p102 = pneg %p96
      %p103 = scmp.eq.s32.totalorder %s12, 1
      %p104 = por %p102, %p103
      %p105 = scmp.ne.s32.totalorder %s97, %s100
      %p106 = scmp.eq.s32.totalorder %s12, 0
      %p107 = por %p105, %p106
      %p108 = scmp.ne.s32.totalorder %s97, %s100
      %p109 = scmp.eq.s32.totalorder %s17, 1
      %p110 = por %p108, %p109
      %p111 = scmp.ne.s32.totalorder %s100, %s101
      %p112 = scmp.eq.s32.totalorder %s17, 0
      %p113 = por %p111, %p112
      %p114 = scmp.ne.s32.totalorder %s100, %s101
      %p115 = scmp.eq.s32.totalorder %s18, 1
      %p116 = por %p114, %p115
      %p118 = scmp.ne.s32.totalorder %s101, %s117
      %p119 = scmp.eq.s32.totalorder %s18, 0
      %p120 = por %p118, %p119
      %s121 = ssub.s32 %s19, %s38
      %s122 = ssub.s32 %s20, %s34
      %s123 = sor.u32 %s121, %s122
      %p124 = scmp.eq.s32.totalorder %s123, 0
      %s126 = sadd.s32 %s125, 1
      %s127 = scalar_select %p124, %s125, %s126
      %p130 = pneg %p124
      %p131 = scmp.eq.s32.totalorder %s12, 1
      %p132 = por %p130, %p131
      %p133 = scmp.ne.s32.totalorder %s125, %s128
      %p134 = scmp.eq.s32.totalorder %s12, 0
      %p135 = por %p133, %p134
      %p136 = scmp.ne.s32.totalorder %s125, %s128
      %p137 = scmp.eq.s32.totalorder %s17, 1
      %p138 = por %p136, %p137
      %p139 = scmp.ne.s32.totalorder %s128, %s129
      %p140 = scmp.eq.s32.totalorder %s17, 0
      %p141 = por %p139, %p140
      %p142 = scmp.ne.s32.totalorder %s128, %s129
      %p143 = scmp.eq.s32.totalorder %s18, 1
      %p144 = por %p142, %p143
      %p146 = scmp.ne.s32.totalorder %s129, %s145
      %p147 = scmp.eq.s32.totalorder %s18, 0
      %p148 = por %p146, %p147
      %p149 = scmp.le.s32.totalorder 1, %s12
      %p150 = scmp.lt.s32.totalorder %s12, 3
      %p151 = pnand %p149, %p150
      %p152 = pneg %p151
      // Predicated region
      $region9: #{seq2seq_decoder_layer.9} parent=5 // pred_check
        _
      $region10: #{seq2seq_decoder_layer.9} parent=5 // pred_check_branch
        %154 = sbr.rel (%p151) target = $region12
      $region11: #{seq2seq_decoder_layer.9} parent=5 // pred_region
        %s155 = ssub.s32 %s12, 1
        // Predicated region
        $region13: #{seq2seq_decoder_layer.9} parent=11 // pred_check
          %p156 = pneg %p59
        $region14: #{seq2seq_decoder_layer.9} parent=11 // pred_check_branch
          %158 = sbr.rel (%p156) target = $region16
        $region15: #{seq2seq_decoder_layer.9} parent=11 // pred_region
          %s159 = smul.u32 2, %s22
          %s160 = smul.u32 2, %s24
          %p161 = scmp.lt.s32.totalorder %s159, 1
          %s162 = scalar_select %p161, %s159, 1
          %p163 = scmp.lt.s32.totalorder %s160, 1
          %s164 = scalar_select %p163, %s160, 1
          %s165 = smul.addr %s162, 2
          %s166 = sadd.s32 %s164, %s165
          %s167 = smul.addr %s166, 4
          %s168 = scalar_lea.vmem %s0, %s167
          %s169 = smul.u32 2, %s22
          %s170 = smul.u32 2, %s24
        $region16: #{seq2seq_decoder_layer.9} parent=11 // pred_fallthru
          _
      $region12: #{seq2seq_decoder_layer.9} parent=5 // pred_fallthru
        _
      %p171 = scmp.lt.s32.totalorder %s12, 2
      // Predicated region
      $region17: #{seq2seq_decoder_layer.9} parent=5 // pred_check
        %p172 = pneg %p171
      $region18: #{seq2seq_decoder_layer.9} parent=5 // pred_check_branch
        %174 = sbr.rel (%p172) target = $region20
      $region19: #{seq2seq_decoder_layer.9} parent=5 // pred_region
        // Predicated region
        $region21: #{seq2seq_decoder_layer.9} parent=19 // pred_check
          %p175 = pneg %p81
        $region22: #{seq2seq_decoder_layer.9} parent=19 // pred_check_branch
          %177 = sbr.rel (%p175) target = $region24
        $region23: #{seq2seq_decoder_layer.9} parent=19 // pred_region
          %s178 = sand.u32 %s71, 1
          %s179 = scalar_lea.sflag [#allocation4], %s178
          %s180 = sand.u32 %s71, 1
          %s181 = smul.addr %s180, 384
          %s182 = scalar_lea.vmem [#allocation3], %s181
          %s183 = smul.u32 32, %s21
          %s184 = smul.u32 3, %s20
          %s186 = ssub.s32 6144, 6144
          %187 = vsyncadd %s179, %s186
          %s188 = smul.addr %s183, 6
          %s189 = sadd.s32 %s184, %s188
          %s190 = smul.addr %s189, 64
          %s191 = scalar_lea.hbm %s1, %s190
          %s192 = sshll.u32 %s182, 4
          %s193 = int_to_ptr.vmem [resolvable:$true] %s192
          %198 = dma.hbm_to_vmem [thread:$0]  %s191, 6144, %s193, %s179, 384, 192, 12
        $region24: #{seq2seq_decoder_layer.9} parent=19 // pred_fallthru
          _
        // Predicated region
        $region25: #{seq2seq_decoder_layer.9} parent=19 // pred_check
          %p199 = pneg %p107
        $region26: #{seq2seq_decoder_layer.9} parent=19 // pred_check_branch
          %201 = sbr.rel (%p199) target = $region28
        $region27: #{seq2seq_decoder_layer.9} parent=19 // pred_region
          %s202 = smul.u32 3, %s20
          %p203 = scmp.lt.s32.totalorder %s202, 5
          %s204 = scalar_select %p203, %s202, 5
          %s205 = scalar_lea.vmem %s2, %s204
          %s206 = smul.u32 3, %s20
        $region28: #{seq2seq_decoder_layer.9} parent=19 // pred_fallthru
          _
      $region20: #{seq2seq_decoder_layer.9} parent=5 // pred_fallthru
        _
      %p207 = scmp.le.s32.totalorder 1, %s12
      %p208 = scmp.lt.s32.totalorder %s12, 3
      %p209 = pnand %p207, %p208
      %p210 = pneg %p209
      // Predicated region
      $region29: #{seq2seq_decoder_layer.9} parent=5 // pred_check
        _
      $region30: #{seq2seq_decoder_layer.9} parent=5 // pred_check_branch
        %212 = sbr.rel (%p209) target = $region32
      $region31: #{seq2seq_decoder_layer.9} parent=5 // pred_region
        %s213 = ssub.s32 %s12, 1
        %s214 = sand.u32 %s74, 1
        %s215 = scalar_lea.sflag [#allocation4], %s214
        %s216 = sand.u32 %s74, 1
        %s217 = smul.addr %s216, 384
        %s218 = scalar_lea.vmem [#allocation3], %s217
        // Predicated region
        $region33: #{seq2seq_decoder_layer.9} parent=31 // pred_check
          %p219 = pneg %p87
        $region34: #{seq2seq_decoder_layer.9} parent=31 // pred_check_branch
          %221 = sbr.rel (%p219) target = $region36
        $region35: #{seq2seq_decoder_layer.9} parent=31 // pred_region
          %222 = dma.done %s215, 6144
        $region36: #{seq2seq_decoder_layer.9} parent=31 // pred_fallthru
          _
        %s223 = smul.u32 2, %s22
        %s224 = smul.u32 2, %s24
        %p225 = scmp.lt.s32.totalorder %s223, 1
        %s226 = scalar_select %p225, %s223, 1
        %p227 = scmp.lt.s32.totalorder %s224, 1
        %s228 = scalar_select %p227, %s224, 1
        %s229 = smul.addr %s226, 2
        %s230 = sadd.s32 %s228, %s229
        %s231 = smul.addr %s230, 4
        %s232 = scalar_lea.vmem %s0, %s231
        %p233 = pneg %p59
        %p234 = pneg %p56
        %s235 = sand.u32 %s74, 1
        %s236 = scalar_lea.sflag [#allocation4], %s235
        %s237 = sand.u32 %s74, 1
        %s238 = smul.addr %s237, 384
        %s239 = scalar_lea.vmem [#allocation3], %s238
        %p240 = pneg %p87
        %p241 = pneg %p84
        %s242 = smul.u32 3, %s23
        %p243 = scmp.lt.s32.totalorder %s242, 5
        %s244 = scalar_select %p243, %s242, 5
        %s245 = scalar_lea.vmem %s2, %s244
        %p246 = pneg %p113
        %p247 = pneg %p110
        %p248 = pneg %p141
        %p249 = pneg %p138
        %s250 = sand.u32 %s128, 1
        %s251 = sand.u32 %s128, 1
        %s252 = smul.addr %s251, 24
        %s253 = scalar_lea.vmem [#allocation5], %s252
        %s254 = smul.u32 2, %s22
        %s255 = smul.u32 2, %s24
        %p256 = scmp.lt.s32.totalorder %s254, 1
        %s257 = scalar_select %p256, %s254, 1
        %p258 = scmp.lt.s32.totalorder %s255, 1
        %s259 = scalar_select %p258, %s255, 1
        %s260 = smul.addr %s257, 2
        %s261 = sadd.s32 %s259, %s260
        %s262 = smul.addr %s261, 4
        %s263 = scalar_lea.vmem %s0, %s262
        %s264 = smul.u32 2, %s22
        %s265 = smul.u32 2, %s24
        %s266 = smul.u32 32, %s24
        %s267 = smul.u32 3, %s23
        %s268 = smul.u32 3, %s23
        %p269 = scmp.lt.s32.totalorder %s268, 5
        %s270 = scalar_select %p269, %s268, 5
        %s271 = scalar_lea.vmem %s2, %s270
        %s272 = smul.u32 3, %s23
        %s273 = smul.u32 2, %s22
        %s274 = smul.u32 3, %s23
        %p276 = scmp.eq.s32.totalorder %s24, 0
        // Predicated region
        $region37: #{seq2seq_decoder_layer.9} parent=31 // pred_check
          %p277 = pneg %p276
        $region38: #{seq2seq_decoder_layer.9} parent=31 // pred_check_branch
          %279 = sbr.rel (%p277) target = $region40
        $region39: #{seq2seq_decoder_layer.9} parent=31 // pred_region
          %280 = vst [vmem:[#allocation2] sm:$0xff] 0.0
          %281 = vst [vmem:[#allocation2 + $0x8] sm:$0xff] 0.0
          %282 = vst [vmem:[#allocation2 + $0x10] sm:$0xff] 0.0
          %283 = vst [vmem:[#allocation2 + $0x18] sm:$0xff] 0.0
          %284 = vst [vmem:[#allocation2 + $0x20] sm:$0xff] 0.0
          %285 = vst [vmem:[#allocation2 + $0x28] sm:$0xff] 0.0
        $region40: #{seq2seq_decoder_layer.9} parent=31 // pred_fallthru
          _
        %v286 = vld [vmem:[#allocation2] sm:$0xff]
        %v287 = vld [vmem:[#allocation2 + $0x8] sm:$0xff]
        %v288 = vld [vmem:[#allocation2 + $0x10] sm:$0xff]
        %v289 = vld [vmem:[#allocation2 + $0x18] sm:$0xff]
        %v290 = vld [vmem:[#allocation2 + $0x20] sm:$0xff]
        %v291 = vld [vmem:[#allocation2 + $0x28] sm:$0xff]
        %v292 = vld [vmem:[%s263] sm:$0xff]
        %v293 = vld [vmem:[%s263 + $0x8] sm:$0xff]
        %v294 = vld [vmem:[%s218] sm:$0xff]
        %v295 = vld [vmem:[%s218 + $0x8] sm:$0xf]
        %v296 = vld [vmem:[%s218 + $0xc] sm:$0xff]
        %v297 = vld [vmem:[%s218 + $0x14] sm:$0xf]
        %v298 = vld [vmem:[%s218 + $0x18] sm:$0xff]
        %v299 = vld [vmem:[%s218 + $0x20] sm:$0xf]
        %v300 = vld [vmem:[%s218 + $0x24] sm:$0xff]
        %v301 = vld [vmem:[%s218 + $0x2c] sm:$0xf]
        %v302 = vld [vmem:[%s218 + $0x30] sm:$0xff]
        %v303 = vld [vmem:[%s218 + $0x38] sm:$0xf]
        %v304 = vld [vmem:[%s218 + $0x3c] sm:$0xff]
        %v305 = vld [vmem:[%s218 + $0x44] sm:$0xf]
        %v306 = vld [vmem:[%s218 + $0x48] sm:$0xff]
        %v307 = vld [vmem:[%s218 + $0x50] sm:$0xf]
        %v308 = vld [vmem:[%s218 + $0x54] sm:$0xff]
        %v309 = vld [vmem:[%s218 + $0x5c] sm:$0xf]
        %v310 = vld [vmem:[%s218 + $0x60] sm:$0xff]
        %v311 = vld [vmem:[%s218 + $0x68] sm:$0xf]
        %v312 = vld [vmem:[%s218 + $0x6c] sm:$0xff]
        %v313 = vld [vmem:[%s218 + $0x74] sm:$0xf]
        %v314 = vld [vmem:[%s218 + $0x78] sm:$0xff]
        %v315 = vld [vmem:[%s218 + $0x80] sm:$0xf]
        %v316 = vld [vmem:[%s218 + $0x84] sm:$0xff]
        %v317 = vld [vmem:[%s218 + $0x8c] sm:$0xf]
        %v318 = vld [vmem:[%s218 + $0x90] sm:$0xff]
        %v319 = vld [vmem:[%s218 + $0x98] sm:$0xf]
        %v320 = vld [vmem:[%s218 + $0x9c] sm:$0xff]
        %v321 = vld [vmem:[%s218 + $0xa4] sm:$0xf]
        %v322 = vld [vmem:[%s218 + $0xa8] sm:$0xff]
        %v323 = vld [vmem:[%s218 + $0xb0] sm:$0xf]
        %v324 = vld [vmem:[%s218 + $0xb4] sm:$0xff]
        %v325 = vld [vmem:[%s218 + $0xbc] sm:$0xf]
        %v326 = vld [vmem:[%s218 + $0xc0] sm:$0xff]
        %v327 = vld [vmem:[%s218 + $0xc8] sm:$0xf]
        %v328 = vld [vmem:[%s218 + $0xcc] sm:$0xff]
        %v329 = vld [vmem:[%s218 + $0xd4] sm:$0xf]
        %v330 = vld [vmem:[%s218 + $0xd8] sm:$0xff]
        %v331 = vld [vmem:[%s218 + $0xe0] sm:$0xf]
        %v332 = vld [vmem:[%s218 + $0xe4] sm:$0xff]
        %v333 = vld [vmem:[%s218 + $0xec] sm:$0xf]
        %v334 = vld [vmem:[%s218 + $0xf0] sm:$0xff]
        %v335 = vld [vmem:[%s218 + $0xf8] sm:$0xf]
        %v336 = vld [vmem:[%s218 + $0xfc] sm:$0xff]
        %v337 = vld [vmem:[%s218 + $0x104] sm:$0xf]
        %v338 = vld [vmem:[%s218 + $0x108] sm:$0xff]
        %v339 = vld [vmem:[%s218 + $0x110] sm:$0xf]
        %v340 = vld [vmem:[%s218 + $0x114] sm:$0xff]
        %v341 = vld [vmem:[%s218 + $0x11c] sm:$0xf]
        %v342 = vld [vmem:[%s218 + $0x120] sm:$0xff]
        %v343 = vld [vmem:[%s218 + $0x128] sm:$0xf]
        %v344 = vld [vmem:[%s218 + $0x12c] sm:$0xff]
        %v345 = vld [vmem:[%s218 + $0x134] sm:$0xf]
        %v346 = vld [vmem:[%s218 + $0x138] sm:$0xff]
        %v347 = vld [vmem:[%s218 + $0x140] sm:$0xf]
        %v348 = vld [vmem:[%s218 + $0x144] sm:$0xff]
        %v349 = vld [vmem:[%s218 + $0x14c] sm:$0xf]
        %v350 = vld [vmem:[%s218 + $0x150] sm:$0xff]
        %v351 = vld [vmem:[%s218 + $0x158] sm:$0xf]
        %v352 = vld [vmem:[%s218 + $0x15c] sm:$0xff]
        %v353 = vld [vmem:[%s218 + $0x164] sm:$0xf]
        %v354 = vld [vmem:[%s218 + $0x168] sm:$0xff]
        %v355 = vld [vmem:[%s218 + $0x170] sm:$0xf]
        %v356 = vld [vmem:[%s218 + $0x174] sm:$0xff]
        %v357 = vld [vmem:[%s218 + $0x17c] sm:$0xf]
        %v360 = vunpack.c.l.b16 %v292
        %v361 = vunpack.c.h.b16 %v292
        %v362 = vunpack.c.l.b16 %v293
        %v363 = vunpack.c.h.b16 %v293
        %v364 = vpack.c.b16 %v362, %v360
        %v365 = vpack.c.b16 %v363, %v361
        %v432 = vunpack.c.l.b16 %v294
        %v433 = vunpack.c.h.b16 %v294
        %v434 = vunpack.c.l.b16 %v295
        %v435 = vunpack.c.l.b16 %v296
        %v436 = vunpack.c.h.b16 %v296
        %v437 = vunpack.c.l.b16 %v297
        %v438 = vunpack.c.l.b16 %v298
        %v439 = vunpack.c.h.b16 %v298
        %v440 = vunpack.c.l.b16 %v299
        %v441 = vunpack.c.l.b16 %v300
        %v442 = vunpack.c.h.b16 %v300
        %v443 = vunpack.c.l.b16 %v301
        %v444 = vunpack.c.l.b16 %v302
        %v445 = vunpack.c.h.b16 %v302
        %v446 = vunpack.c.l.b16 %v303
        %v447 = vunpack.c.l.b16 %v304
        %v448 = vunpack.c.h.b16 %v304
        %v449 = vunpack.c.l.b16 %v305
        %v450 = vunpack.c.l.b16 %v306
        %v451 = vunpack.c.h.b16 %v306
        %v452 = vunpack.c.l.b16 %v307
        %v453 = vunpack.c.l.b16 %v308
        %v454 = vunpack.c.h.b16 %v308
        %v455 = vunpack.c.l.b16 %v309
        %v456 = vunpack.c.l.b16 %v310
        %v457 = vunpack.c.h.b16 %v310
        %v458 = vunpack.c.l.b16 %v311
        %v459 = vunpack.c.l.b16 %v312
        %v460 = vunpack.c.h.b16 %v312
        %v461 = vunpack.c.l.b16 %v313
        %v462 = vunpack.c.l.b16 %v314
        %v463 = vunpack.c.h.b16 %v314
        %v464 = vunpack.c.l.b16 %v315
        %v465 = vunpack.c.l.b16 %v316
        %v466 = vunpack.c.h.b16 %v316
        %v467 = vunpack.c.l.b16 %v317
        %v468 = vunpack.c.l.b16 %v318
        %v469 = vunpack.c.h.b16 %v318
        %v470 = vunpack.c.l.b16 %v319
        %v471 = vunpack.c.l.b16 %v320
        %v472 = vunpack.c.h.b16 %v320
        %v473 = vunpack.c.l.b16 %v321
        %v474 = vunpack.c.l.b16 %v322
        %v475 = vunpack.c.h.b16 %v322
        %v476 = vunpack.c.l.b16 %v323
        %v477 = vunpack.c.l.b16 %v324
        %v478 = vunpack.c.h.b16 %v324
        %v479 = vunpack.c.l.b16 %v325
        %v480 = vunpack.c.l.b16 %v326
        %v481 = vunpack.c.h.b16 %v326
        %v482 = vunpack.c.l.b16 %v327
        %v483 = vunpack.c.l.b16 %v328
        %v484 = vunpack.c.h.b16 %v328
        %v485 = vunpack.c.l.b16 %v329
        %v486 = vunpack.c.l.b16 %v330
        %v487 = vunpack.c.h.b16 %v330
        %v488 = vunpack.c.l.b16 %v331
        %v489 = vunpack.c.l.b16 %v332
        %v490 = vunpack.c.h.b16 %v332
        %v491 = vunpack.c.l.b16 %v333
        %v492 = vunpack.c.l.b16 %v334
        %v493 = vunpack.c.h.b16 %v334
        %v494 = vunpack.c.l.b16 %v335
        %v495 = vunpack.c.l.b16 %v336
        %v496 = vunpack.c.h.b16 %v336
        %v497 = vunpack.c.l.b16 %v337
        %v498 = vunpack.c.l.b16 %v338
        %v499 = vunpack.c.h.b16 %v338
        %v500 = vunpack.c.l.b16 %v339
        %v501 = vunpack.c.l.b16 %v340
        %v502 = vunpack.c.h.b16 %v340
        %v503 = vunpack.c.l.b16 %v341
        %v504 = vunpack.c.l.b16 %v342
        %v505 = vunpack.c.h.b16 %v342
        %v506 = vunpack.c.l.b16 %v343
        %v507 = vunpack.c.l.b16 %v344
        %v508 = vunpack.c.h.b16 %v344
        %v509 = vunpack.c.l.b16 %v345
        %v510 = vunpack.c.l.b16 %v346
        %v511 = vunpack.c.h.b16 %v346
        %v512 = vunpack.c.l.b16 %v347
        %v513 = vunpack.c.l.b16 %v348
        %v514 = vunpack.c.h.b16 %v348
        %v515 = vunpack.c.l.b16 %v349
        %v516 = vunpack.c.l.b16 %v350
        %v517 = vunpack.c.h.b16 %v350
        %v518 = vunpack.c.l.b16 %v351
        %v519 = vunpack.c.l.b16 %v352
        %v520 = vunpack.c.h.b16 %v352
        %v521 = vunpack.c.l.b16 %v353
        %v522 = vunpack.c.l.b16 %v354
        %v523 = vunpack.c.h.b16 %v354
        %v524 = vunpack.c.l.b16 %v355
        %v525 = vunpack.c.l.b16 %v356
        %v526 = vunpack.c.h.b16 %v356
        %v527 = vunpack.c.l.b16 %v357
        %v528 = vpack.c.b16 %v435, %v432
        %v529 = vpack.c.b16 %v436, %v433
        %v530 = vpack.c.b16 %v437, %v434
        %v531 = vpack.c.b16 %v441, %v438
        %v532 = vpack.c.b16 %v442, %v439
        %v533 = vpack.c.b16 %v443, %v440
        %v534 = vpack.c.b16 %v447, %v444
        %v535 = vpack.c.b16 %v448, %v445
        %v536 = vpack.c.b16 %v449, %v446
        %v537 = vpack.c.b16 %v453, %v450
        %v538 = vpack.c.b16 %v454, %v451
        %v539 = vpack.c.b16 %v455, %v452
        %v540 = vpack.c.b16 %v459, %v456
        %v541 = vpack.c.b16 %v460, %v457
        %v542 = vpack.c.b16 %v461, %v458
        %v543 = vpack.c.b16 %v465, %v462
        %v544 = vpack.c.b16 %v466, %v463
        %v545 = vpack.c.b16 %v467, %v464
        %v546 = vpack.c.b16 %v471, %v468
        %v547 = vpack.c.b16 %v472, %v469
        %v548 = vpack.c.b16 %v473, %v470
        %v549 = vpack.c.b16 %v477, %v474
        %v550 = vpack.c.b16 %v478, %v475
        %v551 = vpack.c.b16 %v479, %v476
        %v552 = vpack.c.b16 %v483, %v480
        %v553 = vpack.c.b16 %v484, %v481
        %v554 = vpack.c.b16 %v485, %v482
        %v555 = vpack.c.b16 %v489, %v486
        %v556 = vpack.c.b16 %v490, %v487
        %v557 = vpack.c.b16 %v491, %v488
        %v558 = vpack.c.b16 %v495, %v492
        %v559 = vpack.c.b16 %v496, %v493
        %v560 = vpack.c.b16 %v497, %v494
        %v561 = vpack.c.b16 %v501, %v498
        %v562 = vpack.c.b16 %v502, %v499
        %v563 = vpack.c.b16 %v503, %v500
        %v564 = vpack.c.b16 %v507, %v504
        %v565 = vpack.c.b16 %v508, %v505
        %v566 = vpack.c.b16 %v509, %v506
        %v567 = vpack.c.b16 %v513, %v510
        %v568 = vpack.c.b16 %v514, %v511
        %v569 = vpack.c.b16 %v515, %v512
        %v570 = vpack.c.b16 %v519, %v516
        %v571 = vpack.c.b16 %v520, %v517
        %v572 = vpack.c.b16 %v521, %v518
        %v573 = vpack.c.b16 %v525, %v522
        %v574 = vpack.c.b16 %v526, %v523
        %v575 = vpack.c.b16 %v527, %v524
        %624 = vmatprep.subr.bf16.mxu0 %v550
        %625 = vmatpush1.bf16.msra.mxu0 %v549
        %626 = vmatprep.subr.bf16.mxu0 %v547
        %627 = vmatpush1.bf16.msra.mxu0 %v546
        %628 = vmatprep.subr.bf16.mxu0 %v544
        %629 = vmatpush1.bf16.msra.mxu0 %v543
        %630 = vmatprep.subr.bf16.mxu0 %v541
        %631 = vmatpush1.bf16.msra.mxu0 %v540
        %632 = vmatprep.subr.bf16.mxu0 %v538
        %633 = vmatpush1.bf16.msra.mxu0 %v537
        %634 = vmatprep.subr.bf16.mxu0 %v535
        %635 = vmatpush1.bf16.msra.mxu0 %v534
        %636 = vmatprep.subr.bf16.mxu0 %v532
        %637 = vmatpush1.bf16.msra.mxu0 %v531
        %638 = vmatprep.subr.bf16.mxu0 %v529
        %639 = vmatpush1.bf16.msra.mxu0 %v528
        %640 = vmatprep.subr.bf16.mxu0 %v574
        %641 = vmatpush2.bf16.msra.mxu0 %v573
        %642 = vmatprep.subr.bf16.mxu0 %v571
        %643 = vmatpush2.bf16.msra.mxu0 %v570
        %644 = vmatprep.subr.bf16.mxu0 %v568
        %645 = vmatpush2.bf16.msra.mxu0 %v567
        %646 = vmatprep.subr.bf16.mxu0 %v565
        %647 = vmatpush2.bf16.msra.mxu0 %v564
        %648 = vmatprep.subr.bf16.mxu0 %v562
        %649 = vmatpush2.bf16.msra.mxu0 %v561
        %650 = vmatprep.subr.bf16.mxu0 %v559
        %651 = vmatpush2.bf16.msra.mxu0 %v558
        %652 = vmatprep.subr.bf16.mxu0 %v556
        %653 = vmatpush2.bf16.msra.mxu0 %v555
        %654 = vmatprep.subr.bf16.mxu0 %v553
        %655 = vmatpush2.bf16.msra.mxu0 %v552
        %656 = vmatprep.mubr.bf16.mxu0 %v365
        %657 = vmatmul.mubr.bf16.gmra.mxu0 %v364
        %v658 = vpop.f32.mrf.mxu0
        %v659 = vadd.f32 0.0, %v658
        %v660 = vpop.f32.mrf.mxu0
        %v661 = vadd.f32 0.0, %v660
        %v662 = vpop.f32.mrf.mxu0
        %v663 = vadd.f32 0.0, %v662
        %v664 = vpop.f32.mrf.mxu0
        %v665 = vadd.f32 0.0, %v664
        %666 = vdwg.mxu0
        %667 = vmatprep.subr.bf16.mxu0 0
        %668 = vmatpush1.bf16.msra.mxu0 %v551
        %669 = vmatprep.subr.bf16.mxu0 0
        %670 = vmatpush1.bf16.msra.mxu0 %v548
        %671 = vmatprep.subr.bf16.mxu0 0
        %672 = vmatpush1.bf16.msra.mxu0 %v545
        %673 = vmatprep.subr.bf16.mxu0 0
        %674 = vmatpush1.bf16.msra.mxu0 %v542
        %675 = vmatprep.subr.bf16.mxu0 0
        %676 = vmatpush1.bf16.msra.mxu0 %v539
        %677 = vmatprep.subr.bf16.mxu0 0
        %678 = vmatpush1.bf16.msra.mxu0 %v536
        %679 = vmatprep.subr.bf16.mxu0 0
        %680 = vmatpush1.bf16.msra.mxu0 %v533
        %681 = vmatprep.subr.bf16.mxu0 0
        %682 = vmatpush1.bf16.msra.mxu0 %v530
        %683 = vmatprep.subr.bf16.mxu0 0
        %684 = vmatpush2.bf16.msra.mxu0 %v575
        %685 = vmatprep.subr.bf16.mxu0 0
        %686 = vmatpush2.bf16.msra.mxu0 %v572
        %687 = vmatprep.subr.bf16.mxu0 0
        %688 = vmatpush2.bf16.msra.mxu0 %v569
        %689 = vmatprep.subr.bf16.mxu0 0
        %690 = vmatpush2.bf16.msra.mxu0 %v566
        %691 = vmatprep.subr.bf16.mxu0 0
        %692 = vmatpush2.bf16.msra.mxu0 %v563
        %693 = vmatprep.subr.bf16.mxu0 0
        %694 = vmatpush2.bf16.msra.mxu0 %v560
        %695 = vmatprep.subr.bf16.mxu0 0
        %696 = vmatpush2.bf16.msra.mxu0 %v557
        %697 = vmatprep.subr.bf16.mxu0 0
        %698 = vmatpush2.bf16.msra.mxu0 %v554
        %699 = vmatprep.mubr.bf16.mxu0 %v365
        %700 = vmatmul.mubr.bf16.gmra.mxu0 %v364
        %v701 = vpop.f32.mrf.mxu0
        %v702 = vadd.f32 0.0, %v701
        %v703 = vpop.f32.mrf.mxu0
        %v704 = vpop.f32.mrf.mxu0
        %v705 = vadd.f32 0.0, %v704
        %v706 = vpop.f32.mrf.mxu0
        %707 = vdwg.mxu0
        %v708 = vadd.f32 %v286, %v659
        %v709 = vadd.f32 %v287, %v661
        %v710 = vadd.f32 %v288, %v702
        %v711 = vadd.f32 %v289, %v663
        %v712 = vadd.f32 %v290, %v665
        %v713 = vadd.f32 %v291, %v705
        %714 = vst [vmem:[#allocation2] sm:$0xff] %v708
        %715 = vst [vmem:[#allocation2 + $0x8] sm:$0xff] %v709
        %716 = vst [vmem:[#allocation2 + $0x10] sm:$0xff] %v710
        %717 = vst [vmem:[#allocation2 + $0x18] sm:$0xff] %v711
        %718 = vst [vmem:[#allocation2 + $0x20] sm:$0xff] %v712
        %719 = vst [vmem:[#allocation2 + $0x28] sm:$0xff] %v713
        // Predicated region
        $region41: #{seq2seq_decoder_layer.9} parent=31 // pred_check
          %p720 = pneg %p276
        $region42: #{seq2seq_decoder_layer.9} parent=31 // pred_check_branch
          %722 = sbr.rel (%p720) target = $region44
        $region43: #{seq2seq_decoder_layer.9} parent=31 // pred_region
          %v723 = vld [vmem:[#allocation2] sm:$0xff]
          %v724 = vld [vmem:[#allocation2 + $0x8] sm:$0xff]
          %v725 = vld [vmem:[#allocation2 + $0x10] sm:$0xff]
          %v726 = vld [vmem:[#allocation2 + $0x18] sm:$0xff]
          %v727 = vld [vmem:[#allocation2 + $0x20] sm:$0xff]
          %v728 = vld [vmem:[#allocation2 + $0x28] sm:$0xff]
          %v729 = vld [vmem:[%s271] sm:$0x7]
          %v731 = vlaneseq
          %v732 = vshrl.u32 %v731, 7
          %v733 = vsub.s32 0, %v732
          %v734 = vrot.slane %v729, %v733
          %v735 = vlaneseq
          %v736 = vshrl.u32 %v735, 7
          %v737 = vsub.s32 1, %v736
          %v738 = vrot.slane %v729, %v737
          %v739 = vlaneseq
          %v740 = vshrl.u32 %v739, 7
          %v741 = vsub.s32 2, %v740
          %v742 = vrot.slane %v729, %v741
          %v746 = vadd.f32 %v723, %v734
          %v747 = vadd.f32 %v724, %v738
          %v748 = vadd.f32 %v725, %v742
          %v749 = vadd.f32 %v726, %v734
          %v750 = vadd.f32 %v727, %v738
          %v751 = vadd.f32 %v728, %v742
          %v752 = vpack.c.bf16 %v749, %v746
          %v753 = vpack.c.bf16 %v750, %v747
          %v754 = vpack.c.bf16 %v751, %v748
          %v758 = vunpack.c.l.b16 %v752
          %v759 = vunpack.c.l.b16 %v753
          %v760 = vunpack.c.l.b16 %v754
          %v761 = vunpack.c.h.b16 %v752
          %v762 = vunpack.c.h.b16 %v753
          %v763 = vunpack.c.h.b16 %v754
          %v764 = vpack.c.b16 %v759, %v758
          %v765 = vpack.c.b16 %v760, %v760
          %v766 = vpack.c.b16 %v762, %v761
          %v767 = vpack.c.b16 %v763, %v763
          %772 = vst [vmem:[%s253] sm:$0xff] %v764
          %773 = vst [vmem:[%s253 + $0x8] sm:$0xf] %v765
          %774 = vst [vmem:[%s253 + $0xc] sm:$0xff] %v766
          %775 = vst [vmem:[%s253 + $0x14] sm:$0xf] %v767
        $region44: #{seq2seq_decoder_layer.9} parent=31 // pred_fallthru
          _
        %s776 = sand.u32 %s128, 1
        %s777 = sand.u32 %s128, 1
        %s778 = smul.addr %s777, 24
        %s779 = scalar_lea.vmem [#allocation5], %s778
        // Predicated region
        $region45: #{seq2seq_decoder_layer.9} parent=31 // pred_check
          %p780 = pneg %p138
        $region46: #{seq2seq_decoder_layer.9} parent=31 // pred_check_branch
          %782 = sbr.rel (%p780) target = $region48
        $region47: #{seq2seq_decoder_layer.9} parent=31 // pred_region
          %s783 = smul.u32 2, %s22
          %s784 = smul.u32 3, %s23
          %s785 = smul.addr %s783, 6
          %s786 = sadd.s32 %s784, %s785
          %s787 = smul.addr %s786, 4
          %s788 = scalar_lea.vmem %s3, %s787
          // Predicated region
          $region49: #{seq2seq_decoder_layer.9} parent=47 // pred_check
            _
          $region50: #{seq2seq_decoder_layer.9} parent=47 // pred_check_branch
            %790 = sbr.rel (0) target = $region52
          $region51: #{seq2seq_decoder_layer.9} parent=47 // pred_region
            // Predicated region
            $region53: #{seq2seq_decoder_layer.9} parent=51 // pred_check
              _
            $region54: #{seq2seq_decoder_layer.9} parent=51 // pred_check_branch
              %792 = sbr.rel (0) target = $region56
            $region55: #{seq2seq_decoder_layer.9} parent=51 // pred_region
              %s793 = scalar_lea.vmem %s779, 8 [#allocation5]
              %s794 = scalar_lea.vmem %s788, 8
              loop: start=0, step=1, limit=1
              $region57: #{seq2seq_decoder_layer.9} parent=55 // loop_pre_header
                _
              $region58: #{seq2seq_decoder_layer.9} parent=55 // loop_header
                %s796 = sphi 0, %s800
                %p797 = scmp.ge.s32.totalorder %s796, 1
                %s801 = sphi %s779, %s779
                %s802 = sphi %s788, %s788
              $region59: #{seq2seq_decoder_layer.9} parent=55 // loop_header_branch
                %799 = sbr.rel (%p797) target = $region63
              $region60: #{seq2seq_decoder_layer.9} parent=55 // loop_body
                %v803 = vld [vmem:[%s801] sm:$0xff]
                %804 = vst [vmem:[%s802] sm:$0xff] %v803
                %v805 = vld [vmem:[%s801 + $0xc] sm:$0xff]
                %806 = vst [vmem:[%s802 + $0x18] sm:$0xff] %v805
              $region61: #{seq2seq_decoder_layer.9} parent=55 // loop_footer
                %s800 = sadd.s32 1, %s796
              $region62: #{seq2seq_decoder_layer.9} parent=55 // loop_footer_branch
                %795 = sbr.rel target = $region58
              $region63: #{seq2seq_decoder_layer.9} parent=55 // loop_exit
                _
              %s808 = ssub.s32 16, 1
              loop: start=0, step=1, limit=1
              $region64: #{seq2seq_decoder_layer.9} parent=55 // loop_pre_header
                _
              $region65: #{seq2seq_decoder_layer.9} parent=55 // loop_header
                %s810 = sphi 0, %s814
                %p811 = scmp.ge.s32.totalorder %s810, 1
                %s815 = sphi %s793, %s793
                %s816 = sphi %s794, %s794
              $region66: #{seq2seq_decoder_layer.9} parent=55 // loop_header_branch
                %813 = sbr.rel (%p811) target = $region70
              $region67: #{seq2seq_decoder_layer.9} parent=55 // loop_body
                %v817 = vld [vmem:[%s815] sm:%s808]
                %818 = vst [vmem:[%s816] sm:%s808] %v817
                %v819 = vld [vmem:[%s815 + $0xc] sm:%s808]
                %820 = vst [vmem:[%s816 + $0x18] sm:%s808] %v819
              $region68: #{seq2seq_decoder_layer.9} parent=55 // loop_footer
                %s814 = sadd.s32 1, %s810
              $region69: #{seq2seq_decoder_layer.9} parent=55 // loop_footer_branch
                %809 = sbr.rel target = $region65
              $region70: #{seq2seq_decoder_layer.9} parent=55 // loop_exit
                _
            $region56: #{seq2seq_decoder_layer.9} parent=51 // pred_fallthru
              _
          $region52: #{seq2seq_decoder_layer.9} parent=47 // pred_fallthru
            _
          %821 = vnop
        $region48: #{seq2seq_decoder_layer.9} parent=31 // pred_fallthru
          _
      $region32: #{seq2seq_decoder_layer.9} parent=5 // pred_fallthru
        _
      %p822 = scmp.le.s32.totalorder 2, %s12
      // Predicated region
      $region71: #{seq2seq_decoder_layer.9} parent=5 // pred_check
        %p823 = pneg %p822
      $region72: #{seq2seq_decoder_layer.9} parent=5 // pred_check_branch
        %825 = sbr.rel (%p823) target = $region74
      $region73: #{seq2seq_decoder_layer.9} parent=5 // pred_region
        %s826 = ssub.s32 %s12, 2
        // Predicated region
        $region75: #{seq2seq_decoder_layer.9} parent=73 // pred_check
          %p827 = pneg %p144
        $region76: #{seq2seq_decoder_layer.9} parent=73 // pred_check_branch
          %829 = sbr.rel (%p827) target = $region78
        $region77: #{seq2seq_decoder_layer.9} parent=73 // pred_region
          %s830 = sand.u32 %s129, 1
          %s831 = sand.u32 %s129, 1
          %s832 = smul.addr %s831, 24
          %s833 = scalar_lea.vmem [#allocation5], %s832
        $region78: #{seq2seq_decoder_layer.9} parent=73 // pred_fallthru
          _
      $region74: #{seq2seq_decoder_layer.9} parent=5 // pred_fallthru
        _
    $region6: #{seq2seq_decoder_layer.9} parent=1 // loop_footer
      %s16 = sadd.s32 1, %s12
    $region7: #{seq2seq_decoder_layer.9} parent=1 // loop_footer_branch
      %11 = sbr.rel target = $region3
    $region8: #{seq2seq_decoder_layer.9} parent=1 // loop_exit
      _
    %834 = vsyncpa [#allocation4], 1
    %s835 = scalar_lea.sflag [#allocation4], 1
    %836 = vsyncpa %s835, 1

// kernel: seq2seq_decoder_layer.12
$region0: #{seq2seq_decoder_layer.12}
  #allocation0 [shape = 'u32[]', space=smem, size = 0x4, offset = 0x4, fixed_abs, tag = 'smem constant byte address 0x4 - core index']
  #allocation1 [shape = 'u32[144,128]{1,0:T(1,128)}', space=vmem, size = 0x12000, scoped, tag = 'internal scratch']
  #allocation2 [shape = 'f32[16,256]{1,0:T(8,128)}', space=vmem, size = 0x4000, scoped, tag = 'scratch operand']
  %s0 = inlined_call_operand.vmem [shape: bf16[16,256], index: 0, kind: input, shape index: {}]
  %s1 = inlined_call_operand.vmem [shape: bf16[256,256], index: 1, kind: input, shape index: {}]
  %s2 = inlined_call_operand.vmem [shape: f32[1,256], index: 2, kind: input, shape index: {}]
  %s3 = inlined_call_operand.vmem [shape: bf16[16,256], index: 3, kind: output, shape index: {}]
  %s4 = sld [smem:[#allocation0]]
  $region30: #{seq2seq_decoder_layer.12} parent=0
    _
  %s6 = ssub.s32 1, %s4
  %s7 = scalar_select 0, %s6, %s4
  // Predicated region
  $region2: #{seq2seq_decoder_layer.12} parent=0 // pred_check
    _
  $region3: #{seq2seq_decoder_layer.12} parent=0 // pred_check_branch
    %9 = sbr.rel (0) target = $region5
  $region4: #{seq2seq_decoder_layer.12} parent=0 // pred_region
    _
  $region5: #{seq2seq_decoder_layer.12} parent=0 // pred_fallthru
    _
  // Predicated region
  $region6: #{seq2seq_decoder_layer.12} parent=0 // pred_check
    _
  $region7: #{seq2seq_decoder_layer.12} parent=0 // pred_check_branch
    %11 = sbr.rel (0) target = $region9
  $region8: #{seq2seq_decoder_layer.12} parent=0 // pred_region
    _
  $region9: #{seq2seq_decoder_layer.12} parent=0 // pred_fallthru
    _
  // Predicated region
  $region10: #{seq2seq_decoder_layer.12} parent=0 // pred_check
    _
  $region11: #{seq2seq_decoder_layer.12} parent=0 // pred_check_branch
    %13 = sbr.rel (0) target = $region13
  $region12: #{seq2seq_decoder_layer.12} parent=0 // pred_region
    _
  $region13: #{seq2seq_decoder_layer.12} parent=0 // pred_fallthru
    _
  %p14 = scmp.eq.s32.totalorder 0, 0
  // Predicated region
  $region14: #{seq2seq_decoder_layer.12} parent=0 // pred_check
    %p15 = pneg %p14
  $region15: #{seq2seq_decoder_layer.12} parent=0 // pred_check_branch
    %17 = sbr.rel (%p15) target = $region17
  $region16: #{seq2seq_decoder_layer.12} parent=0 // pred_region
    %18 = vst [vmem:[#allocation2] sm:$0xff] 0.0
    %19 = vst [vmem:[#allocation2 + $0x8] sm:$0xff] 0.0
    %20 = vst [vmem:[#allocation2 + $0x10] sm:$0xff] 0.0
    %21 = vst [vmem:[#allocation2 + $0x18] sm:$0xff] 0.0
  $region17: #{seq2seq_decoder_layer.12} parent=0 // pred_fallthru
    _
  %v22 = vld [vmem:[#allocation2] sm:$0xff]
  %v23 = vld [vmem:[#allocation2 + $0x8] sm:$0xff]
  %v24 = vld [vmem:[#allocation2 + $0x10] sm:$0xff]
  %v25 = vld [vmem:[#allocation2 + $0x18] sm:$0xff]
  %v26 = vld [vmem:[%s0] sm:$0xff]
  %v27 = vld [vmem:[%s0 + $0x8] sm:$0xff]
  %v28 = vld [vmem:[%s1] sm:$0xff]
  %v29 = vld [vmem:[%s1 + $0x8] sm:$0xff]
  %v30 = vld [vmem:[%s1 + $0x10] sm:$0xff]
  %v31 = vld [vmem:[%s1 + $0x18] sm:$0xff]
  %v32 = vld [vmem:[%s1 + $0x20] sm:$0xff]
  %v33 = vld [vmem:[%s1 + $0x28] sm:$0xff]
  %v34 = vld [vmem:[%s1 + $0x30] sm:$0xff]
  %v35 = vld [vmem:[%s1 + $0x38] sm:$0xff]
  %v36 = vld [vmem:[%s1 + $0x40] sm:$0xff]
  %v37 = vld [vmem:[%s1 + $0x48] sm:$0xff]
  %v38 = vld [vmem:[%s1 + $0x50] sm:$0xff]
  %v39 = vld [vmem:[%s1 + $0x58] sm:$0xff]
  %v40 = vld [vmem:[%s1 + $0x60] sm:$0xff]
  %v41 = vld [vmem:[%s1 + $0x68] sm:$0xff]
  %v42 = vld [vmem:[%s1 + $0x70] sm:$0xff]
  %v43 = vld [vmem:[%s1 + $0x78] sm:$0xff]
  %v44 = vld [vmem:[%s1 + $0x80] sm:$0xff]
  %v45 = vld [vmem:[%s1 + $0x88] sm:$0xff]
  %v46 = vld [vmem:[%s1 + $0x90] sm:$0xff]
  %v47 = vld [vmem:[%s1 + $0x98] sm:$0xff]
  %v48 = vld [vmem:[%s1 + $0xa0] sm:$0xff]
  %v49 = vld [vmem:[%s1 + $0xa8] sm:$0xff]
  %v50 = vld [vmem:[%s1 + $0xb0] sm:$0xff]
  %v51 = vld [vmem:[%s1 + $0xb8] sm:$0xff]
  %v52 = vld [vmem:[%s1 + $0xc0] sm:$0xff]
  %v53 = vld [vmem:[%s1 + $0xc8] sm:$0xff]
  %v54 = vld [vmem:[%s1 + $0xd0] sm:$0xff]
  %v55 = vld [vmem:[%s1 + $0xd8] sm:$0xff]
  %v56 = vld [vmem:[%s1 + $0xe0] sm:$0xff]
  %v57 = vld [vmem:[%s1 + $0xe8] sm:$0xff]
  %v58 = vld [vmem:[%s1 + $0xf0] sm:$0xff]
  %v59 = vld [vmem:[%s1 + $0xf8] sm:$0xff]
  %v62 = vunpack.c.l.b16 %v26
  %v63 = vunpack.c.h.b16 %v26
  %v64 = vunpack.c.l.b16 %v27
  %v65 = vunpack.c.h.b16 %v27
  %v66 = vpack.c.b16 %v64, %v62
  %v67 = vpack.c.b16 %v65, %v63
  %v102 = vunpack.c.l.b16 %v28
  %v103 = vunpack.c.h.b16 %v28
  %v104 = vunpack.c.l.b16 %v29
  %v105 = vunpack.c.h.b16 %v29
  %v106 = vunpack.c.l.b16 %v30
  %v107 = vunpack.c.h.b16 %v30
  %v108 = vunpack.c.l.b16 %v31
  %v109 = vunpack.c.h.b16 %v31
  %v110 = vunpack.c.l.b16 %v32
  %v111 = vunpack.c.h.b16 %v32
  %v112 = vunpack.c.l.b16 %v33
  %v113 = vunpack.c.h.b16 %v33
  %v114 = vunpack.c.l.b16 %v34
  %v115 = vunpack.c.h.b16 %v34
  %v116 = vunpack.c.l.b16 %v35
  %v117 = vunpack.c.h.b16 %v35
  %v118 = vunpack.c.l.b16 %v36
  %v119 = vunpack.c.h.b16 %v36
  %v120 = vunpack.c.l.b16 %v37
  %v121 = vunpack.c.h.b16 %v37
  %v122 = vunpack.c.l.b16 %v38
  %v123 = vunpack.c.h.b16 %v38
  %v124 = vunpack.c.l.b16 %v39
  %v125 = vunpack.c.h.b16 %v39
  %v126 = vunpack.c.l.b16 %v40
  %v127 = vunpack.c.h.b16 %v40
  %v128 = vunpack.c.l.b16 %v41
  %v129 = vunpack.c.h.b16 %v41
  %v130 = vunpack.c.l.b16 %v42
  %v131 = vunpack.c.h.b16 %v42
  %v132 = vunpack.c.l.b16 %v43
  %v133 = vunpack.c.h.b16 %v43
  %v134 = vunpack.c.l.b16 %v44
  %v135 = vunpack.c.h.b16 %v44
  %v136 = vunpack.c.l.b16 %v45
  %v137 = vunpack.c.h.b16 %v45
  %v138 = vunpack.c.l.b16 %v46
  %v139 = vunpack.c.h.b16 %v46
  %v140 = vunpack.c.l.b16 %v47
  %v141 = vunpack.c.h.b16 %v47
  %v142 = vunpack.c.l.b16 %v48
  %v143 = vunpack.c.h.b16 %v48
  %v144 = vunpack.c.l.b16 %v49
  %v145 = vunpack.c.h.b16 %v49
  %v146 = vunpack.c.l.b16 %v50
  %v147 = vunpack.c.h.b16 %v50
  %v148 = vunpack.c.l.b16 %v51
  %v149 = vunpack.c.h.b16 %v51
  %v150 = vunpack.c.l.b16 %v52
  %v151 = vunpack.c.h.b16 %v52
  %v152 = vunpack.c.l.b16 %v53
  %v153 = vunpack.c.h.b16 %v53
  %v154 = vunpack.c.l.b16 %v54
  %v155 = vunpack.c.h.b16 %v54
  %v156 = vunpack.c.l.b16 %v55
  %v157 = vunpack.c.h.b16 %v55
  %v158 = vunpack.c.l.b16 %v56
  %v159 = vunpack.c.h.b16 %v56
  %v160 = vunpack.c.l.b16 %v57
  %v161 = vunpack.c.h.b16 %v57
  %v162 = vunpack.c.l.b16 %v58
  %v163 = vunpack.c.h.b16 %v58
  %v164 = vunpack.c.l.b16 %v59
  %v165 = vunpack.c.h.b16 %v59
  %v166 = vpack.c.b16 %v104, %v102
  %v167 = vpack.c.b16 %v105, %v103
  %v168 = vpack.c.b16 %v108, %v106
  %v169 = vpack.c.b16 %v109, %v107
  %v170 = vpack.c.b16 %v112, %v110
  %v171 = vpack.c.b16 %v113, %v111
  %v172 = vpack.c.b16 %v116, %v114
  %v173 = vpack.c.b16 %v117, %v115
  %v174 = vpack.c.b16 %v120, %v118
  %v175 = vpack.c.b16 %v121, %v119
  %v176 = vpack.c.b16 %v124, %v122
  %v177 = vpack.c.b16 %v125, %v123
  %v178 = vpack.c.b16 %v128, %v126
  %v179 = vpack.c.b16 %v129, %v127
  %v180 = vpack.c.b16 %v132, %v130
  %v181 = vpack.c.b16 %v133, %v131
  %v182 = vpack.c.b16 %v136, %v134
  %v183 = vpack.c.b16 %v137, %v135
  %v184 = vpack.c.b16 %v140, %v138
  %v185 = vpack.c.b16 %v141, %v139
  %v186 = vpack.c.b16 %v144, %v142
  %v187 = vpack.c.b16 %v145, %v143
  %v188 = vpack.c.b16 %v148, %v146
  %v189 = vpack.c.b16 %v149, %v147
  %v190 = vpack.c.b16 %v152, %v150
  %v191 = vpack.c.b16 %v153, %v151
  %v192 = vpack.c.b16 %v156, %v154
  %v193 = vpack.c.b16 %v157, %v155
  %v194 = vpack.c.b16 %v160, %v158
  %v195 = vpack.c.b16 %v161, %v159
  %v196 = vpack.c.b16 %v164, %v162
  %v197 = vpack.c.b16 %v165, %v163
  %230 = vmatprep.subr.bf16.mxu0 %v181
  %231 = vmatpush1.bf16.msra.mxu0 %v180
  %232 = vmatprep.subr.bf16.mxu0 %v179
  %233 = vmatpush1.bf16.msra.mxu0 %v178
  %234 = vmatprep.subr.bf16.mxu0 %v177
  %235 = vmatpush1.bf16.msra.mxu0 %v176
  %236 = vmatprep.subr.bf16.mxu0 %v175
  %237 = vmatpush1.bf16.msra.mxu0 %v174
  %238 = vmatprep.subr.bf16.mxu0 %v173
  %239 = vmatpush1.bf16.msra.mxu0 %v172
  %240 = vmatprep.subr.bf16.mxu0 %v171
  %241 = vmatpush1.bf16.msra.mxu0 %v170
  %242 = vmatprep.subr.bf16.mxu0 %v169
  %243 = vmatpush1.bf16.msra.mxu0 %v168
  %244 = vmatprep.subr.bf16.mxu0 %v167
  %245 = vmatpush1.bf16.msra.mxu0 %v166
  %246 = vmatprep.subr.bf16.mxu0 %v197
  %247 = vmatpush2.bf16.msra.mxu0 %v196
  %248 = vmatprep.subr.bf16.mxu0 %v195
  %249 = vmatpush2.bf16.msra.mxu0 %v194
  %250 = vmatprep.subr.bf16.mxu0 %v193
  %251 = vmatpush2.bf16.msra.mxu0 %v192
  %252 = vmatprep.subr.bf16.mxu0 %v191
  %253 = vmatpush2.bf16.msra.mxu0 %v190
  %254 = vmatprep.subr.bf16.mxu0 %v189
  %255 = vmatpush2.bf16.msra.mxu0 %v188
  %256 = vmatprep.subr.bf16.mxu0 %v187
  %257 = vmatpush2.bf16.msra.mxu0 %v186
  %258 = vmatprep.subr.bf16.mxu0 %v185
  %259 = vmatpush2.bf16.msra.mxu0 %v184
  %260 = vmatprep.subr.bf16.mxu0 %v183
  %261 = vmatpush2.bf16.msra.mxu0 %v182
  %262 = vmatprep.mubr.bf16.mxu0 %v67
  %263 = vmatmul.mubr.bf16.gmra.mxu0 %v66
  %v264 = vpop.f32.mrf.mxu0
  %v265 = vadd.f32 0.0, %v264
  %v266 = vpop.f32.mrf.mxu0
  %v267 = vadd.f32 0.0, %v266
  %v268 = vpop.f32.mrf.mxu0
  %v269 = vadd.f32 0.0, %v268
  %v270 = vpop.f32.mrf.mxu0
  %v271 = vadd.f32 0.0, %v270
  %272 = vdwg.mxu0
  %v273 = vadd.f32 %v22, %v265
  %v274 = vadd.f32 %v23, %v267
  %v275 = vadd.f32 %v24, %v269
  %v276 = vadd.f32 %v25, %v271
  %277 = vst [vmem:[#allocation2] sm:$0xff] %v273
  %278 = vst [vmem:[#allocation2 + $0x8] sm:$0xff] %v274
  %279 = vst [vmem:[#allocation2 + $0x10] sm:$0xff] %v275
  %280 = vst [vmem:[#allocation2 + $0x18] sm:$0xff] %v276
  // Predicated region
  $region18: #{seq2seq_decoder_layer.12} parent=0 // pred_check
    %p281 = pneg %p14
  $region19: #{seq2seq_decoder_layer.12} parent=0 // pred_check_branch
    %283 = sbr.rel (%p281) target = $region21
  $region20: #{seq2seq_decoder_layer.12} parent=0 // pred_region
    %v284 = vld [vmem:[#allocation2] sm:$0xff]
    %v285 = vld [vmem:[#allocation2 + $0x8] sm:$0xff]
    %v286 = vld [vmem:[#allocation2 + $0x10] sm:$0xff]
    %v287 = vld [vmem:[#allocation2 + $0x18] sm:$0xff]
    %v288 = vld [vmem:[%s2] sm:$0x3]
    %v290 = vlaneseq
    %v291 = vshrl.u32 %v290, 7
    %v292 = vsub.s32 0, %v291
    %v293 = vrot.slane %v288, %v292
    %v294 = vlaneseq
    %v295 = vshrl.u32 %v294, 7
    %v296 = vsub.s32 1, %v295
    %v297 = vrot.slane %v288, %v296
    %v300 = vadd.f32 %v284, %v293
    %v301 = vadd.f32 %v285, %v297
    %v302 = vadd.f32 %v286, %v293
    %v303 = vadd.f32 %v287, %v297
    %v304 = vpack.c.bf16 %v302, %v300
    %v305 = vpack.c.bf16 %v303, %v301
    %v308 = vunpack.c.l.b16 %v304
    %v309 = vunpack.c.l.b16 %v305
    %v310 = vunpack.c.h.b16 %v304
    %v311 = vunpack.c.h.b16 %v305
    %v312 = vpack.c.b16 %v309, %v308
    %v313 = vpack.c.b16 %v311, %v310
    %316 = vst [vmem:[%s3] sm:$0xff] %v312
    %317 = vst [vmem:[%s3 + $0x8] sm:$0xff] %v313
  $region21: #{seq2seq_decoder_layer.12} parent=0 // pred_fallthru
    _
  // Predicated region
  $region22: #{seq2seq_decoder_layer.12} parent=0 // pred_check
    _
  $region23: #{seq2seq_decoder_layer.12} parent=0 // pred_check_branch
    %319 = sbr.rel (0) target = $region25
  $region24: #{seq2seq_decoder_layer.12} parent=0 // pred_region
    _
  $region25: #{seq2seq_decoder_layer.12} parent=0 // pred_fallthru
    _
  // Predicated region
  $region26: #{seq2seq_decoder_layer.12} parent=0 // pred_check
    _
  $region27: #{seq2seq_decoder_layer.12} parent=0 // pred_check_branch
    %321 = sbr.rel (0) target = $region29
  $region28: #{seq2seq_decoder_layer.12} parent=0 // pred_region
    _
  $region29: #{seq2seq_decoder_layer.12} parent=0 // pred_fallthru
    _

// kernel: seq2seq_decoder_layer.11
$region0: #{seq2seq_decoder_layer.11}
  #allocation0 [shape = 'u32[]', space=smem, size = 0x4, offset = 0x4, fixed_abs, tag = 'smem constant byte address 0x4 - core index']
  #allocation1 [shape = 'u32[144,128]{1,0:T(1,128)}', space=vmem, size = 0x12000, scoped, tag = 'internal scratch']
  #allocation2 [shape = 'f32[16,256]{1,0:T(8,128)}', space=vmem, size = 0x4000, scoped, tag = 'scratch operand']
  %s0 = inlined_call_operand.vmem [shape: bf16[16,256], index: 0, kind: input, shape index: {}]
  %s1 = inlined_call_operand.vmem [shape: bf16[256,256], index: 1, kind: input, shape index: {}]
  %s2 = inlined_call_operand.vmem [shape: f32[1,256], index: 2, kind: input, shape index: {}, may-alias: {2,5}]
  %s3 = inlined_call_operand.vmem [shape: f32[16,256], index: 3, kind: input, shape index: {}]
  %s4 = inlined_call_operand.vmem [shape: f32[1,256], index: 4, kind: input, shape index: {}]
  %s5 = inlined_call_operand.vmem [shape: f32[1,256], index: 5, kind: input, shape index: {}, may-alias: {2,5}]
  %s6 = inlined_call_operand.vmem [shape: bf16[16,256], index: 6, kind: output, shape index: {}]
  %s7 = sld [smem:[#allocation0]]
  $region42: #{seq2seq_decoder_layer.11} parent=0
    _
  %s9 = ssub.s32 1, %s7
  %s10 = scalar_select 0, %s9, %s7
  // Predicated region
  $region2: #{seq2seq_decoder_layer.11} parent=0 // pred_check
    _
  $region3: #{seq2seq_decoder_layer.11} parent=0 // pred_check_branch
    %12 = sbr.rel (0) target = $region5
  $region4: #{seq2seq_decoder_layer.11} parent=0 // pred_region
    _
  $region5: #{seq2seq_decoder_layer.11} parent=0 // pred_fallthru
    _
  // Predicated region
  $region6: #{seq2seq_decoder_layer.11} parent=0 // pred_check
    _
  $region7: #{seq2seq_decoder_layer.11} parent=0 // pred_check_branch
    %14 = sbr.rel (0) target = $region9
  $region8: #{seq2seq_decoder_layer.11} parent=0 // pred_region
    _
  $region9: #{seq2seq_decoder_layer.11} parent=0 // pred_fallthru
    _
  // Predicated region
  $region10: #{seq2seq_decoder_layer.11} parent=0 // pred_check
    _
  $region11: #{seq2seq_decoder_layer.11} parent=0 // pred_check_branch
    %16 = sbr.rel (0) target = $region13
  $region12: #{seq2seq_decoder_layer.11} parent=0 // pred_region
    _
  $region13: #{seq2seq_decoder_layer.11} parent=0 // pred_fallthru
    _
  // Predicated region
  $region14: #{seq2seq_decoder_layer.11} parent=0 // pred_check
    _
  $region15: #{seq2seq_decoder_layer.11} parent=0 // pred_check_branch
    %18 = sbr.rel (0) target = $region17
  $region16: #{seq2seq_decoder_layer.11} parent=0 // pred_region
    _
  $region17: #{seq2seq_decoder_layer.11} parent=0 // pred_fallthru
    _
  // Predicated region
  $region18: #{seq2seq_decoder_layer.11} parent=0 // pred_check
    _
  $region19: #{seq2seq_decoder_layer.11} parent=0 // pred_check_branch
    %20 = sbr.rel (0) target = $region21
  $region20: #{seq2seq_decoder_layer.11} parent=0 // pred_region
    _
  $region21: #{seq2seq_decoder_layer.11} parent=0 // pred_fallthru
    _
  // Predicated region
  $region22: #{seq2seq_decoder_layer.11} parent=0 // pred_check
    _
  $region23: #{seq2seq_decoder_layer.11} parent=0 // pred_check_branch
    %22 = sbr.rel (0) target = $region25
  $region24: #{seq2seq_decoder_layer.11} parent=0 // pred_region
    _
  $region25: #{seq2seq_decoder_layer.11} parent=0 // pred_fallthru
    _
  %p23 = scmp.eq.s32.totalorder 0, 0
  // Predicated region
  $region26: #{seq2seq_decoder_layer.11} parent=0 // pred_check
    %p24 = pneg %p23
  $region27: #{seq2seq_decoder_layer.11} parent=0 // pred_check_branch
    %26 = sbr.rel (%p24) target = $region29
  $region28: #{seq2seq_decoder_layer.11} parent=0 // pred_region
    %27 = vst [vmem:[#allocation2] sm:$0xff] 0.0
    %28 = vst [vmem:[#allocation2 + $0x8] sm:$0xff] 0.0
    %29 = vst [vmem:[#allocation2 + $0x10] sm:$0xff] 0.0
    %30 = vst [vmem:[#allocation2 + $0x18] sm:$0xff] 0.0
  $region29: #{seq2seq_decoder_layer.11} parent=0 // pred_fallthru
    _
  %v31 = vld [vmem:[#allocation2] sm:$0xff]
  %v32 = vld [vmem:[#allocation2 + $0x8] sm:$0xff]
  %v33 = vld [vmem:[#allocation2 + $0x10] sm:$0xff]
  %v34 = vld [vmem:[#allocation2 + $0x18] sm:$0xff]
  %v35 = vld [vmem:[%s0] sm:$0xff]
  %v36 = vld [vmem:[%s0 + $0x8] sm:$0xff]
  %v37 = vld [vmem:[%s1] sm:$0xff]
  %v38 = vld [vmem:[%s1 + $0x8] sm:$0xff]
  %v39 = vld [vmem:[%s1 + $0x10] sm:$0xff]
  %v40 = vld [vmem:[%s1 + $0x18] sm:$0xff]
  %v41 = vld [vmem:[%s1 + $0x20] sm:$0xff]
  %v42 = vld [vmem:[%s1 + $0x28] sm:$0xff]
  %v43 = vld [vmem:[%s1 + $0x30] sm:$0xff]
  %v44 = vld [vmem:[%s1 + $0x38] sm:$0xff]
  %v45 = vld [vmem:[%s1 + $0x40] sm:$0xff]
  %v46 = vld [vmem:[%s1 + $0x48] sm:$0xff]
  %v47 = vld [vmem:[%s1 + $0x50] sm:$0xff]
  %v48 = vld [vmem:[%s1 + $0x58] sm:$0xff]
  %v49 = vld [vmem:[%s1 + $0x60] sm:$0xff]
  %v50 = vld [vmem:[%s1 + $0x68] sm:$0xff]
  %v51 = vld [vmem:[%s1 + $0x70] sm:$0xff]
  %v52 = vld [vmem:[%s1 + $0x78] sm:$0xff]
  %v53 = vld [vmem:[%s1 + $0x80] sm:$0xff]
  %v54 = vld [vmem:[%s1 + $0x88] sm:$0xff]
  %v55 = vld [vmem:[%s1 + $0x90] sm:$0xff]
  %v56 = vld [vmem:[%s1 + $0x98] sm:$0xff]
  %v57 = vld [vmem:[%s1 + $0xa0] sm:$0xff]
  %v58 = vld [vmem:[%s1 + $0xa8] sm:$0xff]
  %v59 = vld [vmem:[%s1 + $0xb0] sm:$0xff]
  %v60 = vld [vmem:[%s1 + $0xb8] sm:$0xff]
  %v61 = vld [vmem:[%s1 + $0xc0] sm:$0xff]
  %v62 = vld [vmem:[%s1 + $0xc8] sm:$0xff]
  %v63 = vld [vmem:[%s1 + $0xd0] sm:$0xff]
  %v64 = vld [vmem:[%s1 + $0xd8] sm:$0xff]
  %v65 = vld [vmem:[%s1 + $0xe0] sm:$0xff]
  %v66 = vld [vmem:[%s1 + $0xe8] sm:$0xff]
  %v67 = vld [vmem:[%s1 + $0xf0] sm:$0xff]
  %v68 = vld [vmem:[%s1 + $0xf8] sm:$0xff]
  %v71 = vunpack.c.l.b16 %v35
  %v72 = vunpack.c.h.b16 %v35
  %v73 = vunpack.c.l.b16 %v36
  %v74 = vunpack.c.h.b16 %v36
  %v75 = vpack.c.b16 %v73, %v71
  %v76 = vpack.c.b16 %v74, %v72
  %v111 = vunpack.c.l.b16 %v37
  %v112 = vunpack.c.h.b16 %v37
  %v113 = vunpack.c.l.b16 %v38
  %v114 = vunpack.c.h.b16 %v38
  %v115 = vunpack.c.l.b16 %v39
  %v116 = vunpack.c.h.b16 %v39
  %v117 = vunpack.c.l.b16 %v40
  %v118 = vunpack.c.h.b16 %v40
  %v119 = vunpack.c.l.b16 %v41
  %v120 = vunpack.c.h.b16 %v41
  %v121 = vunpack.c.l.b16 %v42
  %v122 = vunpack.c.h.b16 %v42
  %v123 = vunpack.c.l.b16 %v43
  %v124 = vunpack.c.h.b16 %v43
  %v125 = vunpack.c.l.b16 %v44
  %v126 = vunpack.c.h.b16 %v44
  %v127 = vunpack.c.l.b16 %v45
  %v128 = vunpack.c.h.b16 %v45
  %v129 = vunpack.c.l.b16 %v46
  %v130 = vunpack.c.h.b16 %v46
  %v131 = vunpack.c.l.b16 %v47
  %v132 = vunpack.c.h.b16 %v47
  %v133 = vunpack.c.l.b16 %v48
  %v134 = vunpack.c.h.b16 %v48
  %v135 = vunpack.c.l.b16 %v49
  %v136 = vunpack.c.h.b16 %v49
  %v137 = vunpack.c.l.b16 %v50
  %v138 = vunpack.c.h.b16 %v50
  %v139 = vunpack.c.l.b16 %v51
  %v140 = vunpack.c.h.b16 %v51
  %v141 = vunpack.c.l.b16 %v52
  %v142 = vunpack.c.h.b16 %v52
  %v143 = vunpack.c.l.b16 %v53
  %v144 = vunpack.c.h.b16 %v53
  %v145 = vunpack.c.l.b16 %v54
  %v146 = vunpack.c.h.b16 %v54
  %v147 = vunpack.c.l.b16 %v55
  %v148 = vunpack.c.h.b16 %v55
  %v149 = vunpack.c.l.b16 %v56
  %v150 = vunpack.c.h.b16 %v56
  %v151 = vunpack.c.l.b16 %v57
  %v152 = vunpack.c.h.b16 %v57
  %v153 = vunpack.c.l.b16 %v58
  %v154 = vunpack.c.h.b16 %v58
  %v155 = vunpack.c.l.b16 %v59
  %v156 = vunpack.c.h.b16 %v59
  %v157 = vunpack.c.l.b16 %v60
  %v158 = vunpack.c.h.b16 %v60
  %v159 = vunpack.c.l.b16 %v61
  %v160 = vunpack.c.h.b16 %v61
  %v161 = vunpack.c.l.b16 %v62
  %v162 = vunpack.c.h.b16 %v62
  %v163 = vunpack.c.l.b16 %v63
  %v164 = vunpack.c.h.b16 %v63
  %v165 = vunpack.c.l.b16 %v64
  %v166 = vunpack.c.h.b16 %v64
  %v167 = vunpack.c.l.b16 %v65
  %v168 = vunpack.c.h.b16 %v65
  %v169 = vunpack.c.l.b16 %v66
  %v170 = vunpack.c.h.b16 %v66
  %v171 = vunpack.c.l.b16 %v67
  %v172 = vunpack.c.h.b16 %v67
  %v173 = vunpack.c.l.b16 %v68
  %v174 = vunpack.c.h.b16 %v68
  %v175 = vpack.c.b16 %v113, %v111
  %v176 = vpack.c.b16 %v114, %v112
  %v177 = vpack.c.b16 %v117, %v115
  %v178 = vpack.c.b16 %v118, %v116
  %v179 = vpack.c.b16 %v121, %v119
  %v180 = vpack.c.b16 %v122, %v120
  %v181 = vpack.c.b16 %v125, %v123
  %v182 = vpack.c.b16 %v126, %v124
  %v183 = vpack.c.b16 %v129, %v127
  %v184 = vpack.c.b16 %v130, %v128
  %v185 = vpack.c.b16 %v133, %v131
  %v186 = vpack.c.b16 %v134, %v132
  %v187 = vpack.c.b16 %v137, %v135
  %v188 = vpack.c.b16 %v138, %v136
  %v189 = vpack.c.b16 %v141, %v139
  %v190 = vpack.c.b16 %v142, %v140
  %v191 = vpack.c.b16 %v145, %v143
  %v192 = vpack.c.b16 %v146, %v144
  %v193 = vpack.c.b16 %v149, %v147
  %v194 = vpack.c.b16 %v150, %v148
  %v195 = vpack.c.b16 %v153, %v151
  %v196 = vpack.c.b16 %v154, %v152
  %v197 = vpack.c.b16 %v157, %v155
  %v198 = vpack.c.b16 %v158, %v156
  %v199 = vpack.c.b16 %v161, %v159
  %v200 = vpack.c.b16 %v162, %v160
  %v201 = vpack.c.b16 %v165, %v163
  %v202 = vpack.c.b16 %v166, %v164
  %v203 = vpack.c.b16 %v169, %v167
  %v204 = vpack.c.b16 %v170, %v168
  %v205 = vpack.c.b16 %v173, %v171
  %v206 = vpack.c.b16 %v174, %v172
  %239 = vmatprep.subr.bf16.mxu0 %v190
  %240 = vmatpush1.bf16.msra.mxu0 %v189
  %241 = vmatprep.subr.bf16.mxu0 %v188
  %242 = vmatpush1.bf16.msra.mxu0 %v187
  %243 = vmatprep.subr.bf16.mxu0 %v186
  %244 = vmatpush1.bf16.msra.mxu0 %v185
  %245 = vmatprep.subr.bf16.mxu0 %v184
  %246 = vmatpush1.bf16.msra.mxu0 %v183
  %247 = vmatprep.subr.bf16.mxu0 %v182
  %248 = vmatpush1.bf16.msra.mxu0 %v181
  %249 = vmatprep.subr.bf16.mxu0 %v180
  %250 = vmatpush1.bf16.msra.mxu0 %v179
  %251 = vmatprep.subr.bf16.mxu0 %v178
  %252 = vmatpush1.bf16.msra.mxu0 %v177
  %253 = vmatprep.subr.bf16.mxu0 %v176
  %254 = vmatpush1.bf16.msra.mxu0 %v175
  %255 = vmatprep.subr.bf16.mxu0 %v206
  %256 = vmatpush2.bf16.msra.mxu0 %v205
  %257 = vmatprep.subr.bf16.mxu0 %v204
  %258 = vmatpush2.bf16.msra.mxu0 %v203
  %259 = vmatprep.subr.bf16.mxu0 %v202
  %260 = vmatpush2.bf16.msra.mxu0 %v201
  %261 = vmatprep.subr.bf16.mxu0 %v200
  %262 = vmatpush2.bf16.msra.mxu0 %v199
  %263 = vmatprep.subr.bf16.mxu0 %v198
  %264 = vmatpush2.bf16.msra.mxu0 %v197
  %265 = vmatprep.subr.bf16.mxu0 %v196
  %266 = vmatpush2.bf16.msra.mxu0 %v195
  %267 = vmatprep.subr.bf16.mxu0 %v194
  %268 = vmatpush2.bf16.msra.mxu0 %v193
  %269 = vmatprep.subr.bf16.mxu0 %v192
  %270 = vmatpush2.bf16.msra.mxu0 %v191
  %271 = vmatprep.mubr.bf16.mxu0 %v76
  %272 = vmatmul.mubr.bf16.gmra.mxu0 %v75
  %v273 = vpop.f32.mrf.mxu0
  %v274 = vadd.f32 0.0, %v273
  %v275 = vpop.f32.mrf.mxu0
  %v276 = vadd.f32 0.0, %v275
  %v277 = vpop.f32.mrf.mxu0
  %v278 = vadd.f32 0.0, %v277
  %v279 = vpop.f32.mrf.mxu0
  %v280 = vadd.f32 0.0, %v279
  %281 = vdwg.mxu0
  %v282 = vadd.f32 %v31, %v274
  %v283 = vadd.f32 %v32, %v276
  %v284 = vadd.f32 %v33, %v278
  %v285 = vadd.f32 %v34, %v280
  %286 = vst [vmem:[#allocation2] sm:$0xff] %v282
  %287 = vst [vmem:[#allocation2 + $0x8] sm:$0xff] %v283
  %288 = vst [vmem:[#allocation2 + $0x10] sm:$0xff] %v284
  %289 = vst [vmem:[#allocation2 + $0x18] sm:$0xff] %v285
  // Predicated region
  $region30: #{seq2seq_decoder_layer.11} parent=0 // pred_check
    %p290 = pneg %p23
  $region31: #{seq2seq_decoder_layer.11} parent=0 // pred_check_branch
    %292 = sbr.rel (%p290) target = $region33
  $region32: #{seq2seq_decoder_layer.11} parent=0 // pred_region
    %v293 = vld [vmem:[#allocation2] sm:$0xff]
    %v294 = vld [vmem:[#allocation2 + $0x8] sm:$0xff]
    %v295 = vld [vmem:[#allocation2 + $0x10] sm:$0xff]
    %v296 = vld [vmem:[#allocation2 + $0x18] sm:$0xff]
    %v297 = vld [vmem:[%s2] sm:$0x3]
    %v299 = vlaneseq
    %v300 = vshrl.u32 %v299, 7
    %v301 = vsub.s32 0, %v300
    %v302 = vrot.slane %v297, %v301
    %v303 = vlaneseq
    %v304 = vshrl.u32 %v303, 7
    %v305 = vsub.s32 1, %v304
    %v306 = vrot.slane %v297, %v305
    %v309 = vadd.f32 %v293, %v302
    %v310 = vadd.f32 %v294, %v306
    %v311 = vadd.f32 %v295, %v302
    %v312 = vadd.f32 %v296, %v306
    %v313 = vld [vmem:[%s3] sm:$0xff]
    %v314 = vld [vmem:[%s3 + $0x8] sm:$0xff]
    %v315 = vld [vmem:[%s3 + $0x10] sm:$0xff]
    %v316 = vld [vmem:[%s3 + $0x18] sm:$0xff]
    %v317 = vadd.f32 %v309, %v313
    %v318 = vadd.f32 %v310, %v314
    %v319 = vadd.f32 %v311, %v315
    %v320 = vadd.f32 %v312, %v316
    %v321 = vadd.f32 %v317, %v318
    %322 = vadd.xlane.f32.xlu0 %v321
    %v323 = vpop.xlane.xlu0 %322
    %v324 = vadd.f32 %v319, %v320
    %325 = vadd.xlane.f32.xlu0 %v324
    %v326 = vpop.xlane.xlu0 %325
    %v327 = vrcp.pop 256.0
    %v328 = vmul.f32 %v323, %v327
    %v329 = vmul.f32 %v326, %v327
    %v330 = vsub.f32 %v317, %v328
    %v331 = vsub.f32 %v318, %v328
    %v332 = vsub.f32 %v319, %v329
    %v333 = vsub.f32 %v320, %v329
    %v334 = vmul.f32 %v330, %v330
    %v335 = vmul.f32 %v331, %v331
    %v336 = vmul.f32 %v332, %v332
    %v337 = vmul.f32 %v333, %v333
    %v338 = vadd.f32 %v334, %v335
    %339 = vadd.xlane.f32.xlu0 %v338
    %v340 = vpop.xlane.xlu0 %339
    %v341 = vadd.f32 %v336, %v337
    %342 = vadd.xlane.f32.xlu0 %v341
    %v343 = vpop.xlane.xlu0 %342
    %v344 = vmul.f32 %v340, %v327
    %v345 = vmul.f32 %v343, %v327
    %v346 = vadd.f32 %v344, 1e-12
    %v347 = vadd.f32 %v345, 1e-12
    %v348 = vrsqrt.pop %v346
    %v349 = vrsqrt.pop %v347
    %v350 = vmul.f32 %v330, %v348
    %v351 = vmul.f32 %v331, %v348
    %v352 = vmul.f32 %v332, %v349
    %v353 = vmul.f32 %v333, %v349
    %v354 = vld [vmem:[%s4] sm:$0x3]
    %v356 = vlaneseq
    %v357 = vshrl.u32 %v356, 7
    %v358 = vsub.s32 0, %v357
    %v359 = vrot.slane %v354, %v358
    %v360 = vlaneseq
    %v361 = vshrl.u32 %v360, 7
    %v362 = vsub.s32 1, %v361
    %v363 = vrot.slane %v354, %v362
    %v366 = vmul.f32 %v350, %v359
    %v367 = vmul.f32 %v351, %v363
    %v368 = vmul.f32 %v352, %v359
    %v369 = vmul.f32 %v353, %v363
    %v370 = vld [vmem:[%s5] sm:$0x3]
    %v372 = vlaneseq
    %v373 = vshrl.u32 %v372, 7
    %v374 = vsub.s32 0, %v373
    %v375 = vrot.slane %v370, %v374
    %v376 = vlaneseq
    %v377 = vshrl.u32 %v376, 7
    %v378 = vsub.s32 1, %v377
    %v379 = vrot.slane %v370, %v378
    %v382 = vadd.f32 %v366, %v375
    %v383 = vadd.f32 %v367, %v379
    %v384 = vadd.f32 %v368, %v375
    %v385 = vadd.f32 %v369, %v379
    %v386 = vpack.c.bf16 %v384, %v382
    %v387 = vpack.c.bf16 %v385, %v383
    %v390 = vunpack.c.l.b16 %v386
    %v391 = vunpack.c.l.b16 %v387
    %v392 = vunpack.c.h.b16 %v386
    %v393 = vunpack.c.h.b16 %v387
    %v394 = vpack.c.b16 %v391, %v390
    %v395 = vpack.c.b16 %v393, %v392
    %398 = vst [vmem:[%s6] sm:$0xff] %v394
    %399 = vst [vmem:[%s6 + $0x8] sm:$0xff] %v395
  $region33: #{seq2seq_decoder_layer.11} parent=0 // pred_fallthru
    _
  // Predicated region
  $region34: #{seq2seq_decoder_layer.11} parent=0 // pred_check
    _
  $region35: #{seq2seq_decoder_layer.11} parent=0 // pred_check_branch
    %401 = sbr.rel (0) target = $region37
  $region36: #{seq2seq_decoder_layer.11} parent=0 // pred_region
    _
  $region37: #{seq2seq_decoder_layer.11} parent=0 // pred_fallthru
    _
  // Predicated region
  $region38: #{seq2seq_decoder_layer.11} parent=0 // pred_check
    _
  $region39: #{seq2seq_decoder_layer.11} parent=0 // pred_check_branch
    %403 = sbr.rel (0) target = $region41
  $region40: #{seq2seq_decoder_layer.11} parent=0 // pred_region
    _
  $region41: #{seq2seq_decoder_layer.11} parent=0 // pred_fallthru
    _

// kernel: seq2seq_decoder_layer.13
$region0: #{seq2seq_decoder_layer.13}
  #allocation0 [shape = 'u32[]', space=smem, size = 0x4, offset = 0x4, fixed_abs, tag = 'smem constant byte address 0x4 - core index']
  #allocation1 [shape = 'u32[144,128]{1,0:T(1,128)}', space=vmem, size = 0x12000, scoped, tag = 'internal scratch']
  #allocation2 [shape = 'f32[16,512]{1,0:T(8,128)}', space=vmem, size = 0x8000, scoped, tag = 'scratch operand']
  %s0 = inlined_call_operand.vmem [shape: bf16[16,256], index: 0, kind: input, shape index: {}]
  %s1 = inlined_call_operand.vmem [shape: bf16[256,512], index: 1, kind: input, shape index: {}]
  %s2 = inlined_call_operand.vmem [shape: f32[1,512], index: 2, kind: input, shape index: {}]
  %s3 = inlined_call_operand.vmem [shape: bf16[16,512], index: 3, kind: output, shape index: {}]
  %s4 = sld [smem:[#allocation0]]
  $region30: #{seq2seq_decoder_layer.13} parent=0
    _
  %s6 = ssub.s32 1, %s4
  %s7 = scalar_select 0, %s6, %s4
  // Predicated region
  $region2: #{seq2seq_decoder_layer.13} parent=0 // pred_check
    _
  $region3: #{seq2seq_decoder_layer.13} parent=0 // pred_check_branch
    %9 = sbr.rel (0) target = $region5
  $region4: #{seq2seq_decoder_layer.13} parent=0 // pred_region
    _
  $region5: #{seq2seq_decoder_layer.13} parent=0 // pred_fallthru
    _
  // Predicated region
  $region6: #{seq2seq_decoder_layer.13} parent=0 // pred_check
    _
  $region7: #{seq2seq_decoder_layer.13} parent=0 // pred_check_branch
    %11 = sbr.rel (0) target = $region9
  $region8: #{seq2seq_decoder_layer.13} parent=0 // pred_region
    _
  $region9: #{seq2seq_decoder_layer.13} parent=0 // pred_fallthru
    _
  // Predicated region
  $region10: #{seq2seq_decoder_layer.13} parent=0 // pred_check
    _
  $region11: #{seq2seq_decoder_layer.13} parent=0 // pred_check_branch
    %13 = sbr.rel (0) target = $region13
  $region12: #{seq2seq_decoder_layer.13} parent=0 // pred_region
    _
  $region13: #{seq2seq_decoder_layer.13} parent=0 // pred_fallthru
    _
  %p14 = scmp.eq.s32.totalorder 0, 0
  // Predicated region
  $region14: #{seq2seq_decoder_layer.13} parent=0 // pred_check
    %p15 = pneg %p14
  $region15: #{seq2seq_decoder_layer.13} parent=0 // pred_check_branch
    %17 = sbr.rel (%p15) target = $region17
  $region16: #{seq2seq_decoder_layer.13} parent=0 // pred_region
    %18 = vst [vmem:[#allocation2] sm:$0xff] 0.0
    %19 = vst [vmem:[#allocation2 + $0x8] sm:$0xff] 0.0
    %20 = vst [vmem:[#allocation2 + $0x10] sm:$0xff] 0.0
    %21 = vst [vmem:[#allocation2 + $0x18] sm:$0xff] 0.0
    %22 = vst [vmem:[#allocation2 + $0x20] sm:$0xff] 0.0
    %23 = vst [vmem:[#allocation2 + $0x28] sm:$0xff] 0.0
    %24 = vst [vmem:[#allocation2 + $0x30] sm:$0xff] 0.0
    %25 = vst [vmem:[#allocation2 + $0x38] sm:$0xff] 0.0
  $region17: #{seq2seq_decoder_layer.13} parent=0 // pred_fallthru
    _
  %v26 = vld [vmem:[#allocation2] sm:$0xff]
  %v27 = vld [vmem:[#allocation2 + $0x8] sm:$0xff]
  %v28 = vld [vmem:[#allocation2 + $0x10] sm:$0xff]
  %v29 = vld [vmem:[#allocation2 + $0x18] sm:$0xff]
  %v30 = vld [vmem:[#allocation2 + $0x20] sm:$0xff]
  %v31 = vld [vmem:[#allocation2 + $0x28] sm:$0xff]
  %v32 = vld [vmem:[#allocation2 + $0x30] sm:$0xff]
  %v33 = vld [vmem:[#allocation2 + $0x38] sm:$0xff]
  %v34 = vld [vmem:[%s0] sm:$0xff]
  %v35 = vld [vmem:[%s0 + $0x8] sm:$0xff]
  %v36 = vld [vmem:[%s1] sm:$0xff]
  %v37 = vld [vmem:[%s1 + $0x8] sm:$0xff]
  %v38 = vld [vmem:[%s1 + $0x10] sm:$0xff]
  %v39 = vld [vmem:[%s1 + $0x18] sm:$0xff]
  %v40 = vld [vmem:[%s1 + $0x20] sm:$0xff]
  %v41 = vld [vmem:[%s1 + $0x28] sm:$0xff]
  %v42 = vld [vmem:[%s1 + $0x30] sm:$0xff]
  %v43 = vld [vmem:[%s1 + $0x38] sm:$0xff]
  %v44 = vld [vmem:[%s1 + $0x40] sm:$0xff]
  %v45 = vld [vmem:[%s1 + $0x48] sm:$0xff]
  %v46 = vld [vmem:[%s1 + $0x50] sm:$0xff]
  %v47 = vld [vmem:[%s1 + $0x58] sm:$0xff]
  %v48 = vld [vmem:[%s1 + $0x60] sm:$0xff]
  %v49 = vld [vmem:[%s1 + $0x68] sm:$0xff]
  %v50 = vld [vmem:[%s1 + $0x70] sm:$0xff]
  %v51 = vld [vmem:[%s1 + $0x78] sm:$0xff]
  %v52 = vld [vmem:[%s1 + $0x80] sm:$0xff]
  %v53 = vld [vmem:[%s1 + $0x88] sm:$0xff]
  %v54 = vld [vmem:[%s1 + $0x90] sm:$0xff]
  %v55 = vld [vmem:[%s1 + $0x98] sm:$0xff]
  %v56 = vld [vmem:[%s1 + $0xa0] sm:$0xff]
  %v57 = vld [vmem:[%s1 + $0xa8] sm:$0xff]
  %v58 = vld [vmem:[%s1 + $0xb0] sm:$0xff]
  %v59 = vld [vmem:[%s1 + $0xb8] sm:$0xff]
  %v60 = vld [vmem:[%s1 + $0xc0] sm:$0xff]
  %v61 = vld [vmem:[%s1 + $0xc8] sm:$0xff]
  %v62 = vld [vmem:[%s1 + $0xd0] sm:$0xff]
  %v63 = vld [vmem:[%s1 + $0xd8] sm:$0xff]
  %v64 = vld [vmem:[%s1 + $0xe0] sm:$0xff]
  %v65 = vld [vmem:[%s1 + $0xe8] sm:$0xff]
  %v66 = vld [vmem:[%s1 + $0xf0] sm:$0xff]
  %v67 = vld [vmem:[%s1 + $0xf8] sm:$0xff]
  %v68 = vld [vmem:[%s1 + $0x100] sm:$0xff]
  %v69 = vld [vmem:[%s1 + $0x108] sm:$0xff]
  %v70 = vld [vmem:[%s1 + $0x110] sm:$0xff]
  %v71 = vld [vmem:[%s1 + $0x118] sm:$0xff]
  %v72 = vld [vmem:[%s1 + $0x120] sm:$0xff]
  %v73 = vld [vmem:[%s1 + $0x128] sm:$0xff]
  %v74 = vld [vmem:[%s1 + $0x130] sm:$0xff]
  %v75 = vld [vmem:[%s1 + $0x138] sm:$0xff]
  %v76 = vld [vmem:[%s1 + $0x140] sm:$0xff]
  %v77 = vld [vmem:[%s1 + $0x148] sm:$0xff]
  %v78 = vld [vmem:[%s1 + $0x150] sm:$0xff]
  %v79 = vld [vmem:[%s1 + $0x158] sm:$0xff]
  %v80 = vld [vmem:[%s1 + $0x160] sm:$0xff]
  %v81 = vld [vmem:[%s1 + $0x168] sm:$0xff]
  %v82 = vld [vmem:[%s1 + $0x170] sm:$0xff]
  %v83 = vld [vmem:[%s1 + $0x178] sm:$0xff]
  %v84 = vld [vmem:[%s1 + $0x180] sm:$0xff]
  %v85 = vld [vmem:[%s1 + $0x188] sm:$0xff]
  %v86 = vld [vmem:[%s1 + $0x190] sm:$0xff]
  %v87 = vld [vmem:[%s1 + $0x198] sm:$0xff]
  %v88 = vld [vmem:[%s1 + $0x1a0] sm:$0xff]
  %v89 = vld [vmem:[%s1 + $0x1a8] sm:$0xff]
  %v90 = vld [vmem:[%s1 + $0x1b0] sm:$0xff]
  %v91 = vld [vmem:[%s1 + $0x1b8] sm:$0xff]
  %v92 = vld [vmem:[%s1 + $0x1c0] sm:$0xff]
  %v93 = vld [vmem:[%s1 + $0x1c8] sm:$0xff]
  %v94 = vld [vmem:[%s1 + $0x1d0] sm:$0xff]
  %v95 = vld [vmem:[%s1 + $0x1d8] sm:$0xff]
  %v96 = vld [vmem:[%s1 + $0x1e0] sm:$0xff]
  %v97 = vld [vmem:[%s1 + $0x1e8] sm:$0xff]
  %v98 = vld [vmem:[%s1 + $0x1f0] sm:$0xff]
  %v99 = vld [vmem:[%s1 + $0x1f8] sm:$0xff]
  %v102 = vunpack.c.l.b16 %v34
  %v103 = vunpack.c.h.b16 %v34
  %v104 = vunpack.c.l.b16 %v35
  %v105 = vunpack.c.h.b16 %v35
  %v106 = vpack.c.b16 %v104, %v102
  %v107 = vpack.c.b16 %v105, %v103
  %v174 = vunpack.c.l.b16 %v36
  %v175 = vunpack.c.h.b16 %v36
  %v176 = vunpack.c.l.b16 %v37
  %v177 = vunpack.c.h.b16 %v37
  %v178 = vunpack.c.l.b16 %v38
  %v179 = vunpack.c.h.b16 %v38
  %v180 = vunpack.c.l.b16 %v39
  %v181 = vunpack.c.h.b16 %v39
  %v182 = vunpack.c.l.b16 %v40
  %v183 = vunpack.c.h.b16 %v40
  %v184 = vunpack.c.l.b16 %v41
  %v185 = vunpack.c.h.b16 %v41
  %v186 = vunpack.c.l.b16 %v42
  %v187 = vunpack.c.h.b16 %v42
  %v188 = vunpack.c.l.b16 %v43
  %v189 = vunpack.c.h.b16 %v43
  %v190 = vunpack.c.l.b16 %v44
  %v191 = vunpack.c.h.b16 %v44
  %v192 = vunpack.c.l.b16 %v45
  %v193 = vunpack.c.h.b16 %v45
  %v194 = vunpack.c.l.b16 %v46
  %v195 = vunpack.c.h.b16 %v46
  %v196 = vunpack.c.l.b16 %v47
  %v197 = vunpack.c.h.b16 %v47
  %v198 = vunpack.c.l.b16 %v48
  %v199 = vunpack.c.h.b16 %v48
  %v200 = vunpack.c.l.b16 %v49
  %v201 = vunpack.c.h.b16 %v49
  %v202 = vunpack.c.l.b16 %v50
  %v203 = vunpack.c.h.b16 %v50
  %v204 = vunpack.c.l.b16 %v51
  %v205 = vunpack.c.h.b16 %v51
  %v206 = vunpack.c.l.b16 %v52
  %v207 = vunpack.c.h.b16 %v52
  %v208 = vunpack.c.l.b16 %v53
  %v209 = vunpack.c.h.b16 %v53
  %v210 = vunpack.c.l.b16 %v54
  %v211 = vunpack.c.h.b16 %v54
  %v212 = vunpack.c.l.b16 %v55
  %v213 = vunpack.c.h.b16 %v55
  %v214 = vunpack.c.l.b16 %v56
  %v215 = vunpack.c.h.b16 %v56
  %v216 = vunpack.c.l.b16 %v57
  %v217 = vunpack.c.h.b16 %v57
  %v218 = vunpack.c.l.b16 %v58
  %v219 = vunpack.c.h.b16 %v58
  %v220 = vunpack.c.l.b16 %v59
  %v221 = vunpack.c.h.b16 %v59
  %v222 = vunpack.c.l.b16 %v60
  %v223 = vunpack.c.h.b16 %v60
  %v224 = vunpack.c.l.b16 %v61
  %v225 = vunpack.c.h.b16 %v61
  %v226 = vunpack.c.l.b16 %v62
  %v227 = vunpack.c.h.b16 %v62
  %v228 = vunpack.c.l.b16 %v63
  %v229 = vunpack.c.h.b16 %v63
  %v230 = vunpack.c.l.b16 %v64
  %v231 = vunpack.c.h.b16 %v64
  %v232 = vunpack.c.l.b16 %v65
  %v233 = vunpack.c.h.b16 %v65
  %v234 = vunpack.c.l.b16 %v66
  %v235 = vunpack.c.h.b16 %v66
  %v236 = vunpack.c.l.b16 %v67
  %v237 = vunpack.c.h.b16 %v67
  %v238 = vunpack.c.l.b16 %v68
  %v239 = vunpack.c.h.b16 %v68
  %v240 = vunpack.c.l.b16 %v69
  %v241 = vunpack.c.h.b16 %v69
  %v242 = vunpack.c.l.b16 %v70
  %v243 = vunpack.c.h.b16 %v70
  %v244 = vunpack.c.l.b16 %v71
  %v245 = vunpack.c.h.b16 %v71
  %v246 = vunpack.c.l.b16 %v72
  %v247 = vunpack.c.h.b16 %v72
  %v248 = vunpack.c.l.b16 %v73
  %v249 = vunpack.c.h.b16 %v73
  %v250 = vunpack.c.l.b16 %v74
  %v251 = vunpack.c.h.b16 %v74
  %v252 = vunpack.c.l.b16 %v75
  %v253 = vunpack.c.h.b16 %v75
  %v254 = vunpack.c.l.b16 %v76
  %v255 = vunpack.c.h.b16 %v76
  %v256 = vunpack.c.l.b16 %v77
  %v257 = vunpack.c.h.b16 %v77
  %v258 = vunpack.c.l.b16 %v78
  %v259 = vunpack.c.h.b16 %v78
  %v260 = vunpack.c.l.b16 %v79
  %v261 = vunpack.c.h.b16 %v79
  %v262 = vunpack.c.l.b16 %v80
  %v263 = vunpack.c.h.b16 %v80
  %v264 = vunpack.c.l.b16 %v81
  %v265 = vunpack.c.h.b16 %v81
  %v266 = vunpack.c.l.b16 %v82
  %v267 = vunpack.c.h.b16 %v82
  %v268 = vunpack.c.l.b16 %v83
  %v269 = vunpack.c.h.b16 %v83
  %v270 = vunpack.c.l.b16 %v84
  %v271 = vunpack.c.h.b16 %v84
  %v272 = vunpack.c.l.b16 %v85
  %v273 = vunpack.c.h.b16 %v85
  %v274 = vunpack.c.l.b16 %v86
  %v275 = vunpack.c.h.b16 %v86
  %v276 = vunpack.c.l.b16 %v87
  %v277 = vunpack.c.h.b16 %v87
  %v278 = vunpack.c.l.b16 %v88
  %v279 = vunpack.c.h.b16 %v88
  %v280 = vunpack.c.l.b16 %v89
  %v281 = vunpack.c.h.b16 %v89
  %v282 = vunpack.c.l.b16 %v90
  %v283 = vunpack.c.h.b16 %v90
  %v284 = vunpack.c.l.b16 %v91
  %v285 = vunpack.c.h.b16 %v91
  %v286 = vunpack.c.l.b16 %v92
  %v287 = vunpack.c.h.b16 %v92
  %v288 = vunpack.c.l.b16 %v93
  %v289 = vunpack.c.h.b16 %v93
  %v290 = vunpack.c.l.b16 %v94
  %v291 = vunpack.c.h.b16 %v94
  %v292 = vunpack.c.l.b16 %v95
  %v293 = vunpack.c.h.b16 %v95
  %v294 = vunpack.c.l.b16 %v96
  %v295 = vunpack.c.h.b16 %v96
  %v296 = vunpack.c.l.b16 %v97
  %v297 = vunpack.c.h.b16 %v97
  %v298 = vunpack.c.l.b16 %v98
  %v299 = vunpack.c.h.b16 %v98
  %v300 = vunpack.c.l.b16 %v99
  %v301 = vunpack.c.h.b16 %v99
  %v302 = vpack.c.b16 %v178, %v174
  %v303 = vpack.c.b16 %v179, %v175
  %v304 = vpack.c.b16 %v180, %v176
  %v305 = vpack.c.b16 %v181, %v177
  %v306 = vpack.c.b16 %v186, %v182
  %v307 = vpack.c.b16 %v187, %v183
  %v308 = vpack.c.b16 %v188, %v184
  %v309 = vpack.c.b16 %v189, %v185
  %v310 = vpack.c.b16 %v194, %v190
  %v311 = vpack.c.b16 %v195, %v191
  %v312 = vpack.c.b16 %v196, %v192
  %v313 = vpack.c.b16 %v197, %v193
  %v314 = vpack.c.b16 %v202, %v198
  %v315 = vpack.c.b16 %v203, %v199
  %v316 = vpack.c.b16 %v204, %v200
  %v317 = vpack.c.b16 %v205, %v201
  %v318 = vpack.c.b16 %v210, %v206
  %v319 = vpack.c.b16 %v211, %v207
  %v320 = vpack.c.b16 %v212, %v208
  %v321 = vpack.c.b16 %v213, %v209
  %v322 = vpack.c.b16 %v218, %v214
  %v323 = vpack.c.b16 %v219, %v215
  %v324 = vpack.c.b16 %v220, %v216
  %v325 = vpack.c.b16 %v221, %v217
  %v326 = vpack.c.b16 %v226, %v222
  %v327 = vpack.c.b16 %v227, %v223
  %v328 = vpack.c.b16 %v228, %v224
  %v329 = vpack.c.b16 %v229, %v225
  %v330 = vpack.c.b16 %v234, %v230
  %v331 = vpack.c.b16 %v235, %v231
  %v332 = vpack.c.b16 %v236, %v232
  %v333 = vpack.c.b16 %v237, %v233
  %v334 = vpack.c.b16 %v242, %v238
  %v335 = vpack.c.b16 %v243, %v239
  %v336 = vpack.c.b16 %v244, %v240
  %v337 = vpack.c.b16 %v245, %v241
  %v338 = vpack.c.b16 %v250, %v246
  %v339 = vpack.c.b16 %v251, %v247
  %v340 = vpack.c.b16 %v252, %v248
  %v341 = vpack.c.b16 %v253, %v249
  %v342 = vpack.c.b16 %v258, %v254
  %v343 = vpack.c.b16 %v259, %v255
  %v344 = vpack.c.b16 %v260, %v256
  %v345 = vpack.c.b16 %v261, %v257
  %v346 = vpack.c.b16 %v266, %v262
  %v347 = vpack.c.b16 %v267, %v263
  %v348 = vpack.c.b16 %v268, %v264
  %v349 = vpack.c.b16 %v269, %v265
  %v350 = vpack.c.b16 %v274, %v270
  %v351 = vpack.c.b16 %v275, %v271
  %v352 = vpack.c.b16 %v276, %v272
  %v353 = vpack.c.b16 %v277, %v273
  %v354 = vpack.c.b16 %v282, %v278
  %v355 = vpack.c.b16 %v283, %v279
  %v356 = vpack.c.b16 %v284, %v280
  %v357 = vpack.c.b16 %v285, %v281
  %v358 = vpack.c.b16 %v290, %v286
  %v359 = vpack.c.b16 %v291, %v287
  %v360 = vpack.c.b16 %v292, %v288
  %v361 = vpack.c.b16 %v293, %v289
  %v362 = vpack.c.b16 %v298, %v294
  %v363 = vpack.c.b16 %v299, %v295
  %v364 = vpack.c.b16 %v300, %v296
  %v365 = vpack.c.b16 %v301, %v297
  %430 = vmatprep.subr.bf16.mxu0 %v331
  %431 = vmatpush1.bf16.msra.mxu0 %v330
  %432 = vmatprep.subr.bf16.mxu0 %v327
  %433 = vmatpush1.bf16.msra.mxu0 %v326
  %434 = vmatprep.subr.bf16.mxu0 %v323
  %435 = vmatpush1.bf16.msra.mxu0 %v322
  %436 = vmatprep.subr.bf16.mxu0 %v319
  %437 = vmatpush1.bf16.msra.mxu0 %v318
  %438 = vmatprep.subr.bf16.mxu0 %v315
  %439 = vmatpush1.bf16.msra.mxu0 %v314
  %440 = vmatprep.subr.bf16.mxu0 %v311
  %441 = vmatpush1.bf16.msra.mxu0 %v310
  %442 = vmatprep.subr.bf16.mxu0 %v307
  %443 = vmatpush1.bf16.msra.mxu0 %v306
  %444 = vmatprep.subr.bf16.mxu0 %v303
  %445 = vmatpush1.bf16.msra.mxu0 %v302
  %446 = vmatprep.subr.bf16.mxu0 %v363
  %447 = vmatpush2.bf16.msra.mxu0 %v362
  %448 = vmatprep.subr.bf16.mxu0 %v359
  %449 = vmatpush2.bf16.msra.mxu0 %v358
  %450 = vmatprep.subr.bf16.mxu0 %v355
  %451 = vmatpush2.bf16.msra.mxu0 %v354
  %452 = vmatprep.subr.bf16.mxu0 %v351
  %453 = vmatpush2.bf16.msra.mxu0 %v350
  %454 = vmatprep.subr.bf16.mxu0 %v347
  %455 = vmatpush2.bf16.msra.mxu0 %v346
  %456 = vmatprep.subr.bf16.mxu0 %v343
  %457 = vmatpush2.bf16.msra.mxu0 %v342
  %458 = vmatprep.subr.bf16.mxu0 %v339
  %459 = vmatpush2.bf16.msra.mxu0 %v338
  %460 = vmatprep.subr.bf16.mxu0 %v335
  %461 = vmatpush2.bf16.msra.mxu0 %v334
  %462 = vmatprep.mubr.bf16.mxu0 %v107
  %463 = vmatmul.mubr.bf16.gmra.mxu0 %v106
  %v464 = vpop.f32.mrf.mxu0
  %v465 = vadd.f32 0.0, %v464
  %v466 = vpop.f32.mrf.mxu0
  %v467 = vadd.f32 0.0, %v466
  %v468 = vpop.f32.mrf.mxu0
  %v469 = vadd.f32 0.0, %v468
  %v470 = vpop.f32.mrf.mxu0
  %v471 = vadd.f32 0.0, %v470
  %472 = vdwg.mxu0
  %473 = vmatprep.subr.bf16.mxu0 %v333
  %474 = vmatpush1.bf16.msra.mxu0 %v332
  %475 = vmatprep.subr.bf16.mxu0 %v329
  %476 = vmatpush1.bf16.msra.mxu0 %v328
  %477 = vmatprep.subr.bf16.mxu0 %v325
  %478 = vmatpush1.bf16.msra.mxu0 %v324
  %479 = vmatprep.subr.bf16.mxu0 %v321
  %480 = vmatpush1.bf16.msra.mxu0 %v320
  %481 = vmatprep.subr.bf16.mxu0 %v317
  %482 = vmatpush1.bf16.msra.mxu0 %v316
  %483 = vmatprep.subr.bf16.mxu0 %v313
  %484 = vmatpush1.bf16.msra.mxu0 %v312
  %485 = vmatprep.subr.bf16.mxu0 %v309
  %486 = vmatpush1.bf16.msra.mxu0 %v308
  %487 = vmatprep.subr.bf16.mxu0 %v305
  %488 = vmatpush1.bf16.msra.mxu0 %v304
  %489 = vmatprep.subr.bf16.mxu0 %v365
  %490 = vmatpush2.bf16.msra.mxu0 %v364
  %491 = vmatprep.subr.bf16.mxu0 %v361
  %492 = vmatpush2.bf16.msra.mxu0 %v360
  %493 = vmatprep.subr.bf16.mxu0 %v357
  %494 = vmatpush2.bf16.msra.mxu0 %v356
  %495 = vmatprep.subr.bf16.mxu0 %v353
  %496 = vmatpush2.bf16.msra.mxu0 %v352
  %497 = vmatprep.subr.bf16.mxu0 %v349
  %498 = vmatpush2.bf16.msra.mxu0 %v348
  %499 = vmatprep.subr.bf16.mxu0 %v345
  %500 = vmatpush2.bf16.msra.mxu0 %v344
  %501 = vmatprep.subr.bf16.mxu0 %v341
  %502 = vmatpush2.bf16.msra.mxu0 %v340
  %503 = vmatprep.subr.bf16.mxu0 %v337
  %504 = vmatpush2.bf16.msra.mxu0 %v336
  %505 = vmatprep.mubr.bf16.mxu0 %v107
  %506 = vmatmul.mubr.bf16.gmra.mxu0 %v106
  %v507 = vpop.f32.mrf.mxu0
  %v508 = vadd.f32 0.0, %v507
  %v509 = vpop.f32.mrf.mxu0
  %v510 = vadd.f32 0.0, %v509
  %v511 = vpop.f32.mrf.mxu0
  %v512 = vadd.f32 0.0, %v511
  %v513 = vpop.f32.mrf.mxu0
  %v514 = vadd.f32 0.0, %v513
  %515 = vdwg.mxu0
  %v516 = vadd.f32 %v26, %v465
  %v517 = vadd.f32 %v27, %v467
  %v518 = vadd.f32 %v28, %v508
  %v519 = vadd.f32 %v29, %v510
  %v520 = vadd.f32 %v30, %v469
  %v521 = vadd.f32 %v31, %v471
  %v522 = vadd.f32 %v32, %v512
  %v523 = vadd.f32 %v33, %v514
  %524 = vst [vmem:[#allocation2] sm:$0xff] %v516
  %525 = vst [vmem:[#allocation2 + $0x8] sm:$0xff] %v517
  %526 = vst [vmem:[#allocation2 + $0x10] sm:$0xff] %v518
  %527 = vst [vmem:[#allocation2 + $0x18] sm:$0xff] %v519
  %528 = vst [vmem:[#allocation2 + $0x20] sm:$0xff] %v520
  %529 = vst [vmem:[#allocation2 + $0x28] sm:$0xff] %v521
  %530 = vst [vmem:[#allocation2 + $0x30] sm:$0xff] %v522
  %531 = vst [vmem:[#allocation2 + $0x38] sm:$0xff] %v523
  // Predicated region
  $region18: #{seq2seq_decoder_layer.13} parent=0 // pred_check
    %p532 = pneg %p14
  $region19: #{seq2seq_decoder_layer.13} parent=0 // pred_check_branch
    %534 = sbr.rel (%p532) target = $region21
  $region20: #{seq2seq_decoder_layer.13} parent=0 // pred_region
    %v535 = vld [vmem:[#allocation2] sm:$0xff]
    %v536 = vld [vmem:[#allocation2 + $0x8] sm:$0xff]
    %v537 = vld [vmem:[#allocation2 + $0x10] sm:$0xff]
    %v538 = vld [vmem:[#allocation2 + $0x18] sm:$0xff]
    %v539 = vld [vmem:[#allocation2 + $0x20] sm:$0xff]
    %v540 = vld [vmem:[#allocation2 + $0x28] sm:$0xff]
    %v541 = vld [vmem:[#allocation2 + $0x30] sm:$0xff]
    %v542 = vld [vmem:[#allocation2 + $0x38] sm:$0xff]
    %v543 = vld [vmem:[%s2] sm:$0xf]
    %v545 = vlaneseq
    %v546 = vshrl.u32 %v545, 7
    %v547 = vsub.s32 0, %v546
    %v548 = vrot.slane %v543, %v547
    %v549 = vlaneseq
    %v550 = vshrl.u32 %v549, 7
    %v551 = vsub.s32 1, %v550
    %v552 = vrot.slane %v543, %v551
    %v553 = vlaneseq
    %v554 = vshrl.u32 %v553, 7
    %v555 = vsub.s32 2, %v554
    %v556 = vrot.slane %v543, %v555
    %v557 = vlaneseq
    %v558 = vshrl.u32 %v557, 7
    %v559 = vsub.s32 3, %v558
    %v560 = vrot.slane %v543, %v559
    %v565 = vadd.f32 %v535, %v548
    %v566 = vadd.f32 %v536, %v552
    %v567 = vadd.f32 %v537, %v556
    %v568 = vadd.f32 %v538, %v560
    %v569 = vadd.f32 %v539, %v548
    %v570 = vadd.f32 %v540, %v552
    %v571 = vadd.f32 %v541, %v556
    %v572 = vadd.f32 %v542, %v560
    %v573 = vpack.c.bf16 %v569, %v565
    %v574 = vpack.c.bf16 %v570, %v566
    %v575 = vpack.c.bf16 %v571, %v567
    %v576 = vpack.c.bf16 %v572, %v568
    %v581 = vunpack.c.l.b16 %v573
    %v582 = vunpack.c.l.b16 %v574
    %v583 = vunpack.c.l.b16 %v575
    %v584 = vunpack.c.l.b16 %v576
    %v585 = vunpack.c.h.b16 %v573
    %v586 = vunpack.c.h.b16 %v574
    %v587 = vunpack.c.h.b16 %v575
    %v588 = vunpack.c.h.b16 %v576
    %v589 = vpack.c.b16 %v582, %v581
    %v590 = vpack.c.b16 %v584, %v583
    %v591 = vpack.c.b16 %v586, %v585
    %v592 = vpack.c.b16 %v588, %v587
    %597 = vst [vmem:[%s3] sm:$0xff] %v589
    %598 = vst [vmem:[%s3 + $0x8] sm:$0xff] %v590
    %599 = vst [vmem:[%s3 + $0x10] sm:$0xff] %v591
    %600 = vst [vmem:[%s3 + $0x18] sm:$0xff] %v592
  $region21: #{seq2seq_decoder_layer.13} parent=0 // pred_fallthru
    _
  // Predicated region
  $region22: #{seq2seq_decoder_layer.13} parent=0 // pred_check
    _
  $region23: #{seq2seq_decoder_layer.13} parent=0 // pred_check_branch
    %602 = sbr.rel (0) target = $region25
  $region24: #{seq2seq_decoder_layer.13} parent=0 // pred_region
    _
  $region25: #{seq2seq_decoder_layer.13} parent=0 // pred_fallthru
    _
  // Predicated region
  $region26: #{seq2seq_decoder_layer.13} parent=0 // pred_check
    _
  $region27: #{seq2seq_decoder_layer.13} parent=0 // pred_check_branch
    %604 = sbr.rel (0) target = $region29
  $region28: #{seq2seq_decoder_layer.13} parent=0 // pred_region
    _
  $region29: #{seq2seq_decoder_layer.13} parent=0 // pred_fallthru
    _

// kernel: seq2seq_decoder_layer.14
$region0: #{seq2seq_decoder_layer.14}
  #allocation0 [shape = 'u32[]', space=smem, size = 0x4, offset = 0x4, fixed_abs, tag = 'smem constant byte address 0x4 - core index']
  #allocation1 [shape = 'u32[144,128]{1,0:T(1,128)}', space=vmem, size = 0x12000, scoped, tag = 'internal scratch']
  #allocation2 [shape = 'f32[8,1]{1,0:T(8,128)}', space=vmem, size = 0x1000, scoped, tag = 'scratch operand']
  #allocation3 [shape = 'f32[8,1]{1,0:T(8,128)}', space=vmem, size = 0x1000, scoped, tag = 'scratch operand']
  #allocation4 [shape = 'f32[8,128]{1,0:T(8,128)}', space=vmem, size = 0x1000, scoped, tag = 'scratch operand']
  %s0 = inlined_call_operand.vmem [shape: bf16[2,8,256], index: 0, kind: input, shape index: {}]
  %s1 = inlined_call_operand.vmem [shape: bf16[2,8,512], index: 1, kind: input, shape index: {}, may-alias: {1,2}]
  %s2 = inlined_call_operand.vmem [shape: bf16[2,8,512], index: 2, kind: input, shape index: {}, may-alias: {1,2}]
  %s3 = inlined_call_operand.vmem [shape: f32[2,1,1,8], index: 3, kind: input, shape index: {}]
  %s4 = inlined_call_operand.vmem [shape: bf16[2,8,256], index: 4, kind: output, shape index: {}]
  %s5 = sld [smem:[#allocation0]]
  $region57: #{seq2seq_decoder_layer.14} parent=0
    _
  %s7 = ssub.s32 1, %s5
  %s8 = scalar_select 0, %s7, %s5
  loop: start=0, step=1, limit=6
  $region2: #{seq2seq_decoder_layer.14} parent=0 // loop_pre_header
    _
  $region3: #{seq2seq_decoder_layer.14} parent=0 // loop_header
    %s10 = sphi 0, %s14
    %p11 = scmp.ge.s32.totalorder %s10, 6
    %s17 = sphi 0, %s43
    %s18 = sphi 0, %s39
    %s19 = sphi 0, %s35
    %s20 = sphi 0, %s31
    %s21 = sphi 0, %s17
    %s22 = sphi 0, %s18
    %s23 = sphi 0, %s19
    %s24 = sphi 0, %s20
    %s25 = sphi 0, %s21
    %s26 = sphi 0, %s22
    %s27 = sphi 0, %s23
    %s28 = sphi 0, %s24
    %s50 = sphi 0, %s52
    %s53 = sphi 0, %s50
    %s54 = sphi 0, %s53
    %s70 = sphi 0, %s54
    %s80 = sphi 0, %s82
    %s83 = sphi 0, %s80
    %s84 = sphi 0, %s83
    %s100 = sphi 0, %s84
    %s112 = sphi 0, %s114
    %s115 = sphi 0, %s112
    %s116 = sphi 0, %s115
    %s132 = sphi 0, %s116
    %s140 = sphi 0, %s142
    %s143 = sphi 0, %s140
    %s144 = sphi 0, %s143
    %s160 = sphi 0, %s144
    %s170 = sphi 0, %s172
    %s173 = sphi 0, %s170
    %s174 = sphi 0, %s173
    %s190 = sphi 0, %s174
  $region4: #{seq2seq_decoder_layer.14} parent=0 // loop_header_branch
    %13 = sbr.rel (%p11) target = $region8
  $region5: #{seq2seq_decoder_layer.14} parent=0 // loop_body
    %s15 = ssub.s32 %s10, 1
    %s16 = ssub.s32 %s10, 2
    %s29 = sadd.s32 1, %s20
    %p30 = scmp.ge.s32.totalorder %s29, 1
    %s31 = scalar_select %p30, 0, %s29
    %s32 = sadd.s32 1, %s19
    %s33 = scalar_select %p30, %s32, %s19
    %p34 = scmp.ge.s32.totalorder %s33, 1
    %s35 = scalar_select %p34, 0, %s33
    %s36 = sadd.s32 1, %s18
    %s37 = scalar_select %p34, %s36, %s18
    %p38 = scmp.ge.s32.totalorder %s37, 2
    %s39 = scalar_select %p38, 0, %s37
    %s40 = sadd.s32 1, %s17
    %s41 = scalar_select %p38, %s40, %s17
    %p42 = scmp.ge.s32.totalorder %s41, 2
    %s43 = scalar_select %p42, 0, %s41
    %s44 = ssub.s32 %s17, %s43
    %s45 = ssub.s32 %s19, %s35
    %s46 = sor.u32 %s44, %s45
    %s47 = ssub.s32 %s18, %s39
    %s48 = sor.u32 %s46, %s47
    %p49 = scmp.eq.s32.totalorder %s48, 0
    %s51 = sadd.s32 %s50, 1
    %s52 = scalar_select %p49, %s50, %s51
    %p55 = pneg %p49
    %p56 = scmp.eq.s32.totalorder %s10, 3
    %p57 = por %p55, %p56
    %p58 = scmp.ne.s32.totalorder %s50, %s53
    %p59 = scmp.eq.s32.totalorder %s10, 0
    %p60 = por %p58, %p59
    %p61 = scmp.ne.s32.totalorder %s50, %s53
    %p62 = scmp.eq.s32.totalorder %s15, 3
    %p63 = por %p61, %p62
    %p64 = scmp.ne.s32.totalorder %s53, %s54
    %p65 = scmp.eq.s32.totalorder %s15, 0
    %p66 = por %p64, %p65
    %p67 = scmp.ne.s32.totalorder %s53, %s54
    %p68 = scmp.eq.s32.totalorder %s16, 3
    %p69 = por %p67, %p68
    %p71 = scmp.ne.s32.totalorder %s54, %s70
    %p72 = scmp.eq.s32.totalorder %s16, 0
    %p73 = por %p71, %p72
    %s74 = ssub.s32 %s17, %s43
    %s75 = ssub.s32 %s20, %s31
    %s76 = sor.u32 %s74, %s75
    %s77 = ssub.s32 %s18, %s39
    %s78 = sor.u32 %s76, %s77
    %p79 = scmp.eq.s32.totalorder %s78, 0
    %s81 = sadd.s32 %s80, 1
    %s82 = scalar_select %p79, %s80, %s81
    %p85 = pneg %p79
    %p86 = scmp.eq.s32.totalorder %s10, 3
    %p87 = por %p85, %p86
    %p88 = scmp.ne.s32.totalorder %s80, %s83
    %p89 = scmp.eq.s32.totalorder %s10, 0
    %p90 = por %p88, %p89
    %p91 = scmp.ne.s32.totalorder %s80, %s83
    %p92 = scmp.eq.s32.totalorder %s15, 3
    %p93 = por %p91, %p92
    %p94 = scmp.ne.s32.totalorder %s83, %s84
    %p95 = scmp.eq.s32.totalorder %s15, 0
    %p96 = por %p94, %p95
    %p97 = scmp.ne.s32.totalorder %s83, %s84
    %p98 = scmp.eq.s32.totalorder %s16, 3
    %p99 = por %p97, %p98
    %p101 = scmp.ne.s32.totalorder %s84, %s100
    %p102 = scmp.eq.s32.totalorder %s16, 0
    %p103 = por %p101, %p102
    %s104 = sadd.s32 %s18, 2
    %s105 = sadd.s32 %s39, 2
    %s106 = ssub.s32 %s17, %s43
    %s107 = ssub.s32 %s20, %s31
    %s108 = sor.u32 %s106, %s107
    %s109 = ssub.s32 %s104, %s105
    %s110 = sor.u32 %s108, %s109
    %p111 = scmp.eq.s32.totalorder %s110, 0
    %s113 = sadd.s32 %s112, 1
    %s114 = scalar_select %p111, %s112, %s113
    %p117 = pneg %p111
    %p118 = scmp.eq.s32.totalorder %s10, 3
    %p119 = por %p117, %p118
    %p120 = scmp.ne.s32.totalorder %s112, %s115
    %p121 = scmp.eq.s32.totalorder %s10, 0
    %p122 = por %p120, %p121
    %p123 = scmp.ne.s32.totalorder %s112, %s115
    %p124 = scmp.eq.s32.totalorder %s15, 3
    %p125 = por %p123, %p124
    %p126 = scmp.ne.s32.totalorder %s115, %s116
    %p127 = scmp.eq.s32.totalorder %s15, 0
    %p128 = por %p126, %p127
    %p129 = scmp.ne.s32.totalorder %s115, %s116
    %p130 = scmp.eq.s32.totalorder %s16, 3
    %p131 = por %p129, %p130
    %p133 = scmp.ne.s32.totalorder %s116, %s132
    %p134 = scmp.eq.s32.totalorder %s16, 0
    %p135 = por %p133, %p134
    %s136 = ssub.s32 %s17, %s43
    %s137 = ssub.s32 %s20, %s31
    %s138 = sor.u32 %s136, %s137
    %p139 = scmp.eq.s32.totalorder %s138, 0
    %s141 = sadd.s32 %s140, 1
    %s142 = scalar_select %p139, %s140, %s141
    %p145 = pneg %p139
    %p146 = scmp.eq.s32.totalorder %s10, 3
    %p147 = por %p145, %p146
    %p148 = scmp.ne.s32.totalorder %s140, %s143
    %p149 = scmp.eq.s32.totalorder %s10, 0
    %p150 = por %p148, %p149
    %p151 = scmp.ne.s32.totalorder %s140, %s143
    %p152 = scmp.eq.s32.totalorder %s15, 3
    %p153 = por %p151, %p152
    %p154 = scmp.ne.s32.totalorder %s143, %s144
    %p155 = scmp.eq.s32.totalorder %s15, 0
    %p156 = por %p154, %p155
    %p157 = scmp.ne.s32.totalorder %s143, %s144
    %p158 = scmp.eq.s32.totalorder %s16, 3
    %p159 = por %p157, %p158
    %p161 = scmp.ne.s32.totalorder %s144, %s160
    %p162 = scmp.eq.s32.totalorder %s16, 0
    %p163 = por %p161, %p162
    %s164 = ssub.s32 %s17, %s43
    %s165 = ssub.s32 %s19, %s35
    %s166 = sor.u32 %s164, %s165
    %s167 = ssub.s32 %s18, %s39
    %s168 = sor.u32 %s166, %s167
    %p169 = scmp.eq.s32.totalorder %s168, 0
    %s171 = sadd.s32 %s170, 1
    %s172 = scalar_select %p169, %s170, %s171
    %p175 = pneg %p169
    %p176 = scmp.eq.s32.totalorder %s10, 3
    %p177 = por %p175, %p176
    %p178 = scmp.ne.s32.totalorder %s170, %s173
    %p179 = scmp.eq.s32.totalorder %s10, 0
    %p180 = por %p178, %p179
    %p181 = scmp.ne.s32.totalorder %s170, %s173
    %p182 = scmp.eq.s32.totalorder %s15, 3
    %p183 = por %p181, %p182
    %p184 = scmp.ne.s32.totalorder %s173, %s174
    %p185 = scmp.eq.s32.totalorder %s15, 0
    %p186 = por %p184, %p185
    %p187 = scmp.ne.s32.totalorder %s173, %s174
    %p188 = scmp.eq.s32.totalorder %s16, 3
    %p189 = por %p187, %p188
    %p191 = scmp.ne.s32.totalorder %s174, %s190
    %p192 = scmp.eq.s32.totalorder %s16, 0
    %p193 = por %p191, %p192
    %p194 = scmp.le.s32.totalorder 1, %s10
    %p195 = scmp.lt.s32.totalorder %s10, 5
    %p196 = pnand %p194, %p195
    %p197 = pneg %p196
    // Predicated region
    $region9: #{seq2seq_decoder_layer.14} parent=5 // pred_check
      _
    $region10: #{seq2seq_decoder_layer.14} parent=5 // pred_check_branch
      %199 = sbr.rel (%p196) target = $region12
    $region11: #{seq2seq_decoder_layer.14} parent=5 // pred_region
      %s200 = ssub.s32 %s10, 1
    $region12: #{seq2seq_decoder_layer.14} parent=5 // pred_fallthru
      _
    %p201 = scmp.lt.s32.totalorder %s10, 4
    // Predicated region
    $region13: #{seq2seq_decoder_layer.14} parent=5 // pred_check
      %p202 = pneg %p201
    $region14: #{seq2seq_decoder_layer.14} parent=5 // pred_check_branch
      %204 = sbr.rel (%p202) target = $region16
    $region15: #{seq2seq_decoder_layer.14} parent=5 // pred_region
      // Predicated region
      $region17: #{seq2seq_decoder_layer.14} parent=15 // pred_check
        %p205 = pneg %p60
      $region18: #{seq2seq_decoder_layer.14} parent=15 // pred_check_branch
        %207 = sbr.rel (%p205) target = $region20
      $region19: #{seq2seq_decoder_layer.14} parent=15 // pred_region
        %p208 = scmp.lt.s32.totalorder %s17, 1
        %s209 = scalar_select %p208, %s17, 1
        %p210 = scmp.lt.s32.totalorder %s19, 0
        %s211 = scalar_select %p210, %s19, 0
        %p212 = scmp.lt.s32.totalorder %s18, 1
        %s213 = scalar_select %p212, %s18, 1
        %s214 = smul.addr %s211, 2
        %s215 = sadd.s32 %s213, %s214
        %s216 = smul.addr %s209, 2
        %s217 = sadd.s32 %s215, %s216
        %s218 = smul.addr %s217, 4
        %s219 = scalar_lea.vmem %s0, %s218
      $region20: #{seq2seq_decoder_layer.14} parent=15 // pred_fallthru
        _
      // Predicated region
      $region21: #{seq2seq_decoder_layer.14} parent=15 // pred_check
        %p220 = pneg %p90
      $region22: #{seq2seq_decoder_layer.14} parent=15 // pred_check_branch
        %222 = sbr.rel (%p220) target = $region24
      $region23: #{seq2seq_decoder_layer.14} parent=15 // pred_region
        %p223 = scmp.lt.s32.totalorder %s17, 1
        %s224 = scalar_select %p223, %s17, 1
        %p225 = scmp.lt.s32.totalorder %s20, 0
        %s226 = scalar_select %p225, %s20, 0
        %p227 = scmp.lt.s32.totalorder %s18, 3
        %s228 = scalar_select %p227, %s18, 3
        %s229 = smul.addr %s226, 4
        %s230 = sadd.s32 %s228, %s229
        %s231 = smul.addr %s224, 4
        %s232 = sadd.s32 %s230, %s231
        %s233 = smul.addr %s232, 4
        %s234 = scalar_lea.vmem %s1, %s233
      $region24: #{seq2seq_decoder_layer.14} parent=15 // pred_fallthru
        _
      // Predicated region
      $region25: #{seq2seq_decoder_layer.14} parent=15 // pred_check
        %p235 = pneg %p122
      $region26: #{seq2seq_decoder_layer.14} parent=15 // pred_check_branch
        %237 = sbr.rel (%p235) target = $region28
      $region27: #{seq2seq_decoder_layer.14} parent=15 // pred_region
        %s238 = sadd.s32 %s18, 2
        %p239 = scmp.lt.s32.totalorder %s17, 1
        %s240 = scalar_select %p239, %s17, 1
        %p241 = scmp.lt.s32.totalorder %s20, 0
        %s242 = scalar_select %p241, %s20, 0
        %p243 = scmp.lt.s32.totalorder %s238, 3
        %s244 = scalar_select %p243, %s238, 3
        %s245 = smul.addr %s242, 4
        %s246 = sadd.s32 %s244, %s245
        %s247 = smul.addr %s240, 4
        %s248 = sadd.s32 %s246, %s247
        %s249 = smul.addr %s248, 4
        %s250 = scalar_lea.vmem %s2, %s249
        %s251 = sadd.s32 %s18, 2
      $region28: #{seq2seq_decoder_layer.14} parent=15 // pred_fallthru
        _
      // Predicated region
      $region29: #{seq2seq_decoder_layer.14} parent=15 // pred_check
        %p252 = pneg %p150
      $region30: #{seq2seq_decoder_layer.14} parent=15 // pred_check_branch
        %254 = sbr.rel (%p252) target = $region32
      $region31: #{seq2seq_decoder_layer.14} parent=15 // pred_region
        %p255 = scmp.lt.s32.totalorder %s17, 1
        %s256 = scalar_select %p255, %s17, 1
        %p257 = scmp.lt.s32.totalorder %s20, 0
        %s258 = scalar_select %p257, %s20, 0
        %s259 = sadd.s32 %s258, %s256
        %s260 = scalar_lea.vmem %s3, %s259
      $region32: #{seq2seq_decoder_layer.14} parent=15 // pred_fallthru
        _
    $region16: #{seq2seq_decoder_layer.14} parent=5 // pred_fallthru
      _
    %p261 = scmp.le.s32.totalorder 1, %s10
    %p262 = scmp.lt.s32.totalorder %s10, 5
    %p263 = pnand %p261, %p262
    %p264 = pneg %p263
    // Predicated region
    $region33: #{seq2seq_decoder_layer.14} parent=5 // pred_check
      _
    $region34: #{seq2seq_decoder_layer.14} parent=5 // pred_check_branch
      %266 = sbr.rel (%p263) target = $region36
    $region35: #{seq2seq_decoder_layer.14} parent=5 // pred_region
      %s267 = ssub.s32 %s10, 1
      %p268 = scmp.lt.s32.totalorder %s21, 1
      %s269 = scalar_select %p268, %s21, 1
      %p270 = scmp.lt.s32.totalorder %s23, 0
      %s271 = scalar_select %p270, %s23, 0
      %p272 = scmp.lt.s32.totalorder %s22, 1
      %s273 = scalar_select %p272, %s22, 1
      %s274 = smul.addr %s271, 2
      %s275 = sadd.s32 %s273, %s274
      %s276 = smul.addr %s269, 2
      %s277 = sadd.s32 %s275, %s276
      %s278 = smul.addr %s277, 4
      %s279 = scalar_lea.vmem %s0, %s278
      %p280 = pneg %p66
      %p281 = pneg %p63
      %p282 = scmp.lt.s32.totalorder %s21, 1
      %s283 = scalar_select %p282, %s21, 1
      %p284 = scmp.lt.s32.totalorder %s24, 0
      %s285 = scalar_select %p284, %s24, 0
      %p286 = scmp.lt.s32.totalorder %s22, 3
      %s287 = scalar_select %p286, %s22, 3
      %s288 = smul.addr %s285, 4
      %s289 = sadd.s32 %s287, %s288
      %s290 = smul.addr %s283, 4
      %s291 = sadd.s32 %s289, %s290
      %s292 = smul.addr %s291, 4
      %s293 = scalar_lea.vmem %s1, %s292
      %p294 = pneg %p96
      %p295 = pneg %p93
      %s296 = sadd.s32 %s22, 2
      %p297 = scmp.lt.s32.totalorder %s21, 1
      %s298 = scalar_select %p297, %s21, 1
      %p299 = scmp.lt.s32.totalorder %s24, 0
      %s300 = scalar_select %p299, %s24, 0
      %p301 = scmp.lt.s32.totalorder %s296, 3
      %s302 = scalar_select %p301, %s296, 3
      %s303 = smul.addr %s300, 4
      %s304 = sadd.s32 %s302, %s303
      %s305 = smul.addr %s298, 4
      %s306 = sadd.s32 %s304, %s305
      %s307 = smul.addr %s306, 4
      %s308 = scalar_lea.vmem %s2, %s307
      %p309 = pneg %p128
      %p310 = pneg %p125
      %p311 = scmp.lt.s32.totalorder %s21, 1
      %s312 = scalar_select %p311, %s21, 1
      %p313 = scmp.lt.s32.totalorder %s24, 0
      %s314 = scalar_select %p313, %s24, 0
      %s315 = sadd.s32 %s314, %s312
      %s316 = scalar_lea.vmem %s3, %s315
      %p317 = pneg %p156
      %p318 = pneg %p153
      %p319 = pneg %p186
      %p320 = pneg %p183
      %p321 = scmp.lt.s32.totalorder %s21, 1
      %s322 = scalar_select %p321, %s21, 1
      %p323 = scmp.lt.s32.totalorder %s23, 0
      %s324 = scalar_select %p323, %s23, 0
      %p325 = scmp.lt.s32.totalorder %s22, 1
      %s326 = scalar_select %p325, %s22, 1
      %s327 = smul.addr %s324, 2
      %s328 = sadd.s32 %s326, %s327
      %s329 = smul.addr %s322, 2
      %s330 = sadd.s32 %s328, %s329
      %s331 = smul.addr %s330, 4
      %s332 = scalar_lea.vmem %s4, %s331
      %p333 = scmp.lt.s32.totalorder %s21, 1
      %s334 = scalar_select %p333, %s21, 1
      %p335 = scmp.lt.s32.totalorder %s23, 0
      %s336 = scalar_select %p335, %s23, 0
      %p337 = scmp.lt.s32.totalorder %s22, 1
      %s338 = scalar_select %p337, %s22, 1
      %s339 = smul.addr %s336, 2
      %s340 = sadd.s32 %s338, %s339
      %s341 = smul.addr %s334, 2
      %s342 = sadd.s32 %s340, %s341
      %s343 = smul.addr %s342, 4
      %s344 = scalar_lea.vmem %s0, %s343
      %p345 = scmp.lt.s32.totalorder %s21, 1
      %s346 = scalar_select %p345, %s21, 1
      %p347 = scmp.lt.s32.totalorder %s24, 0
      %s348 = scalar_select %p347, %s24, 0
      %p349 = scmp.lt.s32.totalorder %s22, 3
      %s350 = scalar_select %p349, %s22, 3
      %s351 = smul.addr %s348, 4
      %s352 = sadd.s32 %s350, %s351
      %s353 = smul.addr %s346, 4
      %s354 = sadd.s32 %s352, %s353
      %s355 = smul.addr %s354, 4
      %s356 = scalar_lea.vmem %s1, %s355
      %s357 = sadd.s32 %s22, 2
      %p358 = scmp.lt.s32.totalorder %s21, 1
      %s359 = scalar_select %p358, %s21, 1
      %p360 = scmp.lt.s32.totalorder %s24, 0
      %s361 = scalar_select %p360, %s24, 0
      %p362 = scmp.lt.s32.totalorder %s357, 3
      %s363 = scalar_select %p362, %s357, 3
      %s364 = smul.addr %s361, 4
      %s365 = sadd.s32 %s363, %s364
      %s366 = smul.addr %s359, 4
      %s367 = sadd.s32 %s365, %s366
      %s368 = smul.addr %s367, 4
      %s369 = scalar_lea.vmem %s2, %s368
      %s370 = sadd.s32 %s22, 2
      %p371 = scmp.lt.s32.totalorder %s21, 1
      %s372 = scalar_select %p371, %s21, 1
      %p373 = scmp.lt.s32.totalorder %s24, 0
      %s374 = scalar_select %p373, %s24, 0
      %s375 = sadd.s32 %s374, %s372
      %s376 = scalar_lea.vmem %s3, %s375
      %p377 = scmp.lt.s32.totalorder %s21, 1
      %s378 = scalar_select %p377, %s21, 1
      %p379 = scmp.lt.s32.totalorder %s23, 0
      %s380 = scalar_select %p379, %s23, 0
      %p381 = scmp.lt.s32.totalorder %s22, 1
      %s382 = scalar_select %p381, %s22, 1
      %s383 = smul.addr %s380, 2
      %s384 = sadd.s32 %s382, %s383
      %s385 = smul.addr %s378, 2
      %s386 = sadd.s32 %s384, %s385
      %s387 = smul.addr %s386, 4
      %s388 = scalar_lea.vmem %s4, %s387
      %p390 = scmp.eq.s32.totalorder %s24, 0
      // Predicated region
      $region37: #{seq2seq_decoder_layer.14} parent=35 // pred_check
        %p391 = pneg %p390
      $region38: #{seq2seq_decoder_layer.14} parent=35 // pred_check_branch
        %393 = sbr.rel (%p391) target = $region40
      $region39: #{seq2seq_decoder_layer.14} parent=35 // pred_region
        %vm394 = vcmask 7168
        %395 = vst.msk [vmem:[#allocation2] sm:$0xff] %vm394, -inf
        %396 = vst.msk [vmem:[#allocation3] sm:$0xff] %vm394, 0.0
        %397 = vst [vmem:[#allocation4] sm:$0xff] 0.0
      $region40: #{seq2seq_decoder_layer.14} parent=35 // pred_fallthru
        _
      %v398 = vld [vmem:[%s376] sm:$0x1]
      %v399 = vld [vmem:[%s344] sm:$0xf]
      %v400 = vld [vmem:[%s356] sm:$0xf]
      %v401 = vld [vmem:[%s369] sm:$0xf]
      %v403 = vlaneseq
      %v404 = vshrl.u32 %v403, 7
      %v405 = vsub.s32 0, %v404
      %v406 = vrot.slane %v398, %v405
      %408 = vmatprep.subr.bf16.mxu0 0
      %409 = vmatpush1.bf16.xpose.msra.mxu0 0
      %410 = vmatprep.subr.bf16.mxu0 0
      %411 = vmatpush1.bf16.xpose.msra.mxu0 0
      %412 = vmatprep.subr.bf16.mxu0 0
      %413 = vmatpush1.bf16.xpose.msra.mxu0 0
      %414 = vmatprep.subr.bf16.mxu0 0
      %415 = vmatpush1.bf16.xpose.msra.mxu0 0
      %416 = vmatprep.subr.bf16.mxu0 0
      %417 = vmatpush1.bf16.xpose.msra.mxu0 0
      %418 = vmatprep.subr.bf16.mxu0 0
      %419 = vmatpush1.bf16.xpose.msra.mxu0 0
      %420 = vmatprep.subr.bf16.mxu0 0
      %421 = vmatpush1.bf16.xpose.msra.mxu0 0
      %422 = vmatprep.subr.bf16.mxu0 0
      %423 = vmatpush1.bf16.xpose.msra.mxu0 %v400
      %424 = vmatprep.subr.bf16.mxu0 0
      %425 = vmatpush2.bf16.xpose.msra.mxu0 0
      %426 = vmatprep.subr.bf16.mxu0 0
      %427 = vmatpush2.bf16.xpose.msra.mxu0 0
      %428 = vmatprep.subr.bf16.mxu0 0
      %429 = vmatpush2.bf16.xpose.msra.mxu0 0
      %430 = vmatprep.subr.bf16.mxu0 0
      %431 = vmatpush2.bf16.xpose.msra.mxu0 0
      %432 = vmatprep.subr.bf16.mxu0 0
      %433 = vmatpush2.bf16.xpose.msra.mxu0 0
      %434 = vmatprep.subr.bf16.mxu0 0
      %435 = vmatpush2.bf16.xpose.msra.mxu0 0
      %436 = vmatprep.subr.bf16.mxu0 0
      %437 = vmatpush2.bf16.xpose.msra.mxu0 0
      %438 = vmatprep.subr.bf16.mxu0 0
      %439 = vmatpush2.bf16.xpose.msra.mxu0 0
      %440 = vmatprep.mubr.bf16.mxu0 0
      %441 = vmatmul.mubr.bf16.gmra.mxu0 %v399
      %v442 = vpop.f32.mrf.mxu0
      %v443 = vadd.f32 %v406, %v442
      %v444 = vpop.f32.mrf.mxu0
      %v445 = vpop.f32.mrf.mxu0
      %v446 = vpop.f32.mrf.mxu0
      %447 = vdwg.mxu0
      %v448 = vld [vmem:[#allocation2] sm:$0xff]
      %vm449 = vcmask 64512
      %v450 = vsel %vm449, %v443, -inf
      %451 = vmax.xlane.f32.xlu0 %v450
      %v452 = vpop.xlane.xlu0 %451
      %v453 = vmax.f32 %v448, %v452
      %v454 = vsub.f32 %v448, %v453
      %v455 = vmul.f32 %v454, 1.442695
      %v456 = vpow.pop %v455
      %458 = vset.pattern.permute.xlu0 0
      %459 = vperm.xlu0 %458, %v453
      %v460 = vpop.permute.xlu0 %459
      %v462 = vsub.f32 %v443, %v460
      %v463 = vmul.f32 %v462, 1.442695
      %v464 = vpow.pop %v463
      %v465 = vld [vmem:[#allocation3] sm:$0xff]
      %v466 = vmul.f32 %v456, %v465
      %v467 = vsel %vm449, %v464, 0.0
      %468 = vadd.xlane.f32.xlu0 %v467
      %v469 = vpop.xlane.xlu0 %468
      %v470 = vadd.f32 %v466, %v469
      %vm471 = vcmask 7168
      %472 = vst.msk [vmem:[#allocation3] sm:$0xff] %vm471, %v470
      %v473 = vld [vmem:[#allocation4] sm:$0xff]
      %475 = vset.pattern.permute.xlu0 0
      %476 = vperm.xlu0 %475, %v456
      %v477 = vpop.permute.xlu0 %476
      %v479 = vmul.f32 %v477, %v473
      %v480 = vpack.c.bf16 %v464, %v464
      %v482 = vsel %vm449, %v480, 0
      %vm484 = vcmask 1043456
      %v486 = vsel %vm484, %v401, 0
      %488 = vmatprep.subr.bf16.mxu0 0
      %489 = vmatpush1.bf16.msra.mxu0 0
      %490 = vmatprep.subr.bf16.mxu0 0
      %491 = vmatpush1.bf16.msra.mxu0 0
      %492 = vmatprep.subr.bf16.mxu0 0
      %493 = vmatpush1.bf16.msra.mxu0 0
      %494 = vmatprep.subr.bf16.mxu0 0
      %495 = vmatpush1.bf16.msra.mxu0 0
      %496 = vmatprep.subr.bf16.mxu0 0
      %497 = vmatpush1.bf16.msra.mxu0 0
      %498 = vmatprep.subr.bf16.mxu0 0
      %499 = vmatpush1.bf16.msra.mxu0 0
      %500 = vmatprep.subr.bf16.mxu0 0
      %501 = vmatpush1.bf16.msra.mxu0 0
      %502 = vmatprep.subr.bf16.mxu0 0
      %503 = vmatpush1.bf16.msra.mxu0 %v486
      %504 = vmatprep.subr.bf16.mxu0 0
      %505 = vmatpush2.bf16.msra.mxu0 0
      %506 = vmatprep.subr.bf16.mxu0 0
      %507 = vmatpush2.bf16.msra.mxu0 0
      %508 = vmatprep.subr.bf16.mxu0 0
      %509 = vmatpush2.bf16.msra.mxu0 0
      %510 = vmatprep.subr.bf16.mxu0 0
      %511 = vmatpush2.bf16.msra.mxu0 0
      %512 = vmatprep.subr.bf16.mxu0 0
      %513 = vmatpush2.bf16.msra.mxu0 0
      %514 = vmatprep.subr.bf16.mxu0 0
      %515 = vmatpush2.bf16.msra.mxu0 0
      %516 = vmatprep.subr.bf16.mxu0 0
      %517 = vmatpush2.bf16.msra.mxu0 0
      %518 = vmatprep.subr.bf16.mxu0 0
      %519 = vmatpush2.bf16.msra.mxu0 0
      %520 = vmatprep.mubr.bf16.mxu0 0
      %521 = vmatmul.mubr.bf16.gmra.mxu0 %v482
      %v522 = vpop.f32.mrf.mxu0
      %v523 = vadd.f32 0.0, %v522
      %v524 = vpop.f32.mrf.mxu0
      %v525 = vpop.f32.mrf.mxu0
      %v526 = vpop.f32.mrf.mxu0
      %527 = vdwg.mxu0
      %v528 = vadd.f32 %v479, %v523
      %529 = vst [vmem:[#allocation4] sm:$0xff] %v528
      %530 = vst.msk [vmem:[#allocation2] sm:$0xff] %vm471, %v453
      // Predicated region
      $region41: #{seq2seq_decoder_layer.14} parent=35 // pred_check
        %p531 = pneg %p390
      $region42: #{seq2seq_decoder_layer.14} parent=35 // pred_check_branch
        %533 = sbr.rel (%p531) target = $region44
      $region43: #{seq2seq_decoder_layer.14} parent=35 // pred_region
        %v534 = vld [vmem:[#allocation4] sm:$0xff]
        %v535 = vld [vmem:[#allocation3] sm:$0xff]
        %537 = vset.pattern.permute.xlu0 0
        %538 = vperm.xlu0 %537, %v535
        %v539 = vpop.permute.xlu0 %538
        %v541 = vrcp.pop %v539
        %v542 = vmul.f32 %v534, %v541
        %v543 = vpack.c.bf16 %v542, %v542
        %544 = vst [vmem:[%s388] sm:$0xf] %v543
      $region44: #{seq2seq_decoder_layer.14} parent=35 // pred_fallthru
        _
      %p545 = scmp.lt.s32.totalorder %s21, 1
      %s546 = scalar_select %p545, %s21, 1
      %p547 = scmp.lt.s32.totalorder %s23, 0
      %s548 = scalar_select %p547, %s23, 0
      %p549 = scmp.lt.s32.totalorder %s22, 1
      %s550 = scalar_select %p549, %s22, 1
      %s551 = smul.addr %s548, 2
      %s552 = sadd.s32 %s550, %s551
      %s553 = smul.addr %s546, 2
      %s554 = sadd.s32 %s552, %s553
      %s555 = smul.addr %s554, 4
      %s556 = scalar_lea.vmem %s4, %s555
      // Predicated region
      $region45: #{seq2seq_decoder_layer.14} parent=35 // pred_check
        %p557 = pneg %p183
      $region46: #{seq2seq_decoder_layer.14} parent=35 // pred_check_branch
        %559 = sbr.rel (%p557) target = $region48
      $region47: #{seq2seq_decoder_layer.14} parent=35 // pred_region
        _
      $region48: #{seq2seq_decoder_layer.14} parent=35 // pred_fallthru
        _
    $region36: #{seq2seq_decoder_layer.14} parent=5 // pred_fallthru
      _
    %p560 = scmp.le.s32.totalorder 2, %s10
    // Predicated region
    $region49: #{seq2seq_decoder_layer.14} parent=5 // pred_check
      %p561 = pneg %p560
    $region50: #{seq2seq_decoder_layer.14} parent=5 // pred_check_branch
      %563 = sbr.rel (%p561) target = $region52
    $region51: #{seq2seq_decoder_layer.14} parent=5 // pred_region
      %s564 = ssub.s32 %s10, 2
      // Predicated region
      $region53: #{seq2seq_decoder_layer.14} parent=51 // pred_check
        %p565 = pneg %p189
      $region54: #{seq2seq_decoder_layer.14} parent=51 // pred_check_branch
        %567 = sbr.rel (%p565) target = $region56
      $region55: #{seq2seq_decoder_layer.14} parent=51 // pred_region
        %p568 = scmp.lt.s32.totalorder %s25, 1
        %s569 = scalar_select %p568, %s25, 1
        %p570 = scmp.lt.s32.totalorder %s27, 0
        %s571 = scalar_select %p570, %s27, 0
        %p572 = scmp.lt.s32.totalorder %s26, 1
        %s573 = scalar_select %p572, %s26, 1
        %s574 = smul.addr %s571, 2
        %s575 = sadd.s32 %s573, %s574
        %s576 = smul.addr %s569, 2
        %s577 = sadd.s32 %s575, %s576
        %s578 = smul.addr %s577, 4
        %s579 = scalar_lea.vmem %s4, %s578
      $region56: #{seq2seq_decoder_layer.14} parent=51 // pred_fallthru
        _
    $region52: #{seq2seq_decoder_layer.14} parent=5 // pred_fallthru
      _
  $region6: #{seq2seq_decoder_layer.14} parent=0 // loop_footer
    %s14 = sadd.s32 1, %s10
  $region7: #{seq2seq_decoder_layer.14} parent=0 // loop_footer_branch
    %9 = sbr.rel target = $region3
  $region8: #{seq2seq_decoder_layer.14} parent=0 // loop_exit
    _

// kernel: seq2seq_decoder_layer.15
$region0: #{seq2seq_decoder_layer.15}
  #allocation0 [shape = 'u32[]', space=smem, size = 0x4, offset = 0x4, fixed_abs, tag = 'smem constant byte address 0x4 - core index']
  #allocation1 [shape = 'u32[144,128]{1,0:T(1,128)}', space=vmem, size = 0x12000, scoped, tag = 'internal scratch']
  #allocation2 [shape = 'f32[16,256]{1,0:T(8,128)}', space=vmem, size = 0x4000, scoped, tag = 'scratch operand']
  %s0 = inlined_call_operand.vmem [shape: bf16[16,256], index: 0, kind: input, shape index: {}]
  %s1 = inlined_call_operand.vmem [shape: bf16[256,256], index: 1, kind: input, shape index: {}]
  %s2 = inlined_call_operand.vmem [shape: f32[1,256], index: 2, kind: input, shape index: {}, may-alias: {2,5}]
  %s3 = inlined_call_operand.vmem [shape: bf16[16,256], index: 3, kind: input, shape index: {}]
  %s4 = inlined_call_operand.vmem [shape: f32[1,256], index: 4, kind: input, shape index: {}]
  %s5 = inlined_call_operand.vmem [shape: f32[1,256], index: 5, kind: input, shape index: {}, may-alias: {2,5}]
  %s6 = inlined_call_operand.vmem [shape: bf16[16,256], index: 6, kind: output, shape index: {}]
  %s7 = sld [smem:[#allocation0]]
  $region42: #{seq2seq_decoder_layer.15} parent=0
    _
  %s9 = ssub.s32 1, %s7
  %s10 = scalar_select 0, %s9, %s7
  // Predicated region
  $region2: #{seq2seq_decoder_layer.15} parent=0 // pred_check
    _
  $region3: #{seq2seq_decoder_layer.15} parent=0 // pred_check_branch
    %12 = sbr.rel (0) target = $region5
  $region4: #{seq2seq_decoder_layer.15} parent=0 // pred_region
    _
  $region5: #{seq2seq_decoder_layer.15} parent=0 // pred_fallthru
    _
  // Predicated region
  $region6: #{seq2seq_decoder_layer.15} parent=0 // pred_check
    _
  $region7: #{seq2seq_decoder_layer.15} parent=0 // pred_check_branch
    %14 = sbr.rel (0) target = $region9
  $region8: #{seq2seq_decoder_layer.15} parent=0 // pred_region
    _
  $region9: #{seq2seq_decoder_layer.15} parent=0 // pred_fallthru
    _
  // Predicated region
  $region10: #{seq2seq_decoder_layer.15} parent=0 // pred_check
    _
  $region11: #{seq2seq_decoder_layer.15} parent=0 // pred_check_branch
    %16 = sbr.rel (0) target = $region13
  $region12: #{seq2seq_decoder_layer.15} parent=0 // pred_region
    _
  $region13: #{seq2seq_decoder_layer.15} parent=0 // pred_fallthru
    _
  // Predicated region
  $region14: #{seq2seq_decoder_layer.15} parent=0 // pred_check
    _
  $region15: #{seq2seq_decoder_layer.15} parent=0 // pred_check_branch
    %18 = sbr.rel (0) target = $region17
  $region16: #{seq2seq_decoder_layer.15} parent=0 // pred_region
    _
  $region17: #{seq2seq_decoder_layer.15} parent=0 // pred_fallthru
    _
  // Predicated region
  $region18: #{seq2seq_decoder_layer.15} parent=0 // pred_check
    _
  $region19: #{seq2seq_decoder_layer.15} parent=0 // pred_check_branch
    %20 = sbr.rel (0) target = $region21
  $region20: #{seq2seq_decoder_layer.15} parent=0 // pred_region
    _
  $region21: #{seq2seq_decoder_layer.15} parent=0 // pred_fallthru
    _
  // Predicated region
  $region22: #{seq2seq_decoder_layer.15} parent=0 // pred_check
    _
  $region23: #{seq2seq_decoder_layer.15} parent=0 // pred_check_branch
    %22 = sbr.rel (0) target = $region25
  $region24: #{seq2seq_decoder_layer.15} parent=0 // pred_region
    _
  $region25: #{seq2seq_decoder_layer.15} parent=0 // pred_fallthru
    _
  %p23 = scmp.eq.s32.totalorder 0, 0
  // Predicated region
  $region26: #{seq2seq_decoder_layer.15} parent=0 // pred_check
    %p24 = pneg %p23
  $region27: #{seq2seq_decoder_layer.15} parent=0 // pred_check_branch
    %26 = sbr.rel (%p24) target = $region29
  $region28: #{seq2seq_decoder_layer.15} parent=0 // pred_region
    %27 = vst [vmem:[#allocation2] sm:$0xff] 0.0
    %28 = vst [vmem:[#allocation2 + $0x8] sm:$0xff] 0.0
    %29 = vst [vmem:[#allocation2 + $0x10] sm:$0xff] 0.0
    %30 = vst [vmem:[#allocation2 + $0x18] sm:$0xff] 0.0
  $region29: #{seq2seq_decoder_layer.15} parent=0 // pred_fallthru
    _
  %v31 = vld [vmem:[#allocation2] sm:$0xff]
  %v32 = vld [vmem:[#allocation2 + $0x8] sm:$0xff]
  %v33 = vld [vmem:[#allocation2 + $0x10] sm:$0xff]
  %v34 = vld [vmem:[#allocation2 + $0x18] sm:$0xff]
  %v35 = vld [vmem:[%s0] sm:$0xff]
  %v36 = vld [vmem:[%s0 + $0x8] sm:$0xff]
  %v37 = vld [vmem:[%s1] sm:$0xff]
  %v38 = vld [vmem:[%s1 + $0x8] sm:$0xff]
  %v39 = vld [vmem:[%s1 + $0x10] sm:$0xff]
  %v40 = vld [vmem:[%s1 + $0x18] sm:$0xff]
  %v41 = vld [vmem:[%s1 + $0x20] sm:$0xff]
  %v42 = vld [vmem:[%s1 + $0x28] sm:$0xff]
  %v43 = vld [vmem:[%s1 + $0x30] sm:$0xff]
  %v44 = vld [vmem:[%s1 + $0x38] sm:$0xff]
  %v45 = vld [vmem:[%s1 + $0x40] sm:$0xff]
  %v46 = vld [vmem:[%s1 + $0x48] sm:$0xff]
  %v47 = vld [vmem:[%s1 + $0x50] sm:$0xff]
  %v48 = vld [vmem:[%s1 + $0x58] sm:$0xff]
  %v49 = vld [vmem:[%s1 + $0x60] sm:$0xff]
  %v50 = vld [vmem:[%s1 + $0x68] sm:$0xff]
  %v51 = vld [vmem:[%s1 + $0x70] sm:$0xff]
  %v52 = vld [vmem:[%s1 + $0x78] sm:$0xff]
  %v53 = vld [vmem:[%s1 + $0x80] sm:$0xff]
  %v54 = vld [vmem:[%s1 + $0x88] sm:$0xff]
  %v55 = vld [vmem:[%s1 + $0x90] sm:$0xff]
  %v56 = vld [vmem:[%s1 + $0x98] sm:$0xff]
  %v57 = vld [vmem:[%s1 + $0xa0] sm:$0xff]
  %v58 = vld [vmem:[%s1 + $0xa8] sm:$0xff]
  %v59 = vld [vmem:[%s1 + $0xb0] sm:$0xff]
  %v60 = vld [vmem:[%s1 + $0xb8] sm:$0xff]
  %v61 = vld [vmem:[%s1 + $0xc0] sm:$0xff]
  %v62 = vld [vmem:[%s1 + $0xc8] sm:$0xff]
  %v63 = vld [vmem:[%s1 + $0xd0] sm:$0xff]
  %v64 = vld [vmem:[%s1 + $0xd8] sm:$0xff]
  %v65 = vld [vmem:[%s1 + $0xe0] sm:$0xff]
  %v66 = vld [vmem:[%s1 + $0xe8] sm:$0xff]
  %v67 = vld [vmem:[%s1 + $0xf0] sm:$0xff]
  %v68 = vld [vmem:[%s1 + $0xf8] sm:$0xff]
  %v71 = vunpack.c.l.b16 %v35
  %v72 = vunpack.c.h.b16 %v35
  %v73 = vunpack.c.l.b16 %v36
  %v74 = vunpack.c.h.b16 %v36
  %v75 = vpack.c.b16 %v73, %v71
  %v76 = vpack.c.b16 %v74, %v72
  %v111 = vunpack.c.l.b16 %v37
  %v112 = vunpack.c.h.b16 %v37
  %v113 = vunpack.c.l.b16 %v38
  %v114 = vunpack.c.h.b16 %v38
  %v115 = vunpack.c.l.b16 %v39
  %v116 = vunpack.c.h.b16 %v39
  %v117 = vunpack.c.l.b16 %v40
  %v118 = vunpack.c.h.b16 %v40
  %v119 = vunpack.c.l.b16 %v41
  %v120 = vunpack.c.h.b16 %v41
  %v121 = vunpack.c.l.b16 %v42
  %v122 = vunpack.c.h.b16 %v42
  %v123 = vunpack.c.l.b16 %v43
  %v124 = vunpack.c.h.b16 %v43
  %v125 = vunpack.c.l.b16 %v44
  %v126 = vunpack.c.h.b16 %v44
  %v127 = vunpack.c.l.b16 %v45
  %v128 = vunpack.c.h.b16 %v45
  %v129 = vunpack.c.l.b16 %v46
  %v130 = vunpack.c.h.b16 %v46
  %v131 = vunpack.c.l.b16 %v47
  %v132 = vunpack.c.h.b16 %v47
  %v133 = vunpack.c.l.b16 %v48
  %v134 = vunpack.c.h.b16 %v48
  %v135 = vunpack.c.l.b16 %v49
  %v136 = vunpack.c.h.b16 %v49
  %v137 = vunpack.c.l.b16 %v50
  %v138 = vunpack.c.h.b16 %v50
  %v139 = vunpack.c.l.b16 %v51
  %v140 = vunpack.c.h.b16 %v51
  %v141 = vunpack.c.l.b16 %v52
  %v142 = vunpack.c.h.b16 %v52
  %v143 = vunpack.c.l.b16 %v53
  %v144 = vunpack.c.h.b16 %v53
  %v145 = vunpack.c.l.b16 %v54
  %v146 = vunpack.c.h.b16 %v54
  %v147 = vunpack.c.l.b16 %v55
  %v148 = vunpack.c.h.b16 %v55
  %v149 = vunpack.c.l.b16 %v56
  %v150 = vunpack.c.h.b16 %v56
  %v151 = vunpack.c.l.b16 %v57
  %v152 = vunpack.c.h.b16 %v57
  %v153 = vunpack.c.l.b16 %v58
  %v154 = vunpack.c.h.b16 %v58
  %v155 = vunpack.c.l.b16 %v59
  %v156 = vunpack.c.h.b16 %v59
  %v157 = vunpack.c.l.b16 %v60
  %v158 = vunpack.c.h.b16 %v60
  %v159 = vunpack.c.l.b16 %v61
  %v160 = vunpack.c.h.b16 %v61
  %v161 = vunpack.c.l.b16 %v62
  %v162 = vunpack.c.h.b16 %v62
  %v163 = vunpack.c.l.b16 %v63
  %v164 = vunpack.c.h.b16 %v63
  %v165 = vunpack.c.l.b16 %v64
  %v166 = vunpack.c.h.b16 %v64
  %v167 = vunpack.c.l.b16 %v65
  %v168 = vunpack.c.h.b16 %v65
  %v169 = vunpack.c.l.b16 %v66
  %v170 = vunpack.c.h.b16 %v66
  %v171 = vunpack.c.l.b16 %v67
  %v172 = vunpack.c.h.b16 %v67
  %v173 = vunpack.c.l.b16 %v68
  %v174 = vunpack.c.h.b16 %v68
  %v175 = vpack.c.b16 %v113, %v111
  %v176 = vpack.c.b16 %v114, %v112
  %v177 = vpack.c.b16 %v117, %v115
  %v178 = vpack.c.b16 %v118, %v116
  %v179 = vpack.c.b16 %v121, %v119
  %v180 = vpack.c.b16 %v122, %v120
  %v181 = vpack.c.b16 %v125, %v123
  %v182 = vpack.c.b16 %v126, %v124
  %v183 = vpack.c.b16 %v129, %v127
  %v184 = vpack.c.b16 %v130, %v128
  %v185 = vpack.c.b16 %v133, %v131
  %v186 = vpack.c.b16 %v134, %v132
  %v187 = vpack.c.b16 %v137, %v135
  %v188 = vpack.c.b16 %v138, %v136
  %v189 = vpack.c.b16 %v141, %v139
  %v190 = vpack.c.b16 %v142, %v140
  %v191 = vpack.c.b16 %v145, %v143
  %v192 = vpack.c.b16 %v146, %v144
  %v193 = vpack.c.b16 %v149, %v147
  %v194 = vpack.c.b16 %v150, %v148
  %v195 = vpack.c.b16 %v153, %v151
  %v196 = vpack.c.b16 %v154, %v152
  %v197 = vpack.c.b16 %v157, %v155
  %v198 = vpack.c.b16 %v158, %v156
  %v199 = vpack.c.b16 %v161, %v159
  %v200 = vpack.c.b16 %v162, %v160
  %v201 = vpack.c.b16 %v165, %v163
  %v202 = vpack.c.b16 %v166, %v164
  %v203 = vpack.c.b16 %v169, %v167
  %v204 = vpack.c.b16 %v170, %v168
  %v205 = vpack.c.b16 %v173, %v171
  %v206 = vpack.c.b16 %v174, %v172
  %239 = vmatprep.subr.bf16.mxu0 %v190
  %240 = vmatpush1.bf16.msra.mxu0 %v189
  %241 = vmatprep.subr.bf16.mxu0 %v188
  %242 = vmatpush1.bf16.msra.mxu0 %v187
  %243 = vmatprep.subr.bf16.mxu0 %v186
  %244 = vmatpush1.bf16.msra.mxu0 %v185
  %245 = vmatprep.subr.bf16.mxu0 %v184
  %246 = vmatpush1.bf16.msra.mxu0 %v183
  %247 = vmatprep.subr.bf16.mxu0 %v182
  %248 = vmatpush1.bf16.msra.mxu0 %v181
  %249 = vmatprep.subr.bf16.mxu0 %v180
  %250 = vmatpush1.bf16.msra.mxu0 %v179
  %251 = vmatprep.subr.bf16.mxu0 %v178
  %252 = vmatpush1.bf16.msra.mxu0 %v177
  %253 = vmatprep.subr.bf16.mxu0 %v176
  %254 = vmatpush1.bf16.msra.mxu0 %v175
  %255 = vmatprep.subr.bf16.mxu0 %v206
  %256 = vmatpush2.bf16.msra.mxu0 %v205
  %257 = vmatprep.subr.bf16.mxu0 %v204
  %258 = vmatpush2.bf16.msra.mxu0 %v203
  %259 = vmatprep.subr.bf16.mxu0 %v202
  %260 = vmatpush2.bf16.msra.mxu0 %v201
  %261 = vmatprep.subr.bf16.mxu0 %v200
  %262 = vmatpush2.bf16.msra.mxu0 %v199
  %263 = vmatprep.subr.bf16.mxu0 %v198
  %264 = vmatpush2.bf16.msra.mxu0 %v197
  %265 = vmatprep.subr.bf16.mxu0 %v196
  %266 = vmatpush2.bf16.msra.mxu0 %v195
  %267 = vmatprep.subr.bf16.mxu0 %v194
  %268 = vmatpush2.bf16.msra.mxu0 %v193
  %269 = vmatprep.subr.bf16.mxu0 %v192
  %270 = vmatpush2.bf16.msra.mxu0 %v191
  %271 = vmatprep.mubr.bf16.mxu0 %v76
  %272 = vmatmul.mubr.bf16.gmra.mxu0 %v75
  %v273 = vpop.f32.mrf.mxu0
  %v274 = vadd.f32 0.0, %v273
  %v275 = vpop.f32.mrf.mxu0
  %v276 = vadd.f32 0.0, %v275
  %v277 = vpop.f32.mrf.mxu0
  %v278 = vadd.f32 0.0, %v277
  %v279 = vpop.f32.mrf.mxu0
  %v280 = vadd.f32 0.0, %v279
  %281 = vdwg.mxu0
  %v282 = vadd.f32 %v31, %v274
  %v283 = vadd.f32 %v32, %v276
  %v284 = vadd.f32 %v33, %v278
  %v285 = vadd.f32 %v34, %v280
  %286 = vst [vmem:[#allocation2] sm:$0xff] %v282
  %287 = vst [vmem:[#allocation2 + $0x8] sm:$0xff] %v283
  %288 = vst [vmem:[#allocation2 + $0x10] sm:$0xff] %v284
  %289 = vst [vmem:[#allocation2 + $0x18] sm:$0xff] %v285
  // Predicated region
  $region30: #{seq2seq_decoder_layer.15} parent=0 // pred_check
    %p290 = pneg %p23
  $region31: #{seq2seq_decoder_layer.15} parent=0 // pred_check_branch
    %292 = sbr.rel (%p290) target = $region33
  $region32: #{seq2seq_decoder_layer.15} parent=0 // pred_region
    %v293 = vld [vmem:[#allocation2] sm:$0xff]
    %v294 = vld [vmem:[#allocation2 + $0x8] sm:$0xff]
    %v295 = vld [vmem:[#allocation2 + $0x10] sm:$0xff]
    %v296 = vld [vmem:[#allocation2 + $0x18] sm:$0xff]
    %v297 = vld [vmem:[%s2] sm:$0x3]
    %v299 = vlaneseq
    %v300 = vshrl.u32 %v299, 7
    %v301 = vsub.s32 0, %v300
    %v302 = vrot.slane %v297, %v301
    %v303 = vlaneseq
    %v304 = vshrl.u32 %v303, 7
    %v305 = vsub.s32 1, %v304
    %v306 = vrot.slane %v297, %v305
    %v309 = vadd.f32 %v293, %v302
    %v310 = vadd.f32 %v294, %v306
    %v311 = vadd.f32 %v295, %v302
    %v312 = vadd.f32 %v296, %v306
    %v313 = vld [vmem:[%s3] sm:$0xff]
    %v314 = vld [vmem:[%s3 + $0x8] sm:$0xff]
    %v315 = vunpack.c.l.bf16 %v313
    %v316 = vunpack.c.h.bf16 %v313
    %v317 = vunpack.c.l.bf16 %v314
    %v318 = vunpack.c.h.bf16 %v314
    %v319 = vadd.f32 %v309, %v315
    %v320 = vadd.f32 %v310, %v316
    %v321 = vadd.f32 %v311, %v317
    %v322 = vadd.f32 %v312, %v318
    %v323 = vadd.f32 %v319, %v320
    %324 = vadd.xlane.f32.xlu0 %v323
    %v325 = vpop.xlane.xlu0 %324
    %v326 = vadd.f32 %v321, %v322
    %327 = vadd.xlane.f32.xlu0 %v326
    %v328 = vpop.xlane.xlu0 %327
    %v329 = vrcp.pop 256.0
    %v330 = vmul.f32 %v325, %v329
    %v331 = vmul.f32 %v328, %v329
    %v332 = vsub.f32 %v319, %v330
    %v333 = vsub.f32 %v320, %v330
    %v334 = vsub.f32 %v321, %v331
    %v335 = vsub.f32 %v322, %v331
    %v336 = vmul.f32 %v332, %v332
    %v337 = vmul.f32 %v333, %v333
    %v338 = vmul.f32 %v334, %v334
    %v339 = vmul.f32 %v335, %v335
    %v340 = vadd.f32 %v336, %v337
    %341 = vadd.xlane.f32.xlu0 %v340
    %v342 = vpop.xlane.xlu0 %341
    %v343 = vadd.f32 %v338, %v339
    %344 = vadd.xlane.f32.xlu0 %v343
    %v345 = vpop.xlane.xlu0 %344
    %v346 = vmul.f32 %v342, %v329
    %v347 = vmul.f32 %v345, %v329
    %v348 = vadd.f32 %v346, 1e-12
    %v349 = vadd.f32 %v347, 1e-12
    %v350 = vrsqrt.pop %v348
    %v351 = vrsqrt.pop %v349
    %v352 = vmul.f32 %v332, %v350
    %v353 = vmul.f32 %v333, %v350
    %v354 = vmul.f32 %v334, %v351
    %v355 = vmul.f32 %v335, %v351
    %v356 = vld [vmem:[%s4] sm:$0x3]
    %v358 = vlaneseq
    %v359 = vshrl.u32 %v358, 7
    %v360 = vsub.s32 0, %v359
    %v361 = vrot.slane %v356, %v360
    %v362 = vlaneseq
    %v363 = vshrl.u32 %v362, 7
    %v364 = vsub.s32 1, %v363
    %v365 = vrot.slane %v356, %v364
    %v368 = vmul.f32 %v352, %v361
    %v369 = vmul.f32 %v353, %v365
    %v370 = vmul.f32 %v354, %v361
    %v371 = vmul.f32 %v355, %v365
    %v372 = vld [vmem:[%s5] sm:$0x3]
    %v374 = vlaneseq
    %v375 = vshrl.u32 %v374, 7
    %v376 = vsub.s32 0, %v375
    %v377 = vrot.slane %v372, %v376
    %v378 = vlaneseq
    %v379 = vshrl.u32 %v378, 7
    %v380 = vsub.s32 1, %v379
    %v381 = vrot.slane %v372, %v380
    %v384 = vadd.f32 %v368, %v377
    %v385 = vadd.f32 %v369, %v381
    %v386 = vadd.f32 %v370, %v377
    %v387 = vadd.f32 %v371, %v381
    %v388 = vpack.c.bf16 %v386, %v384
    %v389 = vpack.c.bf16 %v387, %v385
    %v392 = vunpack.c.l.b16 %v388
    %v393 = vunpack.c.l.b16 %v389
    %v394 = vunpack.c.h.b16 %v388
    %v395 = vunpack.c.h.b16 %v389
    %v396 = vpack.c.b16 %v393, %v392
    %v397 = vpack.c.b16 %v395, %v394
    %400 = vst [vmem:[%s6] sm:$0xff] %v396
    %401 = vst [vmem:[%s6 + $0x8] sm:$0xff] %v397
  $region33: #{seq2seq_decoder_layer.15} parent=0 // pred_fallthru
    _
  // Predicated region
  $region34: #{seq2seq_decoder_layer.15} parent=0 // pred_check
    _
  $region35: #{seq2seq_decoder_layer.15} parent=0 // pred_check_branch
    %403 = sbr.rel (0) target = $region37
  $region36: #{seq2seq_decoder_layer.15} parent=0 // pred_region
    _
  $region37: #{seq2seq_decoder_layer.15} parent=0 // pred_fallthru
    _
  // Predicated region
  $region38: #{seq2seq_decoder_layer.15} parent=0 // pred_check
    _
  $region39: #{seq2seq_decoder_layer.15} parent=0 // pred_check_branch
    %405 = sbr.rel (0) target = $region41
  $region40: #{seq2seq_decoder_layer.15} parent=0 // pred_region
    _
  $region41: #{seq2seq_decoder_layer.15} parent=0 // pred_fallthru
    _

// kernel: seq2seq_decoder_layer.16
$region0: #{seq2seq_decoder_layer.16}
  #allocation0 [shape = 'u32[]', space=smem, size = 0x4, offset = 0x4, fixed_abs, tag = 'smem constant byte address 0x4 - core index']
  #allocation1 [shape = 'u32[144,128]{1,0:T(1,128)}', space=vmem, size = 0x12000, scoped, tag = 'internal scratch']
  #allocation2 [shape = 'f32[16,512]{1,0:T(8,128)}', space=vmem, size = 0x8000, scoped, tag = 'scratch operand']
  %s0 = inlined_call_operand.vmem [shape: bf16[16,256], index: 0, kind: input, shape index: {}]
  %s1 = inlined_call_operand.vmem [shape: bf16[256,1024], index: 1, kind: input, shape index: {}]
  %s2 = inlined_call_operand.vmem [shape: f32[1,1024], index: 2, kind: input, shape index: {}]
  %s3 = inlined_call_operand.vmem [shape: bf16[16,1024], index: 3, kind: output, shape index: {}]
  %s4 = sld [smem:[#allocation0]]
  $region95: #{seq2seq_decoder_layer.16} parent=0
    _
  %s6 = ssub.s32 1, %s4
  %s7 = scalar_select 0, %s6, %s4
  $region1: #{seq2seq_decoder_layer.16} parent=0
    #allocation3 [shape = 'u8[524288]{0}', space=vmem, size = 0x80000, scoped, tag = 'input window, operand 1']
    #allocation4 [shape = 'u8[32768]{0}', space=vmem, size = 0x8000, scoped, tag = 'output window, operand 0']
    loop: start=0, step=1, limit=4
    $region2: #{seq2seq_decoder_layer.16} parent=1 // loop_pre_header
      _
    $region3: #{seq2seq_decoder_layer.16} parent=1 // loop_header
      %s9 = sphi 0, %s13
      %p10 = scmp.ge.s32.totalorder %s9, 4
      %s16 = sphi 0, %s35
      %s17 = sphi 0, %s31
      %s18 = sphi 0, %s27
      %s19 = sphi 0, %s16
      %s20 = sphi 0, %s17
      %s21 = sphi 0, %s18
      %s22 = sphi 0, %s19
      %s23 = sphi 0, %s20
      %s24 = sphi 0, %s21
      %s40 = sphi 0, %s42
      %s43 = sphi 0, %s40
      %s44 = sphi 0, %s43
      %s60 = sphi 0, %s44
      %s68 = sphi 0, %s70
      %s71 = sphi 0, %s68
      %s72 = sphi 0, %s71
      %s88 = sphi 0, %s72
      %s94 = sphi 0, %s96
      %s97 = sphi 0, %s94
      %s98 = sphi 0, %s97
      %s114 = sphi 0, %s98
      %s122 = sphi 0, %s124
      %s125 = sphi 0, %s122
      %s126 = sphi 0, %s125
      %s142 = sphi 0, %s126
    $region4: #{seq2seq_decoder_layer.16} parent=1 // loop_header_branch
      %12 = sbr.rel (%p10) target = $region8
    $region5: #{seq2seq_decoder_layer.16} parent=1 // loop_body
      %s14 = ssub.s32 %s9, 1
      %s15 = ssub.s32 %s9, 2
      %s25 = sadd.s32 1, %s18
      %p26 = scmp.ge.s32.totalorder %s25, 1
      %s27 = scalar_select %p26, 0, %s25
      %s28 = sadd.s32 1, %s17
      %s29 = scalar_select %p26, %s28, %s17
      %p30 = scmp.ge.s32.totalorder %s29, 2
      %s31 = scalar_select %p30, 0, %s29
      %s32 = sadd.s32 1, %s16
      %s33 = scalar_select %p30, %s32, %s16
      %p34 = scmp.ge.s32.totalorder %s33, 1
      %s35 = scalar_select %p34, 0, %s33
      %s36 = ssub.s32 %s16, %s35
      %s37 = ssub.s32 %s18, %s27
      %s38 = sor.u32 %s36, %s37
      %p39 = scmp.eq.s32.totalorder %s38, 0
      %s41 = sadd.s32 %s40, 1
      %s42 = scalar_select %p39, %s40, %s41
      %p45 = pneg %p39
      %p46 = scmp.eq.s32.totalorder %s9, 1
      %p47 = por %p45, %p46
      %p48 = scmp.ne.s32.totalorder %s40, %s43
      %p49 = scmp.eq.s32.totalorder %s9, 0
      %p50 = por %p48, %p49
      %p51 = scmp.ne.s32.totalorder %s40, %s43
      %p52 = scmp.eq.s32.totalorder %s14, 1
      %p53 = por %p51, %p52
      %p54 = scmp.ne.s32.totalorder %s43, %s44
      %p55 = scmp.eq.s32.totalorder %s14, 0
      %p56 = por %p54, %p55
      %p57 = scmp.ne.s32.totalorder %s43, %s44
      %p58 = scmp.eq.s32.totalorder %s15, 1
      %p59 = por %p57, %p58
      %p61 = scmp.ne.s32.totalorder %s44, %s60
      %p62 = scmp.eq.s32.totalorder %s15, 0
      %p63 = por %p61, %p62
      %s64 = ssub.s32 %s18, %s27
      %s65 = ssub.s32 %s17, %s31
      %s66 = sor.u32 %s64, %s65
      %p67 = scmp.eq.s32.totalorder %s66, 0
      %s69 = sadd.s32 %s68, 1
      %s70 = scalar_select %p67, %s68, %s69
      %p73 = pneg %p67
      %p74 = scmp.eq.s32.totalorder %s9, 1
      %p75 = por %p73, %p74
      %p76 = scmp.ne.s32.totalorder %s68, %s71
      %p77 = scmp.eq.s32.totalorder %s9, 0
      %p78 = por %p76, %p77
      %p79 = scmp.ne.s32.totalorder %s68, %s71
      %p80 = scmp.eq.s32.totalorder %s14, 1
      %p81 = por %p79, %p80
      %p82 = scmp.ne.s32.totalorder %s71, %s72
      %p83 = scmp.eq.s32.totalorder %s14, 0
      %p84 = por %p82, %p83
      %p85 = scmp.ne.s32.totalorder %s71, %s72
      %p86 = scmp.eq.s32.totalorder %s15, 1
      %p87 = por %p85, %p86
      %p89 = scmp.ne.s32.totalorder %s72, %s88
      %p90 = scmp.eq.s32.totalorder %s15, 0
      %p91 = por %p89, %p90
      %s92 = ssub.s32 %s17, %s31
      %p93 = scmp.eq.s32.totalorder %s92, 0
      %s95 = sadd.s32 %s94, 1
      %s96 = scalar_select %p93, %s94, %s95
      %p99 = pneg %p93
      %p100 = scmp.eq.s32.totalorder %s9, 1
      %p101 = por %p99, %p100
      %p102 = scmp.ne.s32.totalorder %s94, %s97
      %p103 = scmp.eq.s32.totalorder %s9, 0
      %p104 = por %p102, %p103
      %p105 = scmp.ne.s32.totalorder %s94, %s97
      %p106 = scmp.eq.s32.totalorder %s14, 1
      %p107 = por %p105, %p106
      %p108 = scmp.ne.s32.totalorder %s97, %s98
      %p109 = scmp.eq.s32.totalorder %s14, 0
      %p110 = por %p108, %p109
      %p111 = scmp.ne.s32.totalorder %s97, %s98
      %p112 = scmp.eq.s32.totalorder %s15, 1
      %p113 = por %p111, %p112
      %p115 = scmp.ne.s32.totalorder %s98, %s114
      %p116 = scmp.eq.s32.totalorder %s15, 0
      %p117 = por %p115, %p116
      %s118 = ssub.s32 %s16, %s35
      %s119 = ssub.s32 %s17, %s31
      %s120 = sor.u32 %s118, %s119
      %p121 = scmp.eq.s32.totalorder %s120, 0
      %s123 = sadd.s32 %s122, 1
      %s124 = scalar_select %p121, %s122, %s123
      %p127 = pneg %p121
      %p128 = scmp.eq.s32.totalorder %s9, 1
      %p129 = por %p127, %p128
      %p130 = scmp.ne.s32.totalorder %s122, %s125
      %p131 = scmp.eq.s32.totalorder %s9, 0
      %p132 = por %p130, %p131
      %p133 = scmp.ne.s32.totalorder %s122, %s125
      %p134 = scmp.eq.s32.totalorder %s14, 1
      %p135 = por %p133, %p134
      %p136 = scmp.ne.s32.totalorder %s125, %s126
      %p137 = scmp.eq.s32.totalorder %s14, 0
      %p138 = por %p136, %p137
      %p139 = scmp.ne.s32.totalorder %s125, %s126
      %p140 = scmp.eq.s32.totalorder %s15, 1
      %p141 = por %p139, %p140
      %p143 = scmp.ne.s32.totalorder %s126, %s142
      %p144 = scmp.eq.s32.totalorder %s15, 0
      %p145 = por %p143, %p144
      %p146 = scmp.le.s32.totalorder 1, %s9
      %p147 = scmp.lt.s32.totalorder %s9, 3
      %p148 = pnand %p146, %p147
      %p149 = pneg %p148
      // Predicated region
      $region9: #{seq2seq_decoder_layer.16} parent=5 // pred_check
        _
      $region10: #{seq2seq_decoder_layer.16} parent=5 // pred_check_branch
        %151 = sbr.rel (%p148) target = $region12
      $region11: #{seq2seq_decoder_layer.16} parent=5 // pred_region
        %s152 = ssub.s32 %s9, 1
        // Predicated region
        $region13: #{seq2seq_decoder_layer.16} parent=11 // pred_check
          %p153 = pneg %p56
        $region14: #{seq2seq_decoder_layer.16} parent=11 // pred_check_branch
          %155 = sbr.rel (%p153) target = $region16
        $region15: #{seq2seq_decoder_layer.16} parent=11 // pred_region
          %s156 = smul.u32 2, %s19
          %s157 = smul.u32 2, %s21
          %p158 = scmp.lt.s32.totalorder %s156, 1
          %s159 = scalar_select %p158, %s156, 1
          %p160 = scmp.lt.s32.totalorder %s157, 1
          %s161 = scalar_select %p160, %s157, 1
          %s162 = smul.addr %s159, 2
          %s163 = sadd.s32 %s161, %s162
          %s164 = smul.addr %s163, 4
          %s165 = scalar_lea.vmem %s0, %s164
          %s166 = smul.u32 2, %s19
          %s167 = smul.u32 2, %s21
        $region16: #{seq2seq_decoder_layer.16} parent=11 // pred_fallthru
          _
      $region12: #{seq2seq_decoder_layer.16} parent=5 // pred_fallthru
        _
      %p168 = scmp.lt.s32.totalorder %s9, 2
      // Predicated region
      $region17: #{seq2seq_decoder_layer.16} parent=5 // pred_check
        %p169 = pneg %p168
      $region18: #{seq2seq_decoder_layer.16} parent=5 // pred_check_branch
        %171 = sbr.rel (%p169) target = $region20
      $region19: #{seq2seq_decoder_layer.16} parent=5 // pred_region
        // Predicated region
        $region21: #{seq2seq_decoder_layer.16} parent=19 // pred_check
          %p172 = pneg %p78
        $region22: #{seq2seq_decoder_layer.16} parent=19 // pred_check_branch
          %174 = sbr.rel (%p172) target = $region24
        $region23: #{seq2seq_decoder_layer.16} parent=19 // pred_region
          %s175 = sand.u32 %s68, 1
          %s176 = sand.u32 %s68, 1
          %s177 = smul.addr %s176, 512
          %s178 = scalar_lea.vmem [#allocation3], %s177
          %s179 = smul.u32 32, %s18
          %s180 = smul.u32 4, %s17
          %s181 = smul.addr %s179, 8
          %s182 = sadd.s32 %s180, %s181
          %s183 = smul.addr %s182, 4
          %s184 = scalar_lea.vmem %s1, %s183
          // Predicated region
          $region25: #{seq2seq_decoder_layer.16} parent=23 // pred_check
            _
          $region26: #{seq2seq_decoder_layer.16} parent=23 // pred_check_branch
            %186 = sbr.rel (0) target = $region28
          $region27: #{seq2seq_decoder_layer.16} parent=23 // pred_region
            // Predicated region
            $region29: #{seq2seq_decoder_layer.16} parent=27 // pred_check
              _
            $region30: #{seq2seq_decoder_layer.16} parent=27 // pred_check_branch
              %188 = sbr.rel (0) target = $region32
            $region31: #{seq2seq_decoder_layer.16} parent=27 // pred_region
              loop: start=0, step=1, limit=1
              $region33: #{seq2seq_decoder_layer.16} parent=31 // loop_pre_header
                _
              $region34: #{seq2seq_decoder_layer.16} parent=31 // loop_header
                %s190 = sphi 0, %s194
                %p191 = scmp.ge.s32.totalorder %s190, 1
                %s195 = sphi %s184, %s184
                %s196 = sphi %s178, %s178
              $region35: #{seq2seq_decoder_layer.16} parent=31 // loop_header_branch
                %193 = sbr.rel (%p191) target = $region39
              $region36: #{seq2seq_decoder_layer.16} parent=31 // loop_body
                %v197 = vld [vmem:[%s195] sm:$0xff]
                %198 = vst [vmem:[%s196] sm:$0xff] %v197
                %v199 = vld [vmem:[%s195 + $0x8] sm:$0xff]
                %200 = vst [vmem:[%s196 + $0x8] sm:$0xff] %v199
                %v201 = vld [vmem:[%s195 + $0x20] sm:$0xff]
                %202 = vst [vmem:[%s196 + $0x10] sm:$0xff] %v201
                %v203 = vld [vmem:[%s195 + $0x28] sm:$0xff]
                %204 = vst [vmem:[%s196 + $0x18] sm:$0xff] %v203
                %v205 = vld [vmem:[%s195 + $0x40] sm:$0xff]
                %206 = vst [vmem:[%s196 + $0x20] sm:$0xff] %v205
                %v207 = vld [vmem:[%s195 + $0x48] sm:$0xff]
                %208 = vst [vmem:[%s196 + $0x28] sm:$0xff] %v207
                %v209 = vld [vmem:[%s195 + $0x60] sm:$0xff]
                %210 = vst [vmem:[%s196 + $0x30] sm:$0xff] %v209
                %v211 = vld [vmem:[%s195 + $0x68] sm:$0xff]
                %212 = vst [vmem:[%s196 + $0x38] sm:$0xff] %v211
                %v213 = vld [vmem:[%s195 + $0x80] sm:$0xff]
                %214 = vst [vmem:[%s196 + $0x40] sm:$0xff] %v213
                %v215 = vld [vmem:[%s195 + $0x88] sm:$0xff]
                %216 = vst [vmem:[%s196 + $0x48] sm:$0xff] %v215
                %v217 = vld [vmem:[%s195 + $0xa0] sm:$0xff]
                %218 = vst [vmem:[%s196 + $0x50] sm:$0xff] %v217
                %v219 = vld [vmem:[%s195 + $0xa8] sm:$0xff]
                %220 = vst [vmem:[%s196 + $0x58] sm:$0xff] %v219
                %v221 = vld [vmem:[%s195 + $0xc0] sm:$0xff]
                %222 = vst [vmem:[%s196 + $0x60] sm:$0xff] %v221
                %v223 = vld [vmem:[%s195 + $0xc8] sm:$0xff]
                %224 = vst [vmem:[%s196 + $0x68] sm:$0xff] %v223
                %v225 = vld [vmem:[%s195 + $0xe0] sm:$0xff]
                %226 = vst [vmem:[%s196 + $0x70] sm:$0xff] %v225
                %v227 = vld [vmem:[%s195 + $0xe8] sm:$0xff]
                %228 = vst [vmem:[%s196 + $0x78] sm:$0xff] %v227
                %v229 = vld [vmem:[%s195 + $0x100] sm:$0xff]
                %230 = vst [vmem:[%s196 + $0x80] sm:$0xff] %v229
                %v231 = vld [vmem:[%s195 + $0x108] sm:$0xff]
                %232 = vst [vmem:[%s196 + $0x88] sm:$0xff] %v231
                %v233 = vld [vmem:[%s195 + $0x120] sm:$0xff]
                %234 = vst [vmem:[%s196 + $0x90] sm:$0xff] %v233
                %v235 = vld [vmem:[%s195 + $0x128] sm:$0xff]
                %236 = vst [vmem:[%s196 + $0x98] sm:$0xff] %v235
                %v237 = vld [vmem:[%s195 + $0x140] sm:$0xff]
                %238 = vst [vmem:[%s196 + $0xa0] sm:$0xff] %v237
                %v239 = vld [vmem:[%s195 + $0x148] sm:$0xff]
                %240 = vst [vmem:[%s196 + $0xa8] sm:$0xff] %v239
                %v241 = vld [vmem:[%s195 + $0x160] sm:$0xff]
                %242 = vst [vmem:[%s196 + $0xb0] sm:$0xff] %v241
                %v243 = vld [vmem:[%s195 + $0x168] sm:$0xff]
                %244 = vst [vmem:[%s196 + $0xb8] sm:$0xff] %v243
                %v245 = vld [vmem:[%s195 + $0x180] sm:$0xff]
                %246 = vst [vmem:[%s196 + $0xc0] sm:$0xff] %v245
                %v247 = vld [vmem:[%s195 + $0x188] sm:$0xff]
                %248 = vst [vmem:[%s196 + $0xc8] sm:$0xff] %v247
                %v249 = vld [vmem:[%s195 + $0x1a0] sm:$0xff]
                %250 = vst [vmem:[%s196 + $0xd0] sm:$0xff] %v249
                %v251 = vld [vmem:[%s195 + $0x1a8] sm:$0xff]
                %252 = vst [vmem:[%s196 + $0xd8] sm:$0xff] %v251
                %v253 = vld [vmem:[%s195 + $0x1c0] sm:$0xff]
                %254 = vst [vmem:[%s196 + $0xe0] sm:$0xff] %v253
                %v255 = vld [vmem:[%s195 + $0x1c8] sm:$0xff]
                %256 = vst [vmem:[%s196 + $0xe8] sm:$0xff] %v255
                %v257 = vld [vmem:[%s195 + $0x1e0] sm:$0xff]
                %258 = vst [vmem:[%s196 + $0xf0] sm:$0xff] %v257
                %v259 = vld [vmem:[%s195 + $0x1e8] sm:$0xff]
                %260 = vst [vmem:[%s196 + $0xf8] sm:$0xff] %v259
                %v261 = vld [vmem:[%s195 + $0x200] sm:$0xff]
                %262 = vst [vmem:[%s196 + $0x100] sm:$0xff] %v261
                %v263 = vld [vmem:[%s195 + $0x208] sm:$0xff]
                %264 = vst [vmem:[%s196 + $0x108] sm:$0xff] %v263
                %v265 = vld [vmem:[%s195 + $0x220] sm:$0xff]
                %266 = vst [vmem:[%s196 + $0x110] sm:$0xff] %v265
                %v267 = vld [vmem:[%s195 + $0x228] sm:$0xff]
                %268 = vst [vmem:[%s196 + $0x118] sm:$0xff] %v267
                %v269 = vld [vmem:[%s195 + $0x240] sm:$0xff]
                %270 = vst [vmem:[%s196 + $0x120] sm:$0xff] %v269
                %v271 = vld [vmem:[%s195 + $0x248] sm:$0xff]
                %272 = vst [vmem:[%s196 + $0x128] sm:$0xff] %v271
                %v273 = vld [vmem:[%s195 + $0x260] sm:$0xff]
                %274 = vst [vmem:[%s196 + $0x130] sm:$0xff] %v273
                %v275 = vld [vmem:[%s195 + $0x268] sm:$0xff]
                %276 = vst [vmem:[%s196 + $0x138] sm:$0xff] %v275
                %v277 = vld [vmem:[%s195 + $0x280] sm:$0xff]
                %278 = vst [vmem:[%s196 + $0x140] sm:$0xff] %v277
                %v279 = vld [vmem:[%s195 + $0x288] sm:$0xff]
                %280 = vst [vmem:[%s196 + $0x148] sm:$0xff] %v279
                %v281 = vld [vmem:[%s195 + $0x2a0] sm:$0xff]
                %282 = vst [vmem:[%s196 + $0x150] sm:$0xff] %v281
                %v283 = vld [vmem:[%s195 + $0x2a8] sm:$0xff]
                %284 = vst [vmem:[%s196 + $0x158] sm:$0xff] %v283
                %v285 = vld [vmem:[%s195 + $0x2c0] sm:$0xff]
                %286 = vst [vmem:[%s196 + $0x160] sm:$0xff] %v285
                %v287 = vld [vmem:[%s195 + $0x2c8] sm:$0xff]
                %288 = vst [vmem:[%s196 + $0x168] sm:$0xff] %v287
                %v289 = vld [vmem:[%s195 + $0x2e0] sm:$0xff]
                %290 = vst [vmem:[%s196 + $0x170] sm:$0xff] %v289
                %v291 = vld [vmem:[%s195 + $0x2e8] sm:$0xff]
                %292 = vst [vmem:[%s196 + $0x178] sm:$0xff] %v291
                %v293 = vld [vmem:[%s195 + $0x300] sm:$0xff]
                %294 = vst [vmem:[%s196 + $0x180] sm:$0xff] %v293
                %v295 = vld [vmem:[%s195 + $0x308] sm:$0xff]
                %296 = vst [vmem:[%s196 + $0x188] sm:$0xff] %v295
                %v297 = vld [vmem:[%s195 + $0x320] sm:$0xff]
                %298 = vst [vmem:[%s196 + $0x190] sm:$0xff] %v297
                %v299 = vld [vmem:[%s195 + $0x328] sm:$0xff]
                %300 = vst [vmem:[%s196 + $0x198] sm:$0xff] %v299
                %v301 = vld [vmem:[%s195 + $0x340] sm:$0xff]
                %302 = vst [vmem:[%s196 + $0x1a0] sm:$0xff] %v301
                %v303 = vld [vmem:[%s195 + $0x348] sm:$0xff]
                %304 = vst [vmem:[%s196 + $0x1a8] sm:$0xff] %v303
                %v305 = vld [vmem:[%s195 + $0x360] sm:$0xff]
                %306 = vst [vmem:[%s196 + $0x1b0] sm:$0xff] %v305
                %v307 = vld [vmem:[%s195 + $0x368] sm:$0xff]
                %308 = vst [vmem:[%s196 + $0x1b8] sm:$0xff] %v307
                %v309 = vld [vmem:[%s195 + $0x380] sm:$0xff]
                %310 = vst [vmem:[%s196 + $0x1c0] sm:$0xff] %v309
                %v311 = vld [vmem:[%s195 + $0x388] sm:$0xff]
                %312 = vst [vmem:[%s196 + $0x1c8] sm:$0xff] %v311
                %v313 = vld [vmem:[%s195 + $0x3a0] sm:$0xff]
                %314 = vst [vmem:[%s196 + $0x1d0] sm:$0xff] %v313
                %v315 = vld [vmem:[%s195 + $0x3a8] sm:$0xff]
                %316 = vst [vmem:[%s196 + $0x1d8] sm:$0xff] %v315
                %v317 = vld [vmem:[%s195 + $0x3c0] sm:$0xff]
                %318 = vst [vmem:[%s196 + $0x1e0] sm:$0xff] %v317
                %v319 = vld [vmem:[%s195 + $0x3c8] sm:$0xff]
                %320 = vst [vmem:[%s196 + $0x1e8] sm:$0xff] %v319
                %v321 = vld [vmem:[%s195 + $0x3e0] sm:$0xff]
                %322 = vst [vmem:[%s196 + $0x1f0] sm:$0xff] %v321
                %v323 = vld [vmem:[%s195 + $0x3e8] sm:$0xff]
                %324 = vst [vmem:[%s196 + $0x1f8] sm:$0xff] %v323
              $region37: #{seq2seq_decoder_layer.16} parent=31 // loop_footer
                %s194 = sadd.s32 1, %s190
              $region38: #{seq2seq_decoder_layer.16} parent=31 // loop_footer_branch
                %189 = sbr.rel target = $region34
              $region39: #{seq2seq_decoder_layer.16} parent=31 // loop_exit
                _
            $region32: #{seq2seq_decoder_layer.16} parent=27 // pred_fallthru
              _
            // Predicated region
            $region40: #{seq2seq_decoder_layer.16} parent=27 // pred_check
              _
            $region41: #{seq2seq_decoder_layer.16} parent=27 // pred_check_branch
              %326 = sbr.rel target = $region43
            $region42: #{seq2seq_decoder_layer.16} parent=27 // pred_region
              _
            $region43: #{seq2seq_decoder_layer.16} parent=27 // pred_fallthru
              _
          $region28: #{seq2seq_decoder_layer.16} parent=23 // pred_fallthru
            _
          %327 = vnop
        $region24: #{seq2seq_decoder_layer.16} parent=19 // pred_fallthru
          _
        // Predicated region
        $region44: #{seq2seq_decoder_layer.16} parent=19 // pred_check
          %p328 = pneg %p104
        $region45: #{seq2seq_decoder_layer.16} parent=19 // pred_check_branch
          %330 = sbr.rel (%p328) target = $region47
        $region46: #{seq2seq_decoder_layer.16} parent=19 // pred_region
          %s331 = smul.u32 4, %s17
          %p332 = scmp.lt.s32.totalorder %s331, 7
          %s333 = scalar_select %p332, %s331, 7
          %s334 = scalar_lea.vmem %s2, %s333
          %s335 = smul.u32 4, %s17
        $region47: #{seq2seq_decoder_layer.16} parent=19 // pred_fallthru
          _
      $region20: #{seq2seq_decoder_layer.16} parent=5 // pred_fallthru
        _
      %p336 = scmp.le.s32.totalorder 1, %s9
      %p337 = scmp.lt.s32.totalorder %s9, 3
      %p338 = pnand %p336, %p337
      %p339 = pneg %p338
      // Predicated region
      $region48: #{seq2seq_decoder_layer.16} parent=5 // pred_check
        _
      $region49: #{seq2seq_decoder_layer.16} parent=5 // pred_check_branch
        %341 = sbr.rel (%p338) target = $region51
      $region50: #{seq2seq_decoder_layer.16} parent=5 // pred_region
        %s342 = ssub.s32 %s9, 1
        %s343 = sand.u32 %s71, 1
        %s344 = sand.u32 %s71, 1
        %s345 = smul.addr %s344, 512
        %s346 = scalar_lea.vmem [#allocation3], %s345
        // Predicated region
        $region52: #{seq2seq_decoder_layer.16} parent=50 // pred_check
          %p347 = pneg %p84
        $region53: #{seq2seq_decoder_layer.16} parent=50 // pred_check_branch
          %349 = sbr.rel (%p347) target = $region55
        $region54: #{seq2seq_decoder_layer.16} parent=50 // pred_region
          _
        $region55: #{seq2seq_decoder_layer.16} parent=50 // pred_fallthru
          _
        %s350 = smul.u32 2, %s19
        %s351 = smul.u32 2, %s21
        %p352 = scmp.lt.s32.totalorder %s350, 1
        %s353 = scalar_select %p352, %s350, 1
        %p354 = scmp.lt.s32.totalorder %s351, 1
        %s355 = scalar_select %p354, %s351, 1
        %s356 = smul.addr %s353, 2
        %s357 = sadd.s32 %s355, %s356
        %s358 = smul.addr %s357, 4
        %s359 = scalar_lea.vmem %s0, %s358
        %p360 = pneg %p56
        %p361 = pneg %p53
        %s362 = sand.u32 %s71, 1
        %s363 = sand.u32 %s71, 1
        %s364 = smul.addr %s363, 512
        %s365 = scalar_lea.vmem [#allocation3], %s364
        %p366 = pneg %p84
        %p367 = pneg %p81
        %s368 = smul.u32 4, %s20
        %p369 = scmp.lt.s32.totalorder %s368, 7
        %s370 = scalar_select %p369, %s368, 7
        %s371 = scalar_lea.vmem %s2, %s370
        %p372 = pneg %p110
        %p373 = pneg %p107
        %p374 = pneg %p138
        %p375 = pneg %p135
        %s376 = sand.u32 %s125, 1
        %s377 = sand.u32 %s125, 1
        %s378 = smul.addr %s377, 32
        %s379 = scalar_lea.vmem [#allocation4], %s378
        %s380 = smul.u32 2, %s19
        %s381 = smul.u32 2, %s21
        %p382 = scmp.lt.s32.totalorder %s380, 1
        %s383 = scalar_select %p382, %s380, 1
        %p384 = scmp.lt.s32.totalorder %s381, 1
        %s385 = scalar_select %p384, %s381, 1
        %s386 = smul.addr %s383, 2
        %s387 = sadd.s32 %s385, %s386
        %s388 = smul.addr %s387, 4
        %s389 = scalar_lea.vmem %s0, %s388
        %s390 = smul.u32 2, %s19
        %s391 = smul.u32 2, %s21
        %s392 = smul.u32 32, %s21
        %s393 = smul.u32 4, %s20
        %s394 = smul.u32 4, %s20
        %p395 = scmp.lt.s32.totalorder %s394, 7
        %s396 = scalar_select %p395, %s394, 7
        %s397 = scalar_lea.vmem %s2, %s396
        %s398 = smul.u32 4, %s20
        %s399 = smul.u32 2, %s19
        %s400 = smul.u32 4, %s20
        %p401 = scmp.eq.s32.totalorder %s21, 0
        // Predicated region
        $region56: #{seq2seq_decoder_layer.16} parent=50 // pred_check
          %p402 = pneg %p401
        $region57: #{seq2seq_decoder_layer.16} parent=50 // pred_check_branch
          %404 = sbr.rel (%p402) target = $region59
        $region58: #{seq2seq_decoder_layer.16} parent=50 // pred_region
          %405 = vst [vmem:[#allocation2] sm:$0xff] 0.0
          %406 = vst [vmem:[#allocation2 + $0x8] sm:$0xff] 0.0
          %407 = vst [vmem:[#allocation2 + $0x10] sm:$0xff] 0.0
          %408 = vst [vmem:[#allocation2 + $0x18] sm:$0xff] 0.0
          %409 = vst [vmem:[#allocation2 + $0x20] sm:$0xff] 0.0
          %410 = vst [vmem:[#allocation2 + $0x28] sm:$0xff] 0.0
          %411 = vst [vmem:[#allocation2 + $0x30] sm:$0xff] 0.0
          %412 = vst [vmem:[#allocation2 + $0x38] sm:$0xff] 0.0
        $region59: #{seq2seq_decoder_layer.16} parent=50 // pred_fallthru
          _
        %v413 = vld [vmem:[#allocation2] sm:$0xff]
        %v414 = vld [vmem:[#allocation2 + $0x8] sm:$0xff]
        %v415 = vld [vmem:[#allocation2 + $0x10] sm:$0xff]
        %v416 = vld [vmem:[#allocation2 + $0x18] sm:$0xff]
        %v417 = vld [vmem:[#allocation2 + $0x20] sm:$0xff]
        %v418 = vld [vmem:[#allocation2 + $0x28] sm:$0xff]
        %v419 = vld [vmem:[#allocation2 + $0x30] sm:$0xff]
        %v420 = vld [vmem:[#allocation2 + $0x38] sm:$0xff]
        %v421 = vld [vmem:[%s389] sm:$0xff]
        %v422 = vld [vmem:[%s389 + $0x8] sm:$0xff]
        %v423 = vld [vmem:[%s346] sm:$0xff]
        %v424 = vld [vmem:[%s346 + $0x8] sm:$0xff]
        %v425 = vld [vmem:[%s346 + $0x10] sm:$0xff]
        %v426 = vld [vmem:[%s346 + $0x18] sm:$0xff]
        %v427 = vld [vmem:[%s346 + $0x20] sm:$0xff]
        %v428 = vld [vmem:[%s346 + $0x28] sm:$0xff]
        %v429 = vld [vmem:[%s346 + $0x30] sm:$0xff]
        %v430 = vld [vmem:[%s346 + $0x38] sm:$0xff]
        %v431 = vld [vmem:[%s346 + $0x40] sm:$0xff]
        %v432 = vld [vmem:[%s346 + $0x48] sm:$0xff]
        %v433 = vld [vmem:[%s346 + $0x50] sm:$0xff]
        %v434 = vld [vmem:[%s346 + $0x58] sm:$0xff]
        %v435 = vld [vmem:[%s346 + $0x60] sm:$0xff]
        %v436 = vld [vmem:[%s346 + $0x68] sm:$0xff]
        %v437 = vld [vmem:[%s346 + $0x70] sm:$0xff]
        %v438 = vld [vmem:[%s346 + $0x78] sm:$0xff]
        %v439 = vld [vmem:[%s346 + $0x80] sm:$0xff]
        %v440 = vld [vmem:[%s346 + $0x88] sm:$0xff]
        %v441 = vld [vmem:[%s346 + $0x90] sm:$0xff]
        %v442 = vld [vmem:[%s346 + $0x98] sm:$0xff]
        %v443 = vld [vmem:[%s346 + $0xa0] sm:$0xff]
        %v444 = vld [vmem:[%s346 + $0xa8] sm:$0xff]
        %v445 = vld [vmem:[%s346 + $0xb0] sm:$0xff]
        %v446 = vld [vmem:[%s346 + $0xb8] sm:$0xff]
        %v447 = vld [vmem:[%s346 + $0xc0] sm:$0xff]
        %v448 = vld [vmem:[%s346 + $0xc8] sm:$0xff]
        %v449 = vld [vmem:[%s346 + $0xd0] sm:$0xff]
        %v450 = vld [vmem:[%s346 + $0xd8] sm:$0xff]
        %v451 = vld [vmem:[%s346 + $0xe0] sm:$0xff]
        %v452 = vld [vmem:[%s346 + $0xe8] sm:$0xff]
        %v453 = vld [vmem:[%s346 + $0xf0] sm:$0xff]
        %v454 = vld [vmem:[%s346 + $0xf8] sm:$0xff]
        %v455 = vld [vmem:[%s346 + $0x100] sm:$0xff]
        %v456 = vld [vmem:[%s346 + $0x108] sm:$0xff]
        %v457 = vld [vmem:[%s346 + $0x110] sm:$0xff]
        %v458 = vld [vmem:[%s346 + $0x118] sm:$0xff]
        %v459 = vld [vmem:[%s346 + $0x120] sm:$0xff]
        %v460 = vld [vmem:[%s346 + $0x128] sm:$0xff]
        %v461 = vld [vmem:[%s346 + $0x130] sm:$0xff]
        %v462 = vld [vmem:[%s346 + $0x138] sm:$0xff]
        %v463 = vld [vmem:[%s346 + $0x140] sm:$0xff]
        %v464 = vld [vmem:[%s346 + $0x148] sm:$0xff]
        %v465 = vld [vmem:[%s346 + $0x150] sm:$0xff]
        %v466 = vld [vmem:[%s346 + $0x158] sm:$0xff]
        %v467 = vld [vmem:[%s346 + $0x160] sm:$0xff]
        %v468 = vld [vmem:[%s346 + $0x168] sm:$0xff]
        %v469 = vld [vmem:[%s346 + $0x170] sm:$0xff]
        %v470 = vld [vmem:[%s346 + $0x178] sm:$0xff]
        %v471 = vld [vmem:[%s346 + $0x180] sm:$0xff]
        %v472 = vld [vmem:[%s346 + $0x188] sm:$0xff]
        %v473 = vld [vmem:[%s346 + $0x190] sm:$0xff]
        %v474 = vld [vmem:[%s346 + $0x198] sm:$0xff]
        %v475 = vld [vmem:[%s346 + $0x1a0] sm:$0xff]
        %v476 = vld [vmem:[%s346 + $0x1a8] sm:$0xff]
        %v477 = vld [vmem:[%s346 + $0x1b0] sm:$0xff]
        %v478 = vld [vmem:[%s346 + $0x1b8] sm:$0xff]
        %v479 = vld [vmem:[%s346 + $0x1c0] sm:$0xff]
        %v480 = vld [vmem:[%s346 + $0x1c8] sm:$0xff]
        %v481 = vld [vmem:[%s346 + $0x1d0] sm:$0xff]
        %v482 = vld [vmem:[%s346 + $0x1d8] sm:$0xff]
        %v483 = vld [vmem:[%s346 + $0x1e0] sm:$0xff]
        %v484 = vld [vmem:[%s346 + $0x1e8] sm:$0xff]
        %v485 = vld [vmem:[%s346 + $0x1f0] sm:$0xff]
        %v486 = vld [vmem:[%s346 + $0x1f8] sm:$0xff]
        %v489 = vunpack.c.l.b16 %v421
        %v490 = vunpack.c.h.b16 %v421
        %v491 = vunpack.c.l.b16 %v422
        %v492 = vunpack.c.h.b16 %v422
        %v493 = vpack.c.b16 %v491, %v489
        %v494 = vpack.c.b16 %v492, %v490
        %v561 = vunpack.c.l.b16 %v423
        %v562 = vunpack.c.h.b16 %v423
        %v563 = vunpack.c.l.b16 %v424
        %v564 = vunpack.c.h.b16 %v424
        %v565 = vunpack.c.l.b16 %v425
        %v566 = vunpack.c.h.b16 %v425
        %v567 = vunpack.c.l.b16 %v426
        %v568 = vunpack.c.h.b16 %v426
        %v569 = vunpack.c.l.b16 %v427
        %v570 = vunpack.c.h.b16 %v427
        %v571 = vunpack.c.l.b16 %v428
        %v572 = vunpack.c.h.b16 %v428
        %v573 = vunpack.c.l.b16 %v429
        %v574 = vunpack.c.h.b16 %v429
        %v575 = vunpack.c.l.b16 %v430
        %v576 = vunpack.c.h.b16 %v430
        %v577 = vunpack.c.l.b16 %v431
        %v578 = vunpack.c.h.b16 %v431
        %v579 = vunpack.c.l.b16 %v432
        %v580 = vunpack.c.h.b16 %v432
        %v581 = vunpack.c.l.b16 %v433
        %v582 = vunpack.c.h.b16 %v433
        %v583 = vunpack.c.l.b16 %v434
        %v584 = vunpack.c.h.b16 %v434
        %v585 = vunpack.c.l.b16 %v435
        %v586 = vunpack.c.h.b16 %v435
        %v587 = vunpack.c.l.b16 %v436
        %v588 = vunpack.c.h.b16 %v436
        %v589 = vunpack.c.l.b16 %v437
        %v590 = vunpack.c.h.b16 %v437
        %v591 = vunpack.c.l.b16 %v438
        %v592 = vunpack.c.h.b16 %v438
        %v593 = vunpack.c.l.b16 %v439
        %v594 = vunpack.c.h.b16 %v439
        %v595 = vunpack.c.l.b16 %v440
        %v596 = vunpack.c.h.b16 %v440
        %v597 = vunpack.c.l.b16 %v441
        %v598 = vunpack.c.h.b16 %v441
        %v599 = vunpack.c.l.b16 %v442
        %v600 = vunpack.c.h.b16 %v442
        %v601 = vunpack.c.l.b16 %v443
        %v602 = vunpack.c.h.b16 %v443
        %v603 = vunpack.c.l.b16 %v444
        %v604 = vunpack.c.h.b16 %v444
        %v605 = vunpack.c.l.b16 %v445
        %v606 = vunpack.c.h.b16 %v445
        %v607 = vunpack.c.l.b16 %v446
        %v608 = vunpack.c.h.b16 %v446
        %v609 = vunpack.c.l.b16 %v447
        %v610 = vunpack.c.h.b16 %v447
        %v611 = vunpack.c.l.b16 %v448
        %v612 = vunpack.c.h.b16 %v448
        %v613 = vunpack.c.l.b16 %v449
        %v614 = vunpack.c.h.b16 %v449
        %v615 = vunpack.c.l.b16 %v450
        %v616 = vunpack.c.h.b16 %v450
        %v617 = vunpack.c.l.b16 %v451
        %v618 = vunpack.c.h.b16 %v451
        %v619 = vunpack.c.l.b16 %v452
        %v620 = vunpack.c.h.b16 %v452
        %v621 = vunpack.c.l.b16 %v453
        %v622 = vunpack.c.h.b16 %v453
        %v623 = vunpack.c.l.b16 %v454
        %v624 = vunpack.c.h.b16 %v454
        %v625 = vunpack.c.l.b16 %v455
        %v626 = vunpack.c.h.b16 %v455
        %v627 = vunpack.c.l.b16 %v456
        %v628 = vunpack.c.h.b16 %v456
        %v629 = vunpack.c.l.b16 %v457
        %v630 = vunpack.c.h.b16 %v457
        %v631 = vunpack.c.l.b16 %v458
        %v632 = vunpack.c.h.b16 %v458
        %v633 = vunpack.c.l.b16 %v459
        %v634 = vunpack.c.h.b16 %v459
        %v635 = vunpack.c.l.b16 %v460
        %v636 = vunpack.c.h.b16 %v460
        %v637 = vunpack.c.l.b16 %v461
        %v638 = vunpack.c.h.b16 %v461
        %v639 = vunpack.c.l.b16 %v462
        %v640 = vunpack.c.h.b16 %v462
        %v641 = vunpack.c.l.b16 %v463
        %v642 = vunpack.c.h.b16 %v463
        %v643 = vunpack.c.l.b16 %v464
        %v644 = vunpack.c.h.b16 %v464
        %v645 = vunpack.c.l.b16 %v465
        %v646 = vunpack.c.h.b16 %v465
        %v647 = vunpack.c.l.b16 %v466
        %v648 = vunpack.c.h.b16 %v466
        %v649 = vunpack.c.l.b16 %v467
        %v650 = vunpack.c.h.b16 %v467
        %v651 = vunpack.c.l.b16 %v468
        %v652 = vunpack.c.h.b16 %v468
        %v653 = vunpack.c.l.b16 %v469
        %v654 = vunpack.c.h.b16 %v469
        %v655 = vunpack.c.l.b16 %v470
        %v656 = vunpack.c.h.b16 %v470
        %v657 = vunpack.c.l.b16 %v471
        %v658 = vunpack.c.h.b16 %v471
        %v659 = vunpack.c.l.b16 %v472
        %v660 = vunpack.c.h.b16 %v472
        %v661 = vunpack.c.l.b16 %v473
        %v662 = vunpack.c.h.b16 %v473
        %v663 = vunpack.c.l.b16 %v474
        %v664 = vunpack.c.h.b16 %v474
        %v665 = vunpack.c.l.b16 %v475
        %v666 = vunpack.c.h.b16 %v475
        %v667 = vunpack.c.l.b16 %v476
        %v668 = vunpack.c.h.b16 %v476
        %v669 = vunpack.c.l.b16 %v477
        %v670 = vunpack.c.h.b16 %v477
        %v671 = vunpack.c.l.b16 %v478
        %v672 = vunpack.c.h.b16 %v478
        %v673 = vunpack.c.l.b16 %v479
        %v674 = vunpack.c.h.b16 %v479
        %v675 = vunpack.c.l.b16 %v480
        %v676 = vunpack.c.h.b16 %v480
        %v677 = vunpack.c.l.b16 %v481
        %v678 = vunpack.c.h.b16 %v481
        %v679 = vunpack.c.l.b16 %v482
        %v680 = vunpack.c.h.b16 %v482
        %v681 = vunpack.c.l.b16 %v483
        %v682 = vunpack.c.h.b16 %v483
        %v683 = vunpack.c.l.b16 %v484
        %v684 = vunpack.c.h.b16 %v484
        %v685 = vunpack.c.l.b16 %v485
        %v686 = vunpack.c.h.b16 %v485
        %v687 = vunpack.c.l.b16 %v486
        %v688 = vunpack.c.h.b16 %v486
        %v689 = vpack.c.b16 %v565, %v561
        %v690 = vpack.c.b16 %v566, %v562
        %v691 = vpack.c.b16 %v567, %v563
        %v692 = vpack.c.b16 %v568, %v564
        %v693 = vpack.c.b16 %v573, %v569
        %v694 = vpack.c.b16 %v574, %v570
        %v695 = vpack.c.b16 %v575, %v571
        %v696 = vpack.c.b16 %v576, %v572
        %v697 = vpack.c.b16 %v581, %v577
        %v698 = vpack.c.b16 %v582, %v578
        %v699 = vpack.c.b16 %v583, %v579
        %v700 = vpack.c.b16 %v584, %v580
        %v701 = vpack.c.b16 %v589, %v585
        %v702 = vpack.c.b16 %v590, %v586
        %v703 = vpack.c.b16 %v591, %v587
        %v704 = vpack.c.b16 %v592, %v588
        %v705 = vpack.c.b16 %v597, %v593
        %v706 = vpack.c.b16 %v598, %v594
        %v707 = vpack.c.b16 %v599, %v595
        %v708 = vpack.c.b16 %v600, %v596
        %v709 = vpack.c.b16 %v605, %v601
        %v710 = vpack.c.b16 %v606, %v602
        %v711 = vpack.c.b16 %v607, %v603
        %v712 = vpack.c.b16 %v608, %v604
        %v713 = vpack.c.b16 %v613, %v609
        %v714 = vpack.c.b16 %v614, %v610
        %v715 = vpack.c.b16 %v615, %v611
        %v716 = vpack.c.b16 %v616, %v612
        %v717 = vpack.c.b16 %v621, %v617
        %v718 = vpack.c.b16 %v622, %v618
        %v719 = vpack.c.b16 %v623, %v619
        %v720 = vpack.c.b16 %v624, %v620
        %v721 = vpack.c.b16 %v629, %v625
        %v722 = vpack.c.b16 %v630, %v626
        %v723 = vpack.c.b16 %v631, %v627
        %v724 = vpack.c.b16 %v632, %v628
        %v725 = vpack.c.b16 %v637, %v633
        %v726 = vpack.c.b16 %v638, %v634
        %v727 = vpack.c.b16 %v639, %v635
        %v728 = vpack.c.b16 %v640, %v636
        %v729 = vpack.c.b16 %v645, %v641
        %v730 = vpack.c.b16 %v646, %v642
        %v731 = vpack.c.b16 %v647, %v643
        %v732 = vpack.c.b16 %v648, %v644
        %v733 = vpack.c.b16 %v653, %v649
        %v734 = vpack.c.b16 %v654, %v650
        %v735 = vpack.c.b16 %v655, %v651
        %v736 = vpack.c.b16 %v656, %v652
        %v737 = vpack.c.b16 %v661, %v657
        %v738 = vpack.c.b16 %v662, %v658
        %v739 = vpack.c.b16 %v663, %v659
        %v740 = vpack.c.b16 %v664, %v660
        %v741 = vpack.c.b16 %v669, %v665
        %v742 = vpack.c.b16 %v670, %v666
        %v743 = vpack.c.b16 %v671, %v667
        %v744 = vpack.c.b16 %v672, %v668
        %v745 = vpack.c.b16 %v677, %v673
        %v746 = vpack.c.b16 %v678, %v674
        %v747 = vpack.c.b16 %v679, %v675
        %v748 = vpack.c.b16 %v680, %v676
        %v749 = vpack.c.b16 %v685, %v681
        %v750 = vpack.c.b16 %v686, %v682
        %v751 = vpack.c.b16 %v687, %v683
        %v752 = vpack.c.b16 %v688, %v684
        %817 = vmatprep.subr.bf16.mxu0 %v718
        %818 = vmatpush1.bf16.msra.mxu0 %v717
        %819 = vmatprep.subr.bf16.mxu0 %v714
        %820 = vmatpush1.bf16.msra.mxu0 %v713
        %821 = vmatprep.subr.bf16.mxu0 %v710
        %822 = vmatpush1.bf16.msra.mxu0 %v709
        %823 = vmatprep.subr.bf16.mxu0 %v706
        %824 = vmatpush1.bf16.msra.mxu0 %v705
        %825 = vmatprep.subr.bf16.mxu0 %v702
        %826 = vmatpush1.bf16.msra.mxu0 %v701
        %827 = vmatprep.subr.bf16.mxu0 %v698
        %828 = vmatpush1.bf16.msra.mxu0 %v697
        %829 = vmatprep.subr.bf16.mxu0 %v694
        %830 = vmatpush1.bf16.msra.mxu0 %v693
        %831 = vmatprep.subr.bf16.mxu0 %v690
        %832 = vmatpush1.bf16.msra.mxu0 %v689
        %833 = vmatprep.subr.bf16.mxu0 %v750
        %834 = vmatpush2.bf16.msra.mxu0 %v749
        %835 = vmatprep.subr.bf16.mxu0 %v746
        %836 = vmatpush2.bf16.msra.mxu0 %v745
        %837 = vmatprep.subr.bf16.mxu0 %v742
        %838 = vmatpush2.bf16.msra.mxu0 %v741
        %839 = vmatprep.subr.bf16.mxu0 %v738
        %840 = vmatpush2.bf16.msra.mxu0 %v737
        %841 = vmatprep.subr.bf16.mxu0 %v734
        %842 = vmatpush2.bf16.msra.mxu0 %v733
        %843 = vmatprep.subr.bf16.mxu0 %v730
        %844 = vmatpush2.bf16.msra.mxu0 %v729
        %845 = vmatprep.subr.bf16.mxu0 %v726
        %846 = vmatpush2.bf16.msra.mxu0 %v725
        %847 = vmatprep.subr.bf16.mxu0 %v722
        %848 = vmatpush2.bf16.msra.mxu0 %v721
        %849 = vmatprep.mubr.bf16.mxu0 %v494
        %850 = vmatmul.mubr.bf16.gmra.mxu0 %v493
        %v851 = vpop.f32.mrf.mxu0
        %v852 = vadd.f32 0.0, %v851
        %v853 = vpop.f32.mrf.mxu0
        %v854 = vadd.f32 0.0, %v853
        %v855 = vpop.f32.mrf.mxu0
        %v856 = vadd.f32 0.0, %v855
        %v857 = vpop.f32.mrf.mxu0
        %v858 = vadd.f32 0.0, %v857
        %859 = vdwg.mxu0
        %860 = vmatprep.subr.bf16.mxu0 %v720
        %861 = vmatpush1.bf16.msra.mxu0 %v719
        %862 = vmatprep.subr.bf16.mxu0 %v716
        %863 = vmatpush1.bf16.msra.mxu0 %v715
        %864 = vmatprep.subr.bf16.mxu0 %v712
        %865 = vmatpush1.bf16.msra.mxu0 %v711
        %866 = vmatprep.subr.bf16.mxu0 %v708
        %867 = vmatpush1.bf16.msra.mxu0 %v707
        %868 = vmatprep.subr.bf16.mxu0 %v704
        %869 = vmatpush1.bf16.msra.mxu0 %v703
        %870 = vmatprep.subr.bf16.mxu0 %v700
        %871 = vmatpush1.bf16.msra.mxu0 %v699
        %872 = vmatprep.subr.bf16.mxu0 %v696
        %873 = vmatpush1.bf16.msra.mxu0 %v695
        %874 = vmatprep.subr.bf16.mxu0 %v692
        %875 = vmatpush1.bf16.msra.mxu0 %v691
        %876 = vmatprep.subr.bf16.mxu0 %v752
        %877 = vmatpush2.bf16.msra.mxu0 %v751
        %878 = vmatprep.subr.bf16.mxu0 %v748
        %879 = vmatpush2.bf16.msra.mxu0 %v747
        %880 = vmatprep.subr.bf16.mxu0 %v744
        %881 = vmatpush2.bf16.msra.mxu0 %v743
        %882 = vmatprep.subr.bf16.mxu0 %v740
        %883 = vmatpush2.bf16.msra.mxu0 %v739
        %884 = vmatprep.subr.bf16.mxu0 %v736
        %885 = vmatpush2.bf16.msra.mxu0 %v735
        %886 = vmatprep.subr.bf16.mxu0 %v732
        %887 = vmatpush2.bf16.msra.mxu0 %v731
        %888 = vmatprep.subr.bf16.mxu0 %v728
        %889 = vmatpush2.bf16.msra.mxu0 %v727
        %890 = vmatprep.subr.bf16.mxu0 %v724
        %891 = vmatpush2.bf16.msra.mxu0 %v723
        %892 = vmatprep.mubr.bf16.mxu0 %v494
        %893 = vmatmul.mubr.bf16.gmra.mxu0 %v493
        %v894 = vpop.f32.mrf.mxu0
        %v895 = vadd.f32 0.0, %v894
        %v896 = vpop.f32.mrf.mxu0
        %v897 = vadd.f32 0.0, %v896
        %v898 = vpop.f32.mrf.mxu0
        %v899 = vadd.f32 0.0, %v898
        %v900 = vpop.f32.mrf.mxu0
        %v901 = vadd.f32 0.0, %v900
        %902 = vdwg.mxu0
        %v903 = vadd.f32 %v413, %v852
        %v904 = vadd.f32 %v414, %v854
        %v905 = vadd.f32 %v415, %v895
        %v906 = vadd.f32 %v416, %v897
        %v907 = vadd.f32 %v417, %v856
        %v908 = vadd.f32 %v418, %v858
        %v909 = vadd.f32 %v419, %v899
        %v910 = vadd.f32 %v420, %v901
        %911 = vst [vmem:[#allocation2] sm:$0xff] %v903
        %912 = vst [vmem:[#allocation2 + $0x8] sm:$0xff] %v904
        %913 = vst [vmem:[#allocation2 + $0x10] sm:$0xff] %v905
        %914 = vst [vmem:[#allocation2 + $0x18] sm:$0xff] %v906
        %915 = vst [vmem:[#allocation2 + $0x20] sm:$0xff] %v907
        %916 = vst [vmem:[#allocation2 + $0x28] sm:$0xff] %v908
        %917 = vst [vmem:[#allocation2 + $0x30] sm:$0xff] %v909
        %918 = vst [vmem:[#allocation2 + $0x38] sm:$0xff] %v910
        // Predicated region
        $region60: #{seq2seq_decoder_layer.16} parent=50 // pred_check
          %p919 = pneg %p401
        $region61: #{seq2seq_decoder_layer.16} parent=50 // pred_check_branch
          %921 = sbr.rel (%p919) target = $region63
        $region62: #{seq2seq_decoder_layer.16} parent=50 // pred_region
          %v922 = vld [vmem:[#allocation2] sm:$0xff]
          %v923 = vld [vmem:[#allocation2 + $0x8] sm:$0xff]
          %v924 = vld [vmem:[#allocation2 + $0x10] sm:$0xff]
          %v925 = vld [vmem:[#allocation2 + $0x18] sm:$0xff]
          %v926 = vld [vmem:[#allocation2 + $0x20] sm:$0xff]
          %v927 = vld [vmem:[#allocation2 + $0x28] sm:$0xff]
          %v928 = vld [vmem:[#allocation2 + $0x30] sm:$0xff]
          %v929 = vld [vmem:[#allocation2 + $0x38] sm:$0xff]
          %v930 = vld [vmem:[%s397] sm:$0xf]
          %v932 = vlaneseq
          %v933 = vshrl.u32 %v932, 7
          %v934 = vsub.s32 0, %v933
          %v935 = vrot.slane %v930, %v934
          %v936 = vlaneseq
          %v937 = vshrl.u32 %v936, 7
          %v938 = vsub.s32 1, %v937
          %v939 = vrot.slane %v930, %v938
          %v940 = vlaneseq
          %v941 = vshrl.u32 %v940, 7
          %v942 = vsub.s32 2, %v941
          %v943 = vrot.slane %v930, %v942
          %v944 = vlaneseq
          %v945 = vshrl.u32 %v944, 7
          %v946 = vsub.s32 3, %v945
          %v947 = vrot.slane %v930, %v946
          %v952 = vadd.f32 %v922, %v935
          %v953 = vadd.f32 %v923, %v939
          %v954 = vadd.f32 %v924, %v943
          %v955 = vadd.f32 %v925, %v947
          %v956 = vadd.f32 %v926, %v935
          %v957 = vadd.f32 %v927, %v939
          %v958 = vadd.f32 %v928, %v943
          %v959 = vadd.f32 %v929, %v947
          %v960 = vmul.f32 %v952, 0.5
          %v961 = vmul.f32 %v953, 0.5
          %v962 = vmul.f32 %v954, 0.5
          %v963 = vmul.f32 %v955, 0.5
          %v964 = vmul.f32 %v956, 0.5
          %v965 = vmul.f32 %v957, 0.5
          %v966 = vmul.f32 %v958, 0.5
          %v967 = vmul.f32 %v959, 0.5
          %v968 = vmul.f32 %v952, 0.70710677
          %v969 = vmul.f32 %v953, 0.70710677
          %v970 = vmul.f32 %v954, 0.70710677
          %v971 = vmul.f32 %v955, 0.70710677
          %v972 = vmul.f32 %v956, 0.70710677
          %v973 = vmul.f32 %v957, 0.70710677
          %v974 = vmul.f32 %v958, 0.70710677
          %v975 = vmul.f32 %v959, 0.70710677
          %v976 = vand.u32 2147483647, %v968
          %v977 = vand.u32 2147483647, %v969
          %v978 = vand.u32 2147483647, %v970
          %v979 = vand.u32 2147483647, %v971
          %v980 = vand.u32 2147483647, %v972
          %v981 = vand.u32 2147483647, %v973
          %v982 = vand.u32 2147483647, %v974
          %v983 = vand.u32 2147483647, %v975
          %v984 = vmul.f32 %v976, 0.3275911
          %v985 = vmul.f32 %v977, 0.3275911
          %v986 = vmul.f32 %v978, 0.3275911
          %v987 = vmul.f32 %v979, 0.3275911
          %v988 = vmul.f32 %v980, 0.3275911
          %v989 = vmul.f32 %v981, 0.3275911
          %v990 = vmul.f32 %v982, 0.3275911
          %v991 = vmul.f32 %v983, 0.3275911
          %v992 = vadd.f32 %v984, 1.0
          %v993 = vadd.f32 %v985, 1.0
          %v994 = vadd.f32 %v986, 1.0
          %v995 = vadd.f32 %v987, 1.0
          %v996 = vadd.f32 %v988, 1.0
          %v997 = vadd.f32 %v989, 1.0
          %v998 = vadd.f32 %v990, 1.0
          %v999 = vadd.f32 %v991, 1.0
          %v1000 = vrcp.pop %v992
          %v1001 = vmul.f32 1.0, %v1000
          %v1002 = vrcp.pop %v993
          %v1003 = vmul.f32 1.0, %v1002
          %v1004 = vrcp.pop %v994
          %v1005 = vmul.f32 1.0, %v1004
          %v1006 = vrcp.pop %v995
          %v1007 = vmul.f32 1.0, %v1006
          %v1008 = vrcp.pop %v996
          %v1009 = vmul.f32 1.0, %v1008
          %v1010 = vrcp.pop %v997
          %v1011 = vmul.f32 1.0, %v1010
          %v1012 = vrcp.pop %v998
          %v1013 = vmul.f32 1.0, %v1012
          %v1014 = vrcp.pop %v999
          %v1015 = vmul.f32 1.0, %v1014
          %v1016 = vmul.f32 %v1001, 1.0614054
          %v1017 = vmul.f32 %v1003, 1.0614054
          %v1018 = vmul.f32 %v1005, 1.0614054
          %v1019 = vmul.f32 %v1007, 1.0614054
          %v1020 = vmul.f32 %v1009, 1.0614054
          %v1021 = vmul.f32 %v1011, 1.0614054
          %v1022 = vmul.f32 %v1013, 1.0614054
          %v1023 = vmul.f32 %v1015, 1.0614054
          %v1024 = vadd.f32 %v1016, -1.4531521
          %v1025 = vadd.f32 %v1017, -1.4531521
          %v1026 = vadd.f32 %v1018, -1.4531521
          %v1027 = vadd.f32 %v1019, -1.4531521
          %v1028 = vadd.f32 %v1020, -1.4531521
          %v1029 = vadd.f32 %v1021, -1.4531521
          %v1030 = vadd.f32 %v1022, -1.4531521
          %v1031 = vadd.f32 %v1023, -1.4531521
          %v1032 = vmul.f32 %v1024, %v1001
          %v1033 = vmul.f32 %v1025, %v1003
          %v1034 = vmul.f32 %v1026, %v1005
          %v1035 = vmul.f32 %v1027, %v1007
          %v1036 = vmul.f32 %v1028, %v1009
          %v1037 = vmul.f32 %v1029, %v1011
          %v1038 = vmul.f32 %v1030, %v1013
          %v1039 = vmul.f32 %v1031, %v1015
          %v1040 = vadd.f32 %v1032, 1.4214138
          %v1041 = vadd.f32 %v1033, 1.4214138
          %v1042 = vadd.f32 %v1034, 1.4214138
          %v1043 = vadd.f32 %v1035, 1.4214138
          %v1044 = vadd.f32 %v1036, 1.4214138
          %v1045 = vadd.f32 %v1037, 1.4214138
          %v1046 = vadd.f32 %v1038, 1.4214138
          %v1047 = vadd.f32 %v1039, 1.4214138
          %v1048 = vmul.f32 %v1040, %v1001
          %v1049 = vmul.f32 %v1041, %v1003
          %v1050 = vmul.f32 %v1042, %v1005
          %v1051 = vmul.f32 %v1043, %v1007
          %v1052 = vmul.f32 %v1044, %v1009
          %v1053 = vmul.f32 %v1045, %v1011
          %v1054 = vmul.f32 %v1046, %v1013
          %v1055 = vmul.f32 %v1047, %v1015
          %v1056 = vadd.f32 %v1048, -0.28449672
          %v1057 = vadd.f32 %v1049, -0.28449672
          %v1058 = vadd.f32 %v1050, -0.28449672
          %v1059 = vadd.f32 %v1051, -0.28449672
          %v1060 = vadd.f32 %v1052, -0.28449672
          %v1061 = vadd.f32 %v1053, -0.28449672
          %v1062 = vadd.f32 %v1054, -0.28449672
          %v1063 = vadd.f32 %v1055, -0.28449672
          %v1064 = vmul.f32 %v1056, %v1001
          %v1065 = vmul.f32 %v1057, %v1003
          %v1066 = vmul.f32 %v1058, %v1005
          %v1067 = vmul.f32 %v1059, %v1007
          %v1068 = vmul.f32 %v1060, %v1009
          %v1069 = vmul.f32 %v1061, %v1011
          %v1070 = vmul.f32 %v1062, %v1013
          %v1071 = vmul.f32 %v1063, %v1015
          %v1072 = vadd.f32 %v1064, 0.2548296
          %v1073 = vadd.f32 %v1065, 0.2548296
          %v1074 = vadd.f32 %v1066, 0.2548296
          %v1075 = vadd.f32 %v1067, 0.2548296
          %v1076 = vadd.f32 %v1068, 0.2548296
          %v1077 = vadd.f32 %v1069, 0.2548296
          %v1078 = vadd.f32 %v1070, 0.2548296
          %v1079 = vadd.f32 %v1071, 0.2548296
          %v1080 = vmul.f32 %v1072, %v1001
          %v1081 = vmul.f32 %v1073, %v1003
          %v1082 = vmul.f32 %v1074, %v1005
          %v1083 = vmul.f32 %v1075, %v1007
          %v1084 = vmul.f32 %v1076, %v1009
          %v1085 = vmul.f32 %v1077, %v1011
          %v1086 = vmul.f32 %v1078, %v1013
          %v1087 = vmul.f32 %v1079, %v1015
          %v1088 = vsub.f32 0.0, %v976
          %v1089 = vsub.f32 0.0, %v977
          %v1090 = vsub.f32 0.0, %v978
          %v1091 = vsub.f32 0.0, %v979
          %v1092 = vsub.f32 0.0, %v980
          %v1093 = vsub.f32 0.0, %v981
          %v1094 = vsub.f32 0.0, %v982
          %v1095 = vsub.f32 0.0, %v983
          %v1096 = vmul.f32 %v1088, %v976
          %v1097 = vmul.f32 %v1089, %v977
          %v1098 = vmul.f32 %v1090, %v978
          %v1099 = vmul.f32 %v1091, %v979
          %v1100 = vmul.f32 %v1092, %v980
          %v1101 = vmul.f32 %v1093, %v981
          %v1102 = vmul.f32 %v1094, %v982
          %v1103 = vmul.f32 %v1095, %v983
          %v1104 = vmul.f32 %v1096, 1.442695
          %v1105 = vpow.pop %v1104
          %v1106 = vmul.f32 %v1097, 1.442695
          %v1107 = vpow.pop %v1106
          %v1108 = vmul.f32 %v1098, 1.442695
          %v1109 = vpow.pop %v1108
          %v1110 = vmul.f32 %v1099, 1.442695
          %v1111 = vpow.pop %v1110
          %v1112 = vmul.f32 %v1100, 1.442695
          %v1113 = vpow.pop %v1112
          %v1114 = vmul.f32 %v1101, 1.442695
          %v1115 = vpow.pop %v1114
          %v1116 = vmul.f32 %v1102, 1.442695
          %v1117 = vpow.pop %v1116
          %v1118 = vmul.f32 %v1103, 1.442695
          %v1119 = vpow.pop %v1118
          %v1120 = vmul.f32 %v1080, %v1105
          %v1121 = vmul.f32 %v1081, %v1107
          %v1122 = vmul.f32 %v1082, %v1109
          %v1123 = vmul.f32 %v1083, %v1111
          %v1124 = vmul.f32 %v1084, %v1113
          %v1125 = vmul.f32 %v1085, %v1115
          %v1126 = vmul.f32 %v1086, %v1117
          %v1127 = vmul.f32 %v1087, %v1119
          %v1128 = vsub.f32 1.0, %v1120
          %v1129 = vsub.f32 1.0, %v1121
          %v1130 = vsub.f32 1.0, %v1122
          %v1131 = vsub.f32 1.0, %v1123
          %v1132 = vsub.f32 1.0, %v1124
          %v1133 = vsub.f32 1.0, %v1125
          %v1134 = vsub.f32 1.0, %v1126
          %v1135 = vsub.f32 1.0, %v1127
          %vm1136 = vcmp.ge.f32.partialorder %v968, 0.0
          %vm1137 = vcmp.ge.f32.partialorder %v969, 0.0
          %vm1138 = vcmp.ge.f32.partialorder %v970, 0.0
          %vm1139 = vcmp.ge.f32.partialorder %v971, 0.0
          %vm1140 = vcmp.ge.f32.partialorder %v972, 0.0
          %vm1141 = vcmp.ge.f32.partialorder %v973, 0.0
          %vm1142 = vcmp.ge.f32.partialorder %v974, 0.0
          %vm1143 = vcmp.ge.f32.partialorder %v975, 0.0
          %v1144 = vsub.f32 0.0, %v1128
          %v1145 = vsub.f32 0.0, %v1129
          %v1146 = vsub.f32 0.0, %v1130
          %v1147 = vsub.f32 0.0, %v1131
          %v1148 = vsub.f32 0.0, %v1132
          %v1149 = vsub.f32 0.0, %v1133
          %v1150 = vsub.f32 0.0, %v1134
          %v1151 = vsub.f32 0.0, %v1135
          %v1152 = vsel %vm1136, %v1128, %v1144
          %v1153 = vsel %vm1137, %v1129, %v1145
          %v1154 = vsel %vm1138, %v1130, %v1146
          %v1155 = vsel %vm1139, %v1131, %v1147
          %v1156 = vsel %vm1140, %v1132, %v1148
          %v1157 = vsel %vm1141, %v1133, %v1149
          %v1158 = vsel %vm1142, %v1134, %v1150
          %v1159 = vsel %vm1143, %v1135, %v1151
          %v1160 = vadd.f32 %v1152, 1.0
          %v1161 = vadd.f32 %v1153, 1.0
          %v1162 = vadd.f32 %v1154, 1.0
          %v1163 = vadd.f32 %v1155, 1.0
          %v1164 = vadd.f32 %v1156, 1.0
          %v1165 = vadd.f32 %v1157, 1.0
          %v1166 = vadd.f32 %v1158, 1.0
          %v1167 = vadd.f32 %v1159, 1.0
          %v1168 = vmul.f32 %v960, %v1160
          %v1169 = vmul.f32 %v961, %v1161
          %v1170 = vmul.f32 %v962, %v1162
          %v1171 = vmul.f32 %v963, %v1163
          %v1172 = vmul.f32 %v964, %v1164
          %v1173 = vmul.f32 %v965, %v1165
          %v1174 = vmul.f32 %v966, %v1166
          %v1175 = vmul.f32 %v967, %v1167
          %v1176 = vpack.c.bf16 %v1172, %v1168
          %v1177 = vpack.c.bf16 %v1173, %v1169
          %v1178 = vpack.c.bf16 %v1174, %v1170
          %v1179 = vpack.c.bf16 %v1175, %v1171
          %v1184 = vunpack.c.l.b16 %v1176
          %v1185 = vunpack.c.l.b16 %v1177
          %v1186 = vunpack.c.l.b16 %v1178
          %v1187 = vunpack.c.l.b16 %v1179
          %v1188 = vunpack.c.h.b16 %v1176
          %v1189 = vunpack.c.h.b16 %v1177
          %v1190 = vunpack.c.h.b16 %v1178
          %v1191 = vunpack.c.h.b16 %v1179
          %v1192 = vpack.c.b16 %v1185, %v1184
          %v1193 = vpack.c.b16 %v1187, %v1186
          %v1194 = vpack.c.b16 %v1189, %v1188
          %v1195 = vpack.c.b16 %v1191, %v1190
          %1200 = vst [vmem:[%s379] sm:$0xff] %v1192
          %1201 = vst [vmem:[%s379 + $0x8] sm:$0xff] %v1193
          %1202 = vst [vmem:[%s379 + $0x10] sm:$0xff] %v1194
          %1203 = vst [vmem:[%s379 + $0x18] sm:$0xff] %v1195
        $region63: #{seq2seq_decoder_layer.16} parent=50 // pred_fallthru
          _
        %s1204 = sand.u32 %s125, 1
        %s1205 = sand.u32 %s125, 1
        %s1206 = smul.addr %s1205, 32
        %s1207 = scalar_lea.vmem [#allocation4], %s1206
        // Predicated region
        $region64: #{seq2seq_decoder_layer.16} parent=50 // pred_check
          %p1208 = pneg %p135
        $region65: #{seq2seq_decoder_layer.16} parent=50 // pred_check_branch
          %1210 = sbr.rel (%p1208) target = $region67
        $region66: #{seq2seq_decoder_layer.16} parent=50 // pred_region
          %s1211 = smul.u32 2, %s19
          %s1212 = smul.u32 4, %s20
          %s1213 = smul.addr %s1211, 8
          %s1214 = sadd.s32 %s1212, %s1213
          %s1215 = smul.addr %s1214, 4
          %s1216 = scalar_lea.vmem %s3, %s1215
          // Predicated region
          $region68: #{seq2seq_decoder_layer.16} parent=66 // pred_check
            _
          $region69: #{seq2seq_decoder_layer.16} parent=66 // pred_check_branch
            %1218 = sbr.rel (0) target = $region71
          $region70: #{seq2seq_decoder_layer.16} parent=66 // pred_region
            // Predicated region
            $region72: #{seq2seq_decoder_layer.16} parent=70 // pred_check
              _
            $region73: #{seq2seq_decoder_layer.16} parent=70 // pred_check_branch
              %1220 = sbr.rel (0) target = $region75
            $region74: #{seq2seq_decoder_layer.16} parent=70 // pred_region
              loop: start=0, step=1, limit=1
              $region76: #{seq2seq_decoder_layer.16} parent=74 // loop_pre_header
                _
              $region77: #{seq2seq_decoder_layer.16} parent=74 // loop_header
                %s1222 = sphi 0, %s1226
                %p1223 = scmp.ge.s32.totalorder %s1222, 1
                %s1227 = sphi %s1207, %s1207
                %s1228 = sphi %s1216, %s1216
              $region78: #{seq2seq_decoder_layer.16} parent=74 // loop_header_branch
                %1225 = sbr.rel (%p1223) target = $region82
              $region79: #{seq2seq_decoder_layer.16} parent=74 // loop_body
                %v1229 = vld [vmem:[%s1227] sm:$0xff]
                %1230 = vst [vmem:[%s1228] sm:$0xff] %v1229
                %v1231 = vld [vmem:[%s1227 + $0x8] sm:$0xff]
                %1232 = vst [vmem:[%s1228 + $0x8] sm:$0xff] %v1231
                %v1233 = vld [vmem:[%s1227 + $0x10] sm:$0xff]
                %1234 = vst [vmem:[%s1228 + $0x20] sm:$0xff] %v1233
                %v1235 = vld [vmem:[%s1227 + $0x18] sm:$0xff]
                %1236 = vst [vmem:[%s1228 + $0x28] sm:$0xff] %v1235
              $region80: #{seq2seq_decoder_layer.16} parent=74 // loop_footer
                %s1226 = sadd.s32 1, %s1222
              $region81: #{seq2seq_decoder_layer.16} parent=74 // loop_footer_branch
                %1221 = sbr.rel target = $region77
              $region82: #{seq2seq_decoder_layer.16} parent=74 // loop_exit
                _
            $region75: #{seq2seq_decoder_layer.16} parent=70 // pred_fallthru
              _
            // Predicated region
            $region83: #{seq2seq_decoder_layer.16} parent=70 // pred_check
              _
            $region84: #{seq2seq_decoder_layer.16} parent=70 // pred_check_branch
              %1238 = sbr.rel target = $region86
            $region85: #{seq2seq_decoder_layer.16} parent=70 // pred_region
              _
            $region86: #{seq2seq_decoder_layer.16} parent=70 // pred_fallthru
              _
          $region71: #{seq2seq_decoder_layer.16} parent=66 // pred_fallthru
            _
          %1239 = vnop
        $region67: #{seq2seq_decoder_layer.16} parent=50 // pred_fallthru
          _
      $region51: #{seq2seq_decoder_layer.16} parent=5 // pred_fallthru
        _
      %p1240 = scmp.le.s32.totalorder 2, %s9
      // Predicated region
      $region87: #{seq2seq_decoder_layer.16} parent=5 // pred_check
        %p1241 = pneg %p1240
      $region88: #{seq2seq_decoder_layer.16} parent=5 // pred_check_branch
        %1243 = sbr.rel (%p1241) target = $region90
      $region89: #{seq2seq_decoder_layer.16} parent=5 // pred_region
        %s1244 = ssub.s32 %s9, 2
        // Predicated region
        $region91: #{seq2seq_decoder_layer.16} parent=89 // pred_check
          %p1245 = pneg %p141
        $region92: #{seq2seq_decoder_layer.16} parent=89 // pred_check_branch
          %1247 = sbr.rel (%p1245) target = $region94
        $region93: #{seq2seq_decoder_layer.16} parent=89 // pred_region
          %s1248 = sand.u32 %s126, 1
          %s1249 = sand.u32 %s126, 1
          %s1250 = smul.addr %s1249, 32
          %s1251 = scalar_lea.vmem [#allocation4], %s1250
        $region94: #{seq2seq_decoder_layer.16} parent=89 // pred_fallthru
          _
      $region90: #{seq2seq_decoder_layer.16} parent=5 // pred_fallthru
        _
    $region6: #{seq2seq_decoder_layer.16} parent=1 // loop_footer
      %s13 = sadd.s32 1, %s9
    $region7: #{seq2seq_decoder_layer.16} parent=1 // loop_footer_branch
      %8 = sbr.rel target = $region3
    $region8: #{seq2seq_decoder_layer.16} parent=1 // loop_exit
      _

// kernel: seq2seq_decoder_layer.17
$region0: #{seq2seq_decoder_layer.17}
  #allocation0 [shape = 'u32[]', space=smem, size = 0x4, offset = 0x4, fixed_abs, tag = 'smem constant byte address 0x4 - core index']
  #allocation1 [shape = 'u32[144,128]{1,0:T(1,128)}', space=vmem, size = 0x12000, scoped, tag = 'internal scratch']
  #allocation2 [shape = 'f32[16,256]{1,0:T(8,128)}', space=vmem, size = 0x4000, scoped, tag = 'scratch operand']
  %s0 = inlined_call_operand.vmem [shape: bf16[16,1024], index: 0, kind: input, shape index: {}]
  %s1 = inlined_call_operand.vmem [shape: bf16[1024,256], index: 1, kind: input, shape index: {}]
  %s2 = inlined_call_operand.vmem [shape: f32[1,256], index: 2, kind: input, shape index: {}, may-alias: {2,5}]
  %s3 = inlined_call_operand.vmem [shape: f32[16,256], index: 3, kind: input, shape index: {}]
  %s4 = inlined_call_operand.vmem [shape: f32[1,256], index: 4, kind: input, shape index: {}]
  %s5 = inlined_call_operand.vmem [shape: f32[1,256], index: 5, kind: input, shape index: {}, may-alias: {2,5}]
  %s6 = inlined_call_operand.hbm [shape: f32[16,256], index: 6, kind: output, shape index: {}]
  %s7 = sld [smem:[#allocation0]]
  $region88: #{seq2seq_decoder_layer.17} parent=0
    _
  %s9 = ssub.s32 1, %s7
  %s10 = scalar_select 0, %s9, %s7
  $region1: #{seq2seq_decoder_layer.17} parent=0
    #allocation3 [shape = 'u8[32768]{0}', space=vmem, size = 0x8000, scoped, tag = 'input window, operand 0']
    #allocation4 [shape = 'u8[16384]{0}', space=vmem, size = 0x4000, scoped, tag = 'output window, operand 0, single buffered']
    #allocation5 [shape = 's32[2]{0}', space=sflag, size = 0x8, scoped, tag = 'scoped memory for seq2seq_decoder_layer.17']
    %11 = vsyncpa [#allocation5], 0
    loop: start=0, step=1, limit=4
    $region2: #{seq2seq_decoder_layer.17} parent=1 // loop_pre_header
      _
    $region3: #{seq2seq_decoder_layer.17} parent=1 // loop_header
      %s13 = sphi 0, %s17
      %p14 = scmp.ge.s32.totalorder %s13, 4
      %s20 = sphi 0, %s32
      %s21 = sphi 0, %s28
      %s22 = sphi 0, %s20
      %s23 = sphi 0, %s21
      %s24 = sphi 0, %s22
      %s25 = sphi 0, %s23
      %s37 = sphi 0, %s39
      %s40 = sphi 0, %s37
      %s41 = sphi 0, %s40
      %s57 = sphi 0, %s41
      %s63 = sphi 0, %s65
      %s66 = sphi 0, %s63
      %s67 = sphi 0, %s66
      %s83 = sphi 0, %s67
      %s87 = sphi 0, %s87
      %s89 = sphi 0, %s87
      %s90 = sphi 0, %s89
      %s104 = sphi 0, %s90
      %s110 = sphi 0, %s112
      %s113 = sphi 0, %s110
      %s114 = sphi 0, %s113
      %s130 = sphi 0, %s114
      %s134 = sphi 0, %s134
      %s136 = sphi 0, %s134
      %s137 = sphi 0, %s136
      %s151 = sphi 0, %s137
      %s155 = sphi 0, %s155
      %s157 = sphi 0, %s155
      %s158 = sphi 0, %s157
      %s172 = sphi 0, %s158
      %s178 = sphi 0, %s180
      %s181 = sphi 0, %s178
      %s182 = sphi 0, %s181
      %s198 = sphi 0, %s182
    $region4: #{seq2seq_decoder_layer.17} parent=1 // loop_header_branch
      %16 = sbr.rel (%p14) target = $region8
    $region5: #{seq2seq_decoder_layer.17} parent=1 // loop_body
      %s18 = ssub.s32 %s13, 1
      %s19 = ssub.s32 %s13, 2
      %s26 = sadd.s32 1, %s21
      %p27 = scmp.ge.s32.totalorder %s26, 2
      %s28 = scalar_select %p27, 0, %s26
      %s29 = sadd.s32 1, %s20
      %s30 = scalar_select %p27, %s29, %s20
      %p31 = scmp.ge.s32.totalorder %s30, 1
      %s32 = scalar_select %p31, 0, %s30
      %s33 = ssub.s32 %s20, %s32
      %s34 = ssub.s32 %s21, %s28
      %s35 = sor.u32 %s33, %s34
      %p36 = scmp.eq.s32.totalorder %s35, 0
      %s38 = sadd.s32 %s37, 1
      %s39 = scalar_select %p36, %s37, %s38
      %p42 = pneg %p36
      %p43 = scmp.eq.s32.totalorder %s13, 1
      %p44 = por %p42, %p43
      %p45 = scmp.ne.s32.totalorder %s37, %s40
      %p46 = scmp.eq.s32.totalorder %s13, 0
      %p47 = por %p45, %p46
      %p48 = scmp.ne.s32.totalorder %s37, %s40
      %p49 = scmp.eq.s32.totalorder %s18, 1
      %p50 = por %p48, %p49
      %p51 = scmp.ne.s32.totalorder %s40, %s41
      %p52 = scmp.eq.s32.totalorder %s18, 0
      %p53 = por %p51, %p52
      %p54 = scmp.ne.s32.totalorder %s40, %s41
      %p55 = scmp.eq.s32.totalorder %s19, 1
      %p56 = por %p54, %p55
      %p58 = scmp.ne.s32.totalorder %s41, %s57
      %p59 = scmp.eq.s32.totalorder %s19, 0
      %p60 = por %p58, %p59
      %s61 = ssub.s32 %s21, %s28
      %p62 = scmp.eq.s32.totalorder %s61, 0
      %s64 = sadd.s32 %s63, 1
      %s65 = scalar_select %p62, %s63, %s64
      %p68 = pneg %p62
      %p69 = scmp.eq.s32.totalorder %s13, 1
      %p70 = por %p68, %p69
      %p71 = scmp.ne.s32.totalorder %s63, %s66
      %p72 = scmp.eq.s32.totalorder %s13, 0
      %p73 = por %p71, %p72
      %p74 = scmp.ne.s32.totalorder %s63, %s66
      %p75 = scmp.eq.s32.totalorder %s18, 1
      %p76 = por %p74, %p75
      %p77 = scmp.ne.s32.totalorder %s66, %s67
      %p78 = scmp.eq.s32.totalorder %s18, 0
      %p79 = por %p77, %p78
      %p80 = scmp.ne.s32.totalorder %s66, %s67
      %p81 = scmp.eq.s32.totalorder %s19, 1
      %p82 = por %p80, %p81
      %p84 = scmp.ne.s32.totalorder %s67, %s83
      %p85 = scmp.eq.s32.totalorder %s19, 0
      %p86 = por %p84, %p85
      %s88 = sadd.s32 %s87, 1
      %p91 = scmp.eq.s32.totalorder %s13, 1
      %p92 = scmp.ne.s32.totalorder %s87, %s89
      %p93 = scmp.eq.s32.totalorder %s13, 0
      %p94 = por %p92, %p93
      %p95 = scmp.ne.s32.totalorder %s87, %s89
      %p96 = scmp.eq.s32.totalorder %s18, 1
      %p97 = por %p95, %p96
      %p98 = scmp.ne.s32.totalorder %s89, %s90
      %p99 = scmp.eq.s32.totalorder %s18, 0
      %p100 = por %p98, %p99
      %p101 = scmp.ne.s32.totalorder %s89, %s90
      %p102 = scmp.eq.s32.totalorder %s19, 1
      %p103 = por %p101, %p102
      %p105 = scmp.ne.s32.totalorder %s90, %s104
      %p106 = scmp.eq.s32.totalorder %s19, 0
      %p107 = por %p105, %p106
      %s108 = ssub.s32 %s20, %s32
      %p109 = scmp.eq.s32.totalorder %s108, 0
      %s111 = sadd.s32 %s110, 1
      %s112 = scalar_select %p109, %s110, %s111
      %p115 = pneg %p109
      %p116 = scmp.eq.s32.totalorder %s13, 1
      %p117 = por %p115, %p116
      %p118 = scmp.ne.s32.totalorder %s110, %s113
      %p119 = scmp.eq.s32.totalorder %s13, 0
      %p120 = por %p118, %p119
      %p121 = scmp.ne.s32.totalorder %s110, %s113
      %p122 = scmp.eq.s32.totalorder %s18, 1
      %p123 = por %p121, %p122
      %p124 = scmp.ne.s32.totalorder %s113, %s114
      %p125 = scmp.eq.s32.totalorder %s18, 0
      %p126 = por %p124, %p125
      %p127 = scmp.ne.s32.totalorder %s113, %s114
      %p128 = scmp.eq.s32.totalorder %s19, 1
      %p129 = por %p127, %p128
      %p131 = scmp.ne.s32.totalorder %s114, %s130
      %p132 = scmp.eq.s32.totalorder %s19, 0
      %p133 = por %p131, %p132
      %s135 = sadd.s32 %s134, 1
      %p138 = scmp.eq.s32.totalorder %s13, 1
      %p139 = scmp.ne.s32.totalorder %s134, %s136
      %p140 = scmp.eq.s32.totalorder %s13, 0
      %p141 = por %p139, %p140
      %p142 = scmp.ne.s32.totalorder %s134, %s136
      %p143 = scmp.eq.s32.totalorder %s18, 1
      %p144 = por %p142, %p143
      %p145 = scmp.ne.s32.totalorder %s136, %s137
      %p146 = scmp.eq.s32.totalorder %s18, 0
      %p147 = por %p145, %p146
      %p148 = scmp.ne.s32.totalorder %s136, %s137
      %p149 = scmp.eq.s32.totalorder %s19, 1
      %p150 = por %p148, %p149
      %p152 = scmp.ne.s32.totalorder %s137, %s151
      %p153 = scmp.eq.s32.totalorder %s19, 0
      %p154 = por %p152, %p153
      %s156 = sadd.s32 %s155, 1
      %p159 = scmp.eq.s32.totalorder %s13, 1
      %p160 = scmp.ne.s32.totalorder %s155, %s157
      %p161 = scmp.eq.s32.totalorder %s13, 0
      %p162 = por %p160, %p161
      %p163 = scmp.ne.s32.totalorder %s155, %s157
      %p164 = scmp.eq.s32.totalorder %s18, 1
      %p165 = por %p163, %p164
      %p166 = scmp.ne.s32.totalorder %s157, %s158
      %p167 = scmp.eq.s32.totalorder %s18, 0
      %p168 = por %p166, %p167
      %p169 = scmp.ne.s32.totalorder %s157, %s158
      %p170 = scmp.eq.s32.totalorder %s19, 1
      %p171 = por %p169, %p170
      %p173 = scmp.ne.s32.totalorder %s158, %s172
      %p174 = scmp.eq.s32.totalorder %s19, 0
      %p175 = por %p173, %p174
      %s176 = ssub.s32 %s20, %s32
      %p177 = scmp.eq.s32.totalorder %s176, 0
      %s179 = sadd.s32 %s178, 1
      %s180 = scalar_select %p177, %s178, %s179
      %p183 = pneg %p177
      %p184 = scmp.eq.s32.totalorder %s13, 1
      %p185 = por %p183, %p184
      %p186 = scmp.ne.s32.totalorder %s178, %s181
      %p187 = scmp.eq.s32.totalorder %s13, 0
      %p188 = por %p186, %p187
      %p189 = scmp.ne.s32.totalorder %s178, %s181
      %p190 = scmp.eq.s32.totalorder %s18, 1
      %p191 = por %p189, %p190
      %p192 = scmp.ne.s32.totalorder %s181, %s182
      %p193 = scmp.eq.s32.totalorder %s18, 0
      %p194 = por %p192, %p193
      %p195 = scmp.ne.s32.totalorder %s181, %s182
      %p196 = scmp.eq.s32.totalorder %s19, 1
      %p197 = por %p195, %p196
      %p199 = scmp.ne.s32.totalorder %s182, %s198
      %p200 = scmp.eq.s32.totalorder %s19, 0
      %p201 = por %p199, %p200
      %p202 = scmp.le.s32.totalorder 1, %s13
      %p203 = scmp.lt.s32.totalorder %s13, 3
      %p204 = pnand %p202, %p203
      %p205 = pneg %p204
      // Predicated region
      $region9: #{seq2seq_decoder_layer.17} parent=5 // pred_check
        _
      $region10: #{seq2seq_decoder_layer.17} parent=5 // pred_check_branch
        %207 = sbr.rel (%p204) target = $region12
      $region11: #{seq2seq_decoder_layer.17} parent=5 // pred_region
        %s208 = ssub.s32 %s13, 1
        // Predicated region
        $region13: #{seq2seq_decoder_layer.17} parent=11 // pred_check
          %p209 = pneg %p100
        $region14: #{seq2seq_decoder_layer.17} parent=11 // pred_check_branch
          %211 = sbr.rel (%p209) target = $region16
        $region15: #{seq2seq_decoder_layer.17} parent=11 // pred_region
          _
        $region16: #{seq2seq_decoder_layer.17} parent=11 // pred_fallthru
          _
        // Predicated region
        $region17: #{seq2seq_decoder_layer.17} parent=11 // pred_check
          %p212 = pneg %p126
        $region18: #{seq2seq_decoder_layer.17} parent=11 // pred_check_branch
          %214 = sbr.rel (%p212) target = $region20
        $region19: #{seq2seq_decoder_layer.17} parent=11 // pred_region
          %s215 = smul.u32 2, %s22
          %p216 = scmp.lt.s32.totalorder %s215, 1
          %s217 = scalar_select %p216, %s215, 1
          %s218 = smul.addr %s217, 2
          %s219 = smul.addr %s218, 8
          %s220 = scalar_lea.vmem %s3, %s219
          %s221 = smul.u32 2, %s22
        $region20: #{seq2seq_decoder_layer.17} parent=11 // pred_fallthru
          _
        // Predicated region
        $region21: #{seq2seq_decoder_layer.17} parent=11 // pred_check
          %p222 = pneg %p147
        $region22: #{seq2seq_decoder_layer.17} parent=11 // pred_check_branch
          %224 = sbr.rel (%p222) target = $region24
        $region23: #{seq2seq_decoder_layer.17} parent=11 // pred_region
          _
        $region24: #{seq2seq_decoder_layer.17} parent=11 // pred_fallthru
          _
        // Predicated region
        $region25: #{seq2seq_decoder_layer.17} parent=11 // pred_check
          %p225 = pneg %p168
        $region26: #{seq2seq_decoder_layer.17} parent=11 // pred_check_branch
          %227 = sbr.rel (%p225) target = $region28
        $region27: #{seq2seq_decoder_layer.17} parent=11 // pred_region
          _
        $region28: #{seq2seq_decoder_layer.17} parent=11 // pred_fallthru
          _
      $region12: #{seq2seq_decoder_layer.17} parent=5 // pred_fallthru
        _
      %p228 = scmp.lt.s32.totalorder %s13, 2
      // Predicated region
      $region29: #{seq2seq_decoder_layer.17} parent=5 // pred_check
        %p229 = pneg %p228
      $region30: #{seq2seq_decoder_layer.17} parent=5 // pred_check_branch
        %231 = sbr.rel (%p229) target = $region32
      $region31: #{seq2seq_decoder_layer.17} parent=5 // pred_region
        // Predicated region
        $region33: #{seq2seq_decoder_layer.17} parent=31 // pred_check
          %p232 = pneg %p47
        $region34: #{seq2seq_decoder_layer.17} parent=31 // pred_check_branch
          %234 = sbr.rel (%p232) target = $region36
        $region35: #{seq2seq_decoder_layer.17} parent=31 // pred_region
          %s235 = sand.u32 %s37, 1
          %s236 = sand.u32 %s37, 1
          %s237 = smul.addr %s236, 32
          %s238 = scalar_lea.vmem [#allocation3], %s237
          %s239 = smul.u32 2, %s20
          %s240 = smul.u32 4, %s21
          %s241 = smul.addr %s239, 8
          %s242 = sadd.s32 %s240, %s241
          %s243 = smul.addr %s242, 4
          %s244 = scalar_lea.vmem %s0, %s243
          // Predicated region
          $region37: #{seq2seq_decoder_layer.17} parent=35 // pred_check
            _
          $region38: #{seq2seq_decoder_layer.17} parent=35 // pred_check_branch
            %246 = sbr.rel (0) target = $region40
          $region39: #{seq2seq_decoder_layer.17} parent=35 // pred_region
            // Predicated region
            $region41: #{seq2seq_decoder_layer.17} parent=39 // pred_check
              _
            $region42: #{seq2seq_decoder_layer.17} parent=39 // pred_check_branch
              %248 = sbr.rel (0) target = $region44
            $region43: #{seq2seq_decoder_layer.17} parent=39 // pred_region
              loop: start=0, step=1, limit=1
              $region45: #{seq2seq_decoder_layer.17} parent=43 // loop_pre_header
                _
              $region46: #{seq2seq_decoder_layer.17} parent=43 // loop_header
                %s250 = sphi 0, %s254
                %p251 = scmp.ge.s32.totalorder %s250, 1
                %s255 = sphi %s244, %s244
                %s256 = sphi %s238, %s238
              $region47: #{seq2seq_decoder_layer.17} parent=43 // loop_header_branch
                %253 = sbr.rel (%p251) target = $region51
              $region48: #{seq2seq_decoder_layer.17} parent=43 // loop_body
                %v257 = vld [vmem:[%s255] sm:$0xff]
                %258 = vst [vmem:[%s256] sm:$0xff] %v257
                %v259 = vld [vmem:[%s255 + $0x8] sm:$0xff]
                %260 = vst [vmem:[%s256 + $0x8] sm:$0xff] %v259
                %v261 = vld [vmem:[%s255 + $0x20] sm:$0xff]
                %262 = vst [vmem:[%s256 + $0x10] sm:$0xff] %v261
                %v263 = vld [vmem:[%s255 + $0x28] sm:$0xff]
                %264 = vst [vmem:[%s256 + $0x18] sm:$0xff] %v263
              $region49: #{seq2seq_decoder_layer.17} parent=43 // loop_footer
                %s254 = sadd.s32 1, %s250
              $region50: #{seq2seq_decoder_layer.17} parent=43 // loop_footer_branch
                %249 = sbr.rel target = $region46
              $region51: #{seq2seq_decoder_layer.17} parent=43 // loop_exit
                _
            $region44: #{seq2seq_decoder_layer.17} parent=39 // pred_fallthru
              _
            // Predicated region
            $region52: #{seq2seq_decoder_layer.17} parent=39 // pred_check
              _
            $region53: #{seq2seq_decoder_layer.17} parent=39 // pred_check_branch
              %266 = sbr.rel target = $region55
            $region54: #{seq2seq_decoder_layer.17} parent=39 // pred_region
              _
            $region55: #{seq2seq_decoder_layer.17} parent=39 // pred_fallthru
              _
          $region40: #{seq2seq_decoder_layer.17} parent=35 // pred_fallthru
            _
          %267 = vnop
        $region36: #{seq2seq_decoder_layer.17} parent=31 // pred_fallthru
          _
        // Predicated region
        $region56: #{seq2seq_decoder_layer.17} parent=31 // pred_check
          %p268 = pneg %p73
        $region57: #{seq2seq_decoder_layer.17} parent=31 // pred_check_branch
          %270 = sbr.rel (%p268) target = $region59
        $region58: #{seq2seq_decoder_layer.17} parent=31 // pred_region
          %s271 = smul.u32 64, %s21
          %p272 = scmp.lt.s32.totalorder %s271, 127
          %s273 = scalar_select %p272, %s271, 127
          %s274 = smul.addr %s273, 2
          %s275 = smul.addr %s274, 4
          %s276 = scalar_lea.vmem %s1, %s275
          %s277 = smul.u32 64, %s21
        $region59: #{seq2seq_decoder_layer.17} parent=31 // pred_fallthru
          _
      $region32: #{seq2seq_decoder_layer.17} parent=5 // pred_fallthru
        _
      %p278 = scmp.le.s32.totalorder 1, %s13
      %p279 = scmp.lt.s32.totalorder %s13, 3
      %p280 = pnand %p278, %p279
      %p281 = pneg %p280
      // Predicated region
      $region60: #{seq2seq_decoder_layer.17} parent=5 // pred_check
        _
      $region61: #{seq2seq_decoder_layer.17} parent=5 // pred_check_branch
        %283 = sbr.rel (%p280) target = $region63
      $region62: #{seq2seq_decoder_layer.17} parent=5 // pred_region
        %s284 = ssub.s32 %s13, 1
        %s285 = sand.u32 %s40, 1
        %s286 = sand.u32 %s40, 1
        %s287 = smul.addr %s286, 32
        %s288 = scalar_lea.vmem [#allocation3], %s287
        // Predicated region
        $region64: #{seq2seq_decoder_layer.17} parent=62 // pred_check
          %p289 = pneg %p53
        $region65: #{seq2seq_decoder_layer.17} parent=62 // pred_check_branch
          %291 = sbr.rel (%p289) target = $region67
        $region66: #{seq2seq_decoder_layer.17} parent=62 // pred_region
          _
        $region67: #{seq2seq_decoder_layer.17} parent=62 // pred_fallthru
          _
        %s292 = sand.u32 %s40, 1
        %s293 = sand.u32 %s40, 1
        %s294 = smul.addr %s293, 32
        %s295 = scalar_lea.vmem [#allocation3], %s294
        %p296 = pneg %p53
        %p297 = pneg %p50
        %s298 = smul.u32 64, %s23
        %p299 = scmp.lt.s32.totalorder %s298, 127
        %s300 = scalar_select %p299, %s298, 127
        %s301 = smul.addr %s300, 2
        %s302 = smul.addr %s301, 4
        %s303 = scalar_lea.vmem %s1, %s302
        %p304 = pneg %p79
        %p305 = pneg %p76
        %p306 = pneg %p100
        %p307 = pneg %p97
        %s308 = smul.u32 2, %s22
        %p309 = scmp.lt.s32.totalorder %s308, 1
        %s310 = scalar_select %p309, %s308, 1
        %s311 = smul.addr %s310, 2
        %s312 = smul.addr %s311, 8
        %s313 = scalar_lea.vmem %s3, %s312
        %p314 = pneg %p126
        %p315 = pneg %p123
        %p316 = pneg %p147
        %p317 = pneg %p144
        %p318 = pneg %p168
        %p319 = pneg %p165
        %p320 = pneg %p194
        %p321 = pneg %p191
        %s322 = smul.u32 2, %s22
        %s323 = smul.u32 4, %s23
        %s324 = smul.u32 64, %s23
        %p325 = scmp.lt.s32.totalorder %s324, 127
        %s326 = scalar_select %p325, %s324, 127
        %s327 = smul.addr %s326, 2
        %s328 = smul.addr %s327, 4
        %s329 = scalar_lea.vmem %s1, %s328
        %s330 = smul.u32 64, %s23
        %s331 = smul.u32 2, %s22
        %p332 = scmp.lt.s32.totalorder %s331, 1
        %s333 = scalar_select %p332, %s331, 1
        %s334 = smul.addr %s333, 2
        %s335 = smul.addr %s334, 8
        %s336 = scalar_lea.vmem %s3, %s335
        %s337 = smul.u32 2, %s22
        %s338 = smul.u32 2, %s22
        %p339 = scmp.eq.s32.totalorder %s23, 0
        // Predicated region
        $region68: #{seq2seq_decoder_layer.17} parent=62 // pred_check
          %p340 = pneg %p339
        $region69: #{seq2seq_decoder_layer.17} parent=62 // pred_check_branch
          %342 = sbr.rel (%p340) target = $region71
        $region70: #{seq2seq_decoder_layer.17} parent=62 // pred_region
          %343 = vst [vmem:[#allocation2] sm:$0xff] 0.0
          %344 = vst [vmem:[#allocation2 + $0x8] sm:$0xff] 0.0
          %345 = vst [vmem:[#allocation2 + $0x10] sm:$0xff] 0.0
          %346 = vst [vmem:[#allocation2 + $0x18] sm:$0xff] 0.0
        $region71: #{seq2seq_decoder_layer.17} parent=62 // pred_fallthru
          _
        %v347 = vld [vmem:[#allocation2] sm:$0xff]
        %v348 = vld [vmem:[#allocation2 + $0x8] sm:$0xff]
        %v349 = vld [vmem:[#allocation2 + $0x10] sm:$0xff]
        %v350 = vld [vmem:[#allocation2 + $0x18] sm:$0xff]
        %v351 = vld [vmem:[%s288] sm:$0xff]
        %v352 = vld [vmem:[%s288 + $0x8] sm:$0xff]
        %v353 = vld [vmem:[%s288 + $0x10] sm:$0xff]
        %v354 = vld [vmem:[%s288 + $0x18] sm:$0xff]
        %v355 = vld [vmem:[%s329] sm:$0xff]
        %v356 = vld [vmem:[%s329 + $0x8] sm:$0xff]
        %v357 = vld [vmem:[%s329 + $0x10] sm:$0xff]
        %v358 = vld [vmem:[%s329 + $0x18] sm:$0xff]
        %v359 = vld [vmem:[%s329 + $0x20] sm:$0xff]
        %v360 = vld [vmem:[%s329 + $0x28] sm:$0xff]
        %v361 = vld [vmem:[%s329 + $0x30] sm:$0xff]
        %v362 = vld [vmem:[%s329 + $0x38] sm:$0xff]
        %v363 = vld [vmem:[%s329 + $0x40] sm:$0xff]
        %v364 = vld [vmem:[%s329 + $0x48] sm:$0xff]
        %v365 = vld [vmem:[%s329 + $0x50] sm:$0xff]
        %v366 = vld [vmem:[%s329 + $0x58] sm:$0xff]
        %v367 = vld [vmem:[%s329 + $0x60] sm:$0xff]
        %v368 = vld [vmem:[%s329 + $0x68] sm:$0xff]
        %v369 = vld [vmem:[%s329 + $0x70] sm:$0xff]
        %v370 = vld [vmem:[%s329 + $0x78] sm:$0xff]
        %v371 = vld [vmem:[%s329 + $0x80] sm:$0xff]
        %v372 = vld [vmem:[%s329 + $0x88] sm:$0xff]
        %v373 = vld [vmem:[%s329 + $0x90] sm:$0xff]
        %v374 = vld [vmem:[%s329 + $0x98] sm:$0xff]
        %v375 = vld [vmem:[%s329 + $0xa0] sm:$0xff]
        %v376 = vld [vmem:[%s329 + $0xa8] sm:$0xff]
        %v377 = vld [vmem:[%s329 + $0xb0] sm:$0xff]
        %v378 = vld [vmem:[%s329 + $0xb8] sm:$0xff]
        %v379 = vld [vmem:[%s329 + $0xc0] sm:$0xff]
        %v380 = vld [vmem:[%s329 + $0xc8] sm:$0xff]
        %v381 = vld [vmem:[%s329 + $0xd0] sm:$0xff]
        %v382 = vld [vmem:[%s329 + $0xd8] sm:$0xff]
        %v383 = vld [vmem:[%s329 + $0xe0] sm:$0xff]
        %v384 = vld [vmem:[%s329 + $0xe8] sm:$0xff]
        %v385 = vld [vmem:[%s329 + $0xf0] sm:$0xff]
        %v386 = vld [vmem:[%s329 + $0xf8] sm:$0xff]
        %v387 = vld [vmem:[%s329 + $0x100] sm:$0xff]
        %v388 = vld [vmem:[%s329 + $0x108] sm:$0xff]
        %v389 = vld [vmem:[%s329 + $0x110] sm:$0xff]
        %v390 = vld [vmem:[%s329 + $0x118] sm:$0xff]
        %v391 = vld [vmem:[%s329 + $0x120] sm:$0xff]
        %v392 = vld [vmem:[%s329 + $0x128] sm:$0xff]
        %v393 = vld [vmem:[%s329 + $0x130] sm:$0xff]
        %v394 = vld [vmem:[%s329 + $0x138] sm:$0xff]
        %v395 = vld [vmem:[%s329 + $0x140] sm:$0xff]
        %v396 = vld [vmem:[%s329 + $0x148] sm:$0xff]
        %v397 = vld [vmem:[%s329 + $0x150] sm:$0xff]
        %v398 = vld [vmem:[%s329 + $0x158] sm:$0xff]
        %v399 = vld [vmem:[%s329 + $0x160] sm:$0xff]
        %v400 = vld [vmem:[%s329 + $0x168] sm:$0xff]
        %v401 = vld [vmem:[%s329 + $0x170] sm:$0xff]
        %v402 = vld [vmem:[%s329 + $0x178] sm:$0xff]
        %v403 = vld [vmem:[%s329 + $0x180] sm:$0xff]
        %v404 = vld [vmem:[%s329 + $0x188] sm:$0xff]
        %v405 = vld [vmem:[%s329 + $0x190] sm:$0xff]
        %v406 = vld [vmem:[%s329 + $0x198] sm:$0xff]
        %v407 = vld [vmem:[%s329 + $0x1a0] sm:$0xff]
        %v408 = vld [vmem:[%s329 + $0x1a8] sm:$0xff]
        %v409 = vld [vmem:[%s329 + $0x1b0] sm:$0xff]
        %v410 = vld [vmem:[%s329 + $0x1b8] sm:$0xff]
        %v411 = vld [vmem:[%s329 + $0x1c0] sm:$0xff]
        %v412 = vld [vmem:[%s329 + $0x1c8] sm:$0xff]
        %v413 = vld [vmem:[%s329 + $0x1d0] sm:$0xff]
        %v414 = vld [vmem:[%s329 + $0x1d8] sm:$0xff]
        %v415 = vld [vmem:[%s329 + $0x1e0] sm:$0xff]
        %v416 = vld [vmem:[%s329 + $0x1e8] sm:$0xff]
        %v417 = vld [vmem:[%s329 + $0x1f0] sm:$0xff]
        %v418 = vld [vmem:[%s329 + $0x1f8] sm:$0xff]
        %v423 = vunpack.c.l.b16 %v351
        %v424 = vunpack.c.h.b16 %v351
        %v425 = vunpack.c.l.b16 %v352
        %v426 = vunpack.c.h.b16 %v352
        %v427 = vunpack.c.l.b16 %v353
        %v428 = vunpack.c.h.b16 %v353
        %v429 = vunpack.c.l.b16 %v354
        %v430 = vunpack.c.h.b16 %v354
        %v431 = vpack.c.b16 %v427, %v423
        %v432 = vpack.c.b16 %v428, %v424
        %v433 = vpack.c.b16 %v429, %v425
        %v434 = vpack.c.b16 %v430, %v426
        %v503 = vunpack.c.l.b16 %v355
        %v504 = vunpack.c.h.b16 %v355
        %v505 = vunpack.c.l.b16 %v356
        %v506 = vunpack.c.h.b16 %v356
        %v507 = vunpack.c.l.b16 %v357
        %v508 = vunpack.c.h.b16 %v357
        %v509 = vunpack.c.l.b16 %v358
        %v510 = vunpack.c.h.b16 %v358
        %v511 = vunpack.c.l.b16 %v359
        %v512 = vunpack.c.h.b16 %v359
        %v513 = vunpack.c.l.b16 %v360
        %v514 = vunpack.c.h.b16 %v360
        %v515 = vunpack.c.l.b16 %v361
        %v516 = vunpack.c.h.b16 %v361
        %v517 = vunpack.c.l.b16 %v362
        %v518 = vunpack.c.h.b16 %v362
        %v519 = vunpack.c.l.b16 %v363
        %v520 = vunpack.c.h.b16 %v363
        %v521 = vunpack.c.l.b16 %v364
        %v522 = vunpack.c.h.b16 %v364
        %v523 = vunpack.c.l.b16 %v365
        %v524 = vunpack.c.h.b16 %v365
        %v525 = vunpack.c.l.b16 %v366
        %v526 = vunpack.c.h.b16 %v366
        %v527 = vunpack.c.l.b16 %v367
        %v528 = vunpack.c.h.b16 %v367
        %v529 = vunpack.c.l.b16 %v368
        %v530 = vunpack.c.h.b16 %v368
        %v531 = vunpack.c.l.b16 %v369
        %v532 = vunpack.c.h.b16 %v369
        %v533 = vunpack.c.l.b16 %v370
        %v534 = vunpack.c.h.b16 %v370
        %v535 = vunpack.c.l.b16 %v371
        %v536 = vunpack.c.h.b16 %v371
        %v537 = vunpack.c.l.b16 %v372
        %v538 = vunpack.c.h.b16 %v372
        %v539 = vunpack.c.l.b16 %v373
        %v540 = vunpack.c.h.b16 %v373
        %v541 = vunpack.c.l.b16 %v374
        %v542 = vunpack.c.h.b16 %v374
        %v543 = vunpack.c.l.b16 %v375
        %v544 = vunpack.c.h.b16 %v375
        %v545 = vunpack.c.l.b16 %v376
        %v546 = vunpack.c.h.b16 %v376
        %v547 = vunpack.c.l.b16 %v377
        %v548 = vunpack.c.h.b16 %v377
        %v549 = vunpack.c.l.b16 %v378
        %v550 = vunpack.c.h.b16 %v378
        %v551 = vunpack.c.l.b16 %v379
        %v552 = vunpack.c.h.b16 %v379
        %v553 = vunpack.c.l.b16 %v380
        %v554 = vunpack.c.h.b16 %v380
        %v555 = vunpack.c.l.b16 %v381
        %v556 = vunpack.c.h.b16 %v381
        %v557 = vunpack.c.l.b16 %v382
        %v558 = vunpack.c.h.b16 %v382
        %v559 = vunpack.c.l.b16 %v383
        %v560 = vunpack.c.h.b16 %v383
        %v561 = vunpack.c.l.b16 %v384
        %v562 = vunpack.c.h.b16 %v384
        %v563 = vunpack.c.l.b16 %v385
        %v564 = vunpack.c.h.b16 %v385
        %v565 = vunpack.c.l.b16 %v386
        %v566 = vunpack.c.h.b16 %v386
        %v567 = vunpack.c.l.b16 %v387
        %v568 = vunpack.c.h.b16 %v387
        %v569 = vunpack.c.l.b16 %v388
        %v570 = vunpack.c.h.b16 %v388
        %v571 = vunpack.c.l.b16 %v389
        %v572 = vunpack.c.h.b16 %v389
        %v573 = vunpack.c.l.b16 %v390
        %v574 = vunpack.c.h.b16 %v390
        %v575 = vunpack.c.l.b16 %v391
        %v576 = vunpack.c.h.b16 %v391
        %v577 = vunpack.c.l.b16 %v392
        %v578 = vunpack.c.h.b16 %v392
        %v579 = vunpack.c.l.b16 %v393
        %v580 = vunpack.c.h.b16 %v393
        %v581 = vunpack.c.l.b16 %v394
        %v582 = vunpack.c.h.b16 %v394
        %v583 = vunpack.c.l.b16 %v395
        %v584 = vunpack.c.h.b16 %v395
        %v585 = vunpack.c.l.b16 %v396
        %v586 = vunpack.c.h.b16 %v396
        %v587 = vunpack.c.l.b16 %v397
        %v588 = vunpack.c.h.b16 %v397
        %v589 = vunpack.c.l.b16 %v398
        %v590 = vunpack.c.h.b16 %v398
        %v591 = vunpack.c.l.b16 %v399
        %v592 = vunpack.c.h.b16 %v399
        %v593 = vunpack.c.l.b16 %v400
        %v594 = vunpack.c.h.b16 %v400
        %v595 = vunpack.c.l.b16 %v401
        %v596 = vunpack.c.h.b16 %v401
        %v597 = vunpack.c.l.b16 %v402
        %v598 = vunpack.c.h.b16 %v402
        %v599 = vunpack.c.l.b16 %v403
        %v600 = vunpack.c.h.b16 %v403
        %v601 = vunpack.c.l.b16 %v404
        %v602 = vunpack.c.h.b16 %v404
        %v603 = vunpack.c.l.b16 %v405
        %v604 = vunpack.c.h.b16 %v405
        %v605 = vunpack.c.l.b16 %v406
        %v606 = vunpack.c.h.b16 %v406
        %v607 = vunpack.c.l.b16 %v407
        %v608 = vunpack.c.h.b16 %v407
        %v609 = vunpack.c.l.b16 %v408
        %v610 = vunpack.c.h.b16 %v408
        %v611 = vunpack.c.l.b16 %v409
        %v612 = vunpack.c.h.b16 %v409
        %v613 = vunpack.c.l.b16 %v410
        %v614 = vunpack.c.h.b16 %v410
        %v615 = vunpack.c.l.b16 %v411
        %v616 = vunpack.c.h.b16 %v411
        %v617 = vunpack.c.l.b16 %v412
        %v618 = vunpack.c.h.b16 %v412
        %v619 = vunpack.c.l.b16 %v413
        %v620 = vunpack.c.h.b16 %v413
        %v621 = vunpack.c.l.b16 %v414
        %v622 = vunpack.c.h.b16 %v414
        %v623 = vunpack.c.l.b16 %v415
        %v624 = vunpack.c.h.b16 %v415
        %v625 = vunpack.c.l.b16 %v416
        %v626 = vunpack.c.h.b16 %v416
        %v627 = vunpack.c.l.b16 %v417
        %v628 = vunpack.c.h.b16 %v417
        %v629 = vunpack.c.l.b16 %v418
        %v630 = vunpack.c.h.b16 %v418
        %v631 = vpack.c.b16 %v505, %v503
        %v632 = vpack.c.b16 %v506, %v504
        %v633 = vpack.c.b16 %v509, %v507
        %v634 = vpack.c.b16 %v510, %v508
        %v635 = vpack.c.b16 %v513, %v511
        %v636 = vpack.c.b16 %v514, %v512
        %v637 = vpack.c.b16 %v517, %v515
        %v638 = vpack.c.b16 %v518, %v516
        %v639 = vpack.c.b16 %v521, %v519
        %v640 = vpack.c.b16 %v522, %v520
        %v641 = vpack.c.b16 %v525, %v523
        %v642 = vpack.c.b16 %v526, %v524
        %v643 = vpack.c.b16 %v529, %v527
        %v644 = vpack.c.b16 %v530, %v528
        %v645 = vpack.c.b16 %v533, %v531
        %v646 = vpack.c.b16 %v534, %v532
        %v647 = vpack.c.b16 %v537, %v535
        %v648 = vpack.c.b16 %v538, %v536
        %v649 = vpack.c.b16 %v541, %v539
        %v650 = vpack.c.b16 %v542, %v540
        %v651 = vpack.c.b16 %v545, %v543
        %v652 = vpack.c.b16 %v546, %v544
        %v653 = vpack.c.b16 %v549, %v547
        %v654 = vpack.c.b16 %v550, %v548
        %v655 = vpack.c.b16 %v553, %v551
        %v656 = vpack.c.b16 %v554, %v552
        %v657 = vpack.c.b16 %v557, %v555
        %v658 = vpack.c.b16 %v558, %v556
        %v659 = vpack.c.b16 %v561, %v559
        %v660 = vpack.c.b16 %v562, %v560
        %v661 = vpack.c.b16 %v565, %v563
        %v662 = vpack.c.b16 %v566, %v564
        %v663 = vpack.c.b16 %v569, %v567
        %v664 = vpack.c.b16 %v570, %v568
        %v665 = vpack.c.b16 %v573, %v571
        %v666 = vpack.c.b16 %v574, %v572
        %v667 = vpack.c.b16 %v577, %v575
        %v668 = vpack.c.b16 %v578, %v576
        %v669 = vpack.c.b16 %v581, %v579
        %v670 = vpack.c.b16 %v582, %v580
        %v671 = vpack.c.b16 %v585, %v583
        %v672 = vpack.c.b16 %v586, %v584
        %v673 = vpack.c.b16 %v589, %v587
        %v674 = vpack.c.b16 %v590, %v588
        %v675 = vpack.c.b16 %v593, %v591
        %v676 = vpack.c.b16 %v594, %v592
        %v677 = vpack.c.b16 %v597, %v595
        %v678 = vpack.c.b16 %v598, %v596
        %v679 = vpack.c.b16 %v601, %v599
        %v680 = vpack.c.b16 %v602, %v600
        %v681 = vpack.c.b16 %v605, %v603
        %v682 = vpack.c.b16 %v606, %v604
        %v683 = vpack.c.b16 %v609, %v607
        %v684 = vpack.c.b16 %v610, %v608
        %v685 = vpack.c.b16 %v613, %v611
        %v686 = vpack.c.b16 %v614, %v612
        %v687 = vpack.c.b16 %v617, %v615
        %v688 = vpack.c.b16 %v618, %v616
        %v689 = vpack.c.b16 %v621, %v619
        %v690 = vpack.c.b16 %v622, %v620
        %v691 = vpack.c.b16 %v625, %v623
        %v692 = vpack.c.b16 %v626, %v624
        %v693 = vpack.c.b16 %v629, %v627
        %v694 = vpack.c.b16 %v630, %v628
        %759 = vmatprep.subr.bf16.mxu0 %v646
        %760 = vmatpush1.bf16.msra.mxu0 %v645
        %761 = vmatprep.subr.bf16.mxu0 %v644
        %762 = vmatpush1.bf16.msra.mxu0 %v643
        %763 = vmatprep.subr.bf16.mxu0 %v642
        %764 = vmatpush1.bf16.msra.mxu0 %v641
        %765 = vmatprep.subr.bf16.mxu0 %v640
        %766 = vmatpush1.bf16.msra.mxu0 %v639
        %767 = vmatprep.subr.bf16.mxu0 %v638
        %768 = vmatpush1.bf16.msra.mxu0 %v637
        %769 = vmatprep.subr.bf16.mxu0 %v636
        %770 = vmatpush1.bf16.msra.mxu0 %v635
        %771 = vmatprep.subr.bf16.mxu0 %v634
        %772 = vmatpush1.bf16.msra.mxu0 %v633
        %773 = vmatprep.subr.bf16.mxu0 %v632
        %774 = vmatpush1.bf16.msra.mxu0 %v631
        %775 = vmatprep.subr.bf16.mxu0 %v662
        %776 = vmatpush2.bf16.msra.mxu0 %v661
        %777 = vmatprep.subr.bf16.mxu0 %v660
        %778 = vmatpush2.bf16.msra.mxu0 %v659
        %779 = vmatprep.subr.bf16.mxu0 %v658
        %780 = vmatpush2.bf16.msra.mxu0 %v657
        %781 = vmatprep.subr.bf16.mxu0 %v656
        %782 = vmatpush2.bf16.msra.mxu0 %v655
        %783 = vmatprep.subr.bf16.mxu0 %v654
        %784 = vmatpush2.bf16.msra.mxu0 %v653
        %785 = vmatprep.subr.bf16.mxu0 %v652
        %786 = vmatpush2.bf16.msra.mxu0 %v651
        %787 = vmatprep.subr.bf16.mxu0 %v650
        %788 = vmatpush2.bf16.msra.mxu0 %v649
        %789 = vmatprep.subr.bf16.mxu0 %v648
        %790 = vmatpush2.bf16.msra.mxu0 %v647
        %791 = vmatprep.mubr.bf16.mxu0 %v432
        %792 = vmatmul.mubr.bf16.gmra.mxu0 %v431
        %v793 = vpop.f32.mrf.mxu0
        %v794 = vadd.f32 0.0, %v793
        %v795 = vpop.f32.mrf.mxu0
        %v796 = vadd.f32 0.0, %v795
        %v797 = vpop.f32.mrf.mxu0
        %v798 = vadd.f32 0.0, %v797
        %v799 = vpop.f32.mrf.mxu0
        %v800 = vadd.f32 0.0, %v799
        %801 = vdwg.mxu0
        %802 = vmatprep.subr.bf16.mxu0 %v678
        %803 = vmatpush1.bf16.msra.mxu0 %v677
        %804 = vmatprep.subr.bf16.mxu0 %v676
        %805 = vmatpush1.bf16.msra.mxu0 %v675
        %806 = vmatprep.subr.bf16.mxu0 %v674
        %807 = vmatpush1.bf16.msra.mxu0 %v673
        %808 = vmatprep.subr.bf16.mxu0 %v672
        %809 = vmatpush1.bf16.msra.mxu0 %v671
        %810 = vmatprep.subr.bf16.mxu0 %v670
        %811 = vmatpush1.bf16.msra.mxu0 %v669
        %812 = vmatprep.subr.bf16.mxu0 %v668
        %813 = vmatpush1.bf16.msra.mxu0 %v667
        %814 = vmatprep.subr.bf16.mxu0 %v666
        %815 = vmatpush1.bf16.msra.mxu0 %v665
        %816 = vmatprep.subr.bf16.mxu0 %v664
        %817 = vmatpush1.bf16.msra.mxu0 %v663
        %818 = vmatprep.subr.bf16.mxu0 %v694
        %819 = vmatpush2.bf16.msra.mxu0 %v693
        %820 = vmatprep.subr.bf16.mxu0 %v692
        %821 = vmatpush2.bf16.msra.mxu0 %v691
        %822 = vmatprep.subr.bf16.mxu0 %v690
        %823 = vmatpush2.bf16.msra.mxu0 %v689
        %824 = vmatprep.subr.bf16.mxu0 %v688
        %825 = vmatpush2.bf16.msra.mxu0 %v687
        %826 = vmatprep.subr.bf16.mxu0 %v686
        %827 = vmatpush2.bf16.msra.mxu0 %v685
        %828 = vmatprep.subr.bf16.mxu0 %v684
        %829 = vmatpush2.bf16.msra.mxu0 %v683
        %830 = vmatprep.subr.bf16.mxu0 %v682
        %831 = vmatpush2.bf16.msra.mxu0 %v681
        %832 = vmatprep.subr.bf16.mxu0 %v680
        %833 = vmatpush2.bf16.msra.mxu0 %v679
        %834 = vmatprep.mubr.bf16.mxu0 %v434
        %835 = vmatmul.mubr.bf16.gmra.mxu0 %v433
        %v836 = vpop.f32.mrf.mxu0
        %v837 = vadd.f32 %v794, %v836
        %v838 = vpop.f32.mrf.mxu0
        %v839 = vadd.f32 %v796, %v838
        %v840 = vpop.f32.mrf.mxu0
        %v841 = vadd.f32 %v798, %v840
        %v842 = vpop.f32.mrf.mxu0
        %v843 = vadd.f32 %v800, %v842
        %844 = vdwg.mxu0
        %v845 = vadd.f32 %v347, %v837
        %v846 = vadd.f32 %v348, %v839
        %v847 = vadd.f32 %v349, %v841
        %v848 = vadd.f32 %v350, %v843
        %849 = vst [vmem:[#allocation2] sm:$0xff] %v845
        %850 = vst [vmem:[#allocation2 + $0x8] sm:$0xff] %v846
        %851 = vst [vmem:[#allocation2 + $0x10] sm:$0xff] %v847
        %852 = vst [vmem:[#allocation2 + $0x18] sm:$0xff] %v848
        %p853 = scmp.eq.s32.totalorder %s23, 1
        // Predicated region
        $region72: #{seq2seq_decoder_layer.17} parent=62 // pred_check
          %p854 = pneg %p853
        $region73: #{seq2seq_decoder_layer.17} parent=62 // pred_check_branch
          %856 = sbr.rel (%p854) target = $region75
        $region74: #{seq2seq_decoder_layer.17} parent=62 // pred_region
          %v857 = vld [vmem:[#allocation2] sm:$0xff]
          %v858 = vld [vmem:[#allocation2 + $0x8] sm:$0xff]
          %v859 = vld [vmem:[#allocation2 + $0x10] sm:$0xff]
          %v860 = vld [vmem:[#allocation2 + $0x18] sm:$0xff]
          %v861 = vld [vmem:[%s2] sm:$0x3]
          %v863 = vlaneseq
          %v864 = vshrl.u32 %v863, 7
          %v865 = vsub.s32 0, %v864
          %v866 = vrot.slane %v861, %v865
          %v867 = vlaneseq
          %v868 = vshrl.u32 %v867, 7
          %v869 = vsub.s32 1, %v868
          %v870 = vrot.slane %v861, %v869
          %v873 = vadd.f32 %v857, %v866
          %v874 = vadd.f32 %v858, %v870
          %v875 = vadd.f32 %v859, %v866
          %v876 = vadd.f32 %v860, %v870
          %v877 = vld [vmem:[%s336] sm:$0xff]
          %v878 = vld [vmem:[%s336 + $0x8] sm:$0xff]
          %v879 = vld [vmem:[%s336 + $0x10] sm:$0xff]
          %v880 = vld [vmem:[%s336 + $0x18] sm:$0xff]
          %v881 = vadd.f32 %v873, %v877
          %v882 = vadd.f32 %v874, %v878
          %v883 = vadd.f32 %v875, %v879
          %v884 = vadd.f32 %v876, %v880
          %v885 = vadd.f32 %v881, %v882
          %886 = vadd.xlane.f32.xlu0 %v885
          %v887 = vpop.xlane.xlu0 %886
          %v888 = vadd.f32 %v883, %v884
          %889 = vadd.xlane.f32.xlu0 %v888
          %v890 = vpop.xlane.xlu0 %889
          %v891 = vrcp.pop 256.0
          %v892 = vmul.f32 %v887, %v891
          %v893 = vmul.f32 %v890, %v891
          %v894 = vsub.f32 %v881, %v892
          %v895 = vsub.f32 %v882, %v892
          %v896 = vsub.f32 %v883, %v893
          %v897 = vsub.f32 %v884, %v893
          %v898 = vmul.f32 %v894, %v894
          %v899 = vmul.f32 %v895, %v895
          %v900 = vmul.f32 %v896, %v896
          %v901 = vmul.f32 %v897, %v897
          %v902 = vadd.f32 %v898, %v899
          %903 = vadd.xlane.f32.xlu0 %v902
          %v904 = vpop.xlane.xlu0 %903
          %v905 = vadd.f32 %v900, %v901
          %906 = vadd.xlane.f32.xlu0 %v905
          %v907 = vpop.xlane.xlu0 %906
          %v908 = vmul.f32 %v904, %v891
          %v909 = vmul.f32 %v907, %v891
          %v910 = vadd.f32 %v908, 1e-12
          %v911 = vadd.f32 %v909, 1e-12
          %v912 = vrsqrt.pop %v910
          %v913 = vrsqrt.pop %v911
          %v914 = vmul.f32 %v894, %v912
          %v915 = vmul.f32 %v895, %v912
          %v916 = vmul.f32 %v896, %v913
          %v917 = vmul.f32 %v897, %v913
          %v918 = vld [vmem:[%s4] sm:$0x3]
          %v920 = vlaneseq
          %v921 = vshrl.u32 %v920, 7
          %v922 = vsub.s32 0, %v921
          %v923 = vrot.slane %v918, %v922
          %v924 = vlaneseq
          %v925 = vshrl.u32 %v924, 7
          %v926 = vsub.s32 1, %v925
          %v927 = vrot.slane %v918, %v926
          %v930 = vmul.f32 %v914, %v923
          %v931 = vmul.f32 %v915, %v927
          %v932 = vmul.f32 %v916, %v923
          %v933 = vmul.f32 %v917, %v927
          %v934 = vld [vmem:[%s5] sm:$0x3]
          %v936 = vlaneseq
          %v937 = vshrl.u32 %v936, 7
          %v938 = vsub.s32 0, %v937
          %v939 = vrot.slane %v934, %v938
          %v940 = vlaneseq
          %v941 = vshrl.u32 %v940, 7
          %v942 = vsub.s32 1, %v941
          %v943 = vrot.slane %v934, %v942
          %v946 = vadd.f32 %v930, %v939
          %v947 = vadd.f32 %v931, %v943
          %v948 = vadd.f32 %v932, %v939
          %v949 = vadd.f32 %v933, %v943
          %950 = vst [vmem:[#allocation4] sm:$0xff] %v946
          %951 = vst [vmem:[#allocation4 + $0x8] sm:$0xff] %v947
          %952 = vst [vmem:[#allocation4 + $0x10] sm:$0xff] %v948
          %953 = vst [vmem:[#allocation4 + $0x18] sm:$0xff] %v949
        $region75: #{seq2seq_decoder_layer.17} parent=62 // pred_fallthru
          _
        // Predicated region
        $region76: #{seq2seq_decoder_layer.17} parent=62 // pred_check
          %p954 = pneg %p191
        $region77: #{seq2seq_decoder_layer.17} parent=62 // pred_check_branch
          %956 = sbr.rel (%p954) target = $region79
        $region78: #{seq2seq_decoder_layer.17} parent=62 // pred_region
          %s957 = smul.u32 2, %s22
          %s959 = ssub.s32 512, 512
          %960 = vsyncadd [#allocation5], %s959
          %s961 = smul.addr %s957, 2
          %s962 = smul.addr %s961, 128
          %s963 = scalar_lea.hbm %s6, %s962
          %s964 = sshll.u32 [#allocation4], 4
          %s965 = int_to_ptr.vmem [resolvable:$true] %s964
          %970 = dma.vmem_to_hbm [thread:$0]  %s965, 512, %s963, [#allocation5], 256, 256, 16
        $region79: #{seq2seq_decoder_layer.17} parent=62 // pred_fallthru
          _
        // Predicated region
        $region80: #{seq2seq_decoder_layer.17} parent=62 // pred_check
          %p971 = pneg %p191
        $region81: #{seq2seq_decoder_layer.17} parent=62 // pred_check_branch
          %973 = sbr.rel (%p971) target = $region83
        $region82: #{seq2seq_decoder_layer.17} parent=62 // pred_region
          %974 = dma.done [#allocation5], 512
        $region83: #{seq2seq_decoder_layer.17} parent=62 // pred_fallthru
          _
      $region63: #{seq2seq_decoder_layer.17} parent=5 // pred_fallthru
        _
      %p975 = scmp.le.s32.totalorder 2, %s13
      // Predicated region
      $region84: #{seq2seq_decoder_layer.17} parent=5 // pred_check
        %p976 = pneg %p975
      $region85: #{seq2seq_decoder_layer.17} parent=5 // pred_check_branch
        %978 = sbr.rel (%p976) target = $region87
      $region86: #{seq2seq_decoder_layer.17} parent=5 // pred_region
        %s979 = ssub.s32 %s13, 2
      $region87: #{seq2seq_decoder_layer.17} parent=5 // pred_fallthru
        _
    $region6: #{seq2seq_decoder_layer.17} parent=1 // loop_footer
      %s17 = sadd.s32 1, %s13
    $region7: #{seq2seq_decoder_layer.17} parent=1 // loop_footer_branch
      %12 = sbr.rel target = $region3
    $region8: #{seq2seq_decoder_layer.17} parent=1 // loop_exit
      _
    %980 = vsyncpa [#allocation5], 1
    %s981 = scalar_lea.sflag [#allocation5], 1
    %982 = vsyncpa %s981, 1

</llo_original>
